<compile_context>
chip_gen: v5e
topology: v5e:2x2
jax: 0.10.0
libtpu: 0.0.40
codegen_flags: <defaults>
</compile_context>

<pallas_src>
import math

import jax
import jax.numpy as jnp
from jax import lax
from jax.experimental import pallas as pl
from jax.experimental.pallas import tpu as pltpu


# ----------------------------------------------------------------------------
# Mamba chunk kernel: one (direction, L-chunk) grid step.
# ----------------------------------------------------------------------------
def _mamba_chunk_kernel(x_ref, win_ref, convw_ref, convb_ref, wxp_ref,
                        wdt_ref, bdt_ref, a_ref, dskip_ref, wout_ref,
                        o_ref,
                        cbuf, delta_s, u_s, z_s, b_s, c_s, y_s, h_s):
    direc = pl.program_id(0)            # 0 = forward, 1 = time-reversed walk
    chunk = pl.program_id(1)
    fwd = direc == 0

    Tc, _ = x_ref.shape
    N, Din = a_ref.shape                # (d_state, d_inner)
    Kc = convw_ref.shape[0]
    dt_rank = wdt_ref.shape[0]
    f32 = jnp.float32
    bf16 = jnp.bfloat16

    # ---- fused in_proj: x @ [W_x | W_z] ------------------------------------
    x = x_ref[...]
    xz = jnp.dot(x.astype(bf16), win_ref[...], preferred_element_type=f32)
    xi = xz[:, :Din]                    # conv branch
    z_s[...] = xz[:, Din:]              # gate branch (used after the scan)

    # ---- chunk-0 init of carried state (per direction) ---------------------
    @pl.when(chunk == 0)
    def _():
        h_s[...] = jnp.zeros_like(h_s)
        pad = jnp.zeros((8, Din), f32)

        @pl.when(fwd)
        def _():
            cbuf[0:8, :] = pad          # left causal zero-pad

        @pl.when(jnp.logical_not(fwd))
        def _():
            cbuf[Tc + 8:Tc + 16, :] = pad   # "past" of the reversed sequence

    # ---- causal depthwise conv (tail carried across chunks) ----------------
    cbuf[8:8 + Tc, :] = xi
    acc = jnp.zeros((Tc, Din), f32)
    for k in range(Kc):                                  # static unroll
        off = Kc - 1 - k
        tap_f = cbuf[8 - off:8 - off + Tc, :]            # looks back in time
        tap_b = cbuf[8 + off:8 + off + Tc, :]            # looks fwd (reversed pass)
        acc = acc + jnp.where(fwd, tap_f, tap_b) * convw_ref[k:k + 1, :]
    acc = acc + convb_ref[...]
    u = acc * jax.nn.sigmoid(acc)                        # SiLU
    u_s[...] = u

    # carry the conv tail for the next chunk of this direction
    @pl.when(fwd)
    def _():
        cbuf[0:8, :] = cbuf[Tc:Tc + 8, :]

    @pl.when(jnp.logical_not(fwd))
    def _():
        cbuf[Tc + 8:Tc + 16, :] = cbuf[8:16, :]

    # ---- fused x_proj (dt | B | C) + dt_proj + softplus ---------------------
    dbc = jnp.dot(u.astype(bf16), wxp_ref[...], preferred_element_type=f32)
    dt_low = dbc[:, :dt_rank]
    b_s[...] = dbc[:, dt_rank:dt_rank + N]
    c_s[...] = dbc[:, dt_rank + N:dt_rank + 2 * N]
    dt = jnp.dot(dt_low.astype(bf16), wdt_ref[...],
                 preferred_element_type=f32) + bdt_ref[...]
    delta_s[...] = jnp.maximum(dt, 0.0) + jnp.log1p(jnp.exp(-jnp.abs(dt)))

    # ---- selective scan: state (N=16 sublanes, Din lanes) -------------------
    row_i = lax.broadcasted_iota(jnp.int32, (N, N), 0)
    col_i = lax.broadcasted_iota(jnp.int32, (N, N), 1)
    eye = (row_i == col_i).astype(f32)                   # (N, N)
    a_nd = a_ref[...]                                    # (N, Din) = A^T (negative)

    def scan_block(jo, h):
        for s in range(8):                               # unrolled sub-steps
            p = jo * 8 + s
            t = jnp.where(fwd, p, Tc - 1 - p)
            drow = delta_s[pl.ds(t, 1), :]               # (1, Din)
            urow = u_s[pl.ds(t, 1), :]                   # (1, Din)
            brow = b_s[pl.ds(t, 1), :]                   # (1, N)
            crow = c_s[pl.ds(t, 1), :]                   # (1, N)
            bcol = jnp.sum(brow * eye, axis=1, keepdims=True)   # (N, 1)
            ccol = jnp.sum(crow * eye, axis=1, keepdims=True)   # (N, 1)
            h = jnp.exp(drow * a_nd) * h + bcol * (drow * urow)  # (N, Din)
            y_s[pl.ds(t, 1), :] = jnp.sum(h * ccol, axis=0, keepdims=True)
        return h

    h_fin = lax.fori_loop(0, Tc // 8, scan_block, h_s[...])
    h_s[...] = h_fin                                     # carry to next chunk

    # ---- skip, gate, out_proj ----------------------------------------------
    z = z_s[...]
    y = y_s[...] + u_s[...] * dskip_ref[...]
    y = y * (z * jax.nn.sigmoid(z))
    o_ref[...] = jnp.dot(y.astype(bf16), wout_ref[...],
                         preferred_element_type=f32)


def _pick_chunk(L):
    for t in (256, 512, 128, 64, 32, 16, 8):
        if L % t == 0:
            return t
    raise ValueError("sequence length must be a multiple of 8")


def mamba_bidir(x_flat, p, Tc):
    """Returns (2, L, C): [forward pass, already-unflipped backward pass]."""
    L, C = x_flat.shape
    nc = L // Tc
    N, Din = p["A_T"].shape

    def xmap(direc, c):
        return (direc * (nc - 1) + (1 - 2 * direc) * c, 0)

    def omap(direc, c):
        return (direc, direc * (nc - 1) + (1 - 2 * direc) * c, 0)

    const2 = lambda direc, c: (0, 0)

    in_specs = [
        pl.BlockSpec((Tc, C), xmap),
        pl.BlockSpec(p["W_in_T"].shape, const2),
        pl.BlockSpec(p["conv_w"].shape, const2),
        pl.BlockSpec(p["conv_b"].shape, const2),
        pl.BlockSpec(p["W_xp_T"].shape, const2),
        pl.BlockSpec(p["W_dt_T"].shape, const2),
        pl.BlockSpec(p["b_dt"].shape, const2),
        pl.BlockSpec(p["A_T"].shape, const2),
        pl.BlockSpec(p["D"].shape, const2),
        pl.BlockSpec(p["W_out_T"].shape, const2),
    ]
    scratch = [
        pltpu.VMEM((Tc + 16, Din), jnp.float32),   # conv buffer (+carried tails)
        pltpu.VMEM((Tc, Din), jnp.float32),        # delta
        pltpu.VMEM((Tc, Din), jnp.float32),        # u (post conv + SiLU)
        pltpu.VMEM((Tc, Din), jnp.float32),        # z (gate input)
        pltpu.VMEM((Tc, N), jnp.float32),          # B
        pltpu.VMEM((Tc, N), jnp.float32),          # C
        pltpu.VMEM((Tc, Din), jnp.float32),        # y (scan output)
        pltpu.VMEM((N, Din), jnp.float32),         # carried SSM state h
    ]
    return pl.pallas_call(
        _mamba_chunk_kernel,
        out_shape=jax.ShapeDtypeStruct((2, L, C), jnp.float32),
        grid=(2, nc),
        in_specs=in_specs,
        out_specs=pl.BlockSpec((None, Tc, C), omap),
        scratch_shapes=scratch,
        compiler_params=pltpu.CompilerParams(
            dimension_semantics=("parallel", "arbitrary")),
    )(x_flat, p["W_in_T"], p["conv_w"], p["conv_b"], p["W_xp_T"],
      p["W_dt_T"], p["b_dt"], p["A_T"], p["D"], p["W_out_T"])


# ----------------------------------------------------------------------------
# GroupNorm + SiLU + residual kernel: one batch element per grid step.
# TODO(synk): tile over HW (two-pass stats) for very large images; per-batch
#             blocks are fine at these sizes and stay well under scoped VMEM.
# ----------------------------------------------------------------------------
def proj_kernel(y_ref, res_ref, gamma_ref, beta_ref, m_ref, mt_ref, o_ref):
    y = y_ref[...]                                       # (HW, C)
    HW, C = y.shape
    G = m_ref.shape[1]
    inv_n = 1.0 / float(HW * (C // G))

    s = jnp.sum(y, axis=0, keepdims=True)                # (1, C)
    ss = jnp.sum(y * y, axis=0, keepdims=True)
    mean_g = jnp.dot(s, m_ref[...], preferred_element_type=jnp.float32) * inv_n
    ex2_g = jnp.dot(ss, m_ref[...], preferred_element_type=jnp.float32) * inv_n
    var_g = jnp.maximum(ex2_g - mean_g * mean_g, 0.0)
    mean_c = jnp.dot(mean_g, mt_ref[...], preferred_element_type=jnp.float32)
    var_c = jnp.dot(var_g, mt_ref[...], preferred_element_type=jnp.float32)
    inv_std = lax.rsqrt(var_c + 1e-5)

    v = (y - mean_c) * inv_std * gamma_ref[...] + beta_ref[...]
    v = v * jax.nn.sigmoid(v)                            # SiLU
    o_ref[...] = v + res_ref[...]                        # residual add


def proj_residual(y, res, p):
    B, HW, C = y.shape
    G = p["M"].shape[1]
    return pl.pallas_call(
        proj_kernel,
        out_shape=jax.ShapeDtypeStruct((B, HW, C), jnp.float32),
        grid=(B,),
        in_specs=[
            pl.BlockSpec((None, HW, C), lambda b: (b, 0, 0)),
            pl.BlockSpec((None, HW, C), lambda b: (b, 0, 0)),
            pl.BlockSpec((1, C), lambda b: (0, 0)),
            pl.BlockSpec((1, C), lambda b: (0, 0)),
            pl.BlockSpec((C, G), lambda b: (0, 0)),
            pl.BlockSpec((G, C), lambda b: (0, 0)),
        ],
        out_specs=pl.BlockSpec((None, HW, C), lambda b: (b, 0, 0)),
        compiler_params=pltpu.CompilerParams(dimension_semantics=("parallel",)),
    )(y, res, p["gamma"], p["beta"], p["M"], p["MT"])


# ----------------------------------------------------------------------------
# BidirMamba forward (matches the PyTorch module semantics, NCHW in / out).
# ----------------------------------------------------------------------------
@jax.jit
def bidir_mamba_forward(x_nchw, params):
    B, C, H, W = x_nchw.shape
    L = B * H * W
    assert L % 8 == 0
    x_nhwc = jnp.transpose(x_nchw, (0, 2, 3, 1))         # NCHW -> NHWC
    x_flat = x_nhwc.reshape(L, C)                        # (1, L, C) with batch folded

    Tc = _pick_chunk(L)
    y2 = mamba_bidir(x_flat, params, Tc)                 # fwd and (unflipped) bwd
    y = (y2[0] + y2[1]).reshape(B, H * W, C)             # mamba(x) + flip(mamba(flip(x)))

    res = x_nhwc.reshape(B, H * W, C)
    out = proj_residual(y, res, params)                  # GroupNorm + SiLU + residual
    return jnp.transpose(out.reshape(B, H, W, C), (0, 3, 1, 2))


# ----------------------------------------------------------------------------
# Deterministic parameter init (shapes per Mamba(d_model=C, 16, 4, 2)).
# ----------------------------------------------------------------------------
def init_params(key, channels, d_state=16, d_conv=4, expand=2, group_num=4):
    C = channels
    Din = expand * C
    dt_rank = math.ceil(C / 16)
    ks = jax.random.split(key, 8)

    def nrm(k, shape, scale):
        return scale * jax.random.normal(k, shape, jnp.float32)

    W_in = nrm(ks[0], (2 * Din, C), 0.2)                 # in_proj.weight (no bias)
    conv_w = nrm(ks[1], (Din, d_conv), 0.3)              # conv1d.weight (Din,1,K) squeezed
    conv_b = nrm(ks[2], (Din,), 0.1)                     # conv1d.bias
    W_xp = nrm(ks[3], (dt_rank + 2 * d_state, Din), 0.2)  # x_proj.weight (no bias)
    W_dt = nrm(ks[4], (Din, dt_rank), 0.5)               # dt_proj.weight
    b_dt = nrm(ks[5], (Din,), 0.1)                       # dt_proj.bias
    A_log = jnp.log(jnp.broadcast_to(
        jnp.arange(1, d_state + 1, dtype=jnp.float32), (Din, d_state)))
    Dp = jnp.ones((Din,), jnp.float32)
    W_out = nrm(ks[6], (C, Din), 0.2)                    # out_proj.weight (no bias)
    gamma = jnp.ones((C,), jnp.float32)                  # GroupNorm affine defaults
    beta = jnp.zeros((C,), jnp.float32)

    gs = C // group_num
    M = (jnp.arange(C)[:, None] // gs ==
         jnp.arange(group_num)[None, :]).astype(jnp.float32)

    bf16 = jnp.bfloat16
    return {
        "W_in_T": W_in.T.astype(bf16),                   # (C, 2*Din): [x-half | z-half]
        "conv_w": conv_w.T,                              # (Kc, Din), f32
        "conv_b": conv_b[None, :],                       # (1, Din)
        "W_xp_T": W_xp.T.astype(bf16),                   # (Din, dt_rank+2N): [dt | B | C]
        "W_dt_T": W_dt.T.astype(bf16),                   # (dt_rank, Din)
        "b_dt": b_dt[None, :],                           # (1, Din)
        "A_T": (-jnp.exp(A_log)).T,                      # (N, Din), f32
        "D": Dp[None, :],                                # (1, Din)
        "W_out_T": W_out.T.astype(bf16),                 # (Din, C)
        "gamma": gamma[None, :], "beta": beta[None, :],
        "M": M, "MT": M.T,
    }


if __name__ == "__main__":
    B, C, H, W = 2, 4, 16, 16
    key = jax.random.PRNGKey(0)
    kx, kp = jax.random.split(key)
    x = jax.random.normal(kx, (B, C, H, W), jnp.float32)
    params = init_params(kp, channels=C, group_num=4)

    out = bidir_mamba_forward(x, params)
    out = jax.block_until_ready(out)

    assert out.shape == (B, C, H, W), out.shape
    assert bool(jnp.all(jnp.isfinite(out)))
    print("KERNEL_OK")
</pallas_src>

<mosaic_0001>
module attributes {stable_mosaic.version = 11 : i64} {
  func.func @_mamba_chunk_kernel(%arg0: i32, %arg1: i32, %arg2: memref<256x4xf32, #tpu.memory_space<vmem>>, %arg3: memref<4x16xbf16, #tpu.memory_space<vmem>>, %arg4: memref<4x8xf32, #tpu.memory_space<vmem>>, %arg5: memref<1x8xf32, #tpu.memory_space<vmem>>, %arg6: memref<8x33xbf16, #tpu.memory_space<vmem>>, %arg7: memref<1x8xbf16, #tpu.memory_space<vmem>>, %arg8: memref<1x8xf32, #tpu.memory_space<vmem>>, %arg9: memref<16x8xf32, #tpu.memory_space<vmem>>, %arg10: memref<1x8xf32, #tpu.memory_space<vmem>>, %arg11: memref<8x4xbf16, #tpu.memory_space<vmem>>, %arg12: memref<1x256x4xf32, #tpu.memory_space<vmem>>, %arg13: memref<272x8xf32, #tpu.memory_space<vmem>>, %arg14: memref<256x8xf32, #tpu.memory_space<vmem>>, %arg15: memref<256x8xf32, #tpu.memory_space<vmem>>, %arg16: memref<256x8xf32, #tpu.memory_space<vmem>>, %arg17: memref<256x16xf32, #tpu.memory_space<vmem>>, %arg18: memref<256x16xf32, #tpu.memory_space<vmem>>, %arg19: memref<256x8xf32, #tpu.memory_space<vmem>>, %arg20: memref<16x8xf32, #tpu.memory_space<vmem>>) attributes {dimension_semantics = [#tpu.dimension_semantics<parallel>, #tpu.dimension_semantics<arbitrary>], iteration_bounds = array<i64: 2, 2>, scalar_prefetch = 0 : i64, scratch_operands = 8 : i64, tpu.core_type = #tpu.core_type<tc>, window_params = [{transform_indices = @transform_0, window_bounds = array<i64: 256, 4>}, {pipeline_mode = #tpu.pipeline_mode<synchronous>, transform_indices = @transform_1, window_bounds = array<i64: 4, 16>}, {pipeline_mode = #tpu.pipeline_mode<synchronous>, transform_indices = @transform_2, window_bounds = array<i64: 4, 8>}, {pipeline_mode = #tpu.pipeline_mode<synchronous>, transform_indices = @transform_3, window_bounds = array<i64: 1, 8>}, {pipeline_mode = #tpu.pipeline_mode<synchronous>, transform_indices = @transform_4, window_bounds = array<i64: 8, 33>}, {pipeline_mode = #tpu.pipeline_mode<synchronous>, transform_indices = @transform_5, window_bounds = array<i64: 1, 8>}, {pipeline_mode = #tpu.pipeline_mode<synchronous>, transform_indices = @transform_6, window_bounds = array<i64: 1, 8>}, {pipeline_mode = #tpu.pipeline_mode<synchronous>, transform_indices = @transform_7, window_bounds = array<i64: 16, 8>}, {pipeline_mode = #tpu.pipeline_mode<synchronous>, transform_indices = @transform_8, window_bounds = array<i64: 1, 8>}, {pipeline_mode = #tpu.pipeline_mode<synchronous>, transform_indices = @transform_9, window_bounds = array<i64: 8, 4>}, {transform_indices = @transform_10, window_bounds = array<i64: 1, 256, 4>}]} {
    %c0_i32 = arith.constant 0 : i32
    %0 = arith.cmpi eq, %arg0, %c0_i32 : i32
    %c0 = arith.constant 0 : index
    %c0_0 = arith.constant 0 : index
    %1 = vector.load %arg2[%c0, %c0_0] : memref<256x4xf32, #tpu.memory_space<vmem>>, vector<256x4xf32>
    %2 = arith.truncf %1 : vector<256x4xf32> to vector<256x4xbf16>
    %c0_1 = arith.constant 0 : index
    %c0_2 = arith.constant 0 : index
    %3 = vector.load %arg3[%c0_1, %c0_2] : memref<4x16xbf16, #tpu.memory_space<vmem>>, vector<4x16xbf16>
    %cst = arith.constant dense<0.000000e+00> : vector<256x16xf32>
    %4 = tpu.matmul %2, %3, %cst {dimension_numbers = #tpu.dot_dimension_numbers<[1], [0], [0], [1], [0, 0, 1, 1], [], []>} : vector<256x4xbf16>, vector<4x16xbf16>, vector<256x16xf32> -> vector<256x16xf32>
    %5 = vector.extract_strided_slice %4 {offsets = [0, 0], sizes = [256, 8], strides = [1, 1]} : vector<256x16xf32> to vector<256x8xf32>
    %6 = vector.extract_strided_slice %4 {offsets = [0, 8], sizes = [256, 8], strides = [1, 1]} : vector<256x16xf32> to vector<256x8xf32>
    %c0_3 = arith.constant 0 : index
    %c0_4 = arith.constant 0 : index
    %7 = vector.load %arg16[%c0_3, %c0_4] : memref<256x8xf32, #tpu.memory_space<vmem>>, vector<256x8xf32>
    tpu.vector_store %arg16[%c0_3, %c0_4], %6 {strides = array<i32>} : memref<256x8xf32, #tpu.memory_space<vmem>>, vector<256x8xf32>,
    %c0_i32_5 = arith.constant 0 : i32
    %8 = arith.cmpi eq, %arg1, %c0_i32_5 : i32
    %9 = arith.extui %8 : i1 to i32
    %c0_i32_6 = arith.constant 0 : i32
    %10 = arith.cmpi ne, %9, %c0_i32_6 : i32
    scf.if %10 {
      %cst_70 = arith.constant 0.000000e+00 : f32
      %109 = vector.broadcast %cst_70 : f32 to vector<16x8xf32>
      %c0_71 = arith.constant 0 : index
      %c0_72 = arith.constant 0 : index
      %110 = vector.load %arg20[%c0_71, %c0_72] : memref<16x8xf32, #tpu.memory_space<vmem>>, vector<16x8xf32>
      tpu.vector_store %arg20[%c0_71, %c0_72], %109 {strides = array<i32>} : memref<16x8xf32, #tpu.memory_space<vmem>>, vector<16x8xf32>,
      %cst_73 = arith.constant 0.000000e+00 : f32
      %111 = vector.broadcast %cst_73 : f32 to vector<8x8xf32>
      %112 = arith.extui %0 : i1 to i32
      %c0_i32_74 = arith.constant 0 : i32
      %113 = arith.cmpi ne, %112, %c0_i32_74 : i32
      scf.if %113 {
        %c0_77 = arith.constant 0 : index
        %c0_78 = arith.constant 0 : index
        %117 = vector.load %arg13[%c0_77, %c0_78] : memref<272x8xf32, #tpu.memory_space<vmem>>, vector<8x8xf32>
        tpu.vector_store %arg13[%c0_77, %c0_78], %111 {strides = array<i32>} : memref<272x8xf32, #tpu.memory_space<vmem>>, vector<8x8xf32>,
      } else {
      }
      %true_75 = arith.constant true
      %114 = arith.xori %0, %true_75 : i1
      %115 = arith.extui %114 : i1 to i32
      %c0_i32_76 = arith.constant 0 : i32
      %116 = arith.cmpi ne, %115, %c0_i32_76 : i32
      scf.if %116 {
        %c264 = arith.constant 264 : index
        %c0_77 = arith.constant 0 : index
        %117 = vector.load %arg13[%c264, %c0_77] : memref<272x8xf32, #tpu.memory_space<vmem>>, vector<8x8xf32>
        tpu.vector_store %arg13[%c264, %c0_77], %111 {strides = array<i32>} : memref<272x8xf32, #tpu.memory_space<vmem>>, vector<8x8xf32>,
      } else {
      }
    } else {
    }
    %c8 = arith.constant 8 : index
    %c0_7 = arith.constant 0 : index
    %11 = vector.load %arg13[%c8, %c0_7] : memref<272x8xf32, #tpu.memory_space<vmem>>, vector<256x8xf32>
    tpu.vector_store %arg13[%c8, %c0_7], %5 {strides = array<i32>} : memref<272x8xf32, #tpu.memory_space<vmem>>, vector<256x8xf32>,
    %cst_8 = arith.constant 0.000000e+00 : f32
    %12 = vector.broadcast %cst_8 : f32 to vector<256x8xf32>
    %c5 = arith.constant 5 : index
    %c0_9 = arith.constant 0 : index
    %13 = vector.load %arg13[%c5, %c0_9] : memref<272x8xf32, #tpu.memory_space<vmem>>, vector<256x8xf32>
    %c11 = arith.constant 11 : index
    %c0_10 = arith.constant 0 : index
    %14 = vector.load %arg13[%c11, %c0_10] : memref<272x8xf32, #tpu.memory_space<vmem>>, vector<256x8xf32>
    %15 = arith.select %0, %13, %14 : vector<256x8xf32>
    %c0_11 = arith.constant 0 : index
    %c0_12 = arith.constant 0 : index
    %16 = vector.load %arg4[%c0_11, %c0_12] : memref<4x8xf32, #tpu.memory_space<vmem>>, vector<1x8xf32>
    %17 = vector.broadcast %16 : vector<1x8xf32> to vector<256x8xf32>
    %18 = arith.mulf %15, %17 : vector<256x8xf32>
    %19 = arith.addf %12, %18 : vector<256x8xf32>
    %c6 = arith.constant 6 : index
    %c0_13 = arith.constant 0 : index
    %20 = vector.load %arg13[%c6, %c0_13] : memref<272x8xf32, #tpu.memory_space<vmem>>, vector<256x8xf32>
    %c10 = arith.constant 10 : index
    %c0_14 = arith.constant 0 : index
    %21 = vector.load %arg13[%c10, %c0_14] : memref<272x8xf32, #tpu.memory_space<vmem>>, vector<256x8xf32>
    %22 = arith.select %0, %20, %21 : vector<256x8xf32>
    %c1 = arith.constant 1 : index
    %c0_15 = arith.constant 0 : index
    %23 = vector.load %arg4[%c1, %c0_15] : memref<4x8xf32, #tpu.memory_space<vmem>>, vector<1x8xf32>
    %24 = vector.broadcast %23 : vector<1x8xf32> to vector<256x8xf32>
    %25 = arith.mulf %22, %24 : vector<256x8xf32>
    %26 = arith.addf %19, %25 : vector<256x8xf32>
    %c7 = arith.constant 7 : index
    %c0_16 = arith.constant 0 : index
    %27 = vector.load %arg13[%c7, %c0_16] : memref<272x8xf32, #tpu.memory_space<vmem>>, vector<256x8xf32>
    %c9 = arith.constant 9 : index
    %c0_17 = arith.constant 0 : index
    %28 = vector.load %arg13[%c9, %c0_17] : memref<272x8xf32, #tpu.memory_space<vmem>>, vector<256x8xf32>
    %29 = arith.select %0, %27, %28 : vector<256x8xf32>
    %c2 = arith.constant 2 : index
    %c0_18 = arith.constant 0 : index
    %30 = vector.load %arg4[%c2, %c0_18] : memref<4x8xf32, #tpu.memory_space<vmem>>, vector<1x8xf32>
    %31 = vector.broadcast %30 : vector<1x8xf32> to vector<256x8xf32>
    %32 = arith.mulf %29, %31 : vector<256x8xf32>
    %33 = arith.addf %26, %32 : vector<256x8xf32>
    %c8_19 = arith.constant 8 : index
    %c0_20 = arith.constant 0 : index
    %34 = vector.load %arg13[%c8_19, %c0_20] : memref<272x8xf32, #tpu.memory_space<vmem>>, vector<256x8xf32>
    %c8_21 = arith.constant 8 : index
    %c0_22 = arith.constant 0 : index
    %35 = vector.load %arg13[%c8_21, %c0_22] : memref<272x8xf32, #tpu.memory_space<vmem>>, vector<256x8xf32>
    %36 = arith.select %0, %34, %35 : vector<256x8xf32>
    %c3 = arith.constant 3 : index
    %c0_23 = arith.constant 0 : index
    %37 = vector.load %arg4[%c3, %c0_23] : memref<4x8xf32, #tpu.memory_space<vmem>>, vector<1x8xf32>
    %38 = vector.broadcast %37 : vector<1x8xf32> to vector<256x8xf32>
    %39 = arith.mulf %36, %38 : vector<256x8xf32>
    %40 = arith.addf %33, %39 : vector<256x8xf32>
    %c0_24 = arith.constant 0 : index
    %c0_25 = arith.constant 0 : index
    %41 = vector.load %arg5[%c0_24, %c0_25] : memref<1x8xf32, #tpu.memory_space<vmem>>, vector<1x8xf32>
    %42 = vector.broadcast %41 : vector<1x8xf32> to vector<256x8xf32>
    %43 = arith.addf %40, %42 : vector<256x8xf32>
    %44 = arith.negf %43 : vector<256x8xf32>
    %45 = math.exp %44 : vector<256x8xf32>
    %cst_26 = arith.constant 1.000000e+00 : f32
    %46 = vector.broadcast %cst_26 : f32 to vector<256x8xf32>
    %47 = arith.addf %46, %45 : vector<256x8xf32>
    %48 = arith.divf %46, %47 : vector<256x8xf32>
    %49 = arith.mulf %43, %48 : vector<256x8xf32>
    %c0_27 = arith.constant 0 : index
    %c0_28 = arith.constant 0 : index
    %50 = vector.load %arg15[%c0_27, %c0_28] : memref<256x8xf32, #tpu.memory_space<vmem>>, vector<256x8xf32>
    tpu.vector_store %arg15[%c0_27, %c0_28], %49 {strides = array<i32>} : memref<256x8xf32, #tpu.memory_space<vmem>>, vector<256x8xf32>,
    %51 = arith.extui %0 : i1 to i32
    %c0_i32_29 = arith.constant 0 : i32
    %52 = arith.cmpi ne, %51, %c0_i32_29 : i32
    scf.if %52 {
      %c256 = arith.constant 256 : index
      %c0_70 = arith.constant 0 : index
      %109 = vector.load %arg13[%c256, %c0_70] : memref<272x8xf32, #tpu.memory_space<vmem>>, vector<8x8xf32>
      %c0_71 = arith.constant 0 : index
      %c0_72 = arith.constant 0 : index
      %110 = vector.load %arg13[%c0_71, %c0_72] : memref<272x8xf32, #tpu.memory_space<vmem>>, vector<8x8xf32>
      tpu.vector_store %arg13[%c0_71, %c0_72], %109 {strides = array<i32>} : memref<272x8xf32, #tpu.memory_space<vmem>>, vector<8x8xf32>,
    } else {
    }
    %true = arith.constant true
    %53 = arith.xori %0, %true : i1
    %54 = arith.extui %53 : i1 to i32
    %c0_i32_30 = arith.constant 0 : i32
    %55 = arith.cmpi ne, %54, %c0_i32_30 : i32
    scf.if %55 {
      %c8_70 = arith.constant 8 : index
      %c0_71 = arith.constant 0 : index
      %109 = vector.load %arg13[%c8_70, %c0_71] : memref<272x8xf32, #tpu.memory_space<vmem>>, vector<8x8xf32>
      %c264 = arith.constant 264 : index
      %c0_72 = arith.constant 0 : index
      %110 = vector.load %arg13[%c264, %c0_72] : memref<272x8xf32, #tpu.memory_space<vmem>>, vector<8x8xf32>
      tpu.vector_store %arg13[%c264, %c0_72], %109 {strides = array<i32>} : memref<272x8xf32, #tpu.memory_space<vmem>>, vector<8x8xf32>,
    } else {
    }
    %56 = arith.truncf %49 : vector<256x8xf32> to vector<256x8xbf16>
    %c0_31 = arith.constant 0 : index
    %c0_32 = arith.constant 0 : index
    %57 = vector.load %arg6[%c0_31, %c0_32] : memref<8x33xbf16, #tpu.memory_space<vmem>>, vector<8x33xbf16>
    %cst_33 = arith.constant dense<0.000000e+00> : vector<256x33xf32>
    %58 = tpu.matmul %56, %57, %cst_33 {dimension_numbers = #tpu.dot_dimension_numbers<[1], [0], [0], [1], [0, 0, 1, 1], [], []>} : vector<256x8xbf16>, vector<8x33xbf16>, vector<256x33xf32> -> vector<256x33xf32>
    %59 = vector.extract_strided_slice %58 {offsets = [0, 0], sizes = [256, 1], strides = [1, 1]} : vector<256x33xf32> to vector<256x1xf32>
    %60 = vector.extract_strided_slice %58 {offsets = [0, 1], sizes = [256, 16], strides = [1, 1]} : vector<256x33xf32> to vector<256x16xf32>
    %c0_34 = arith.constant 0 : index
    %c0_35 = arith.constant 0 : index
    %61 = vector.load %arg17[%c0_34, %c0_35] : memref<256x16xf32, #tpu.memory_space<vmem>>, vector<256x16xf32>
    tpu.vector_store %arg17[%c0_34, %c0_35], %60 {strides = array<i32>} : memref<256x16xf32, #tpu.memory_space<vmem>>, vector<256x16xf32>,
    %62 = vector.extract_strided_slice %58 {offsets = [0, 17], sizes = [256, 16], strides = [1, 1]} : vector<256x33xf32> to vector<256x16xf32>
    %c0_36 = arith.constant 0 : index
    %c0_37 = arith.constant 0 : index
    %63 = vector.load %arg18[%c0_36, %c0_37] : memref<256x16xf32, #tpu.memory_space<vmem>>, vector<256x16xf32>
    tpu.vector_store %arg18[%c0_36, %c0_37], %62 {strides = array<i32>} : memref<256x16xf32, #tpu.memory_space<vmem>>, vector<256x16xf32>,
    %64 = arith.truncf %59 : vector<256x1xf32> to vector<256x1xbf16>
    %c0_38 = arith.constant 0 : index
    %c0_39 = arith.constant 0 : index
    %65 = vector.load %arg7[%c0_38, %c0_39] : memref<1x8xbf16, #tpu.memory_space<vmem>>, vector<1x8xbf16>
    %cst_40 = arith.constant dense<0.000000e+00> : vector<256x8xf32>
    %66 = tpu.matmul %64, %65, %cst_40 {dimension_numbers = #tpu.dot_dimension_numbers<[1], [0], [0], [1], [0, 0, 1, 1], [], []>} : vector<256x1xbf16>, vector<1x8xbf16>, vector<256x8xf32> -> vector<256x8xf32>
    %c0_41 = arith.constant 0 : index
    %c0_42 = arith.constant 0 : index
    %67 = vector.load %arg8[%c0_41, %c0_42] : memref<1x8xf32, #tpu.memory_space<vmem>>, vector<1x8xf32>
    %68 = vector.broadcast %67 : vector<1x8xf32> to vector<256x8xf32>
    %69 = arith.addf %66, %68 : vector<256x8xf32>
    %cst_43 = arith.constant 0.000000e+00 : f32
    %70 = vector.broadcast %cst_43 : f32 to vector<256x8xf32>
    %71 = arith.maximumf %69, %70 : vector<256x8xf32>
    %72 = math.absf %69 : vector<256x8xf32>
    %cst_44 = arith.constant 0.000000e+00 : f32
    %73 = vector.broadcast %cst_44 : f32 to vector<256x8xf32>
    %74 = arith.subf %73, %72 : vector<256x8xf32>
    %75 = math.exp %74 : vector<256x8xf32>
    %76 = math.log1p %75 : vector<256x8xf32>
    %77 = arith.addf %71, %76 : vector<256x8xf32>
    %c0_45 = arith.constant 0 : index
    %c0_46 = arith.constant 0 : index
    %78 = vector.load %arg14[%c0_45, %c0_46] : memref<256x8xf32, #tpu.memory_space<vmem>>, vector<256x8xf32>
    tpu.vector_store %arg14[%c0_45, %c0_46], %77 {strides = array<i32>} : memref<256x8xf32, #tpu.memory_space<vmem>>, vector<256x8xf32>,
    %79 = tpu.iota {dimensions = array<i32: 0>} : vector<16x16xi32>
    %80 = tpu.iota {dimensions = array<i32: 1>} : vector<16x16xi32>
    %81 = arith.cmpi eq, %79, %80 : vector<16x16xi32>
    %82 = arith.extui %81 : vector<16x16xi1> to vector<16x16xi32>
    %83 = arith.sitofp %82 : vector<16x16xi32> to vector<16x16xf32>
    %c0_47 = arith.constant 0 : index
    %c0_48 = arith.constant 0 : index
    %84 = vector.load %arg9[%c0_47, %c0_48] : memref<16x8xf32, #tpu.memory_space<vmem>>, vector<16x8xf32>
    %c0_49 = arith.constant 0 : index
    %c0_50 = arith.constant 0 : index
    %85 = vector.load %arg20[%c0_49, %c0_50] : memref<16x8xf32, #tpu.memory_space<vmem>>, vector<16x8xf32>
    %c0_i32_51 = arith.constant 0 : i32
    %c32_i32 = arith.constant 32 : i32
    %86 = arith.addi %c0_i32_51, %c32_i32 : i32
    %c1_i32 = arith.constant 1 : i32
    %87 = scf.for %arg21 = %c0_i32_51 to %86 step %c1_i32 iter_args(%arg22 = %85) -> (vector<16x8xf32>)  : i32 {
      %c8_i32 = arith.constant 8 : i32
      %109 = arith.muli %arg21, %c8_i32 : i32
      %c0_i32_70 = arith.constant 0 : i32
      %110 = arith.addi %109, %c0_i32_70 : i32
      %c255_i32 = arith.constant 255 : i32
      %111 = arith.subi %c255_i32, %110 : i32
      %112 = arith.select %0, %110, %111 : i32
      %113 = arith.index_cast %112 : i32 to index
      %c0_71 = arith.constant 0 : index
      %114 = vector.load %arg14[%113, %c0_71] : memref<256x8xf32, #tpu.memory_space<vmem>>, vector<1x8xf32>
      %115 = arith.index_cast %112 : i32 to index
      %c0_72 = arith.constant 0 : index
      %116 = vector.load %arg15[%115, %c0_72] : memref<256x8xf32, #tpu.memory_space<vmem>>, vector<1x8xf32>
      %117 = arith.index_cast %112 : i32 to index
      %c0_73 = arith.constant 0 : index
      %118 = vector.load %arg17[%117, %c0_73] : memref<256x16xf32, #tpu.memory_space<vmem>>, vector<1x16xf32>
      %119 = arith.index_cast %112 : i32 to index
      %c0_74 = arith.constant 0 : index
      %120 = vector.load %arg18[%119, %c0_74] : memref<256x16xf32, #tpu.memory_space<vmem>>, vector<1x16xf32>
      %121 = vector.broadcast %118 : vector<1x16xf32> to vector<16x16xf32>
      %122 = arith.mulf %121, %83 : vector<16x16xf32>
      %cst_75 = arith.constant dense<0.000000e+00> : vector<16xf32>
      %123 = vector.multi_reduction <add>, %122, %cst_75 [1] : vector<16x16xf32> to vector<16xf32>
      %124 = vector.shape_cast %123 : vector<16xf32> to vector<16x1xf32>
      %125 = vector.broadcast %120 : vector<1x16xf32> to vector<16x16xf32>
      %126 = arith.mulf %125, %83 : vector<16x16xf32>
      %cst_76 = arith.constant dense<0.000000e+00> : vector<16xf32>
      %127 = vector.multi_reduction <add>, %126, %cst_76 [1] : vector<16x16xf32> to vector<16xf32>
      %128 = vector.shape_cast %127 : vector<16xf32> to vector<16x1xf32>
      %129 = vector.broadcast %114 : vector<1x8xf32> to vector<16x8xf32>
      %130 = arith.mulf %129, %84 : vector<16x8xf32>
      %131 = math.exp %130 : vector<16x8xf32>
      %132 = arith.mulf %131, %arg22 : vector<16x8xf32>
      %133 = arith.mulf %114, %116 : vector<1x8xf32>
      %134 = vector.broadcast %124 : vector<16x1xf32> to vector<16x8xf32>
      %135 = vector.broadcast %133 : vector<1x8xf32> to vector<16x8xf32>
      %136 = arith.mulf %134, %135 : vector<16x8xf32>
      %137 = arith.addf %132, %136 : vector<16x8xf32>
      %138 = vector.broadcast %128 : vector<16x1xf32> to vector<16x8xf32>
      %139 = arith.mulf %137, %138 : vector<16x8xf32>
      %cst_77 = arith.constant dense<0.000000e+00> : vector<8xf32>
      %140 = vector.multi_reduction <add>, %139, %cst_77 [0] : vector<16x8xf32> to vector<8xf32>
      %141 = vector.shape_cast %140 : vector<8xf32> to vector<1x8xf32>
      %142 = arith.index_cast %112 : i32 to index
      %c0_78 = arith.constant 0 : index
      %143 = vector.load %arg19[%142, %c0_78] : memref<256x8xf32, #tpu.memory_space<vmem>>, vector<1x8xf32>
      tpu.vector_store %arg19[%142, %c0_78], %141 {strides = array<i32>} : memref<256x8xf32, #tpu.memory_space<vmem>>, vector<1x8xf32>,
      %c8_i32_79 = arith.constant 8 : i32
      %144 = arith.muli %arg21, %c8_i32_79 : i32
      %c1_i32_80 = arith.constant 1 : i32
      %145 = arith.addi %144, %c1_i32_80 : i32
      %c255_i32_81 = arith.constant 255 : i32
      %146 = arith.subi %c255_i32_81, %145 : i32
      %147 = arith.select %0, %145, %146 : i32
      %148 = arith.index_cast %147 : i32 to index
      %c0_82 = arith.constant 0 : index
      %149 = vector.load %arg14[%148, %c0_82] : memref<256x8xf32, #tpu.memory_space<vmem>>, vector<1x8xf32>
      %150 = arith.index_cast %147 : i32 to index
      %c0_83 = arith.constant 0 : index
      %151 = vector.load %arg15[%150, %c0_83] : memref<256x8xf32, #tpu.memory_space<vmem>>, vector<1x8xf32>
      %152 = arith.index_cast %147 : i32 to index
      %c0_84 = arith.constant 0 : index
      %153 = vector.load %arg17[%152, %c0_84] : memref<256x16xf32, #tpu.memory_space<vmem>>, vector<1x16xf32>
      %154 = arith.index_cast %147 : i32 to index
      %c0_85 = arith.constant 0 : index
      %155 = vector.load %arg18[%154, %c0_85] : memref<256x16xf32, #tpu.memory_space<vmem>>, vector<1x16xf32>
      %156 = vector.broadcast %153 : vector<1x16xf32> to vector<16x16xf32>
      %157 = arith.mulf %156, %83 : vector<16x16xf32>
      %cst_86 = arith.constant dense<0.000000e+00> : vector<16xf32>
      %158 = vector.multi_reduction <add>, %157, %cst_86 [1] : vector<16x16xf32> to vector<16xf32>
      %159 = vector.shape_cast %158 : vector<16xf32> to vector<16x1xf32>
      %160 = vector.broadcast %155 : vector<1x16xf32> to vector<16x16xf32>
      %161 = arith.mulf %160, %83 : vector<16x16xf32>
      %cst_87 = arith.constant dense<0.000000e+00> : vector<16xf32>
      %162 = vector.multi_reduction <add>, %161, %cst_87 [1] : vector<16x16xf32> to vector<16xf32>
      %163 = vector.shape_cast %162 : vector<16xf32> to vector<16x1xf32>
      %164 = vector.broadcast %149 : vector<1x8xf32> to vector<16x8xf32>
      %165 = arith.mulf %164, %84 : vector<16x8xf32>
      %166 = math.exp %165 : vector<16x8xf32>
      %167 = arith.mulf %166, %137 : vector<16x8xf32>
      %168 = arith.mulf %149, %151 : vector<1x8xf32>
      %169 = vector.broadcast %159 : vector<16x1xf32> to vector<16x8xf32>
      %170 = vector.broadcast %168 : vector<1x8xf32> to vector<16x8xf32>
      %171 = arith.mulf %169, %170 : vector<16x8xf32>
      %172 = arith.addf %167, %171 : vector<16x8xf32>
      %173 = vector.broadcast %163 : vector<16x1xf32> to vector<16x8xf32>
      %174 = arith.mulf %172, %173 : vector<16x8xf32>
      %cst_88 = arith.constant dense<0.000000e+00> : vector<8xf32>
      %175 = vector.multi_reduction <add>, %174, %cst_88 [0] : vector<16x8xf32> to vector<8xf32>
      %176 = vector.shape_cast %175 : vector<8xf32> to vector<1x8xf32>
      %177 = arith.index_cast %147 : i32 to index
      %c0_89 = arith.constant 0 : index
      %178 = vector.load %arg19[%177, %c0_89] : memref<256x8xf32, #tpu.memory_space<vmem>>, vector<1x8xf32>
      tpu.vector_store %arg19[%177, %c0_89], %176 {strides = array<i32>} : memref<256x8xf32, #tpu.memory_space<vmem>>, vector<1x8xf32>,
      %c8_i32_90 = arith.constant 8 : i32
      %179 = arith.muli %arg21, %c8_i32_90 : i32
      %c2_i32 = arith.constant 2 : i32
      %180 = arith.addi %179, %c2_i32 : i32
      %c255_i32_91 = arith.constant 255 : i32
      %181 = arith.subi %c255_i32_91, %180 : i32
      %182 = arith.select %0, %180, %181 : i32
      %183 = arith.index_cast %182 : i32 to index
      %c0_92 = arith.constant 0 : index
      %184 = vector.load %arg14[%183, %c0_92] : memref<256x8xf32, #tpu.memory_space<vmem>>, vector<1x8xf32>
      %185 = arith.index_cast %182 : i32 to index
      %c0_93 = arith.constant 0 : index
      %186 = vector.load %arg15[%185, %c0_93] : memref<256x8xf32, #tpu.memory_space<vmem>>, vector<1x8xf32>
      %187 = arith.index_cast %182 : i32 to index
      %c0_94 = arith.constant 0 : index
      %188 = vector.load %arg17[%187, %c0_94] : memref<256x16xf32, #tpu.memory_space<vmem>>, vector<1x16xf32>
      %189 = arith.index_cast %182 : i32 to index
      %c0_95 = arith.constant 0 : index
      %190 = vector.load %arg18[%189, %c0_95] : memref<256x16xf32, #tpu.memory_space<vmem>>, vector<1x16xf32>
      %191 = vector.broadcast %188 : vector<1x16xf32> to vector<16x16xf32>
      %192 = arith.mulf %191, %83 : vector<16x16xf32>
      %cst_96 = arith.constant dense<0.000000e+00> : vector<16xf32>
      %193 = vector.multi_reduction <add>, %192, %cst_96 [1] : vector<16x16xf32> to vector<16xf32>
      %194 = vector.shape_cast %193 : vector<16xf32> to vector<16x1xf32>
      %195 = vector.broadcast %190 : vector<1x16xf32> to vector<16x16xf32>
      %196 = arith.mulf %195, %83 : vector<16x16xf32>
      %cst_97 = arith.constant dense<0.000000e+00> : vector<16xf32>
      %197 = vector.multi_reduction <add>, %196, %cst_97 [1] : vector<16x16xf32> to vector<16xf32>
      %198 = vector.shape_cast %197 : vector<16xf32> to vector<16x1xf32>
      %199 = vector.broadcast %184 : vector<1x8xf32> to vector<16x8xf32>
      %200 = arith.mulf %199, %84 : vector<16x8xf32>
      %201 = math.exp %200 : vector<16x8xf32>
      %202 = arith.mulf %201, %172 : vector<16x8xf32>
      %203 = arith.mulf %184, %186 : vector<1x8xf32>
      %204 = vector.broadcast %194 : vector<16x1xf32> to vector<16x8xf32>
      %205 = vector.broadcast %203 : vector<1x8xf32> to vector<16x8xf32>
      %206 = arith.mulf %204, %205 : vector<16x8xf32>
      %207 = arith.addf %202, %206 : vector<16x8xf32>
      %208 = vector.broadcast %198 : vector<16x1xf32> to vector<16x8xf32>
      %209 = arith.mulf %207, %208 : vector<16x8xf32>
      %cst_98 = arith.constant dense<0.000000e+00> : vector<8xf32>
      %210 = vector.multi_reduction <add>, %209, %cst_98 [0] : vector<16x8xf32> to vector<8xf32>
      %211 = vector.shape_cast %210 : vector<8xf32> to vector<1x8xf32>
      %212 = arith.index_cast %182 : i32 to index
      %c0_99 = arith.constant 0 : index
      %213 = vector.load %arg19[%212, %c0_99] : memref<256x8xf32, #tpu.memory_space<vmem>>, vector<1x8xf32>
      tpu.vector_store %arg19[%212, %c0_99], %211 {strides = array<i32>} : memref<256x8xf32, #tpu.memory_space<vmem>>, vector<1x8xf32>,
      %c8_i32_100 = arith.constant 8 : i32
      %214 = arith.muli %arg21, %c8_i32_100 : i32
      %c3_i32 = arith.constant 3 : i32
      %215 = arith.addi %214, %c3_i32 : i32
      %c255_i32_101 = arith.constant 255 : i32
      %216 = arith.subi %c255_i32_101, %215 : i32
      %217 = arith.select %0, %215, %216 : i32
      %218 = arith.index_cast %217 : i32 to index
      %c0_102 = arith.constant 0 : index
      %219 = vector.load %arg14[%218, %c0_102] : memref<256x8xf32, #tpu.memory_space<vmem>>, vector<1x8xf32>
      %220 = arith.index_cast %217 : i32 to index
      %c0_103 = arith.constant 0 : index
      %221 = vector.load %arg15[%220, %c0_103] : memref<256x8xf32, #tpu.memory_space<vmem>>, vector<1x8xf32>
      %222 = arith.index_cast %217 : i32 to index
      %c0_104 = arith.constant 0 : index
      %223 = vector.load %arg17[%222, %c0_104] : memref<256x16xf32, #tpu.memory_space<vmem>>, vector<1x16xf32>
      %224 = arith.index_cast %217 : i32 to index
      %c0_105 = arith.constant 0 : index
      %225 = vector.load %arg18[%224, %c0_105] : memref<256x16xf32, #tpu.memory_space<vmem>>, vector<1x16xf32>
      %226 = vector.broadcast %223 : vector<1x16xf32> to vector<16x16xf32>
      %227 = arith.mulf %226, %83 : vector<16x16xf32>
      %cst_106 = arith.constant dense<0.000000e+00> : vector<16xf32>
      %228 = vector.multi_reduction <add>, %227, %cst_106 [1] : vector<16x16xf32> to vector<16xf32>
      %229 = vector.shape_cast %228 : vector<16xf32> to vector<16x1xf32>
      %230 = vector.broadcast %225 : vector<1x16xf32> to vector<16x16xf32>
      %231 = arith.mulf %230, %83 : vector<16x16xf32>
      %cst_107 = arith.constant dense<0.000000e+00> : vector<16xf32>
      %232 = vector.multi_reduction <add>, %231, %cst_107 [1] : vector<16x16xf32> to vector<16xf32>
      %233 = vector.shape_cast %232 : vector<16xf32> to vector<16x1xf32>
      %234 = vector.broadcast %219 : vector<1x8xf32> to vector<16x8xf32>
      %235 = arith.mulf %234, %84 : vector<16x8xf32>
      %236 = math.exp %235 : vector<16x8xf32>
      %237 = arith.mulf %236, %207 : vector<16x8xf32>
      %238 = arith.mulf %219, %221 : vector<1x8xf32>
      %239 = vector.broadcast %229 : vector<16x1xf32> to vector<16x8xf32>
      %240 = vector.broadcast %238 : vector<1x8xf32> to vector<16x8xf32>
      %241 = arith.mulf %239, %240 : vector<16x8xf32>
      %242 = arith.addf %237, %241 : vector<16x8xf32>
      %243 = vector.broadcast %233 : vector<16x1xf32> to vector<16x8xf32>
      %244 = arith.mulf %242, %243 : vector<16x8xf32>
      %cst_108 = arith.constant dense<0.000000e+00> : vector<8xf32>
      %245 = vector.multi_reduction <add>, %244, %cst_108 [0] : vector<16x8xf32> to vector<8xf32>
      %246 = vector.shape_cast %245 : vector<8xf32> to vector<1x8xf32>
      %247 = arith.index_cast %217 : i32 to index
      %c0_109 = arith.constant 0 : index
      %248 = vector.load %arg19[%247, %c0_109] : memref<256x8xf32, #tpu.memory_space<vmem>>, vector<1x8xf32>
      tpu.vector_store %arg19[%247, %c0_109], %246 {strides = array<i32>} : memref<256x8xf32, #tpu.memory_space<vmem>>, vector<1x8xf32>,
      %c8_i32_110 = arith.constant 8 : i32
      %249 = arith.muli %arg21, %c8_i32_110 : i32
      %c4_i32 = arith.constant 4 : i32
      %250 = arith.addi %249, %c4_i32 : i32
      %c255_i32_111 = arith.constant 255 : i32
      %251 = arith.subi %c255_i32_111, %250 : i32
      %252 = arith.select %0, %250, %251 : i32
      %253 = arith.index_cast %252 : i32 to index
      %c0_112 = arith.constant 0 : index
      %254 = vector.load %arg14[%253, %c0_112] : memref<256x8xf32, #tpu.memory_space<vmem>>, vector<1x8xf32>
      %255 = arith.index_cast %252 : i32 to index
      %c0_113 = arith.constant 0 : index
      %256 = vector.load %arg15[%255, %c0_113] : memref<256x8xf32, #tpu.memory_space<vmem>>, vector<1x8xf32>
      %257 = arith.index_cast %252 : i32 to index
      %c0_114 = arith.constant 0 : index
      %258 = vector.load %arg17[%257, %c0_114] : memref<256x16xf32, #tpu.memory_space<vmem>>, vector<1x16xf32>
      %259 = arith.index_cast %252 : i32 to index
      %c0_115 = arith.constant 0 : index
      %260 = vector.load %arg18[%259, %c0_115] : memref<256x16xf32, #tpu.memory_space<vmem>>, vector<1x16xf32>
      %261 = vector.broadcast %258 : vector<1x16xf32> to vector<16x16xf32>
      %262 = arith.mulf %261, %83 : vector<16x16xf32>
      %cst_116 = arith.constant dense<0.000000e+00> : vector<16xf32>
      %263 = vector.multi_reduction <add>, %262, %cst_116 [1] : vector<16x16xf32> to vector<16xf32>
      %264 = vector.shape_cast %263 : vector<16xf32> to vector<16x1xf32>
      %265 = vector.broadcast %260 : vector<1x16xf32> to vector<16x16xf32>
      %266 = arith.mulf %265, %83 : vector<16x16xf32>
      %cst_117 = arith.constant dense<0.000000e+00> : vector<16xf32>
      %267 = vector.multi_reduction <add>, %266, %cst_117 [1] : vector<16x16xf32> to vector<16xf32>
      %268 = vector.shape_cast %267 : vector<16xf32> to vector<16x1xf32>
      %269 = vector.broadcast %254 : vector<1x8xf32> to vector<16x8xf32>
      %270 = arith.mulf %269, %84 : vector<16x8xf32>
      %271 = math.exp %270 : vector<16x8xf32>
      %272 = arith.mulf %271, %242 : vector<16x8xf32>
      %273 = arith.mulf %254, %256 : vector<1x8xf32>
      %274 = vector.broadcast %264 : vector<16x1xf32> to vector<16x8xf32>
      %275 = vector.broadcast %273 : vector<1x8xf32> to vector<16x8xf32>
      %276 = arith.mulf %274, %275 : vector<16x8xf32>
      %277 = arith.addf %272, %276 : vector<16x8xf32>
      %278 = vector.broadcast %268 : vector<16x1xf32> to vector<16x8xf32>
      %279 = arith.mulf %277, %278 : vector<16x8xf32>
      %cst_118 = arith.constant dense<0.000000e+00> : vector<8xf32>
      %280 = vector.multi_reduction <add>, %279, %cst_118 [0] : vector<16x8xf32> to vector<8xf32>
      %281 = vector.shape_cast %280 : vector<8xf32> to vector<1x8xf32>
      %282 = arith.index_cast %252 : i32 to index
      %c0_119 = arith.constant 0 : index
      %283 = vector.load %arg19[%282, %c0_119] : memref<256x8xf32, #tpu.memory_space<vmem>>, vector<1x8xf32>
      tpu.vector_store %arg19[%282, %c0_119], %281 {strides = array<i32>} : memref<256x8xf32, #tpu.memory_space<vmem>>, vector<1x8xf32>,
      %c8_i32_120 = arith.constant 8 : i32
      %284 = arith.muli %arg21, %c8_i32_120 : i32
      %c5_i32 = arith.constant 5 : i32
      %285 = arith.addi %284, %c5_i32 : i32
      %c255_i32_121 = arith.constant 255 : i32
      %286 = arith.subi %c255_i32_121, %285 : i32
      %287 = arith.select %0, %285, %286 : i32
      %288 = arith.index_cast %287 : i32 to index
      %c0_122 = arith.constant 0 : index
      %289 = vector.load %arg14[%288, %c0_122] : memref<256x8xf32, #tpu.memory_space<vmem>>, vector<1x8xf32>
      %290 = arith.index_cast %287 : i32 to index
      %c0_123 = arith.constant 0 : index
      %291 = vector.load %arg15[%290, %c0_123] : memref<256x8xf32, #tpu.memory_space<vmem>>, vector<1x8xf32>
      %292 = arith.index_cast %287 : i32 to index
      %c0_124 = arith.constant 0 : index
      %293 = vector.load %arg17[%292, %c0_124] : memref<256x16xf32, #tpu.memory_space<vmem>>, vector<1x16xf32>
      %294 = arith.index_cast %287 : i32 to index
      %c0_125 = arith.constant 0 : index
      %295 = vector.load %arg18[%294, %c0_125] : memref<256x16xf32, #tpu.memory_space<vmem>>, vector<1x16xf32>
      %296 = vector.broadcast %293 : vector<1x16xf32> to vector<16x16xf32>
      %297 = arith.mulf %296, %83 : vector<16x16xf32>
      %cst_126 = arith.constant dense<0.000000e+00> : vector<16xf32>
      %298 = vector.multi_reduction <add>, %297, %cst_126 [1] : vector<16x16xf32> to vector<16xf32>
      %299 = vector.shape_cast %298 : vector<16xf32> to vector<16x1xf32>
      %300 = vector.broadcast %295 : vector<1x16xf32> to vector<16x16xf32>
      %301 = arith.mulf %300, %83 : vector<16x16xf32>
      %cst_127 = arith.constant dense<0.000000e+00> : vector<16xf32>
      %302 = vector.multi_reduction <add>, %301, %cst_127 [1] : vector<16x16xf32> to vector<16xf32>
      %303 = vector.shape_cast %302 : vector<16xf32> to vector<16x1xf32>
      %304 = vector.broadcast %289 : vector<1x8xf32> to vector<16x8xf32>
      %305 = arith.mulf %304, %84 : vector<16x8xf32>
      %306 = math.exp %305 : vector<16x8xf32>
      %307 = arith.mulf %306, %277 : vector<16x8xf32>
      %308 = arith.mulf %289, %291 : vector<1x8xf32>
      %309 = vector.broadcast %299 : vector<16x1xf32> to vector<16x8xf32>
      %310 = vector.broadcast %308 : vector<1x8xf32> to vector<16x8xf32>
      %311 = arith.mulf %309, %310 : vector<16x8xf32>
      %312 = arith.addf %307, %311 : vector<16x8xf32>
      %313 = vector.broadcast %303 : vector<16x1xf32> to vector<16x8xf32>
      %314 = arith.mulf %312, %313 : vector<16x8xf32>
      %cst_128 = arith.constant dense<0.000000e+00> : vector<8xf32>
      %315 = vector.multi_reduction <add>, %314, %cst_128 [0] : vector<16x8xf32> to vector<8xf32>
      %316 = vector.shape_cast %315 : vector<8xf32> to vector<1x8xf32>
      %317 = arith.index_cast %287 : i32 to index
      %c0_129 = arith.constant 0 : index
      %318 = vector.load %arg19[%317, %c0_129] : memref<256x8xf32, #tpu.memory_space<vmem>>, vector<1x8xf32>
      tpu.vector_store %arg19[%317, %c0_129], %316 {strides = array<i32>} : memref<256x8xf32, #tpu.memory_space<vmem>>, vector<1x8xf32>,
      %c8_i32_130 = arith.constant 8 : i32
      %319 = arith.muli %arg21, %c8_i32_130 : i32
      %c6_i32 = arith.constant 6 : i32
      %320 = arith.addi %319, %c6_i32 : i32
      %c255_i32_131 = arith.constant 255 : i32
      %321 = arith.subi %c255_i32_131, %320 : i32
      %322 = arith.select %0, %320, %321 : i32
      %323 = arith.index_cast %322 : i32 to index
      %c0_132 = arith.constant 0 : index
      %324 = vector.load %arg14[%323, %c0_132] : memref<256x8xf32, #tpu.memory_space<vmem>>, vector<1x8xf32>
      %325 = arith.index_cast %322 : i32 to index
      %c0_133 = arith.constant 0 : index
      %326 = vector.load %arg15[%325, %c0_133] : memref<256x8xf32, #tpu.memory_space<vmem>>, vector<1x8xf32>
      %327 = arith.index_cast %322 : i32 to index
      %c0_134 = arith.constant 0 : index
      %328 = vector.load %arg17[%327, %c0_134] : memref<256x16xf32, #tpu.memory_space<vmem>>, vector<1x16xf32>
      %329 = arith.index_cast %322 : i32 to index
      %c0_135 = arith.constant 0 : index
      %330 = vector.load %arg18[%329, %c0_135] : memref<256x16xf32, #tpu.memory_space<vmem>>, vector<1x16xf32>
      %331 = vector.broadcast %328 : vector<1x16xf32> to vector<16x16xf32>
      %332 = arith.mulf %331, %83 : vector<16x16xf32>
      %cst_136 = arith.constant dense<0.000000e+00> : vector<16xf32>
      %333 = vector.multi_reduction <add>, %332, %cst_136 [1] : vector<16x16xf32> to vector<16xf32>
      %334 = vector.shape_cast %333 : vector<16xf32> to vector<16x1xf32>
      %335 = vector.broadcast %330 : vector<1x16xf32> to vector<16x16xf32>
      %336 = arith.mulf %335, %83 : vector<16x16xf32>
      %cst_137 = arith.constant dense<0.000000e+00> : vector<16xf32>
      %337 = vector.multi_reduction <add>, %336, %cst_137 [1] : vector<16x16xf32> to vector<16xf32>
      %338 = vector.shape_cast %337 : vector<16xf32> to vector<16x1xf32>
      %339 = vector.broadcast %324 : vector<1x8xf32> to vector<16x8xf32>
      %340 = arith.mulf %339, %84 : vector<16x8xf32>
      %341 = math.exp %340 : vector<16x8xf32>
      %342 = arith.mulf %341, %312 : vector<16x8xf32>
      %343 = arith.mulf %324, %326 : vector<1x8xf32>
      %344 = vector.broadcast %334 : vector<16x1xf32> to vector<16x8xf32>
      %345 = vector.broadcast %343 : vector<1x8xf32> to vector<16x8xf32>
      %346 = arith.mulf %344, %345 : vector<16x8xf32>
      %347 = arith.addf %342, %346 : vector<16x8xf32>
      %348 = vector.broadcast %338 : vector<16x1xf32> to vector<16x8xf32>
      %349 = arith.mulf %347, %348 : vector<16x8xf32>
      %cst_138 = arith.constant dense<0.000000e+00> : vector<8xf32>
      %350 = vector.multi_reduction <add>, %349, %cst_138 [0] : vector<16x8xf32> to vector<8xf32>
      %351 = vector.shape_cast %350 : vector<8xf32> to vector<1x8xf32>
      %352 = arith.index_cast %322 : i32 to index
      %c0_139 = arith.constant 0 : index
      %353 = vector.load %arg19[%352, %c0_139] : memref<256x8xf32, #tpu.memory_space<vmem>>, vector<1x8xf32>
      tpu.vector_store %arg19[%352, %c0_139], %351 {strides = array<i32>} : memref<256x8xf32, #tpu.memory_space<vmem>>, vector<1x8xf32>,
      %c8_i32_140 = arith.constant 8 : i32
      %354 = arith.muli %arg21, %c8_i32_140 : i32
      %c7_i32 = arith.constant 7 : i32
      %355 = arith.addi %354, %c7_i32 : i32
      %c255_i32_141 = arith.constant 255 : i32
      %356 = arith.subi %c255_i32_141, %355 : i32
      %357 = arith.select %0, %355, %356 : i32
      %358 = arith.index_cast %357 : i32 to index
      %c0_142 = arith.constant 0 : index
      %359 = vector.load %arg14[%358, %c0_142] : memref<256x8xf32, #tpu.memory_space<vmem>>, vector<1x8xf32>
      %360 = arith.index_cast %357 : i32 to index
      %c0_143 = arith.constant 0 : index
      %361 = vector.load %arg15[%360, %c0_143] : memref<256x8xf32, #tpu.memory_space<vmem>>, vector<1x8xf32>
      %362 = arith.index_cast %357 : i32 to index
      %c0_144 = arith.constant 0 : index
      %363 = vector.load %arg17[%362, %c0_144] : memref<256x16xf32, #tpu.memory_space<vmem>>, vector<1x16xf32>
      %364 = arith.index_cast %357 : i32 to index
      %c0_145 = arith.constant 0 : index
      %365 = vector.load %arg18[%364, %c0_145] : memref<256x16xf32, #tpu.memory_space<vmem>>, vector<1x16xf32>
      %366 = vector.broadcast %363 : vector<1x16xf32> to vector<16x16xf32>
      %367 = arith.mulf %366, %83 : vector<16x16xf32>
      %cst_146 = arith.constant dense<0.000000e+00> : vector<16xf32>
      %368 = vector.multi_reduction <add>, %367, %cst_146 [1] : vector<16x16xf32> to vector<16xf32>
      %369 = vector.shape_cast %368 : vector<16xf32> to vector<16x1xf32>
      %370 = vector.broadcast %365 : vector<1x16xf32> to vector<16x16xf32>
      %371 = arith.mulf %370, %83 : vector<16x16xf32>
      %cst_147 = arith.constant dense<0.000000e+00> : vector<16xf32>
      %372 = vector.multi_reduction <add>, %371, %cst_147 [1] : vector<16x16xf32> to vector<16xf32>
      %373 = vector.shape_cast %372 : vector<16xf32> to vector<16x1xf32>
      %374 = vector.broadcast %359 : vector<1x8xf32> to vector<16x8xf32>
      %375 = arith.mulf %374, %84 : vector<16x8xf32>
      %376 = math.exp %375 : vector<16x8xf32>
      %377 = arith.mulf %376, %347 : vector<16x8xf32>
      %378 = arith.mulf %359, %361 : vector<1x8xf32>
      %379 = vector.broadcast %369 : vector<16x1xf32> to vector<16x8xf32>
      %380 = vector.broadcast %378 : vector<1x8xf32> to vector<16x8xf32>
      %381 = arith.mulf %379, %380 : vector<16x8xf32>
      %382 = arith.addf %377, %381 : vector<16x8xf32>
      %383 = vector.broadcast %373 : vector<16x1xf32> to vector<16x8xf32>
      %384 = arith.mulf %382, %383 : vector<16x8xf32>
      %cst_148 = arith.constant dense<0.000000e+00> : vector<8xf32>
      %385 = vector.multi_reduction <add>, %384, %cst_148 [0] : vector<16x8xf32> to vector<8xf32>
      %386 = vector.shape_cast %385 : vector<8xf32> to vector<1x8xf32>
      %387 = arith.index_cast %357 : i32 to index
      %c0_149 = arith.constant 0 : index
      %388 = vector.load %arg19[%387, %c0_149] : memref<256x8xf32, #tpu.memory_space<vmem>>, vector<1x8xf32>
      tpu.vector_store %arg19[%387, %c0_149], %386 {strides = array<i32>} : memref<256x8xf32, #tpu.memory_space<vmem>>, vector<1x8xf32>,
      scf.yield %382 : vector<16x8xf32>
    }
    %c32_i32_52 = arith.constant 32 : i32
    %c0_53 = arith.constant 0 : index
    %c0_54 = arith.constant 0 : index
    %88 = vector.load %arg20[%c0_53, %c0_54] : memref<16x8xf32, #tpu.memory_space<vmem>>, vector<16x8xf32>
    tpu.vector_store %arg20[%c0_53, %c0_54], %87 {strides = array<i32>} : memref<16x8xf32, #tpu.memory_space<vmem>>, vector<16x8xf32>,
    %c0_55 = arith.constant 0 : index
    %c0_56 = arith.constant 0 : index
    %89 = vector.load %arg16[%c0_55, %c0_56] : memref<256x8xf32, #tpu.memory_space<vmem>>, vector<256x8xf32>
    %c0_57 = arith.constant 0 : index
    %c0_58 = arith.constant 0 : index
    %90 = vector.load %arg19[%c0_57, %c0_58] : memref<256x8xf32, #tpu.memory_space<vmem>>, vector<256x8xf32>
    %c0_59 = arith.constant 0 : index
    %c0_60 = arith.constant 0 : index
    %91 = vector.load %arg15[%c0_59, %c0_60] : memref<256x8xf32, #tpu.memory_space<vmem>>, vector<256x8xf32>
    %c0_61 = arith.constant 0 : index
    %c0_62 = arith.constant 0 : index
    %92 = vector.load %arg10[%c0_61, %c0_62] : memref<1x8xf32, #tpu.memory_space<vmem>>, vector<1x8xf32>
    %93 = vector.broadcast %92 : vector<1x8xf32> to vector<256x8xf32>
    %94 = arith.mulf %91, %93 : vector<256x8xf32>
    %95 = arith.addf %90, %94 : vector<256x8xf32>
    %96 = arith.negf %89 : vector<256x8xf32>
    %97 = math.exp %96 : vector<256x8xf32>
    %cst_63 = arith.constant 1.000000e+00 : f32
    %98 = vector.broadcast %cst_63 : f32 to vector<256x8xf32>
    %99 = arith.addf %98, %97 : vector<256x8xf32>
    %100 = arith.divf %98, %99 : vector<256x8xf32>
    %101 = arith.mulf %89, %100 : vector<256x8xf32>
    %102 = arith.mulf %95, %101 : vector<256x8xf32>
    %103 = arith.truncf %102 : vector<256x8xf32> to vector<256x8xbf16>
    %c0_64 = arith.constant 0 : index
    %c0_65 = arith.constant 0 : index
    %104 = vector.load %arg11[%c0_64, %c0_65] : memref<8x4xbf16, #tpu.memory_space<vmem>>, vector<8x4xbf16>
    %cst_66 = arith.constant dense<0.000000e+00> : vector<256x4xf32>
    %105 = tpu.matmul %103, %104, %cst_66 {dimension_numbers = #tpu.dot_dimension_numbers<[1], [0], [0], [1], [0, 0, 1, 1], [], []>} : vector<256x8xbf16>, vector<8x4xbf16>, vector<256x4xf32> -> vector<256x4xf32>
    %c0_67 = arith.constant 0 : index
    %c0_68 = arith.constant 0 : index
    %c0_69 = arith.constant 0 : index
    %106 = vector.load %arg12[%c0_67, %c0_68, %c0_69] : memref<1x256x4xf32, #tpu.memory_space<vmem>>, vector<1x256x4xf32>
    %107 = vector.shape_cast %106 : vector<1x256x4xf32> to vector<256x4xf32>
    %108 = vector.shape_cast %105 : vector<256x4xf32> to vector<1x256x4xf32>
    tpu.vector_store %arg12[%c0_67, %c0_68, %c0_69], %108 {strides = array<i32>} : memref<1x256x4xf32, #tpu.memory_space<vmem>>, vector<1x256x4xf32>,
    return
  }
  func.func @transform_0(%arg0: i32, %arg1: i32) -> (i32, i32) {
    %c1_i32 = arith.constant 1 : i32
    %0 = arith.muli %arg0, %c1_i32 : i32
    %c2_i32 = arith.constant 2 : i32
    %1 = arith.muli %c2_i32, %arg0 : i32
    %c1_i32_0 = arith.constant 1 : i32
    %2 = arith.subi %c1_i32_0, %1 : i32
    %3 = arith.muli %2, %arg1 : i32
    %4 = arith.addi %0, %3 : i32
    %c0_i32 = arith.constant 0 : i32
    %c0_i32_1 = arith.constant 0 : i32
    return %4, %c0_i32 : i32, i32
  }
  func.func @transform_1(%arg0: i32, %arg1: i32) -> (i32, i32) {
    %c0_i32 = arith.constant 0 : i32
    %c0_i32_0 = arith.constant 0 : i32
    %c0_i32_1 = arith.constant 0 : i32
    return %c0_i32, %c0_i32_0 : i32, i32
  }
  func.func @transform_2(%arg0: i32, %arg1: i32) -> (i32, i32) {
    %c0_i32 = arith.constant 0 : i32
    %c0_i32_0 = arith.constant 0 : i32
    %c0_i32_1 = arith.constant 0 : i32
    return %c0_i32, %c0_i32_0 : i32, i32
  }
  func.func @transform_3(%arg0: i32, %arg1: i32) -> (i32, i32) {
    %c0_i32 = arith.constant 0 : i32
    %c0_i32_0 = arith.constant 0 : i32
    %c0_i32_1 = arith.constant 0 : i32
    return %c0_i32, %c0_i32_0 : i32, i32
  }
  func.func @transform_4(%arg0: i32, %arg1: i32) -> (i32, i32) {
    %c0_i32 = arith.constant 0 : i32
    %c0_i32_0 = arith.constant 0 : i32
    %c0_i32_1 = arith.constant 0 : i32
    return %c0_i32, %c0_i32_0 : i32, i32
  }
  func.func @transform_5(%arg0: i32, %arg1: i32) -> (i32, i32) {
    %c0_i32 = arith.constant 0 : i32
    %c0_i32_0 = arith.constant 0 : i32
    %c0_i32_1 = arith.constant 0 : i32
    return %c0_i32, %c0_i32_0 : i32, i32
  }
  func.func @transform_6(%arg0: i32, %arg1: i32) -> (i32, i32) {
    %c0_i32 = arith.constant 0 : i32
    %c0_i32_0 = arith.constant 0 : i32
    %c0_i32_1 = arith.constant 0 : i32
    return %c0_i32, %c0_i32_0 : i32, i32
  }
  func.func @transform_7(%arg0: i32, %arg1: i32) -> (i32, i32) {
    %c0_i32 = arith.constant 0 : i32
    %c0_i32_0 = arith.constant 0 : i32
    %c0_i32_1 = arith.constant 0 : i32
    return %c0_i32, %c0_i32_0 : i32, i32
  }
  func.func @transform_8(%arg0: i32, %arg1: i32) -> (i32, i32) {
    %c0_i32 = arith.constant 0 : i32
    %c0_i32_0 = arith.constant 0 : i32
    %c0_i32_1 = arith.constant 0 : i32
    return %c0_i32, %c0_i32_0 : i32, i32
  }
  func.func @transform_9(%arg0: i32, %arg1: i32) -> (i32, i32) {
    %c0_i32 = arith.constant 0 : i32
    %c0_i32_0 = arith.constant 0 : i32
    %c0_i32_1 = arith.constant 0 : i32
    return %c0_i32, %c0_i32_0 : i32, i32
  }
  func.func @transform_10(%arg0: i32, %arg1: i32) -> (i32, i32, i32) {
    %c1_i32 = arith.constant 1 : i32
    %0 = arith.muli %arg0, %c1_i32 : i32
    %c2_i32 = arith.constant 2 : i32
    %1 = arith.muli %c2_i32, %arg0 : i32
    %c1_i32_0 = arith.constant 1 : i32
    %2 = arith.subi %c1_i32_0, %1 : i32
    %3 = arith.muli %2, %arg1 : i32
    %4 = arith.addi %0, %3 : i32
    %c0_i32 = arith.constant 0 : i32
    %c0_i32_1 = arith.constant 0 : i32
    return %arg0, %4, %c0_i32 : i32, i32, i32
  }
}

module attributes {stable_mosaic.version = 11 : i64} {
  func.func @proj_kernel(%arg0: i32, %arg1: memref<1x256x4xf32, #tpu.memory_space<vmem>>, %arg2: memref<1x256x4xf32, #tpu.memory_space<vmem>>, %arg3: memref<1x4xf32, #tpu.memory_space<vmem>>, %arg4: memref<1x4xf32, #tpu.memory_space<vmem>>, %arg5: memref<4x4xf32, #tpu.memory_space<vmem>>, %arg6: memref<4x4xf32, #tpu.memory_space<vmem>>, %arg7: memref<1x256x4xf32, #tpu.memory_space<vmem>>) attributes {dimension_semantics = [#tpu.dimension_semantics<parallel>], iteration_bounds = array<i64: 2>, scalar_prefetch = 0 : i64, scratch_operands = 0 : i64, tpu.core_type = #tpu.core_type<tc>, window_params = [{transform_indices = @transform_0, window_bounds = array<i64: 1, 256, 4>}, {transform_indices = @transform_1, window_bounds = array<i64: 1, 256, 4>}, {pipeline_mode = #tpu.pipeline_mode<synchronous>, transform_indices = @transform_2, window_bounds = array<i64: 1, 4>}, {pipeline_mode = #tpu.pipeline_mode<synchronous>, transform_indices = @transform_3, window_bounds = array<i64: 1, 4>}, {pipeline_mode = #tpu.pipeline_mode<synchronous>, transform_indices = @transform_4, window_bounds = array<i64: 4, 4>}, {pipeline_mode = #tpu.pipeline_mode<synchronous>, transform_indices = @transform_5, window_bounds = array<i64: 4, 4>}, {transform_indices = @transform_6, window_bounds = array<i64: 1, 256, 4>}]} {
    %c0 = arith.constant 0 : index
    %c0_0 = arith.constant 0 : index
    %c0_1 = arith.constant 0 : index
    %0 = vector.load %arg1[%c0, %c0_0, %c0_1] : memref<1x256x4xf32, #tpu.memory_space<vmem>>, vector<1x256x4xf32>
    %1 = vector.shape_cast %0 : vector<1x256x4xf32> to vector<256x4xf32>
    %cst = arith.constant dense<0.000000e+00> : vector<4xf32>
    %2 = vector.multi_reduction <add>, %1, %cst [0] : vector<256x4xf32> to vector<4xf32>
    %3 = vector.shape_cast %2 : vector<4xf32> to vector<1x4xf32>
    %4 = arith.mulf %1, %1 : vector<256x4xf32>
    %cst_2 = arith.constant dense<0.000000e+00> : vector<4xf32>
    %5 = vector.multi_reduction <add>, %4, %cst_2 [0] : vector<256x4xf32> to vector<4xf32>
    %6 = vector.shape_cast %5 : vector<4xf32> to vector<1x4xf32>
    %c0_3 = arith.constant 0 : index
    %c0_4 = arith.constant 0 : index
    %7 = vector.load %arg5[%c0_3, %c0_4] : memref<4x4xf32, #tpu.memory_space<vmem>>, vector<4x4xf32>
    %cst_5 = arith.constant dense<0.000000e+00> : vector<1x4xf32>
    %8 = tpu.matmul %3, %7, %cst_5 {dimension_numbers = #tpu.dot_dimension_numbers<[1], [0], [0], [1], [0, 0, 1, 1], [], []>} : vector<1x4xf32>, vector<4x4xf32>, vector<1x4xf32> -> vector<1x4xf32>
    %cst_6 = arith.constant 3.906250e-03 : f32
    %9 = vector.broadcast %cst_6 : f32 to vector<1x4xf32>
    %10 = arith.mulf %8, %9 : vector<1x4xf32>
    %c0_7 = arith.constant 0 : index
    %c0_8 = arith.constant 0 : index
    %11 = vector.load %arg5[%c0_7, %c0_8] : memref<4x4xf32, #tpu.memory_space<vmem>>, vector<4x4xf32>
    %cst_9 = arith.constant dense<0.000000e+00> : vector<1x4xf32>
    %12 = tpu.matmul %6, %11, %cst_9 {dimension_numbers = #tpu.dot_dimension_numbers<[1], [0], [0], [1], [0, 0, 1, 1], [], []>} : vector<1x4xf32>, vector<4x4xf32>, vector<1x4xf32> -> vector<1x4xf32>
    %cst_10 = arith.constant 3.906250e-03 : f32
    %13 = vector.broadcast %cst_10 : f32 to vector<1x4xf32>
    %14 = arith.mulf %12, %13 : vector<1x4xf32>
    %15 = arith.mulf %10, %10 : vector<1x4xf32>
    %16 = arith.subf %14, %15 : vector<1x4xf32>
    %cst_11 = arith.constant 0.000000e+00 : f32
    %17 = vector.broadcast %cst_11 : f32 to vector<1x4xf32>
    %18 = arith.maximumf %16, %17 : vector<1x4xf32>
    %c0_12 = arith.constant 0 : index
    %c0_13 = arith.constant 0 : index
    %19 = vector.load %arg6[%c0_12, %c0_13] : memref<4x4xf32, #tpu.memory_space<vmem>>, vector<4x4xf32>
    %cst_14 = arith.constant dense<0.000000e+00> : vector<1x4xf32>
    %20 = tpu.matmul %10, %19, %cst_14 {dimension_numbers = #tpu.dot_dimension_numbers<[1], [0], [0], [1], [0, 0, 1, 1], [], []>} : vector<1x4xf32>, vector<4x4xf32>, vector<1x4xf32> -> vector<1x4xf32>
    %c0_15 = arith.constant 0 : index
    %c0_16 = arith.constant 0 : index
    %21 = vector.load %arg6[%c0_15, %c0_16] : memref<4x4xf32, #tpu.memory_space<vmem>>, vector<4x4xf32>
    %cst_17 = arith.constant dense<0.000000e+00> : vector<1x4xf32>
    %22 = tpu.matmul %18, %21, %cst_17 {dimension_numbers = #tpu.dot_dimension_numbers<[1], [0], [0], [1], [0, 0, 1, 1], [], []>} : vector<1x4xf32>, vector<4x4xf32>, vector<1x4xf32> -> vector<1x4xf32>
    %cst_18 = arith.constant 9.99999974E-6 : f32
    %23 = vector.broadcast %cst_18 : f32 to vector<1x4xf32>
    %24 = arith.addf %22, %23 : vector<1x4xf32>
    %25 = math.rsqrt %24 : vector<1x4xf32>
    %26 = vector.broadcast %20 : vector<1x4xf32> to vector<256x4xf32>
    %27 = arith.subf %1, %26 : vector<256x4xf32>
    %28 = vector.broadcast %25 : vector<1x4xf32> to vector<256x4xf32>
    %29 = arith.mulf %27, %28 : vector<256x4xf32>
    %c0_19 = arith.constant 0 : index
    %c0_20 = arith.constant 0 : index
    %30 = vector.load %arg3[%c0_19, %c0_20] : memref<1x4xf32, #tpu.memory_space<vmem>>, vector<1x4xf32>
    %31 = vector.broadcast %30 : vector<1x4xf32> to vector<256x4xf32>
    %32 = arith.mulf %29, %31 : vector<256x4xf32>
    %c0_21 = arith.constant 0 : index
    %c0_22 = arith.constant 0 : index
    %33 = vector.load %arg4[%c0_21, %c0_22] : memref<1x4xf32, #tpu.memory_space<vmem>>, vector<1x4xf32>
    %34 = vector.broadcast %33 : vector<1x4xf32> to vector<256x4xf32>
    %35 = arith.addf %32, %34 : vector<256x4xf32>
    %36 = arith.negf %35 : vector<256x4xf32>
    %37 = math.exp %36 : vector<256x4xf32>
    %cst_23 = arith.constant 1.000000e+00 : f32
    %38 = vector.broadcast %cst_23 : f32 to vector<256x4xf32>
    %39 = arith.addf %38, %37 : vector<256x4xf32>
    %40 = arith.divf %38, %39 : vector<256x4xf32>
    %41 = arith.mulf %35, %40 : vector<256x4xf32>
    %c0_24 = arith.constant 0 : index
    %c0_25 = arith.constant 0 : index
    %c0_26 = arith.constant 0 : index
    %42 = vector.load %arg2[%c0_24, %c0_25, %c0_26] : memref<1x256x4xf32, #tpu.memory_space<vmem>>, vector<1x256x4xf32>
    %43 = vector.shape_cast %42 : vector<1x256x4xf32> to vector<256x4xf32>
    %44 = arith.addf %41, %43 : vector<256x4xf32>
    %c0_27 = arith.constant 0 : index
    %c0_28 = arith.constant 0 : index
    %c0_29 = arith.constant 0 : index
    %45 = vector.load %arg7[%c0_27, %c0_28, %c0_29] : memref<1x256x4xf32, #tpu.memory_space<vmem>>, vector<1x256x4xf32>
    %46 = vector.shape_cast %45 : vector<1x256x4xf32> to vector<256x4xf32>
    %47 = vector.shape_cast %44 : vector<256x4xf32> to vector<1x256x4xf32>
    tpu.vector_store %arg7[%c0_27, %c0_28, %c0_29], %47 {strides = array<i32>} : memref<1x256x4xf32, #tpu.memory_space<vmem>>, vector<1x256x4xf32>,
    return
  }
  func.func @transform_0(%arg0: i32) -> (i32, i32, i32) {
    %c0_i32 = arith.constant 0 : i32
    %c0_i32_0 = arith.constant 0 : i32
    %c0_i32_1 = arith.constant 0 : i32
    return %arg0, %c0_i32, %c0_i32_0 : i32, i32, i32
  }
  func.func @transform_1(%arg0: i32) -> (i32, i32, i32) {
    %c0_i32 = arith.constant 0 : i32
    %c0_i32_0 = arith.constant 0 : i32
    %c0_i32_1 = arith.constant 0 : i32
    return %arg0, %c0_i32, %c0_i32_0 : i32, i32, i32
  }
  func.func @transform_2(%arg0: i32) -> (i32, i32) {
    %c0_i32 = arith.constant 0 : i32
    %c0_i32_0 = arith.constant 0 : i32
    %c0_i32_1 = arith.constant 0 : i32
    return %c0_i32, %c0_i32_0 : i32, i32
  }
  func.func @transform_3(%arg0: i32) -> (i32, i32) {
    %c0_i32 = arith.constant 0 : i32
    %c0_i32_0 = arith.constant 0 : i32
    %c0_i32_1 = arith.constant 0 : i32
    return %c0_i32, %c0_i32_0 : i32, i32
  }
  func.func @transform_4(%arg0: i32) -> (i32, i32) {
    %c0_i32 = arith.constant 0 : i32
    %c0_i32_0 = arith.constant 0 : i32
    %c0_i32_1 = arith.constant 0 : i32
    return %c0_i32, %c0_i32_0 : i32, i32
  }
  func.func @transform_5(%arg0: i32) -> (i32, i32) {
    %c0_i32 = arith.constant 0 : i32
    %c0_i32_0 = arith.constant 0 : i32
    %c0_i32_1 = arith.constant 0 : i32
    return %c0_i32, %c0_i32_0 : i32, i32
  }
  func.func @transform_6(%arg0: i32) -> (i32, i32, i32) {
    %c0_i32 = arith.constant 0 : i32
    %c0_i32_0 = arith.constant 0 : i32
    %c0_i32_1 = arith.constant 0 : i32
    return %arg0, %c0_i32, %c0_i32_0 : i32, i32, i32
  }
}

</mosaic_0001>

<llo_original>
// kernel: bidir_mamba_forward.3
$region0: #{bidir_mamba_forward.3}
  #allocation0 [shape = 'u32[]', space=smem, size = 0x4, offset = 0x4, fixed_abs, tag = 'smem constant byte address 0x4 - core index']
  #allocation1 [shape = 'u32[72,128]{1,0:T(1,128)}', space=vmem, size = 0x9000, scoped, tag = 'internal scratch']
  %s0 = inlined_call_operand.vmem [shape: f32[2,256,4], index: 0, kind: input, shape index: {}]
  %s1 = inlined_call_operand.vmem [shape: f32[2,256,4], index: 1, kind: input, shape index: {}]
  %s2 = inlined_call_operand.vmem [shape: f32[1,4], index: 2, kind: input, shape index: {}]
  %s3 = inlined_call_operand.vmem [shape: f32[1,4], index: 3, kind: input, shape index: {}]
  %s4 = inlined_call_operand.vmem [shape: f32[4,4], index: 4, kind: input, shape index: {}]
  %s5 = inlined_call_operand.vmem [shape: f32[4,4], index: 5, kind: input, shape index: {}]
  %s6 = inlined_call_operand.vmem [shape: f32[2,256,4], index: 6, kind: output, shape index: {}]
  %s7 = sld [smem:[#allocation0]]
  $region57: #{bidir_mamba_forward.3} parent=0
    _
  %s9 = ssub.s32 1, %s7
  %s10 = scalar_select 0, %s9, %s7
  loop: start=0, step=1, limit=4
  $region2: #{bidir_mamba_forward.3} parent=0 // loop_pre_header
    _
  $region3: #{bidir_mamba_forward.3} parent=0 // loop_header
    %s12 = sphi 0, %s16
    %p13 = scmp.ge.s32.totalorder %s12, 4
    %s22 = sphi 0, %s24
    %s25 = sphi 0, %s22
    %s26 = sphi 0, %s25
    %s42 = sphi 0, %s26
    %s48 = sphi 0, %s50
    %s51 = sphi 0, %s48
    %s52 = sphi 0, %s51
    %s68 = sphi 0, %s52
    %s72 = sphi 0, %s72
    %s74 = sphi 0, %s72
    %s75 = sphi 0, %s74
    %s89 = sphi 0, %s75
    %s93 = sphi 0, %s93
    %s95 = sphi 0, %s93
    %s96 = sphi 0, %s95
    %s110 = sphi 0, %s96
    %s114 = sphi 0, %s114
    %s116 = sphi 0, %s114
    %s117 = sphi 0, %s116
    %s131 = sphi 0, %s117
    %s135 = sphi 0, %s135
    %s137 = sphi 0, %s135
    %s138 = sphi 0, %s137
    %s152 = sphi 0, %s138
    %s158 = sphi 0, %s160
    %s161 = sphi 0, %s158
    %s162 = sphi 0, %s161
    %s178 = sphi 0, %s162
  $region4: #{bidir_mamba_forward.3} parent=0 // loop_header_branch
    %15 = sbr.rel (%p13) target = $region8
  $region5: #{bidir_mamba_forward.3} parent=0 // loop_body
    %s17 = ssub.s32 %s12, 1
    %s18 = ssub.s32 %s12, 2
    %s19 = sadd.s32 %s12, 1
    %s20 = ssub.s32 %s12, %s19
    %p21 = scmp.eq.s32.totalorder %s20, 0
    %s23 = sadd.s32 %s22, 1
    %s24 = scalar_select %p21, %s22, %s23
    %p27 = pneg %p21
    %p28 = scmp.eq.s32.totalorder %s12, 1
    %p29 = por %p27, %p28
    %p30 = scmp.ne.s32.totalorder %s22, %s25
    %p31 = scmp.eq.s32.totalorder %s12, 0
    %p32 = por %p30, %p31
    %p33 = scmp.ne.s32.totalorder %s22, %s25
    %p34 = scmp.eq.s32.totalorder %s17, 1
    %p35 = por %p33, %p34
    %p36 = scmp.ne.s32.totalorder %s25, %s26
    %p37 = scmp.eq.s32.totalorder %s17, 0
    %p38 = por %p36, %p37
    %p39 = scmp.ne.s32.totalorder %s25, %s26
    %p40 = scmp.eq.s32.totalorder %s18, 1
    %p41 = por %p39, %p40
    %p43 = scmp.ne.s32.totalorder %s26, %s42
    %p44 = scmp.eq.s32.totalorder %s18, 0
    %p45 = por %p43, %p44
    %s46 = ssub.s32 %s12, %s19
    %p47 = scmp.eq.s32.totalorder %s46, 0
    %s49 = sadd.s32 %s48, 1
    %s50 = scalar_select %p47, %s48, %s49
    %p53 = pneg %p47
    %p54 = scmp.eq.s32.totalorder %s12, 1
    %p55 = por %p53, %p54
    %p56 = scmp.ne.s32.totalorder %s48, %s51
    %p57 = scmp.eq.s32.totalorder %s12, 0
    %p58 = por %p56, %p57
    %p59 = scmp.ne.s32.totalorder %s48, %s51
    %p60 = scmp.eq.s32.totalorder %s17, 1
    %p61 = por %p59, %p60
    %p62 = scmp.ne.s32.totalorder %s51, %s52
    %p63 = scmp.eq.s32.totalorder %s17, 0
    %p64 = por %p62, %p63
    %p65 = scmp.ne.s32.totalorder %s51, %s52
    %p66 = scmp.eq.s32.totalorder %s18, 1
    %p67 = por %p65, %p66
    %p69 = scmp.ne.s32.totalorder %s52, %s68
    %p70 = scmp.eq.s32.totalorder %s18, 0
    %p71 = por %p69, %p70
    %s73 = sadd.s32 %s72, 1
    %p76 = scmp.eq.s32.totalorder %s12, 1
    %p77 = scmp.ne.s32.totalorder %s72, %s74
    %p78 = scmp.eq.s32.totalorder %s12, 0
    %p79 = por %p77, %p78
    %p80 = scmp.ne.s32.totalorder %s72, %s74
    %p81 = scmp.eq.s32.totalorder %s17, 1
    %p82 = por %p80, %p81
    %p83 = scmp.ne.s32.totalorder %s74, %s75
    %p84 = scmp.eq.s32.totalorder %s17, 0
    %p85 = por %p83, %p84
    %p86 = scmp.ne.s32.totalorder %s74, %s75
    %p87 = scmp.eq.s32.totalorder %s18, 1
    %p88 = por %p86, %p87
    %p90 = scmp.ne.s32.totalorder %s75, %s89
    %p91 = scmp.eq.s32.totalorder %s18, 0
    %p92 = por %p90, %p91
    %s94 = sadd.s32 %s93, 1
    %p97 = scmp.eq.s32.totalorder %s12, 1
    %p98 = scmp.ne.s32.totalorder %s93, %s95
    %p99 = scmp.eq.s32.totalorder %s12, 0
    %p100 = por %p98, %p99
    %p101 = scmp.ne.s32.totalorder %s93, %s95
    %p102 = scmp.eq.s32.totalorder %s17, 1
    %p103 = por %p101, %p102
    %p104 = scmp.ne.s32.totalorder %s95, %s96
    %p105 = scmp.eq.s32.totalorder %s17, 0
    %p106 = por %p104, %p105
    %p107 = scmp.ne.s32.totalorder %s95, %s96
    %p108 = scmp.eq.s32.totalorder %s18, 1
    %p109 = por %p107, %p108
    %p111 = scmp.ne.s32.totalorder %s96, %s110
    %p112 = scmp.eq.s32.totalorder %s18, 0
    %p113 = por %p111, %p112
    %s115 = sadd.s32 %s114, 1
    %p118 = scmp.eq.s32.totalorder %s12, 1
    %p119 = scmp.ne.s32.totalorder %s114, %s116
    %p120 = scmp.eq.s32.totalorder %s12, 0
    %p121 = por %p119, %p120
    %p122 = scmp.ne.s32.totalorder %s114, %s116
    %p123 = scmp.eq.s32.totalorder %s17, 1
    %p124 = por %p122, %p123
    %p125 = scmp.ne.s32.totalorder %s116, %s117
    %p126 = scmp.eq.s32.totalorder %s17, 0
    %p127 = por %p125, %p126
    %p128 = scmp.ne.s32.totalorder %s116, %s117
    %p129 = scmp.eq.s32.totalorder %s18, 1
    %p130 = por %p128, %p129
    %p132 = scmp.ne.s32.totalorder %s117, %s131
    %p133 = scmp.eq.s32.totalorder %s18, 0
    %p134 = por %p132, %p133
    %s136 = sadd.s32 %s135, 1
    %p139 = scmp.eq.s32.totalorder %s12, 1
    %p140 = scmp.ne.s32.totalorder %s135, %s137
    %p141 = scmp.eq.s32.totalorder %s12, 0
    %p142 = por %p140, %p141
    %p143 = scmp.ne.s32.totalorder %s135, %s137
    %p144 = scmp.eq.s32.totalorder %s17, 1
    %p145 = por %p143, %p144
    %p146 = scmp.ne.s32.totalorder %s137, %s138
    %p147 = scmp.eq.s32.totalorder %s17, 0
    %p148 = por %p146, %p147
    %p149 = scmp.ne.s32.totalorder %s137, %s138
    %p150 = scmp.eq.s32.totalorder %s18, 1
    %p151 = por %p149, %p150
    %p153 = scmp.ne.s32.totalorder %s138, %s152
    %p154 = scmp.eq.s32.totalorder %s18, 0
    %p155 = por %p153, %p154
    %s156 = ssub.s32 %s12, %s19
    %p157 = scmp.eq.s32.totalorder %s156, 0
    %s159 = sadd.s32 %s158, 1
    %s160 = scalar_select %p157, %s158, %s159
    %p163 = pneg %p157
    %p164 = scmp.eq.s32.totalorder %s12, 1
    %p165 = por %p163, %p164
    %p166 = scmp.ne.s32.totalorder %s158, %s161
    %p167 = scmp.eq.s32.totalorder %s12, 0
    %p168 = por %p166, %p167
    %p169 = scmp.ne.s32.totalorder %s158, %s161
    %p170 = scmp.eq.s32.totalorder %s17, 1
    %p171 = por %p169, %p170
    %p172 = scmp.ne.s32.totalorder %s161, %s162
    %p173 = scmp.eq.s32.totalorder %s17, 0
    %p174 = por %p172, %p173
    %p175 = scmp.ne.s32.totalorder %s161, %s162
    %p176 = scmp.eq.s32.totalorder %s18, 1
    %p177 = por %p175, %p176
    %p179 = scmp.ne.s32.totalorder %s162, %s178
    %p180 = scmp.eq.s32.totalorder %s18, 0
    %p181 = por %p179, %p180
    %p182 = scmp.le.s32.totalorder 1, %s12
    %p183 = scmp.lt.s32.totalorder %s12, 3
    %p184 = pnand %p182, %p183
    %p185 = pneg %p184
    // Predicated region
    $region9: #{bidir_mamba_forward.3} parent=5 // pred_check
      _
    $region10: #{bidir_mamba_forward.3} parent=5 // pred_check_branch
      %187 = sbr.rel (%p184) target = $region12
    $region11: #{bidir_mamba_forward.3} parent=5 // pred_region
      %s188 = ssub.s32 %s12, 1
      // Predicated region
      $region13: #{bidir_mamba_forward.3} parent=11 // pred_check
        %p189 = pneg %p85
      $region14: #{bidir_mamba_forward.3} parent=11 // pred_check_branch
        %191 = sbr.rel (%p189) target = $region16
      $region15: #{bidir_mamba_forward.3} parent=11 // pred_region
        _
      $region16: #{bidir_mamba_forward.3} parent=11 // pred_fallthru
        _
      // Predicated region
      $region17: #{bidir_mamba_forward.3} parent=11 // pred_check
        %p192 = pneg %p106
      $region18: #{bidir_mamba_forward.3} parent=11 // pred_check_branch
        %194 = sbr.rel (%p192) target = $region20
      $region19: #{bidir_mamba_forward.3} parent=11 // pred_region
        _
      $region20: #{bidir_mamba_forward.3} parent=11 // pred_fallthru
        _
      // Predicated region
      $region21: #{bidir_mamba_forward.3} parent=11 // pred_check
        %p195 = pneg %p127
      $region22: #{bidir_mamba_forward.3} parent=11 // pred_check_branch
        %197 = sbr.rel (%p195) target = $region24
      $region23: #{bidir_mamba_forward.3} parent=11 // pred_region
        _
      $region24: #{bidir_mamba_forward.3} parent=11 // pred_fallthru
        _
      // Predicated region
      $region25: #{bidir_mamba_forward.3} parent=11 // pred_check
        %p198 = pneg %p148
      $region26: #{bidir_mamba_forward.3} parent=11 // pred_check_branch
        %200 = sbr.rel (%p198) target = $region28
      $region27: #{bidir_mamba_forward.3} parent=11 // pred_region
        _
      $region28: #{bidir_mamba_forward.3} parent=11 // pred_fallthru
        _
    $region12: #{bidir_mamba_forward.3} parent=5 // pred_fallthru
      _
    %p201 = scmp.lt.s32.totalorder %s12, 2
    // Predicated region
    $region29: #{bidir_mamba_forward.3} parent=5 // pred_check
      %p202 = pneg %p201
    $region30: #{bidir_mamba_forward.3} parent=5 // pred_check_branch
      %204 = sbr.rel (%p202) target = $region32
    $region31: #{bidir_mamba_forward.3} parent=5 // pred_region
      // Predicated region
      $region33: #{bidir_mamba_forward.3} parent=31 // pred_check
        %p205 = pneg %p32
      $region34: #{bidir_mamba_forward.3} parent=31 // pred_check_branch
        %207 = sbr.rel (%p205) target = $region36
      $region35: #{bidir_mamba_forward.3} parent=31 // pred_region
        %p208 = scmp.lt.s32.totalorder %s12, 1
        %s209 = scalar_select %p208, %s12, 1
        %s210 = smul.addr %s209, 32
        %s211 = smul.addr %s210, 8
        %s212 = scalar_lea.vmem %s0, %s211
      $region36: #{bidir_mamba_forward.3} parent=31 // pred_fallthru
        _
      // Predicated region
      $region37: #{bidir_mamba_forward.3} parent=31 // pred_check
        %p213 = pneg %p58
      $region38: #{bidir_mamba_forward.3} parent=31 // pred_check_branch
        %215 = sbr.rel (%p213) target = $region40
      $region39: #{bidir_mamba_forward.3} parent=31 // pred_region
        %p216 = scmp.lt.s32.totalorder %s12, 1
        %s217 = scalar_select %p216, %s12, 1
        %s218 = smul.addr %s217, 32
        %s219 = smul.addr %s218, 8
        %s220 = scalar_lea.vmem %s1, %s219
      $region40: #{bidir_mamba_forward.3} parent=31 // pred_fallthru
        _
    $region32: #{bidir_mamba_forward.3} parent=5 // pred_fallthru
      _
    %p221 = scmp.le.s32.totalorder 1, %s12
    %p222 = scmp.lt.s32.totalorder %s12, 3
    %p223 = pnand %p221, %p222
    %p224 = pneg %p223
    // Predicated region
    $region41: #{bidir_mamba_forward.3} parent=5 // pred_check
      _
    $region42: #{bidir_mamba_forward.3} parent=5 // pred_check_branch
      %226 = sbr.rel (%p223) target = $region44
    $region43: #{bidir_mamba_forward.3} parent=5 // pred_region
      %s227 = ssub.s32 %s12, 1
      %p228 = scmp.lt.s32.totalorder %s17, 1
      %s229 = scalar_select %p228, %s17, 1
      %s230 = smul.addr %s229, 32
      %s231 = smul.addr %s230, 8
      %s232 = scalar_lea.vmem %s0, %s231
      %p233 = pneg %p38
      %p234 = pneg %p35
      %p235 = scmp.lt.s32.totalorder %s17, 1
      %s236 = scalar_select %p235, %s17, 1
      %s237 = smul.addr %s236, 32
      %s238 = smul.addr %s237, 8
      %s239 = scalar_lea.vmem %s1, %s238
      %p240 = pneg %p64
      %p241 = pneg %p61
      %p242 = pneg %p85
      %p243 = pneg %p82
      %p244 = pneg %p106
      %p245 = pneg %p103
      %p246 = pneg %p127
      %p247 = pneg %p124
      %p248 = pneg %p148
      %p249 = pneg %p145
      %p250 = pneg %p174
      %p251 = pneg %p171
      %p252 = scmp.lt.s32.totalorder %s17, 1
      %s253 = scalar_select %p252, %s17, 1
      %s254 = smul.addr %s253, 32
      %s255 = smul.addr %s254, 8
      %s256 = scalar_lea.vmem %s6, %s255
      %p257 = scmp.lt.s32.totalorder %s17, 1
      %s258 = scalar_select %p257, %s17, 1
      %s259 = smul.addr %s258, 32
      %s260 = smul.addr %s259, 8
      %s261 = scalar_lea.vmem %s0, %s260
      %p262 = scmp.lt.s32.totalorder %s17, 1
      %s263 = scalar_select %p262, %s17, 1
      %s264 = smul.addr %s263, 32
      %s265 = smul.addr %s264, 8
      %s266 = scalar_lea.vmem %s1, %s265
      %p267 = scmp.lt.s32.totalorder %s17, 1
      %s268 = scalar_select %p267, %s17, 1
      %s269 = smul.addr %s268, 32
      %s270 = smul.addr %s269, 8
      %s271 = scalar_lea.vmem %s6, %s270
      %v272 = vld [vmem:[%s261] sm:$0xff]
      %v273 = vld [vmem:[%s261 + $0x8] sm:$0xff]
      %v274 = vld [vmem:[%s261 + $0x10] sm:$0xff]
      %v275 = vld [vmem:[%s261 + $0x18] sm:$0xff]
      %v276 = vld [vmem:[%s261 + $0x20] sm:$0xff]
      %v277 = vld [vmem:[%s261 + $0x28] sm:$0xff]
      %v278 = vld [vmem:[%s261 + $0x30] sm:$0xff]
      %v279 = vld [vmem:[%s261 + $0x38] sm:$0xff]
      %v280 = vld [vmem:[%s261 + $0x40] sm:$0xff]
      %v281 = vld [vmem:[%s261 + $0x48] sm:$0xff]
      %v282 = vld [vmem:[%s261 + $0x50] sm:$0xff]
      %v283 = vld [vmem:[%s261 + $0x58] sm:$0xff]
      %v284 = vld [vmem:[%s261 + $0x60] sm:$0xff]
      %v285 = vld [vmem:[%s261 + $0x68] sm:$0xff]
      %v286 = vld [vmem:[%s261 + $0x70] sm:$0xff]
      %v287 = vld [vmem:[%s261 + $0x78] sm:$0xff]
      %v288 = vld [vmem:[%s261 + $0x80] sm:$0xff]
      %v289 = vld [vmem:[%s261 + $0x88] sm:$0xff]
      %v290 = vld [vmem:[%s261 + $0x90] sm:$0xff]
      %v291 = vld [vmem:[%s261 + $0x98] sm:$0xff]
      %v292 = vld [vmem:[%s261 + $0xa0] sm:$0xff]
      %v293 = vld [vmem:[%s261 + $0xa8] sm:$0xff]
      %v294 = vld [vmem:[%s261 + $0xb0] sm:$0xff]
      %v295 = vld [vmem:[%s261 + $0xb8] sm:$0xff]
      %v296 = vld [vmem:[%s261 + $0xc0] sm:$0xff]
      %v297 = vld [vmem:[%s261 + $0xc8] sm:$0xff]
      %v298 = vld [vmem:[%s261 + $0xd0] sm:$0xff]
      %v299 = vld [vmem:[%s261 + $0xd8] sm:$0xff]
      %v300 = vld [vmem:[%s261 + $0xe0] sm:$0xff]
      %v301 = vld [vmem:[%s261 + $0xe8] sm:$0xff]
      %v302 = vld [vmem:[%s261 + $0xf0] sm:$0xff]
      %v303 = vld [vmem:[%s261 + $0xf8] sm:$0xff]
      %vm304 = vcmask 31744
      %v305 = vsel %vm304, %v272, 0.0
      %v306 = vsel %vm304, %v273, 0.0
      %v307 = vadd.f32 %v305, %v306
      %v308 = vsel %vm304, %v274, 0.0
      %v309 = vadd.f32 %v307, %v308
      %v310 = vsel %vm304, %v275, 0.0
      %v311 = vadd.f32 %v309, %v310
      %v312 = vsel %vm304, %v276, 0.0
      %v313 = vadd.f32 %v311, %v312
      %v314 = vsel %vm304, %v277, 0.0
      %v315 = vadd.f32 %v313, %v314
      %v316 = vsel %vm304, %v278, 0.0
      %v317 = vadd.f32 %v315, %v316
      %v318 = vsel %vm304, %v279, 0.0
      %v319 = vadd.f32 %v317, %v318
      %v320 = vsel %vm304, %v280, 0.0
      %v321 = vadd.f32 %v319, %v320
      %v322 = vsel %vm304, %v281, 0.0
      %v323 = vadd.f32 %v321, %v322
      %v324 = vsel %vm304, %v282, 0.0
      %v325 = vadd.f32 %v323, %v324
      %v326 = vsel %vm304, %v283, 0.0
      %v327 = vadd.f32 %v325, %v326
      %v328 = vsel %vm304, %v284, 0.0
      %v329 = vadd.f32 %v327, %v328
      %v330 = vsel %vm304, %v285, 0.0
      %v331 = vadd.f32 %v329, %v330
      %v332 = vsel %vm304, %v286, 0.0
      %v333 = vadd.f32 %v331, %v332
      %v334 = vsel %vm304, %v287, 0.0
      %v335 = vadd.f32 %v333, %v334
      %v336 = vsel %vm304, %v288, 0.0
      %v337 = vadd.f32 %v335, %v336
      %v338 = vsel %vm304, %v289, 0.0
      %v339 = vadd.f32 %v337, %v338
      %v340 = vsel %vm304, %v290, 0.0
      %v341 = vadd.f32 %v339, %v340
      %v342 = vsel %vm304, %v291, 0.0
      %v343 = vadd.f32 %v341, %v342
      %v344 = vsel %vm304, %v292, 0.0
      %v345 = vadd.f32 %v343, %v344
      %v346 = vsel %vm304, %v293, 0.0
      %v347 = vadd.f32 %v345, %v346
      %v348 = vsel %vm304, %v294, 0.0
      %v349 = vadd.f32 %v347, %v348
      %v350 = vsel %vm304, %v295, 0.0
      %v351 = vadd.f32 %v349, %v350
      %v352 = vsel %vm304, %v296, 0.0
      %v353 = vadd.f32 %v351, %v352
      %v354 = vsel %vm304, %v297, 0.0
      %v355 = vadd.f32 %v353, %v354
      %v356 = vsel %vm304, %v298, 0.0
      %v357 = vadd.f32 %v355, %v356
      %v358 = vsel %vm304, %v299, 0.0
      %v359 = vadd.f32 %v357, %v358
      %v360 = vsel %vm304, %v300, 0.0
      %v361 = vadd.f32 %v359, %v360
      %v362 = vsel %vm304, %v301, 0.0
      %v363 = vadd.f32 %v361, %v362
      %v364 = vsel %vm304, %v302, 0.0
      %v365 = vadd.f32 %v363, %v364
      %v366 = vsel %vm304, %v303, 0.0
      %v367 = vadd.f32 %v365, %v366
      %v368 = vrot.slane %v367, 4
      %v369 = vadd.f32 %v367, %v368
      %v370 = vrot.slane %v369, 2
      %v371 = vadd.f32 %v369, %v370
      %v372 = vrot.slane %v371, 1
      %v373 = vadd.f32 %v371, %v372
      %v374 = vmul.f32 %v272, %v272
      %v375 = vmul.f32 %v273, %v273
      %v376 = vmul.f32 %v274, %v274
      %v377 = vmul.f32 %v275, %v275
      %v378 = vmul.f32 %v276, %v276
      %v379 = vmul.f32 %v277, %v277
      %v380 = vmul.f32 %v278, %v278
      %v381 = vmul.f32 %v279, %v279
      %v382 = vmul.f32 %v280, %v280
      %v383 = vmul.f32 %v281, %v281
      %v384 = vmul.f32 %v282, %v282
      %v385 = vmul.f32 %v283, %v283
      %v386 = vmul.f32 %v284, %v284
      %v387 = vmul.f32 %v285, %v285
      %v388 = vmul.f32 %v286, %v286
      %v389 = vmul.f32 %v287, %v287
      %v390 = vmul.f32 %v288, %v288
      %v391 = vmul.f32 %v289, %v289
      %v392 = vmul.f32 %v290, %v290
      %v393 = vmul.f32 %v291, %v291
      %v394 = vmul.f32 %v292, %v292
      %v395 = vmul.f32 %v293, %v293
      %v396 = vmul.f32 %v294, %v294
      %v397 = vmul.f32 %v295, %v295
      %v398 = vmul.f32 %v296, %v296
      %v399 = vmul.f32 %v297, %v297
      %v400 = vmul.f32 %v298, %v298
      %v401 = vmul.f32 %v299, %v299
      %v402 = vmul.f32 %v300, %v300
      %v403 = vmul.f32 %v301, %v301
      %v404 = vmul.f32 %v302, %v302
      %v405 = vmul.f32 %v303, %v303
      %v406 = vsel %vm304, %v374, 0.0
      %v407 = vsel %vm304, %v375, 0.0
      %v408 = vadd.f32 %v406, %v407
      %v409 = vsel %vm304, %v376, 0.0
      %v410 = vadd.f32 %v408, %v409
      %v411 = vsel %vm304, %v377, 0.0
      %v412 = vadd.f32 %v410, %v411
      %v413 = vsel %vm304, %v378, 0.0
      %v414 = vadd.f32 %v412, %v413
      %v415 = vsel %vm304, %v379, 0.0
      %v416 = vadd.f32 %v414, %v415
      %v417 = vsel %vm304, %v380, 0.0
      %v418 = vadd.f32 %v416, %v417
      %v419 = vsel %vm304, %v381, 0.0
      %v420 = vadd.f32 %v418, %v419
      %v421 = vsel %vm304, %v382, 0.0
      %v422 = vadd.f32 %v420, %v421
      %v423 = vsel %vm304, %v383, 0.0
      %v424 = vadd.f32 %v422, %v423
      %v425 = vsel %vm304, %v384, 0.0
      %v426 = vadd.f32 %v424, %v425
      %v427 = vsel %vm304, %v385, 0.0
      %v428 = vadd.f32 %v426, %v427
      %v429 = vsel %vm304, %v386, 0.0
      %v430 = vadd.f32 %v428, %v429
      %v431 = vsel %vm304, %v387, 0.0
      %v432 = vadd.f32 %v430, %v431
      %v433 = vsel %vm304, %v388, 0.0
      %v434 = vadd.f32 %v432, %v433
      %v435 = vsel %vm304, %v389, 0.0
      %v436 = vadd.f32 %v434, %v435
      %v437 = vsel %vm304, %v390, 0.0
      %v438 = vadd.f32 %v436, %v437
      %v439 = vsel %vm304, %v391, 0.0
      %v440 = vadd.f32 %v438, %v439
      %v441 = vsel %vm304, %v392, 0.0
      %v442 = vadd.f32 %v440, %v441
      %v443 = vsel %vm304, %v393, 0.0
      %v444 = vadd.f32 %v442, %v443
      %v445 = vsel %vm304, %v394, 0.0
      %v446 = vadd.f32 %v444, %v445
      %v447 = vsel %vm304, %v395, 0.0
      %v448 = vadd.f32 %v446, %v447
      %v449 = vsel %vm304, %v396, 0.0
      %v450 = vadd.f32 %v448, %v449
      %v451 = vsel %vm304, %v397, 0.0
      %v452 = vadd.f32 %v450, %v451
      %v453 = vsel %vm304, %v398, 0.0
      %v454 = vadd.f32 %v452, %v453
      %v455 = vsel %vm304, %v399, 0.0
      %v456 = vadd.f32 %v454, %v455
      %v457 = vsel %vm304, %v400, 0.0
      %v458 = vadd.f32 %v456, %v457
      %v459 = vsel %vm304, %v401, 0.0
      %v460 = vadd.f32 %v458, %v459
      %v461 = vsel %vm304, %v402, 0.0
      %v462 = vadd.f32 %v460, %v461
      %v463 = vsel %vm304, %v403, 0.0
      %v464 = vadd.f32 %v462, %v463
      %v465 = vsel %vm304, %v404, 0.0
      %v466 = vadd.f32 %v464, %v465
      %v467 = vsel %vm304, %v405, 0.0
      %v468 = vadd.f32 %v466, %v467
      %v469 = vrot.slane %v468, 4
      %v470 = vadd.f32 %v468, %v469
      %v471 = vrot.slane %v470, 2
      %v472 = vadd.f32 %v470, %v471
      %v473 = vrot.slane %v472, 1
      %v474 = vadd.f32 %v472, %v473
      %v475 = vld [vmem:[%s4] sm:$0xf]
      %v477 = vsel %vm304, %v373, 0
      %vm479 = vcmask 1043456
      %v481 = vsel %vm479, %v475, 0
      %483 = vmatpush.msra.mxu0 0.0
      %484 = vmatpush.msra.mxu0 0.0
      %485 = vmatpush.msra.mxu0 0.0
      %486 = vmatpush.msra.mxu0 0.0
      %487 = vmatpush.msra.mxu0 0.0
      %488 = vmatpush.msra.mxu0 0.0
      %489 = vmatpush.msra.mxu0 0.0
      %490 = vmatpush.msra.mxu0 0.0
      %491 = vmatpush.msra.mxu0 0.0
      %492 = vmatpush.msra.mxu0 0.0
      %493 = vmatpush.msra.mxu0 0.0
      %494 = vmatpush.msra.mxu0 0.0
      %495 = vmatpush.msra.mxu0 0.0
      %496 = vmatpush.msra.mxu0 0.0
      %497 = vmatpush.msra.mxu0 0.0
      %498 = vmatpush.msra.mxu0 %v481
      %499 = vmatmul.f32.gmra.mxu0 %v477
      %v500 = vpop.f32.mrf.mxu0
      %v501 = vadd.f32 0.0, %v500
      %502 = vdwg.mxu0
      %v503 = vmul.f32 %v501, 0.00390625
      %v505 = vsel %vm304, %v474, 0
      %507 = vmatpush.msra.mxu0 0.0
      %508 = vmatpush.msra.mxu0 0.0
      %509 = vmatpush.msra.mxu0 0.0
      %510 = vmatpush.msra.mxu0 0.0
      %511 = vmatpush.msra.mxu0 0.0
      %512 = vmatpush.msra.mxu0 0.0
      %513 = vmatpush.msra.mxu0 0.0
      %514 = vmatpush.msra.mxu0 0.0
      %515 = vmatpush.msra.mxu0 0.0
      %516 = vmatpush.msra.mxu0 0.0
      %517 = vmatpush.msra.mxu0 0.0
      %518 = vmatpush.msra.mxu0 0.0
      %519 = vmatpush.msra.mxu0 0.0
      %520 = vmatpush.msra.mxu0 0.0
      %521 = vmatpush.msra.mxu0 0.0
      %522 = vmatpush.msra.mxu0 %v481
      %523 = vmatmul.f32.gmra.mxu0 %v505
      %v524 = vpop.f32.mrf.mxu0
      %v525 = vadd.f32 0.0, %v524
      %526 = vdwg.mxu0
      %v527 = vmul.f32 %v525, 0.00390625
      %v528 = vmul.f32 %v503, %v503
      %v529 = vsub.f32 %v527, %v528
      %v530 = vmax.f32 %v529, 0.0
      %v531 = vld [vmem:[%s5] sm:$0xf]
      %v533 = vsel %vm304, %v503, 0
      %v536 = vsel %vm479, %v531, 0
      %538 = vmatpush.msra.mxu0 0.0
      %539 = vmatpush.msra.mxu0 0.0
      %540 = vmatpush.msra.mxu0 0.0
      %541 = vmatpush.msra.mxu0 0.0
      %542 = vmatpush.msra.mxu0 0.0
      %543 = vmatpush.msra.mxu0 0.0
      %544 = vmatpush.msra.mxu0 0.0
      %545 = vmatpush.msra.mxu0 0.0
      %546 = vmatpush.msra.mxu0 0.0
      %547 = vmatpush.msra.mxu0 0.0
      %548 = vmatpush.msra.mxu0 0.0
      %549 = vmatpush.msra.mxu0 0.0
      %550 = vmatpush.msra.mxu0 0.0
      %551 = vmatpush.msra.mxu0 0.0
      %552 = vmatpush.msra.mxu0 0.0
      %553 = vmatpush.msra.mxu0 %v536
      %554 = vmatmul.f32.gmra.mxu0 %v533
      %v555 = vpop.f32.mrf.mxu0
      %v556 = vadd.f32 0.0, %v555
      %557 = vdwg.mxu0
      %v559 = vsel %vm304, %v530, 0
      %561 = vmatpush.msra.mxu0 0.0
      %562 = vmatpush.msra.mxu0 0.0
      %563 = vmatpush.msra.mxu0 0.0
      %564 = vmatpush.msra.mxu0 0.0
      %565 = vmatpush.msra.mxu0 0.0
      %566 = vmatpush.msra.mxu0 0.0
      %567 = vmatpush.msra.mxu0 0.0
      %568 = vmatpush.msra.mxu0 0.0
      %569 = vmatpush.msra.mxu0 0.0
      %570 = vmatpush.msra.mxu0 0.0
      %571 = vmatpush.msra.mxu0 0.0
      %572 = vmatpush.msra.mxu0 0.0
      %573 = vmatpush.msra.mxu0 0.0
      %574 = vmatpush.msra.mxu0 0.0
      %575 = vmatpush.msra.mxu0 0.0
      %576 = vmatpush.msra.mxu0 %v536
      %577 = vmatmul.f32.gmra.mxu0 %v559
      %v578 = vpop.f32.mrf.mxu0
      %v579 = vadd.f32 1e-05, %v578
      %580 = vdwg.mxu0
      %v581 = vrsqrt.pop %v579
      %v582 = vmul.f32 %v581, %v579
      %v583 = vmul.f32 %v582, %v581
      %v584 = vmul.f32 0.5, %v583
      %v585 = vsub.f32 1.5, %v584
      %v586 = vmul.f32 %v581, %v585
      %vm587 = vweird.f32 %v579
      %vm588 = vweird.f32 %v581
      %vm589 = vmor %vm587, %vm588
      %v590 = vsel %vm589, %v581, %v586
      %v591 = vperm.slane %v556, 0
      %v592 = vsub.f32 %v272, %v591
      %v593 = vsub.f32 %v273, %v591
      %v594 = vsub.f32 %v274, %v591
      %v595 = vsub.f32 %v275, %v591
      %v596 = vsub.f32 %v276, %v591
      %v597 = vsub.f32 %v277, %v591
      %v598 = vsub.f32 %v278, %v591
      %v599 = vsub.f32 %v279, %v591
      %v600 = vsub.f32 %v280, %v591
      %v601 = vsub.f32 %v281, %v591
      %v602 = vsub.f32 %v282, %v591
      %v603 = vsub.f32 %v283, %v591
      %v604 = vsub.f32 %v284, %v591
      %v605 = vsub.f32 %v285, %v591
      %v606 = vsub.f32 %v286, %v591
      %v607 = vsub.f32 %v287, %v591
      %v608 = vsub.f32 %v288, %v591
      %v609 = vsub.f32 %v289, %v591
      %v610 = vsub.f32 %v290, %v591
      %v611 = vsub.f32 %v291, %v591
      %v612 = vsub.f32 %v292, %v591
      %v613 = vsub.f32 %v293, %v591
      %v614 = vsub.f32 %v294, %v591
      %v615 = vsub.f32 %v295, %v591
      %v616 = vsub.f32 %v296, %v591
      %v617 = vsub.f32 %v297, %v591
      %v618 = vsub.f32 %v298, %v591
      %v619 = vsub.f32 %v299, %v591
      %v620 = vsub.f32 %v300, %v591
      %v621 = vsub.f32 %v301, %v591
      %v622 = vsub.f32 %v302, %v591
      %v623 = vsub.f32 %v303, %v591
      %v624 = vperm.slane %v590, 0
      %v625 = vmul.f32 %v592, %v624
      %v626 = vmul.f32 %v593, %v624
      %v627 = vmul.f32 %v594, %v624
      %v628 = vmul.f32 %v595, %v624
      %v629 = vmul.f32 %v596, %v624
      %v630 = vmul.f32 %v597, %v624
      %v631 = vmul.f32 %v598, %v624
      %v632 = vmul.f32 %v599, %v624
      %v633 = vmul.f32 %v600, %v624
      %v634 = vmul.f32 %v601, %v624
      %v635 = vmul.f32 %v602, %v624
      %v636 = vmul.f32 %v603, %v624
      %v637 = vmul.f32 %v604, %v624
      %v638 = vmul.f32 %v605, %v624
      %v639 = vmul.f32 %v606, %v624
      %v640 = vmul.f32 %v607, %v624
      %v641 = vmul.f32 %v608, %v624
      %v642 = vmul.f32 %v609, %v624
      %v643 = vmul.f32 %v610, %v624
      %v644 = vmul.f32 %v611, %v624
      %v645 = vmul.f32 %v612, %v624
      %v646 = vmul.f32 %v613, %v624
      %v647 = vmul.f32 %v614, %v624
      %v648 = vmul.f32 %v615, %v624
      %v649 = vmul.f32 %v616, %v624
      %v650 = vmul.f32 %v617, %v624
      %v651 = vmul.f32 %v618, %v624
      %v652 = vmul.f32 %v619, %v624
      %v653 = vmul.f32 %v620, %v624
      %v654 = vmul.f32 %v621, %v624
      %v655 = vmul.f32 %v622, %v624
      %v656 = vmul.f32 %v623, %v624
      %v657 = vld [vmem:[%s2] sm:$0x1]
      %v659 = vperm.slane %v657, 0
      %v661 = vmul.f32 %v625, %v659
      %v662 = vmul.f32 %v626, %v659
      %v663 = vmul.f32 %v627, %v659
      %v664 = vmul.f32 %v628, %v659
      %v665 = vmul.f32 %v629, %v659
      %v666 = vmul.f32 %v630, %v659
      %v667 = vmul.f32 %v631, %v659
      %v668 = vmul.f32 %v632, %v659
      %v669 = vmul.f32 %v633, %v659
      %v670 = vmul.f32 %v634, %v659
      %v671 = vmul.f32 %v635, %v659
      %v672 = vmul.f32 %v636, %v659
      %v673 = vmul.f32 %v637, %v659
      %v674 = vmul.f32 %v638, %v659
      %v675 = vmul.f32 %v639, %v659
      %v676 = vmul.f32 %v640, %v659
      %v677 = vmul.f32 %v641, %v659
      %v678 = vmul.f32 %v642, %v659
      %v679 = vmul.f32 %v643, %v659
      %v680 = vmul.f32 %v644, %v659
      %v681 = vmul.f32 %v645, %v659
      %v682 = vmul.f32 %v646, %v659
      %v683 = vmul.f32 %v647, %v659
      %v684 = vmul.f32 %v648, %v659
      %v685 = vmul.f32 %v649, %v659
      %v686 = vmul.f32 %v650, %v659
      %v687 = vmul.f32 %v651, %v659
      %v688 = vmul.f32 %v652, %v659
      %v689 = vmul.f32 %v653, %v659
      %v690 = vmul.f32 %v654, %v659
      %v691 = vmul.f32 %v655, %v659
      %v692 = vmul.f32 %v656, %v659
      %v693 = vld [vmem:[%s3] sm:$0x1]
      %v695 = vperm.slane %v693, 0
      %v697 = vadd.f32 %v661, %v695
      %v698 = vadd.f32 %v662, %v695
      %v699 = vadd.f32 %v663, %v695
      %v700 = vadd.f32 %v664, %v695
      %v701 = vadd.f32 %v665, %v695
      %v702 = vadd.f32 %v666, %v695
      %v703 = vadd.f32 %v667, %v695
      %v704 = vadd.f32 %v668, %v695
      %v705 = vadd.f32 %v669, %v695
      %v706 = vadd.f32 %v670, %v695
      %v707 = vadd.f32 %v671, %v695
      %v708 = vadd.f32 %v672, %v695
      %v709 = vadd.f32 %v673, %v695
      %v710 = vadd.f32 %v674, %v695
      %v711 = vadd.f32 %v675, %v695
      %v712 = vadd.f32 %v676, %v695
      %v713 = vadd.f32 %v677, %v695
      %v714 = vadd.f32 %v678, %v695
      %v715 = vadd.f32 %v679, %v695
      %v716 = vadd.f32 %v680, %v695
      %v717 = vadd.f32 %v681, %v695
      %v718 = vadd.f32 %v682, %v695
      %v719 = vadd.f32 %v683, %v695
      %v720 = vadd.f32 %v684, %v695
      %v721 = vadd.f32 %v685, %v695
      %v722 = vadd.f32 %v686, %v695
      %v723 = vadd.f32 %v687, %v695
      %v724 = vadd.f32 %v688, %v695
      %v725 = vadd.f32 %v689, %v695
      %v726 = vadd.f32 %v690, %v695
      %v727 = vadd.f32 %v691, %v695
      %v728 = vadd.f32 %v692, %v695
      %v729 = vxor.u32 %v697, 2147483648
      %v730 = vxor.u32 %v698, 2147483648
      %v731 = vxor.u32 %v699, 2147483648
      %v732 = vxor.u32 %v700, 2147483648
      %v733 = vxor.u32 %v701, 2147483648
      %v734 = vxor.u32 %v702, 2147483648
      %v735 = vxor.u32 %v703, 2147483648
      %v736 = vxor.u32 %v704, 2147483648
      %v737 = vxor.u32 %v705, 2147483648
      %v738 = vxor.u32 %v706, 2147483648
      %v739 = vxor.u32 %v707, 2147483648
      %v740 = vxor.u32 %v708, 2147483648
      %v741 = vxor.u32 %v709, 2147483648
      %v742 = vxor.u32 %v710, 2147483648
      %v743 = vxor.u32 %v711, 2147483648
      %v744 = vxor.u32 %v712, 2147483648
      %v745 = vxor.u32 %v713, 2147483648
      %v746 = vxor.u32 %v714, 2147483648
      %v747 = vxor.u32 %v715, 2147483648
      %v748 = vxor.u32 %v716, 2147483648
      %v749 = vxor.u32 %v717, 2147483648
      %v750 = vxor.u32 %v718, 2147483648
      %v751 = vxor.u32 %v719, 2147483648
      %v752 = vxor.u32 %v720, 2147483648
      %v753 = vxor.u32 %v721, 2147483648
      %v754 = vxor.u32 %v722, 2147483648
      %v755 = vxor.u32 %v723, 2147483648
      %v756 = vxor.u32 %v724, 2147483648
      %v757 = vxor.u32 %v725, 2147483648
      %v758 = vxor.u32 %v726, 2147483648
      %v759 = vxor.u32 %v727, 2147483648
      %v760 = vxor.u32 %v728, 2147483648
      %v761 = vmul.f32 %v729, 1.442695
      %v762 = vpow.pop %v761
      %v763 = vmul.f32 %v730, 1.442695
      %v764 = vpow.pop %v763
      %v765 = vmul.f32 %v731, 1.442695
      %v766 = vpow.pop %v765
      %v767 = vmul.f32 %v732, 1.442695
      %v768 = vpow.pop %v767
      %v769 = vmul.f32 %v733, 1.442695
      %v770 = vpow.pop %v769
      %v771 = vmul.f32 %v734, 1.442695
      %v772 = vpow.pop %v771
      %v773 = vmul.f32 %v735, 1.442695
      %v774 = vpow.pop %v773
      %v775 = vmul.f32 %v736, 1.442695
      %v776 = vpow.pop %v775
      %v777 = vmul.f32 %v737, 1.442695
      %v778 = vpow.pop %v777
      %v779 = vmul.f32 %v738, 1.442695
      %v780 = vpow.pop %v779
      %v781 = vmul.f32 %v739, 1.442695
      %v782 = vpow.pop %v781
      %v783 = vmul.f32 %v740, 1.442695
      %v784 = vpow.pop %v783
      %v785 = vmul.f32 %v741, 1.442695
      %v786 = vpow.pop %v785
      %v787 = vmul.f32 %v742, 1.442695
      %v788 = vpow.pop %v787
      %v789 = vmul.f32 %v743, 1.442695
      %v790 = vpow.pop %v789
      %v791 = vmul.f32 %v744, 1.442695
      %v792 = vpow.pop %v791
      %v793 = vmul.f32 %v745, 1.442695
      %v794 = vpow.pop %v793
      %v795 = vmul.f32 %v746, 1.442695
      %v796 = vpow.pop %v795
      %v797 = vmul.f32 %v747, 1.442695
      %v798 = vpow.pop %v797
      %v799 = vmul.f32 %v748, 1.442695
      %v800 = vpow.pop %v799
      %v801 = vmul.f32 %v749, 1.442695
      %v802 = vpow.pop %v801
      %v803 = vmul.f32 %v750, 1.442695
      %v804 = vpow.pop %v803
      %v805 = vmul.f32 %v751, 1.442695
      %v806 = vpow.pop %v805
      %v807 = vmul.f32 %v752, 1.442695
      %v808 = vpow.pop %v807
      %v809 = vmul.f32 %v753, 1.442695
      %v810 = vpow.pop %v809
      %v811 = vmul.f32 %v754, 1.442695
      %v812 = vpow.pop %v811
      %v813 = vmul.f32 %v755, 1.442695
      %v814 = vpow.pop %v813
      %v815 = vmul.f32 %v756, 1.442695
      %v816 = vpow.pop %v815
      %v817 = vmul.f32 %v757, 1.442695
      %v818 = vpow.pop %v817
      %v819 = vmul.f32 %v758, 1.442695
      %v820 = vpow.pop %v819
      %v821 = vmul.f32 %v759, 1.442695
      %v822 = vpow.pop %v821
      %v823 = vmul.f32 %v760, 1.442695
      %v824 = vpow.pop %v823
      %v825 = vadd.f32 %v762, 1.0
      %v826 = vadd.f32 %v764, 1.0
      %v827 = vadd.f32 %v766, 1.0
      %v828 = vadd.f32 %v768, 1.0
      %v829 = vadd.f32 %v770, 1.0
      %v830 = vadd.f32 %v772, 1.0
      %v831 = vadd.f32 %v774, 1.0
      %v832 = vadd.f32 %v776, 1.0
      %v833 = vadd.f32 %v778, 1.0
      %v834 = vadd.f32 %v780, 1.0
      %v835 = vadd.f32 %v782, 1.0
      %v836 = vadd.f32 %v784, 1.0
      %v837 = vadd.f32 %v786, 1.0
      %v838 = vadd.f32 %v788, 1.0
      %v839 = vadd.f32 %v790, 1.0
      %v840 = vadd.f32 %v792, 1.0
      %v841 = vadd.f32 %v794, 1.0
      %v842 = vadd.f32 %v796, 1.0
      %v843 = vadd.f32 %v798, 1.0
      %v844 = vadd.f32 %v800, 1.0
      %v845 = vadd.f32 %v802, 1.0
      %v846 = vadd.f32 %v804, 1.0
      %v847 = vadd.f32 %v806, 1.0
      %v848 = vadd.f32 %v808, 1.0
      %v849 = vadd.f32 %v810, 1.0
      %v850 = vadd.f32 %v812, 1.0
      %v851 = vadd.f32 %v814, 1.0
      %v852 = vadd.f32 %v816, 1.0
      %v853 = vadd.f32 %v818, 1.0
      %v854 = vadd.f32 %v820, 1.0
      %v855 = vadd.f32 %v822, 1.0
      %v856 = vadd.f32 %v824, 1.0
      %v857 = vrcp.pop %v825
      %v858 = vmul.f32 %v825, %v857
      %v859 = vsub.f32 1.0, %v858
      %v860 = vmul.f32 %v857, %v859
      %v861 = vadd.f32 %v857, %v860
      %vm862 = vweird.f32 %v825
      %vm863 = vweird.f32 %v857
      %vm864 = vmor %vm862, %vm863
      %v865 = vsel %vm864, %v857, %v861
      %v866 = vand.u32 2147483647, %v825
      %vm867 = vcmp.eq.f32.partialorder %v866, 8.507059e+37
      %v868 = vand.u32 %v825, 2147483648
      %v869 = vor.u32 1.1754944e-38, %v868
      %v870 = vsel %vm867, %v869, %v865
      %v871 = vmul.f32 1.0, %v870
      %v872 = vrcp.pop %v826
      %v873 = vmul.f32 %v826, %v872
      %v874 = vsub.f32 1.0, %v873
      %v875 = vmul.f32 %v872, %v874
      %v876 = vadd.f32 %v872, %v875
      %vm877 = vweird.f32 %v826
      %vm878 = vweird.f32 %v872
      %vm879 = vmor %vm877, %vm878
      %v880 = vsel %vm879, %v872, %v876
      %v881 = vand.u32 2147483647, %v826
      %vm882 = vcmp.eq.f32.partialorder %v881, 8.507059e+37
      %v883 = vand.u32 %v826, 2147483648
      %v884 = vor.u32 1.1754944e-38, %v883
      %v885 = vsel %vm882, %v884, %v880
      %v886 = vmul.f32 1.0, %v885
      %v887 = vrcp.pop %v827
      %v888 = vmul.f32 %v827, %v887
      %v889 = vsub.f32 1.0, %v888
      %v890 = vmul.f32 %v887, %v889
      %v891 = vadd.f32 %v887, %v890
      %vm892 = vweird.f32 %v827
      %vm893 = vweird.f32 %v887
      %vm894 = vmor %vm892, %vm893
      %v895 = vsel %vm894, %v887, %v891
      %v896 = vand.u32 2147483647, %v827
      %vm897 = vcmp.eq.f32.partialorder %v896, 8.507059e+37
      %v898 = vand.u32 %v827, 2147483648
      %v899 = vor.u32 1.1754944e-38, %v898
      %v900 = vsel %vm897, %v899, %v895
      %v901 = vmul.f32 1.0, %v900
      %v902 = vrcp.pop %v828
      %v903 = vmul.f32 %v828, %v902
      %v904 = vsub.f32 1.0, %v903
      %v905 = vmul.f32 %v902, %v904
      %v906 = vadd.f32 %v902, %v905
      %vm907 = vweird.f32 %v828
      %vm908 = vweird.f32 %v902
      %vm909 = vmor %vm907, %vm908
      %v910 = vsel %vm909, %v902, %v906
      %v911 = vand.u32 2147483647, %v828
      %vm912 = vcmp.eq.f32.partialorder %v911, 8.507059e+37
      %v913 = vand.u32 %v828, 2147483648
      %v914 = vor.u32 1.1754944e-38, %v913
      %v915 = vsel %vm912, %v914, %v910
      %v916 = vmul.f32 1.0, %v915
      %v917 = vrcp.pop %v829
      %v918 = vmul.f32 %v829, %v917
      %v919 = vsub.f32 1.0, %v918
      %v920 = vmul.f32 %v917, %v919
      %v921 = vadd.f32 %v917, %v920
      %vm922 = vweird.f32 %v829
      %vm923 = vweird.f32 %v917
      %vm924 = vmor %vm922, %vm923
      %v925 = vsel %vm924, %v917, %v921
      %v926 = vand.u32 2147483647, %v829
      %vm927 = vcmp.eq.f32.partialorder %v926, 8.507059e+37
      %v928 = vand.u32 %v829, 2147483648
      %v929 = vor.u32 1.1754944e-38, %v928
      %v930 = vsel %vm927, %v929, %v925
      %v931 = vmul.f32 1.0, %v930
      %v932 = vrcp.pop %v830
      %v933 = vmul.f32 %v830, %v932
      %v934 = vsub.f32 1.0, %v933
      %v935 = vmul.f32 %v932, %v934
      %v936 = vadd.f32 %v932, %v935
      %vm937 = vweird.f32 %v830
      %vm938 = vweird.f32 %v932
      %vm939 = vmor %vm937, %vm938
      %v940 = vsel %vm939, %v932, %v936
      %v941 = vand.u32 2147483647, %v830
      %vm942 = vcmp.eq.f32.partialorder %v941, 8.507059e+37
      %v943 = vand.u32 %v830, 2147483648
      %v944 = vor.u32 1.1754944e-38, %v943
      %v945 = vsel %vm942, %v944, %v940
      %v946 = vmul.f32 1.0, %v945
      %v947 = vrcp.pop %v831
      %v948 = vmul.f32 %v831, %v947
      %v949 = vsub.f32 1.0, %v948
      %v950 = vmul.f32 %v947, %v949
      %v951 = vadd.f32 %v947, %v950
      %vm952 = vweird.f32 %v831
      %vm953 = vweird.f32 %v947
      %vm954 = vmor %vm952, %vm953
      %v955 = vsel %vm954, %v947, %v951
      %v956 = vand.u32 2147483647, %v831
      %vm957 = vcmp.eq.f32.partialorder %v956, 8.507059e+37
      %v958 = vand.u32 %v831, 2147483648
      %v959 = vor.u32 1.1754944e-38, %v958
      %v960 = vsel %vm957, %v959, %v955
      %v961 = vmul.f32 1.0, %v960
      %v962 = vrcp.pop %v832
      %v963 = vmul.f32 %v832, %v962
      %v964 = vsub.f32 1.0, %v963
      %v965 = vmul.f32 %v962, %v964
      %v966 = vadd.f32 %v962, %v965
      %vm967 = vweird.f32 %v832
      %vm968 = vweird.f32 %v962
      %vm969 = vmor %vm967, %vm968
      %v970 = vsel %vm969, %v962, %v966
      %v971 = vand.u32 2147483647, %v832
      %vm972 = vcmp.eq.f32.partialorder %v971, 8.507059e+37
      %v973 = vand.u32 %v832, 2147483648
      %v974 = vor.u32 1.1754944e-38, %v973
      %v975 = vsel %vm972, %v974, %v970
      %v976 = vmul.f32 1.0, %v975
      %v977 = vrcp.pop %v833
      %v978 = vmul.f32 %v833, %v977
      %v979 = vsub.f32 1.0, %v978
      %v980 = vmul.f32 %v977, %v979
      %v981 = vadd.f32 %v977, %v980
      %vm982 = vweird.f32 %v833
      %vm983 = vweird.f32 %v977
      %vm984 = vmor %vm982, %vm983
      %v985 = vsel %vm984, %v977, %v981
      %v986 = vand.u32 2147483647, %v833
      %vm987 = vcmp.eq.f32.partialorder %v986, 8.507059e+37
      %v988 = vand.u32 %v833, 2147483648
      %v989 = vor.u32 1.1754944e-38, %v988
      %v990 = vsel %vm987, %v989, %v985
      %v991 = vmul.f32 1.0, %v990
      %v992 = vrcp.pop %v834
      %v993 = vmul.f32 %v834, %v992
      %v994 = vsub.f32 1.0, %v993
      %v995 = vmul.f32 %v992, %v994
      %v996 = vadd.f32 %v992, %v995
      %vm997 = vweird.f32 %v834
      %vm998 = vweird.f32 %v992
      %vm999 = vmor %vm997, %vm998
      %v1000 = vsel %vm999, %v992, %v996
      %v1001 = vand.u32 2147483647, %v834
      %vm1002 = vcmp.eq.f32.partialorder %v1001, 8.507059e+37
      %v1003 = vand.u32 %v834, 2147483648
      %v1004 = vor.u32 1.1754944e-38, %v1003
      %v1005 = vsel %vm1002, %v1004, %v1000
      %v1006 = vmul.f32 1.0, %v1005
      %v1007 = vrcp.pop %v835
      %v1008 = vmul.f32 %v835, %v1007
      %v1009 = vsub.f32 1.0, %v1008
      %v1010 = vmul.f32 %v1007, %v1009
      %v1011 = vadd.f32 %v1007, %v1010
      %vm1012 = vweird.f32 %v835
      %vm1013 = vweird.f32 %v1007
      %vm1014 = vmor %vm1012, %vm1013
      %v1015 = vsel %vm1014, %v1007, %v1011
      %v1016 = vand.u32 2147483647, %v835
      %vm1017 = vcmp.eq.f32.partialorder %v1016, 8.507059e+37
      %v1018 = vand.u32 %v835, 2147483648
      %v1019 = vor.u32 1.1754944e-38, %v1018
      %v1020 = vsel %vm1017, %v1019, %v1015
      %v1021 = vmul.f32 1.0, %v1020
      %v1022 = vrcp.pop %v836
      %v1023 = vmul.f32 %v836, %v1022
      %v1024 = vsub.f32 1.0, %v1023
      %v1025 = vmul.f32 %v1022, %v1024
      %v1026 = vadd.f32 %v1022, %v1025
      %vm1027 = vweird.f32 %v836
      %vm1028 = vweird.f32 %v1022
      %vm1029 = vmor %vm1027, %vm1028
      %v1030 = vsel %vm1029, %v1022, %v1026
      %v1031 = vand.u32 2147483647, %v836
      %vm1032 = vcmp.eq.f32.partialorder %v1031, 8.507059e+37
      %v1033 = vand.u32 %v836, 2147483648
      %v1034 = vor.u32 1.1754944e-38, %v1033
      %v1035 = vsel %vm1032, %v1034, %v1030
      %v1036 = vmul.f32 1.0, %v1035
      %v1037 = vrcp.pop %v837
      %v1038 = vmul.f32 %v837, %v1037
      %v1039 = vsub.f32 1.0, %v1038
      %v1040 = vmul.f32 %v1037, %v1039
      %v1041 = vadd.f32 %v1037, %v1040
      %vm1042 = vweird.f32 %v837
      %vm1043 = vweird.f32 %v1037
      %vm1044 = vmor %vm1042, %vm1043
      %v1045 = vsel %vm1044, %v1037, %v1041
      %v1046 = vand.u32 2147483647, %v837
      %vm1047 = vcmp.eq.f32.partialorder %v1046, 8.507059e+37
      %v1048 = vand.u32 %v837, 2147483648
      %v1049 = vor.u32 1.1754944e-38, %v1048
      %v1050 = vsel %vm1047, %v1049, %v1045
      %v1051 = vmul.f32 1.0, %v1050
      %v1052 = vrcp.pop %v838
      %v1053 = vmul.f32 %v838, %v1052
      %v1054 = vsub.f32 1.0, %v1053
      %v1055 = vmul.f32 %v1052, %v1054
      %v1056 = vadd.f32 %v1052, %v1055
      %vm1057 = vweird.f32 %v838
      %vm1058 = vweird.f32 %v1052
      %vm1059 = vmor %vm1057, %vm1058
      %v1060 = vsel %vm1059, %v1052, %v1056
      %v1061 = vand.u32 2147483647, %v838
      %vm1062 = vcmp.eq.f32.partialorder %v1061, 8.507059e+37
      %v1063 = vand.u32 %v838, 2147483648
      %v1064 = vor.u32 1.1754944e-38, %v1063
      %v1065 = vsel %vm1062, %v1064, %v1060
      %v1066 = vmul.f32 1.0, %v1065
      %v1067 = vrcp.pop %v839
      %v1068 = vmul.f32 %v839, %v1067
      %v1069 = vsub.f32 1.0, %v1068
      %v1070 = vmul.f32 %v1067, %v1069
      %v1071 = vadd.f32 %v1067, %v1070
      %vm1072 = vweird.f32 %v839
      %vm1073 = vweird.f32 %v1067
      %vm1074 = vmor %vm1072, %vm1073
      %v1075 = vsel %vm1074, %v1067, %v1071
      %v1076 = vand.u32 2147483647, %v839
      %vm1077 = vcmp.eq.f32.partialorder %v1076, 8.507059e+37
      %v1078 = vand.u32 %v839, 2147483648
      %v1079 = vor.u32 1.1754944e-38, %v1078
      %v1080 = vsel %vm1077, %v1079, %v1075
      %v1081 = vmul.f32 1.0, %v1080
      %v1082 = vrcp.pop %v840
      %v1083 = vmul.f32 %v840, %v1082
      %v1084 = vsub.f32 1.0, %v1083
      %v1085 = vmul.f32 %v1082, %v1084
      %v1086 = vadd.f32 %v1082, %v1085
      %vm1087 = vweird.f32 %v840
      %vm1088 = vweird.f32 %v1082
      %vm1089 = vmor %vm1087, %vm1088
      %v1090 = vsel %vm1089, %v1082, %v1086
      %v1091 = vand.u32 2147483647, %v840
      %vm1092 = vcmp.eq.f32.partialorder %v1091, 8.507059e+37
      %v1093 = vand.u32 %v840, 2147483648
      %v1094 = vor.u32 1.1754944e-38, %v1093
      %v1095 = vsel %vm1092, %v1094, %v1090
      %v1096 = vmul.f32 1.0, %v1095
      %v1097 = vrcp.pop %v841
      %v1098 = vmul.f32 %v841, %v1097
      %v1099 = vsub.f32 1.0, %v1098
      %v1100 = vmul.f32 %v1097, %v1099
      %v1101 = vadd.f32 %v1097, %v1100
      %vm1102 = vweird.f32 %v841
      %vm1103 = vweird.f32 %v1097
      %vm1104 = vmor %vm1102, %vm1103
      %v1105 = vsel %vm1104, %v1097, %v1101
      %v1106 = vand.u32 2147483647, %v841
      %vm1107 = vcmp.eq.f32.partialorder %v1106, 8.507059e+37
      %v1108 = vand.u32 %v841, 2147483648
      %v1109 = vor.u32 1.1754944e-38, %v1108
      %v1110 = vsel %vm1107, %v1109, %v1105
      %v1111 = vmul.f32 1.0, %v1110
      %v1112 = vrcp.pop %v842
      %v1113 = vmul.f32 %v842, %v1112
      %v1114 = vsub.f32 1.0, %v1113
      %v1115 = vmul.f32 %v1112, %v1114
      %v1116 = vadd.f32 %v1112, %v1115
      %vm1117 = vweird.f32 %v842
      %vm1118 = vweird.f32 %v1112
      %vm1119 = vmor %vm1117, %vm1118
      %v1120 = vsel %vm1119, %v1112, %v1116
      %v1121 = vand.u32 2147483647, %v842
      %vm1122 = vcmp.eq.f32.partialorder %v1121, 8.507059e+37
      %v1123 = vand.u32 %v842, 2147483648
      %v1124 = vor.u32 1.1754944e-38, %v1123
      %v1125 = vsel %vm1122, %v1124, %v1120
      %v1126 = vmul.f32 1.0, %v1125
      %v1127 = vrcp.pop %v843
      %v1128 = vmul.f32 %v843, %v1127
      %v1129 = vsub.f32 1.0, %v1128
      %v1130 = vmul.f32 %v1127, %v1129
      %v1131 = vadd.f32 %v1127, %v1130
      %vm1132 = vweird.f32 %v843
      %vm1133 = vweird.f32 %v1127
      %vm1134 = vmor %vm1132, %vm1133
      %v1135 = vsel %vm1134, %v1127, %v1131
      %v1136 = vand.u32 2147483647, %v843
      %vm1137 = vcmp.eq.f32.partialorder %v1136, 8.507059e+37
      %v1138 = vand.u32 %v843, 2147483648
      %v1139 = vor.u32 1.1754944e-38, %v1138
      %v1140 = vsel %vm1137, %v1139, %v1135
      %v1141 = vmul.f32 1.0, %v1140
      %v1142 = vrcp.pop %v844
      %v1143 = vmul.f32 %v844, %v1142
      %v1144 = vsub.f32 1.0, %v1143
      %v1145 = vmul.f32 %v1142, %v1144
      %v1146 = vadd.f32 %v1142, %v1145
      %vm1147 = vweird.f32 %v844
      %vm1148 = vweird.f32 %v1142
      %vm1149 = vmor %vm1147, %vm1148
      %v1150 = vsel %vm1149, %v1142, %v1146
      %v1151 = vand.u32 2147483647, %v844
      %vm1152 = vcmp.eq.f32.partialorder %v1151, 8.507059e+37
      %v1153 = vand.u32 %v844, 2147483648
      %v1154 = vor.u32 1.1754944e-38, %v1153
      %v1155 = vsel %vm1152, %v1154, %v1150
      %v1156 = vmul.f32 1.0, %v1155
      %v1157 = vrcp.pop %v845
      %v1158 = vmul.f32 %v845, %v1157
      %v1159 = vsub.f32 1.0, %v1158
      %v1160 = vmul.f32 %v1157, %v1159
      %v1161 = vadd.f32 %v1157, %v1160
      %vm1162 = vweird.f32 %v845
      %vm1163 = vweird.f32 %v1157
      %vm1164 = vmor %vm1162, %vm1163
      %v1165 = vsel %vm1164, %v1157, %v1161
      %v1166 = vand.u32 2147483647, %v845
      %vm1167 = vcmp.eq.f32.partialorder %v1166, 8.507059e+37
      %v1168 = vand.u32 %v845, 2147483648
      %v1169 = vor.u32 1.1754944e-38, %v1168
      %v1170 = vsel %vm1167, %v1169, %v1165
      %v1171 = vmul.f32 1.0, %v1170
      %v1172 = vrcp.pop %v846
      %v1173 = vmul.f32 %v846, %v1172
      %v1174 = vsub.f32 1.0, %v1173
      %v1175 = vmul.f32 %v1172, %v1174
      %v1176 = vadd.f32 %v1172, %v1175
      %vm1177 = vweird.f32 %v846
      %vm1178 = vweird.f32 %v1172
      %vm1179 = vmor %vm1177, %vm1178
      %v1180 = vsel %vm1179, %v1172, %v1176
      %v1181 = vand.u32 2147483647, %v846
      %vm1182 = vcmp.eq.f32.partialorder %v1181, 8.507059e+37
      %v1183 = vand.u32 %v846, 2147483648
      %v1184 = vor.u32 1.1754944e-38, %v1183
      %v1185 = vsel %vm1182, %v1184, %v1180
      %v1186 = vmul.f32 1.0, %v1185
      %v1187 = vrcp.pop %v847
      %v1188 = vmul.f32 %v847, %v1187
      %v1189 = vsub.f32 1.0, %v1188
      %v1190 = vmul.f32 %v1187, %v1189
      %v1191 = vadd.f32 %v1187, %v1190
      %vm1192 = vweird.f32 %v847
      %vm1193 = vweird.f32 %v1187
      %vm1194 = vmor %vm1192, %vm1193
      %v1195 = vsel %vm1194, %v1187, %v1191
      %v1196 = vand.u32 2147483647, %v847
      %vm1197 = vcmp.eq.f32.partialorder %v1196, 8.507059e+37
      %v1198 = vand.u32 %v847, 2147483648
      %v1199 = vor.u32 1.1754944e-38, %v1198
      %v1200 = vsel %vm1197, %v1199, %v1195
      %v1201 = vmul.f32 1.0, %v1200
      %v1202 = vrcp.pop %v848
      %v1203 = vmul.f32 %v848, %v1202
      %v1204 = vsub.f32 1.0, %v1203
      %v1205 = vmul.f32 %v1202, %v1204
      %v1206 = vadd.f32 %v1202, %v1205
      %vm1207 = vweird.f32 %v848
      %vm1208 = vweird.f32 %v1202
      %vm1209 = vmor %vm1207, %vm1208
      %v1210 = vsel %vm1209, %v1202, %v1206
      %v1211 = vand.u32 2147483647, %v848
      %vm1212 = vcmp.eq.f32.partialorder %v1211, 8.507059e+37
      %v1213 = vand.u32 %v848, 2147483648
      %v1214 = vor.u32 1.1754944e-38, %v1213
      %v1215 = vsel %vm1212, %v1214, %v1210
      %v1216 = vmul.f32 1.0, %v1215
      %v1217 = vrcp.pop %v849
      %v1218 = vmul.f32 %v849, %v1217
      %v1219 = vsub.f32 1.0, %v1218
      %v1220 = vmul.f32 %v1217, %v1219
      %v1221 = vadd.f32 %v1217, %v1220
      %vm1222 = vweird.f32 %v849
      %vm1223 = vweird.f32 %v1217
      %vm1224 = vmor %vm1222, %vm1223
      %v1225 = vsel %vm1224, %v1217, %v1221
      %v1226 = vand.u32 2147483647, %v849
      %vm1227 = vcmp.eq.f32.partialorder %v1226, 8.507059e+37
      %v1228 = vand.u32 %v849, 2147483648
      %v1229 = vor.u32 1.1754944e-38, %v1228
      %v1230 = vsel %vm1227, %v1229, %v1225
      %v1231 = vmul.f32 1.0, %v1230
      %v1232 = vrcp.pop %v850
      %v1233 = vmul.f32 %v850, %v1232
      %v1234 = vsub.f32 1.0, %v1233
      %v1235 = vmul.f32 %v1232, %v1234
      %v1236 = vadd.f32 %v1232, %v1235
      %vm1237 = vweird.f32 %v850
      %vm1238 = vweird.f32 %v1232
      %vm1239 = vmor %vm1237, %vm1238
      %v1240 = vsel %vm1239, %v1232, %v1236
      %v1241 = vand.u32 2147483647, %v850
      %vm1242 = vcmp.eq.f32.partialorder %v1241, 8.507059e+37
      %v1243 = vand.u32 %v850, 2147483648
      %v1244 = vor.u32 1.1754944e-38, %v1243
      %v1245 = vsel %vm1242, %v1244, %v1240
      %v1246 = vmul.f32 1.0, %v1245
      %v1247 = vrcp.pop %v851
      %v1248 = vmul.f32 %v851, %v1247
      %v1249 = vsub.f32 1.0, %v1248
      %v1250 = vmul.f32 %v1247, %v1249
      %v1251 = vadd.f32 %v1247, %v1250
      %vm1252 = vweird.f32 %v851
      %vm1253 = vweird.f32 %v1247
      %vm1254 = vmor %vm1252, %vm1253
      %v1255 = vsel %vm1254, %v1247, %v1251
      %v1256 = vand.u32 2147483647, %v851
      %vm1257 = vcmp.eq.f32.partialorder %v1256, 8.507059e+37
      %v1258 = vand.u32 %v851, 2147483648
      %v1259 = vor.u32 1.1754944e-38, %v1258
      %v1260 = vsel %vm1257, %v1259, %v1255
      %v1261 = vmul.f32 1.0, %v1260
      %v1262 = vrcp.pop %v852
      %v1263 = vmul.f32 %v852, %v1262
      %v1264 = vsub.f32 1.0, %v1263
      %v1265 = vmul.f32 %v1262, %v1264
      %v1266 = vadd.f32 %v1262, %v1265
      %vm1267 = vweird.f32 %v852
      %vm1268 = vweird.f32 %v1262
      %vm1269 = vmor %vm1267, %vm1268
      %v1270 = vsel %vm1269, %v1262, %v1266
      %v1271 = vand.u32 2147483647, %v852
      %vm1272 = vcmp.eq.f32.partialorder %v1271, 8.507059e+37
      %v1273 = vand.u32 %v852, 2147483648
      %v1274 = vor.u32 1.1754944e-38, %v1273
      %v1275 = vsel %vm1272, %v1274, %v1270
      %v1276 = vmul.f32 1.0, %v1275
      %v1277 = vrcp.pop %v853
      %v1278 = vmul.f32 %v853, %v1277
      %v1279 = vsub.f32 1.0, %v1278
      %v1280 = vmul.f32 %v1277, %v1279
      %v1281 = vadd.f32 %v1277, %v1280
      %vm1282 = vweird.f32 %v853
      %vm1283 = vweird.f32 %v1277
      %vm1284 = vmor %vm1282, %vm1283
      %v1285 = vsel %vm1284, %v1277, %v1281
      %v1286 = vand.u32 2147483647, %v853
      %vm1287 = vcmp.eq.f32.partialorder %v1286, 8.507059e+37
      %v1288 = vand.u32 %v853, 2147483648
      %v1289 = vor.u32 1.1754944e-38, %v1288
      %v1290 = vsel %vm1287, %v1289, %v1285
      %v1291 = vmul.f32 1.0, %v1290
      %v1292 = vrcp.pop %v854
      %v1293 = vmul.f32 %v854, %v1292
      %v1294 = vsub.f32 1.0, %v1293
      %v1295 = vmul.f32 %v1292, %v1294
      %v1296 = vadd.f32 %v1292, %v1295
      %vm1297 = vweird.f32 %v854
      %vm1298 = vweird.f32 %v1292
      %vm1299 = vmor %vm1297, %vm1298
      %v1300 = vsel %vm1299, %v1292, %v1296
      %v1301 = vand.u32 2147483647, %v854
      %vm1302 = vcmp.eq.f32.partialorder %v1301, 8.507059e+37
      %v1303 = vand.u32 %v854, 2147483648
      %v1304 = vor.u32 1.1754944e-38, %v1303
      %v1305 = vsel %vm1302, %v1304, %v1300
      %v1306 = vmul.f32 1.0, %v1305
      %v1307 = vrcp.pop %v855
      %v1308 = vmul.f32 %v855, %v1307
      %v1309 = vsub.f32 1.0, %v1308
      %v1310 = vmul.f32 %v1307, %v1309
      %v1311 = vadd.f32 %v1307, %v1310
      %vm1312 = vweird.f32 %v855
      %vm1313 = vweird.f32 %v1307
      %vm1314 = vmor %vm1312, %vm1313
      %v1315 = vsel %vm1314, %v1307, %v1311
      %v1316 = vand.u32 2147483647, %v855
      %vm1317 = vcmp.eq.f32.partialorder %v1316, 8.507059e+37
      %v1318 = vand.u32 %v855, 2147483648
      %v1319 = vor.u32 1.1754944e-38, %v1318
      %v1320 = vsel %vm1317, %v1319, %v1315
      %v1321 = vmul.f32 1.0, %v1320
      %v1322 = vrcp.pop %v856
      %v1323 = vmul.f32 %v856, %v1322
      %v1324 = vsub.f32 1.0, %v1323
      %v1325 = vmul.f32 %v1322, %v1324
      %v1326 = vadd.f32 %v1322, %v1325
      %vm1327 = vweird.f32 %v856
      %vm1328 = vweird.f32 %v1322
      %vm1329 = vmor %vm1327, %vm1328
      %v1330 = vsel %vm1329, %v1322, %v1326
      %v1331 = vand.u32 2147483647, %v856
      %vm1332 = vcmp.eq.f32.partialorder %v1331, 8.507059e+37
      %v1333 = vand.u32 %v856, 2147483648
      %v1334 = vor.u32 1.1754944e-38, %v1333
      %v1335 = vsel %vm1332, %v1334, %v1330
      %v1336 = vmul.f32 1.0, %v1335
      %v1337 = vmul.f32 %v697, %v871
      %v1338 = vmul.f32 %v698, %v886
      %v1339 = vmul.f32 %v699, %v901
      %v1340 = vmul.f32 %v700, %v916
      %v1341 = vmul.f32 %v701, %v931
      %v1342 = vmul.f32 %v702, %v946
      %v1343 = vmul.f32 %v703, %v961
      %v1344 = vmul.f32 %v704, %v976
      %v1345 = vmul.f32 %v705, %v991
      %v1346 = vmul.f32 %v706, %v1006
      %v1347 = vmul.f32 %v707, %v1021
      %v1348 = vmul.f32 %v708, %v1036
      %v1349 = vmul.f32 %v709, %v1051
      %v1350 = vmul.f32 %v710, %v1066
      %v1351 = vmul.f32 %v711, %v1081
      %v1352 = vmul.f32 %v712, %v1096
      %v1353 = vmul.f32 %v713, %v1111
      %v1354 = vmul.f32 %v714, %v1126
      %v1355 = vmul.f32 %v715, %v1141
      %v1356 = vmul.f32 %v716, %v1156
      %v1357 = vmul.f32 %v717, %v1171
      %v1358 = vmul.f32 %v718, %v1186
      %v1359 = vmul.f32 %v719, %v1201
      %v1360 = vmul.f32 %v720, %v1216
      %v1361 = vmul.f32 %v721, %v1231
      %v1362 = vmul.f32 %v722, %v1246
      %v1363 = vmul.f32 %v723, %v1261
      %v1364 = vmul.f32 %v724, %v1276
      %v1365 = vmul.f32 %v725, %v1291
      %v1366 = vmul.f32 %v726, %v1306
      %v1367 = vmul.f32 %v727, %v1321
      %v1368 = vmul.f32 %v728, %v1336
      %v1369 = vld [vmem:[%s266] sm:$0xff]
      %v1370 = vld [vmem:[%s266 + $0x8] sm:$0xff]
      %v1371 = vld [vmem:[%s266 + $0x10] sm:$0xff]
      %v1372 = vld [vmem:[%s266 + $0x18] sm:$0xff]
      %v1373 = vld [vmem:[%s266 + $0x20] sm:$0xff]
      %v1374 = vld [vmem:[%s266 + $0x28] sm:$0xff]
      %v1375 = vld [vmem:[%s266 + $0x30] sm:$0xff]
      %v1376 = vld [vmem:[%s266 + $0x38] sm:$0xff]
      %v1377 = vld [vmem:[%s266 + $0x40] sm:$0xff]
      %v1378 = vld [vmem:[%s266 + $0x48] sm:$0xff]
      %v1379 = vld [vmem:[%s266 + $0x50] sm:$0xff]
      %v1380 = vld [vmem:[%s266 + $0x58] sm:$0xff]
      %v1381 = vld [vmem:[%s266 + $0x60] sm:$0xff]
      %v1382 = vld [vmem:[%s266 + $0x68] sm:$0xff]
      %v1383 = vld [vmem:[%s266 + $0x70] sm:$0xff]
      %v1384 = vld [vmem:[%s266 + $0x78] sm:$0xff]
      %v1385 = vld [vmem:[%s266 + $0x80] sm:$0xff]
      %v1386 = vld [vmem:[%s266 + $0x88] sm:$0xff]
      %v1387 = vld [vmem:[%s266 + $0x90] sm:$0xff]
      %v1388 = vld [vmem:[%s266 + $0x98] sm:$0xff]
      %v1389 = vld [vmem:[%s266 + $0xa0] sm:$0xff]
      %v1390 = vld [vmem:[%s266 + $0xa8] sm:$0xff]
      %v1391 = vld [vmem:[%s266 + $0xb0] sm:$0xff]
      %v1392 = vld [vmem:[%s266 + $0xb8] sm:$0xff]
      %v1393 = vld [vmem:[%s266 + $0xc0] sm:$0xff]
      %v1394 = vld [vmem:[%s266 + $0xc8] sm:$0xff]
      %v1395 = vld [vmem:[%s266 + $0xd0] sm:$0xff]
      %v1396 = vld [vmem:[%s266 + $0xd8] sm:$0xff]
      %v1397 = vld [vmem:[%s266 + $0xe0] sm:$0xff]
      %v1398 = vld [vmem:[%s266 + $0xe8] sm:$0xff]
      %v1399 = vld [vmem:[%s266 + $0xf0] sm:$0xff]
      %v1400 = vld [vmem:[%s266 + $0xf8] sm:$0xff]
      %v1401 = vadd.f32 %v1337, %v1369
      %v1402 = vadd.f32 %v1338, %v1370
      %v1403 = vadd.f32 %v1339, %v1371
      %v1404 = vadd.f32 %v1340, %v1372
      %v1405 = vadd.f32 %v1341, %v1373
      %v1406 = vadd.f32 %v1342, %v1374
      %v1407 = vadd.f32 %v1343, %v1375
      %v1408 = vadd.f32 %v1344, %v1376
      %v1409 = vadd.f32 %v1345, %v1377
      %v1410 = vadd.f32 %v1346, %v1378
      %v1411 = vadd.f32 %v1347, %v1379
      %v1412 = vadd.f32 %v1348, %v1380
      %v1413 = vadd.f32 %v1349, %v1381
      %v1414 = vadd.f32 %v1350, %v1382
      %v1415 = vadd.f32 %v1351, %v1383
      %v1416 = vadd.f32 %v1352, %v1384
      %v1417 = vadd.f32 %v1353, %v1385
      %v1418 = vadd.f32 %v1354, %v1386
      %v1419 = vadd.f32 %v1355, %v1387
      %v1420 = vadd.f32 %v1356, %v1388
      %v1421 = vadd.f32 %v1357, %v1389
      %v1422 = vadd.f32 %v1358, %v1390
      %v1423 = vadd.f32 %v1359, %v1391
      %v1424 = vadd.f32 %v1360, %v1392
      %v1425 = vadd.f32 %v1361, %v1393
      %v1426 = vadd.f32 %v1362, %v1394
      %v1427 = vadd.f32 %v1363, %v1395
      %v1428 = vadd.f32 %v1364, %v1396
      %v1429 = vadd.f32 %v1365, %v1397
      %v1430 = vadd.f32 %v1366, %v1398
      %v1431 = vadd.f32 %v1367, %v1399
      %v1432 = vadd.f32 %v1368, %v1400
      %1433 = vst.msk [vmem:[%s271] sm:$0xff] %vm304, %v1401
      %1434 = vst.msk [vmem:[%s271 + $0x8] sm:$0xff] %vm304, %v1402
      %1435 = vst.msk [vmem:[%s271 + $0x10] sm:$0xff] %vm304, %v1403
      %1436 = vst.msk [vmem:[%s271 + $0x18] sm:$0xff] %vm304, %v1404
      %1437 = vst.msk [vmem:[%s271 + $0x20] sm:$0xff] %vm304, %v1405
      %1438 = vst.msk [vmem:[%s271 + $0x28] sm:$0xff] %vm304, %v1406
      %1439 = vst.msk [vmem:[%s271 + $0x30] sm:$0xff] %vm304, %v1407
      %1440 = vst.msk [vmem:[%s271 + $0x38] sm:$0xff] %vm304, %v1408
      %1441 = vst.msk [vmem:[%s271 + $0x40] sm:$0xff] %vm304, %v1409
      %1442 = vst.msk [vmem:[%s271 + $0x48] sm:$0xff] %vm304, %v1410
      %1443 = vst.msk [vmem:[%s271 + $0x50] sm:$0xff] %vm304, %v1411
      %1444 = vst.msk [vmem:[%s271 + $0x58] sm:$0xff] %vm304, %v1412
      %1445 = vst.msk [vmem:[%s271 + $0x60] sm:$0xff] %vm304, %v1413
      %1446 = vst.msk [vmem:[%s271 + $0x68] sm:$0xff] %vm304, %v1414
      %1447 = vst.msk [vmem:[%s271 + $0x70] sm:$0xff] %vm304, %v1415
      %1448 = vst.msk [vmem:[%s271 + $0x78] sm:$0xff] %vm304, %v1416
      %1449 = vst.msk [vmem:[%s271 + $0x80] sm:$0xff] %vm304, %v1417
      %1450 = vst.msk [vmem:[%s271 + $0x88] sm:$0xff] %vm304, %v1418
      %1451 = vst.msk [vmem:[%s271 + $0x90] sm:$0xff] %vm304, %v1419
      %1452 = vst.msk [vmem:[%s271 + $0x98] sm:$0xff] %vm304, %v1420
      %1453 = vst.msk [vmem:[%s271 + $0xa0] sm:$0xff] %vm304, %v1421
      %1454 = vst.msk [vmem:[%s271 + $0xa8] sm:$0xff] %vm304, %v1422
      %1455 = vst.msk [vmem:[%s271 + $0xb0] sm:$0xff] %vm304, %v1423
      %1456 = vst.msk [vmem:[%s271 + $0xb8] sm:$0xff] %vm304, %v1424
      %1457 = vst.msk [vmem:[%s271 + $0xc0] sm:$0xff] %vm304, %v1425
      %1458 = vst.msk [vmem:[%s271 + $0xc8] sm:$0xff] %vm304, %v1426
      %1459 = vst.msk [vmem:[%s271 + $0xd0] sm:$0xff] %vm304, %v1427
      %1460 = vst.msk [vmem:[%s271 + $0xd8] sm:$0xff] %vm304, %v1428
      %1461 = vst.msk [vmem:[%s271 + $0xe0] sm:$0xff] %vm304, %v1429
      %1462 = vst.msk [vmem:[%s271 + $0xe8] sm:$0xff] %vm304, %v1430
      %1463 = vst.msk [vmem:[%s271 + $0xf0] sm:$0xff] %vm304, %v1431
      %1464 = vst.msk [vmem:[%s271 + $0xf8] sm:$0xff] %vm304, %v1432
      %p1465 = scmp.lt.s32.totalorder %s17, 1
      %s1466 = scalar_select %p1465, %s17, 1
      %s1467 = smul.addr %s1466, 32
      %s1468 = smul.addr %s1467, 8
      %s1469 = scalar_lea.vmem %s6, %s1468
      // Predicated region
      $region45: #{bidir_mamba_forward.3} parent=43 // pred_check
        %p1470 = pneg %p171
      $region46: #{bidir_mamba_forward.3} parent=43 // pred_check_branch
        %1472 = sbr.rel (%p1470) target = $region48
      $region47: #{bidir_mamba_forward.3} parent=43 // pred_region
        _
      $region48: #{bidir_mamba_forward.3} parent=43 // pred_fallthru
        _
    $region44: #{bidir_mamba_forward.3} parent=5 // pred_fallthru
      _
    %p1473 = scmp.le.s32.totalorder 2, %s12
    // Predicated region
    $region49: #{bidir_mamba_forward.3} parent=5 // pred_check
      %p1474 = pneg %p1473
    $region50: #{bidir_mamba_forward.3} parent=5 // pred_check_branch
      %1476 = sbr.rel (%p1474) target = $region52
    $region51: #{bidir_mamba_forward.3} parent=5 // pred_region
      %s1477 = ssub.s32 %s12, 2
      // Predicated region
      $region53: #{bidir_mamba_forward.3} parent=51 // pred_check
        %p1478 = pneg %p177
      $region54: #{bidir_mamba_forward.3} parent=51 // pred_check_branch
        %1480 = sbr.rel (%p1478) target = $region56
      $region55: #{bidir_mamba_forward.3} parent=51 // pred_region
        %p1481 = scmp.lt.s32.totalorder %s18, 1
        %s1482 = scalar_select %p1481, %s18, 1
        %s1483 = smul.addr %s1482, 32
        %s1484 = smul.addr %s1483, 8
        %s1485 = scalar_lea.vmem %s6, %s1484
      $region56: #{bidir_mamba_forward.3} parent=51 // pred_fallthru
        _
    $region52: #{bidir_mamba_forward.3} parent=5 // pred_fallthru
      _
  $region6: #{bidir_mamba_forward.3} parent=0 // loop_footer
    %s16 = sadd.s32 1, %s12
  $region7: #{bidir_mamba_forward.3} parent=0 // loop_footer_branch
    %11 = sbr.rel target = $region3
  $region8: #{bidir_mamba_forward.3} parent=0 // loop_exit
    _

// kernel: bidir_mamba_forward.2
$region0: #{bidir_mamba_forward.2}
  #allocation0 [shape = 'u32[]', space=smem, size = 0x4, offset = 0x4, fixed_abs, tag = 'smem constant byte address 0x4 - core index']
  #allocation1 [shape = 'u32[72,128]{1,0:T(1,128)}', space=vmem, size = 0x9000, scoped, tag = 'internal scratch']
  #allocation2 [shape = 'f32[272,8]{1,0:T(8,128)}', space=vmem, size = 0x22000, scoped, tag = 'scratch operand']
  #allocation3 [shape = 'f32[256,8]{1,0:T(8,128)}', space=vmem, size = 0x20000, scoped, tag = 'scratch operand']
  #allocation4 [shape = 'f32[256,8]{1,0:T(8,128)}', space=vmem, size = 0x20000, scoped, tag = 'scratch operand']
  #allocation5 [shape = 'f32[256,8]{1,0:T(8,128)}', space=vmem, size = 0x20000, scoped, tag = 'scratch operand']
  #allocation6 [shape = 'f32[256,16]{1,0:T(8,128)}', space=vmem, size = 0x20000, scoped, tag = 'scratch operand']
  #allocation7 [shape = 'f32[256,16]{1,0:T(8,128)}', space=vmem, size = 0x20000, scoped, tag = 'scratch operand']
  #allocation8 [shape = 'f32[256,8]{1,0:T(8,128)}', space=vmem, size = 0x20000, scoped, tag = 'scratch operand']
  #allocation9 [shape = 'f32[16,8]{1,0:T(8,128)}', space=vmem, size = 0x2000, scoped, tag = 'scratch operand']
  %s0 = inlined_call_operand.vmem [shape: f32[512,4], index: 0, kind: input, shape index: {}]
  %s1 = inlined_call_operand.vmem [shape: bf16[4,16], index: 1, kind: input, shape index: {}]
  %s2 = inlined_call_operand.vmem [shape: f32[4,8], index: 2, kind: input, shape index: {}]
  %s3 = inlined_call_operand.vmem [shape: f32[1,8], index: 3, kind: input, shape index: {}]
  %s4 = inlined_call_operand.vmem [shape: bf16[8,33], index: 4, kind: input, shape index: {}]
  %s5 = inlined_call_operand.vmem [shape: bf16[1,8], index: 5, kind: input, shape index: {}]
  %s6 = inlined_call_operand.vmem [shape: f32[1,8], index: 6, kind: input, shape index: {}]
  %s7 = inlined_call_operand.vmem [shape: f32[16,8], index: 7, kind: input, shape index: {}]
  %s8 = inlined_call_operand.vmem [shape: f32[1,8], index: 8, kind: input, shape index: {}]
  %s9 = inlined_call_operand.vmem [shape: bf16[8,4], index: 9, kind: input, shape index: {}]
  %s10 = inlined_call_operand.vmem [shape: f32[2,512,4], index: 10, kind: output, shape index: {}]
  %s11 = sld [smem:[#allocation0]]
  $region100: #{bidir_mamba_forward.2} parent=0
    _
  %s13 = ssub.s32 1, %s11
  %s14 = scalar_select 0, %s13, %s11
  loop: start=0, step=1, limit=6
  $region2: #{bidir_mamba_forward.2} parent=0 // loop_pre_header
    _
  $region3: #{bidir_mamba_forward.2} parent=0 // loop_header
    %s16 = sphi 0, %s20
    %p17 = scmp.ge.s32.totalorder %s16, 6
    %s23 = sphi 0, %s35
    %s24 = sphi 0, %s31
    %s25 = sphi 0, %s23
    %s26 = sphi 0, %s24
    %s27 = sphi 0, %s25
    %s28 = sphi 0, %s26
    %s46 = sphi 0, %s48
    %s49 = sphi 0, %s46
    %s50 = sphi 0, %s49
    %s66 = sphi 0, %s50
    %s70 = sphi 0, %s70
    %s72 = sphi 0, %s70
    %s73 = sphi 0, %s72
    %s87 = sphi 0, %s73
    %s91 = sphi 0, %s91
    %s93 = sphi 0, %s91
    %s94 = sphi 0, %s93
    %s108 = sphi 0, %s94
    %s112 = sphi 0, %s112
    %s114 = sphi 0, %s112
    %s115 = sphi 0, %s114
    %s129 = sphi 0, %s115
    %s133 = sphi 0, %s133
    %s135 = sphi 0, %s133
    %s136 = sphi 0, %s135
    %s150 = sphi 0, %s136
    %s154 = sphi 0, %s154
    %s156 = sphi 0, %s154
    %s157 = sphi 0, %s156
    %s171 = sphi 0, %s157
    %s175 = sphi 0, %s175
    %s177 = sphi 0, %s175
    %s178 = sphi 0, %s177
    %s192 = sphi 0, %s178
    %s196 = sphi 0, %s196
    %s198 = sphi 0, %s196
    %s199 = sphi 0, %s198
    %s213 = sphi 0, %s199
    %s217 = sphi 0, %s217
    %s219 = sphi 0, %s217
    %s220 = sphi 0, %s219
    %s234 = sphi 0, %s220
    %s238 = sphi 0, %s238
    %s240 = sphi 0, %s238
    %s241 = sphi 0, %s240
    %s255 = sphi 0, %s241
    %s271 = sphi 0, %s273
    %s274 = sphi 0, %s271
    %s275 = sphi 0, %s274
    %s291 = sphi 0, %s275
  $region4: #{bidir_mamba_forward.2} parent=0 // loop_header_branch
    %19 = sbr.rel (%p17) target = $region8
  $region5: #{bidir_mamba_forward.2} parent=0 // loop_body
    %s21 = ssub.s32 %s16, 1
    %s22 = ssub.s32 %s16, 2
    %s29 = sadd.s32 1, %s24
    %p30 = scmp.ge.s32.totalorder %s29, 2
    %s31 = scalar_select %p30, 0, %s29
    %s32 = sadd.s32 1, %s23
    %s33 = scalar_select %p30, %s32, %s23
    %p34 = scmp.ge.s32.totalorder %s33, 2
    %s35 = scalar_select %p34, 0, %s33
    %s36 = smul.u32 %s23, 2
    %s37 = ssub.s32 1, %s36
    %s38 = smul.u32 %s37, %s24
    %s39 = sadd.s32 %s23, %s38
    %s40 = smul.u32 %s35, 2
    %s41 = ssub.s32 1, %s40
    %s42 = smul.u32 %s41, %s31
    %s43 = sadd.s32 %s35, %s42
    %s44 = ssub.s32 %s39, %s43
    %p45 = scmp.eq.s32.totalorder %s44, 0
    %s47 = sadd.s32 %s46, 1
    %s48 = scalar_select %p45, %s46, %s47
    %p51 = pneg %p45
    %p52 = scmp.eq.s32.totalorder %s16, 3
    %p53 = por %p51, %p52
    %p54 = scmp.ne.s32.totalorder %s46, %s49
    %p55 = scmp.eq.s32.totalorder %s16, 0
    %p56 = por %p54, %p55
    %p57 = scmp.ne.s32.totalorder %s46, %s49
    %p58 = scmp.eq.s32.totalorder %s21, 3
    %p59 = por %p57, %p58
    %p60 = scmp.ne.s32.totalorder %s49, %s50
    %p61 = scmp.eq.s32.totalorder %s21, 0
    %p62 = por %p60, %p61
    %p63 = scmp.ne.s32.totalorder %s49, %s50
    %p64 = scmp.eq.s32.totalorder %s22, 3
    %p65 = por %p63, %p64
    %p67 = scmp.ne.s32.totalorder %s50, %s66
    %p68 = scmp.eq.s32.totalorder %s22, 0
    %p69 = por %p67, %p68
    %s71 = sadd.s32 %s70, 1
    %p74 = scmp.eq.s32.totalorder %s16, 3
    %p75 = scmp.ne.s32.totalorder %s70, %s72
    %p76 = scmp.eq.s32.totalorder %s16, 0
    %p77 = por %p75, %p76
    %p78 = scmp.ne.s32.totalorder %s70, %s72
    %p79 = scmp.eq.s32.totalorder %s21, 3
    %p80 = por %p78, %p79
    %p81 = scmp.ne.s32.totalorder %s72, %s73
    %p82 = scmp.eq.s32.totalorder %s21, 0
    %p83 = por %p81, %p82
    %p84 = scmp.ne.s32.totalorder %s72, %s73
    %p85 = scmp.eq.s32.totalorder %s22, 3
    %p86 = por %p84, %p85
    %p88 = scmp.ne.s32.totalorder %s73, %s87
    %p89 = scmp.eq.s32.totalorder %s22, 0
    %p90 = por %p88, %p89
    %s92 = sadd.s32 %s91, 1
    %p95 = scmp.eq.s32.totalorder %s16, 3
    %p96 = scmp.ne.s32.totalorder %s91, %s93
    %p97 = scmp.eq.s32.totalorder %s16, 0
    %p98 = por %p96, %p97
    %p99 = scmp.ne.s32.totalorder %s91, %s93
    %p100 = scmp.eq.s32.totalorder %s21, 3
    %p101 = por %p99, %p100
    %p102 = scmp.ne.s32.totalorder %s93, %s94
    %p103 = scmp.eq.s32.totalorder %s21, 0
    %p104 = por %p102, %p103
    %p105 = scmp.ne.s32.totalorder %s93, %s94
    %p106 = scmp.eq.s32.totalorder %s22, 3
    %p107 = por %p105, %p106
    %p109 = scmp.ne.s32.totalorder %s94, %s108
    %p110 = scmp.eq.s32.totalorder %s22, 0
    %p111 = por %p109, %p110
    %s113 = sadd.s32 %s112, 1
    %p116 = scmp.eq.s32.totalorder %s16, 3
    %p117 = scmp.ne.s32.totalorder %s112, %s114
    %p118 = scmp.eq.s32.totalorder %s16, 0
    %p119 = por %p117, %p118
    %p120 = scmp.ne.s32.totalorder %s112, %s114
    %p121 = scmp.eq.s32.totalorder %s21, 3
    %p122 = por %p120, %p121
    %p123 = scmp.ne.s32.totalorder %s114, %s115
    %p124 = scmp.eq.s32.totalorder %s21, 0
    %p125 = por %p123, %p124
    %p126 = scmp.ne.s32.totalorder %s114, %s115
    %p127 = scmp.eq.s32.totalorder %s22, 3
    %p128 = por %p126, %p127
    %p130 = scmp.ne.s32.totalorder %s115, %s129
    %p131 = scmp.eq.s32.totalorder %s22, 0
    %p132 = por %p130, %p131
    %s134 = sadd.s32 %s133, 1
    %p137 = scmp.eq.s32.totalorder %s16, 3
    %p138 = scmp.ne.s32.totalorder %s133, %s135
    %p139 = scmp.eq.s32.totalorder %s16, 0
    %p140 = por %p138, %p139
    %p141 = scmp.ne.s32.totalorder %s133, %s135
    %p142 = scmp.eq.s32.totalorder %s21, 3
    %p143 = por %p141, %p142
    %p144 = scmp.ne.s32.totalorder %s135, %s136
    %p145 = scmp.eq.s32.totalorder %s21, 0
    %p146 = por %p144, %p145
    %p147 = scmp.ne.s32.totalorder %s135, %s136
    %p148 = scmp.eq.s32.totalorder %s22, 3
    %p149 = por %p147, %p148
    %p151 = scmp.ne.s32.totalorder %s136, %s150
    %p152 = scmp.eq.s32.totalorder %s22, 0
    %p153 = por %p151, %p152
    %s155 = sadd.s32 %s154, 1
    %p158 = scmp.eq.s32.totalorder %s16, 3
    %p159 = scmp.ne.s32.totalorder %s154, %s156
    %p160 = scmp.eq.s32.totalorder %s16, 0
    %p161 = por %p159, %p160
    %p162 = scmp.ne.s32.totalorder %s154, %s156
    %p163 = scmp.eq.s32.totalorder %s21, 3
    %p164 = por %p162, %p163
    %p165 = scmp.ne.s32.totalorder %s156, %s157
    %p166 = scmp.eq.s32.totalorder %s21, 0
    %p167 = por %p165, %p166
    %p168 = scmp.ne.s32.totalorder %s156, %s157
    %p169 = scmp.eq.s32.totalorder %s22, 3
    %p170 = por %p168, %p169
    %p172 = scmp.ne.s32.totalorder %s157, %s171
    %p173 = scmp.eq.s32.totalorder %s22, 0
    %p174 = por %p172, %p173
    %s176 = sadd.s32 %s175, 1
    %p179 = scmp.eq.s32.totalorder %s16, 3
    %p180 = scmp.ne.s32.totalorder %s175, %s177
    %p181 = scmp.eq.s32.totalorder %s16, 0
    %p182 = por %p180, %p181
    %p183 = scmp.ne.s32.totalorder %s175, %s177
    %p184 = scmp.eq.s32.totalorder %s21, 3
    %p185 = por %p183, %p184
    %p186 = scmp.ne.s32.totalorder %s177, %s178
    %p187 = scmp.eq.s32.totalorder %s21, 0
    %p188 = por %p186, %p187
    %p189 = scmp.ne.s32.totalorder %s177, %s178
    %p190 = scmp.eq.s32.totalorder %s22, 3
    %p191 = por %p189, %p190
    %p193 = scmp.ne.s32.totalorder %s178, %s192
    %p194 = scmp.eq.s32.totalorder %s22, 0
    %p195 = por %p193, %p194
    %s197 = sadd.s32 %s196, 1
    %p200 = scmp.eq.s32.totalorder %s16, 3
    %p201 = scmp.ne.s32.totalorder %s196, %s198
    %p202 = scmp.eq.s32.totalorder %s16, 0
    %p203 = por %p201, %p202
    %p204 = scmp.ne.s32.totalorder %s196, %s198
    %p205 = scmp.eq.s32.totalorder %s21, 3
    %p206 = por %p204, %p205
    %p207 = scmp.ne.s32.totalorder %s198, %s199
    %p208 = scmp.eq.s32.totalorder %s21, 0
    %p209 = por %p207, %p208
    %p210 = scmp.ne.s32.totalorder %s198, %s199
    %p211 = scmp.eq.s32.totalorder %s22, 3
    %p212 = por %p210, %p211
    %p214 = scmp.ne.s32.totalorder %s199, %s213
    %p215 = scmp.eq.s32.totalorder %s22, 0
    %p216 = por %p214, %p215
    %s218 = sadd.s32 %s217, 1
    %p221 = scmp.eq.s32.totalorder %s16, 3
    %p222 = scmp.ne.s32.totalorder %s217, %s219
    %p223 = scmp.eq.s32.totalorder %s16, 0
    %p224 = por %p222, %p223
    %p225 = scmp.ne.s32.totalorder %s217, %s219
    %p226 = scmp.eq.s32.totalorder %s21, 3
    %p227 = por %p225, %p226
    %p228 = scmp.ne.s32.totalorder %s219, %s220
    %p229 = scmp.eq.s32.totalorder %s21, 0
    %p230 = por %p228, %p229
    %p231 = scmp.ne.s32.totalorder %s219, %s220
    %p232 = scmp.eq.s32.totalorder %s22, 3
    %p233 = por %p231, %p232
    %p235 = scmp.ne.s32.totalorder %s220, %s234
    %p236 = scmp.eq.s32.totalorder %s22, 0
    %p237 = por %p235, %p236
    %s239 = sadd.s32 %s238, 1
    %p242 = scmp.eq.s32.totalorder %s16, 3
    %p243 = scmp.ne.s32.totalorder %s238, %s240
    %p244 = scmp.eq.s32.totalorder %s16, 0
    %p245 = por %p243, %p244
    %p246 = scmp.ne.s32.totalorder %s238, %s240
    %p247 = scmp.eq.s32.totalorder %s21, 3
    %p248 = por %p246, %p247
    %p249 = scmp.ne.s32.totalorder %s240, %s241
    %p250 = scmp.eq.s32.totalorder %s21, 0
    %p251 = por %p249, %p250
    %p252 = scmp.ne.s32.totalorder %s240, %s241
    %p253 = scmp.eq.s32.totalorder %s22, 3
    %p254 = por %p252, %p253
    %p256 = scmp.ne.s32.totalorder %s241, %s255
    %p257 = scmp.eq.s32.totalorder %s22, 0
    %p258 = por %p256, %p257
    %s259 = smul.u32 %s23, 2
    %s260 = ssub.s32 1, %s259
    %s261 = smul.u32 %s260, %s24
    %s262 = sadd.s32 %s23, %s261
    %s263 = smul.u32 %s35, 2
    %s264 = ssub.s32 1, %s263
    %s265 = smul.u32 %s264, %s31
    %s266 = sadd.s32 %s35, %s265
    %s267 = ssub.s32 %s23, %s35
    %s268 = ssub.s32 %s262, %s266
    %s269 = sor.u32 %s267, %s268
    %p270 = scmp.eq.s32.totalorder %s269, 0
    %s272 = sadd.s32 %s271, 1
    %s273 = scalar_select %p270, %s271, %s272
    %p276 = pneg %p270
    %p277 = scmp.eq.s32.totalorder %s16, 3
    %p278 = por %p276, %p277
    %p279 = scmp.ne.s32.totalorder %s271, %s274
    %p280 = scmp.eq.s32.totalorder %s16, 0
    %p281 = por %p279, %p280
    %p282 = scmp.ne.s32.totalorder %s271, %s274
    %p283 = scmp.eq.s32.totalorder %s21, 3
    %p284 = por %p282, %p283
    %p285 = scmp.ne.s32.totalorder %s274, %s275
    %p286 = scmp.eq.s32.totalorder %s21, 0
    %p287 = por %p285, %p286
    %p288 = scmp.ne.s32.totalorder %s274, %s275
    %p289 = scmp.eq.s32.totalorder %s22, 3
    %p290 = por %p288, %p289
    %p292 = scmp.ne.s32.totalorder %s275, %s291
    %p293 = scmp.eq.s32.totalorder %s22, 0
    %p294 = por %p292, %p293
    %p295 = scmp.le.s32.totalorder 1, %s16
    %p296 = scmp.lt.s32.totalorder %s16, 5
    %p297 = pnand %p295, %p296
    %p298 = pneg %p297
    // Predicated region
    $region9: #{bidir_mamba_forward.2} parent=5 // pred_check
      _
    $region10: #{bidir_mamba_forward.2} parent=5 // pred_check_branch
      %300 = sbr.rel (%p297) target = $region12
    $region11: #{bidir_mamba_forward.2} parent=5 // pred_region
      %s301 = ssub.s32 %s16, 1
      // Predicated region
      $region13: #{bidir_mamba_forward.2} parent=11 // pred_check
        %p302 = pneg %p83
      $region14: #{bidir_mamba_forward.2} parent=11 // pred_check_branch
        %304 = sbr.rel (%p302) target = $region16
      $region15: #{bidir_mamba_forward.2} parent=11 // pred_region
        _
      $region16: #{bidir_mamba_forward.2} parent=11 // pred_fallthru
        _
      // Predicated region
      $region17: #{bidir_mamba_forward.2} parent=11 // pred_check
        %p305 = pneg %p104
      $region18: #{bidir_mamba_forward.2} parent=11 // pred_check_branch
        %307 = sbr.rel (%p305) target = $region20
      $region19: #{bidir_mamba_forward.2} parent=11 // pred_region
        _
      $region20: #{bidir_mamba_forward.2} parent=11 // pred_fallthru
        _
      // Predicated region
      $region21: #{bidir_mamba_forward.2} parent=11 // pred_check
        %p308 = pneg %p125
      $region22: #{bidir_mamba_forward.2} parent=11 // pred_check_branch
        %310 = sbr.rel (%p308) target = $region24
      $region23: #{bidir_mamba_forward.2} parent=11 // pred_region
        _
      $region24: #{bidir_mamba_forward.2} parent=11 // pred_fallthru
        _
      // Predicated region
      $region25: #{bidir_mamba_forward.2} parent=11 // pred_check
        %p311 = pneg %p146
      $region26: #{bidir_mamba_forward.2} parent=11 // pred_check_branch
        %313 = sbr.rel (%p311) target = $region28
      $region27: #{bidir_mamba_forward.2} parent=11 // pred_region
        _
      $region28: #{bidir_mamba_forward.2} parent=11 // pred_fallthru
        _
      // Predicated region
      $region29: #{bidir_mamba_forward.2} parent=11 // pred_check
        %p314 = pneg %p167
      $region30: #{bidir_mamba_forward.2} parent=11 // pred_check_branch
        %316 = sbr.rel (%p314) target = $region32
      $region31: #{bidir_mamba_forward.2} parent=11 // pred_region
        _
      $region32: #{bidir_mamba_forward.2} parent=11 // pred_fallthru
        _
      // Predicated region
      $region33: #{bidir_mamba_forward.2} parent=11 // pred_check
        %p317 = pneg %p188
      $region34: #{bidir_mamba_forward.2} parent=11 // pred_check_branch
        %319 = sbr.rel (%p317) target = $region36
      $region35: #{bidir_mamba_forward.2} parent=11 // pred_region
        _
      $region36: #{bidir_mamba_forward.2} parent=11 // pred_fallthru
        _
      // Predicated region
      $region37: #{bidir_mamba_forward.2} parent=11 // pred_check
        %p320 = pneg %p209
      $region38: #{bidir_mamba_forward.2} parent=11 // pred_check_branch
        %322 = sbr.rel (%p320) target = $region40
      $region39: #{bidir_mamba_forward.2} parent=11 // pred_region
        _
      $region40: #{bidir_mamba_forward.2} parent=11 // pred_fallthru
        _
      // Predicated region
      $region41: #{bidir_mamba_forward.2} parent=11 // pred_check
        %p323 = pneg %p230
      $region42: #{bidir_mamba_forward.2} parent=11 // pred_check_branch
        %325 = sbr.rel (%p323) target = $region44
      $region43: #{bidir_mamba_forward.2} parent=11 // pred_region
        _
      $region44: #{bidir_mamba_forward.2} parent=11 // pred_fallthru
        _
      // Predicated region
      $region45: #{bidir_mamba_forward.2} parent=11 // pred_check
        %p326 = pneg %p251
      $region46: #{bidir_mamba_forward.2} parent=11 // pred_check_branch
        %328 = sbr.rel (%p326) target = $region48
      $region47: #{bidir_mamba_forward.2} parent=11 // pred_region
        _
      $region48: #{bidir_mamba_forward.2} parent=11 // pred_fallthru
        _
    $region12: #{bidir_mamba_forward.2} parent=5 // pred_fallthru
      _
    %p329 = scmp.lt.s32.totalorder %s16, 4
    // Predicated region
    $region49: #{bidir_mamba_forward.2} parent=5 // pred_check
      %p330 = pneg %p329
    $region50: #{bidir_mamba_forward.2} parent=5 // pred_check_branch
      %332 = sbr.rel (%p330) target = $region52
    $region51: #{bidir_mamba_forward.2} parent=5 // pred_region
      // Predicated region
      $region53: #{bidir_mamba_forward.2} parent=51 // pred_check
        %p333 = pneg %p56
      $region54: #{bidir_mamba_forward.2} parent=51 // pred_check_branch
        %335 = sbr.rel (%p333) target = $region56
      $region55: #{bidir_mamba_forward.2} parent=51 // pred_region
        %s336 = smul.u32 %s23, 2
        %s337 = ssub.s32 1, %s336
        %s338 = smul.u32 %s337, %s24
        %s339 = sadd.s32 %s23, %s338
        %s340 = smul.u32 32, %s339
        %p341 = scmp.lt.s32.totalorder %s340, 63
        %s342 = scalar_select %p341, %s340, 63
        %s343 = smul.addr %s342, 8
        %s344 = scalar_lea.vmem %s0, %s343
        %s345 = smul.u32 %s23, 2
        %s346 = ssub.s32 1, %s345
        %s347 = smul.u32 %s346, %s24
        %s348 = sadd.s32 %s23, %s347
        %s349 = smul.u32 32, %s348
      $region56: #{bidir_mamba_forward.2} parent=51 // pred_fallthru
        _
    $region52: #{bidir_mamba_forward.2} parent=5 // pred_fallthru
      _
    %p350 = scmp.le.s32.totalorder 1, %s16
    %p351 = scmp.lt.s32.totalorder %s16, 5
    %p352 = pnand %p350, %p351
    %p353 = pneg %p352
    // Predicated region
    $region57: #{bidir_mamba_forward.2} parent=5 // pred_check
      _
    $region58: #{bidir_mamba_forward.2} parent=5 // pred_check_branch
      %355 = sbr.rel (%p352) target = $region60
    $region59: #{bidir_mamba_forward.2} parent=5 // pred_region
      %s356 = ssub.s32 %s16, 1
      %s357 = smul.u32 %s25, 2
      %s358 = ssub.s32 1, %s357
      %s359 = smul.u32 %s358, %s26
      %s360 = sadd.s32 %s25, %s359
      %s361 = smul.u32 32, %s360
      %p362 = scmp.lt.s32.totalorder %s361, 63
      %s363 = scalar_select %p362, %s361, 63
      %s364 = smul.addr %s363, 8
      %s365 = scalar_lea.vmem %s0, %s364
      %p366 = pneg %p62
      %p367 = pneg %p59
      %p368 = pneg %p83
      %p369 = pneg %p80
      %p370 = pneg %p104
      %p371 = pneg %p101
      %p372 = pneg %p125
      %p373 = pneg %p122
      %p374 = pneg %p146
      %p375 = pneg %p143
      %p376 = pneg %p167
      %p377 = pneg %p164
      %p378 = pneg %p188
      %p379 = pneg %p185
      %p380 = pneg %p209
      %p381 = pneg %p206
      %p382 = pneg %p230
      %p383 = pneg %p227
      %p384 = pneg %p251
      %p385 = pneg %p248
      %p386 = pneg %p287
      %p387 = pneg %p284
      %s388 = smul.u32 %s25, 2
      %s389 = ssub.s32 1, %s388
      %s390 = smul.u32 %s389, %s26
      %s391 = sadd.s32 %s25, %s390
      %s392 = smul.u32 32, %s391
      %p393 = scmp.lt.s32.totalorder %s25, 1
      %s394 = scalar_select %p393, %s25, 1
      %p395 = scmp.lt.s32.totalorder %s392, 63
      %s396 = scalar_select %p395, %s392, 63
      %s397 = smul.addr %s394, 64
      %s398 = sadd.s32 %s396, %s397
      %s399 = smul.addr %s398, 8
      %s400 = scalar_lea.vmem %s10, %s399
      %s401 = smul.u32 %s25, 2
      %s402 = ssub.s32 1, %s401
      %s403 = smul.u32 %s402, %s26
      %s404 = sadd.s32 %s25, %s403
      %s405 = smul.u32 32, %s404
      %p406 = scmp.lt.s32.totalorder %s405, 63
      %s407 = scalar_select %p406, %s405, 63
      %s408 = smul.addr %s407, 8
      %s409 = scalar_lea.vmem %s0, %s408
      %s410 = smul.u32 %s25, 2
      %s411 = ssub.s32 1, %s410
      %s412 = smul.u32 %s411, %s26
      %s413 = sadd.s32 %s25, %s412
      %s414 = smul.u32 32, %s413
      %s415 = smul.u32 %s25, 2
      %s416 = ssub.s32 1, %s415
      %s417 = smul.u32 %s416, %s26
      %s418 = sadd.s32 %s25, %s417
      %s419 = smul.u32 32, %s418
      %p420 = scmp.lt.s32.totalorder %s25, 1
      %s421 = scalar_select %p420, %s25, 1
      %p422 = scmp.lt.s32.totalorder %s419, 63
      %s423 = scalar_select %p422, %s419, 63
      %s424 = smul.addr %s421, 64
      %s425 = sadd.s32 %s423, %s424
      %s426 = smul.addr %s425, 8
      %s427 = scalar_lea.vmem %s10, %s426
      %s428 = smul.u32 %s25, 2
      %s429 = ssub.s32 1, %s428
      %s430 = smul.u32 %s429, %s26
      %s431 = sadd.s32 %s25, %s430
      %s432 = smul.u32 32, %s431
      %p434 = scmp.eq.s32.totalorder %s25, 0
      %v435 = vld [vmem:[%s409] sm:$0xff]
      %v436 = vld [vmem:[%s409 + $0x8] sm:$0xff]
      %v437 = vld [vmem:[%s409 + $0x10] sm:$0xff]
      %v438 = vld [vmem:[%s409 + $0x18] sm:$0xff]
      %v439 = vld [vmem:[%s409 + $0x20] sm:$0xff]
      %v440 = vld [vmem:[%s409 + $0x28] sm:$0xff]
      %v441 = vld [vmem:[%s409 + $0x30] sm:$0xff]
      %v442 = vld [vmem:[%s409 + $0x38] sm:$0xff]
      %v443 = vld [vmem:[%s409 + $0x40] sm:$0xff]
      %v444 = vld [vmem:[%s409 + $0x48] sm:$0xff]
      %v445 = vld [vmem:[%s409 + $0x50] sm:$0xff]
      %v446 = vld [vmem:[%s409 + $0x58] sm:$0xff]
      %v447 = vld [vmem:[%s409 + $0x60] sm:$0xff]
      %v448 = vld [vmem:[%s409 + $0x68] sm:$0xff]
      %v449 = vld [vmem:[%s409 + $0x70] sm:$0xff]
      %v450 = vld [vmem:[%s409 + $0x78] sm:$0xff]
      %v451 = vld [vmem:[%s409 + $0x80] sm:$0xff]
      %v452 = vld [vmem:[%s409 + $0x88] sm:$0xff]
      %v453 = vld [vmem:[%s409 + $0x90] sm:$0xff]
      %v454 = vld [vmem:[%s409 + $0x98] sm:$0xff]
      %v455 = vld [vmem:[%s409 + $0xa0] sm:$0xff]
      %v456 = vld [vmem:[%s409 + $0xa8] sm:$0xff]
      %v457 = vld [vmem:[%s409 + $0xb0] sm:$0xff]
      %v458 = vld [vmem:[%s409 + $0xb8] sm:$0xff]
      %v459 = vld [vmem:[%s409 + $0xc0] sm:$0xff]
      %v460 = vld [vmem:[%s409 + $0xc8] sm:$0xff]
      %v461 = vld [vmem:[%s409 + $0xd0] sm:$0xff]
      %v462 = vld [vmem:[%s409 + $0xd8] sm:$0xff]
      %v463 = vld [vmem:[%s409 + $0xe0] sm:$0xff]
      %v464 = vld [vmem:[%s409 + $0xe8] sm:$0xff]
      %v465 = vld [vmem:[%s409 + $0xf0] sm:$0xff]
      %v466 = vld [vmem:[%s409 + $0xf8] sm:$0xff]
      %v467 = vpack.c.bf16 %v436, %v435
      %v468 = vpack.c.bf16 %v438, %v437
      %v469 = vpack.c.bf16 %v440, %v439
      %v470 = vpack.c.bf16 %v442, %v441
      %v471 = vpack.c.bf16 %v444, %v443
      %v472 = vpack.c.bf16 %v446, %v445
      %v473 = vpack.c.bf16 %v448, %v447
      %v474 = vpack.c.bf16 %v450, %v449
      %v475 = vpack.c.bf16 %v452, %v451
      %v476 = vpack.c.bf16 %v454, %v453
      %v477 = vpack.c.bf16 %v456, %v455
      %v478 = vpack.c.bf16 %v458, %v457
      %v479 = vpack.c.bf16 %v460, %v459
      %v480 = vpack.c.bf16 %v462, %v461
      %v481 = vpack.c.bf16 %v464, %v463
      %v482 = vpack.c.bf16 %v466, %v465
      %v483 = vld [vmem:[%s1] sm:$0x3]
      %vm484 = vcmask 31744
      %v486 = vsel %vm484, %v467, 0
      %v489 = vsel %vm484, %v468, 0
      %v492 = vsel %vm484, %v469, 0
      %v495 = vsel %vm484, %v470, 0
      %v498 = vsel %vm484, %v471, 0
      %v501 = vsel %vm484, %v472, 0
      %v504 = vsel %vm484, %v473, 0
      %v507 = vsel %vm484, %v474, 0
      %v510 = vsel %vm484, %v475, 0
      %v513 = vsel %vm484, %v476, 0
      %v516 = vsel %vm484, %v477, 0
      %v519 = vsel %vm484, %v478, 0
      %v522 = vsel %vm484, %v479, 0
      %v525 = vsel %vm484, %v480, 0
      %v528 = vsel %vm484, %v481, 0
      %v531 = vsel %vm484, %v482, 0
      %vm533 = vcmask 1041408
      %v535 = vsel %vm533, %v483, 0
      %537 = vmatpush.bf16.msra.mxu0 0
      %538 = vmatpush.bf16.msra.mxu0 0
      %539 = vmatpush.bf16.msra.mxu0 0
      %540 = vmatpush.bf16.msra.mxu0 0
      %541 = vmatpush.bf16.msra.mxu0 0
      %542 = vmatpush.bf16.msra.mxu0 0
      %543 = vmatpush.bf16.msra.mxu0 0
      %544 = vmatpush.bf16.msra.mxu0 %v535
      %545 = vmatmul.bf16.gmra.mxu0 %v486
      %v546 = vpop.f32.mrf.mxu0
      %v547 = vadd.f32 0.0, %v546
      %v548 = vpop.f32.mrf.mxu0
      %v549 = vadd.f32 0.0, %v548
      %550 = vmatmul.bf16.gmra.mxu0 %v489
      %v551 = vpop.f32.mrf.mxu0
      %v552 = vadd.f32 0.0, %v551
      %v553 = vpop.f32.mrf.mxu0
      %v554 = vadd.f32 0.0, %v553
      %555 = vmatmul.bf16.gmra.mxu0 %v492
      %v556 = vpop.f32.mrf.mxu0
      %v557 = vadd.f32 0.0, %v556
      %v558 = vpop.f32.mrf.mxu0
      %v559 = vadd.f32 0.0, %v558
      %560 = vmatmul.bf16.gmra.mxu0 %v495
      %v561 = vpop.f32.mrf.mxu0
      %v562 = vadd.f32 0.0, %v561
      %v563 = vpop.f32.mrf.mxu0
      %v564 = vadd.f32 0.0, %v563
      %565 = vmatmul.bf16.gmra.mxu0 %v498
      %v566 = vpop.f32.mrf.mxu0
      %v567 = vadd.f32 0.0, %v566
      %v568 = vpop.f32.mrf.mxu0
      %v569 = vadd.f32 0.0, %v568
      %570 = vmatmul.bf16.gmra.mxu0 %v501
      %v571 = vpop.f32.mrf.mxu0
      %v572 = vadd.f32 0.0, %v571
      %v573 = vpop.f32.mrf.mxu0
      %v574 = vadd.f32 0.0, %v573
      %575 = vmatmul.bf16.gmra.mxu0 %v504
      %v576 = vpop.f32.mrf.mxu0
      %v577 = vadd.f32 0.0, %v576
      %v578 = vpop.f32.mrf.mxu0
      %v579 = vadd.f32 0.0, %v578
      %580 = vmatmul.bf16.gmra.mxu0 %v507
      %v581 = vpop.f32.mrf.mxu0
      %v582 = vadd.f32 0.0, %v581
      %v583 = vpop.f32.mrf.mxu0
      %v584 = vadd.f32 0.0, %v583
      %585 = vmatmul.bf16.gmra.mxu0 %v510
      %v586 = vpop.f32.mrf.mxu0
      %v587 = vadd.f32 0.0, %v586
      %v588 = vpop.f32.mrf.mxu0
      %v589 = vadd.f32 0.0, %v588
      %590 = vmatmul.bf16.gmra.mxu0 %v513
      %v591 = vpop.f32.mrf.mxu0
      %v592 = vadd.f32 0.0, %v591
      %v593 = vpop.f32.mrf.mxu0
      %v594 = vadd.f32 0.0, %v593
      %595 = vmatmul.bf16.gmra.mxu0 %v516
      %v596 = vpop.f32.mrf.mxu0
      %v597 = vadd.f32 0.0, %v596
      %v598 = vpop.f32.mrf.mxu0
      %v599 = vadd.f32 0.0, %v598
      %600 = vmatmul.bf16.gmra.mxu0 %v519
      %v601 = vpop.f32.mrf.mxu0
      %v602 = vadd.f32 0.0, %v601
      %v603 = vpop.f32.mrf.mxu0
      %v604 = vadd.f32 0.0, %v603
      %605 = vmatmul.bf16.gmra.mxu0 %v522
      %v606 = vpop.f32.mrf.mxu0
      %v607 = vadd.f32 0.0, %v606
      %v608 = vpop.f32.mrf.mxu0
      %v609 = vadd.f32 0.0, %v608
      %610 = vmatmul.bf16.gmra.mxu0 %v525
      %v611 = vpop.f32.mrf.mxu0
      %v612 = vadd.f32 0.0, %v611
      %v613 = vpop.f32.mrf.mxu0
      %v614 = vadd.f32 0.0, %v613
      %615 = vmatmul.bf16.gmra.mxu0 %v528
      %v616 = vpop.f32.mrf.mxu0
      %v617 = vadd.f32 0.0, %v616
      %v618 = vpop.f32.mrf.mxu0
      %v619 = vadd.f32 0.0, %v618
      %620 = vmatmul.bf16.gmra.mxu0 %v531
      %v621 = vpop.f32.mrf.mxu0
      %v622 = vadd.f32 0.0, %v621
      %v623 = vpop.f32.mrf.mxu0
      %v624 = vadd.f32 0.0, %v623
      %625 = vdwg.mxu0
      %658 = vrot.lane.b32.xlu0 %v547, 120
      %v659 = vpop.permute.xlu0 %658
      %660 = vrot.lane.b32.xlu0 %v549, 120
      %v661 = vpop.permute.xlu0 %660
      %662 = vrot.lane.b32.xlu0 %v552, 120
      %v663 = vpop.permute.xlu0 %662
      %664 = vrot.lane.b32.xlu0 %v554, 120
      %v665 = vpop.permute.xlu0 %664
      %666 = vrot.lane.b32.xlu0 %v557, 120
      %v667 = vpop.permute.xlu0 %666
      %668 = vrot.lane.b32.xlu0 %v559, 120
      %v669 = vpop.permute.xlu0 %668
      %670 = vrot.lane.b32.xlu0 %v562, 120
      %v671 = vpop.permute.xlu0 %670
      %672 = vrot.lane.b32.xlu0 %v564, 120
      %v673 = vpop.permute.xlu0 %672
      %674 = vrot.lane.b32.xlu0 %v567, 120
      %v675 = vpop.permute.xlu0 %674
      %676 = vrot.lane.b32.xlu0 %v569, 120
      %v677 = vpop.permute.xlu0 %676
      %678 = vrot.lane.b32.xlu0 %v572, 120
      %v679 = vpop.permute.xlu0 %678
      %680 = vrot.lane.b32.xlu0 %v574, 120
      %v681 = vpop.permute.xlu0 %680
      %682 = vrot.lane.b32.xlu0 %v577, 120
      %v683 = vpop.permute.xlu0 %682
      %684 = vrot.lane.b32.xlu0 %v579, 120
      %v685 = vpop.permute.xlu0 %684
      %686 = vrot.lane.b32.xlu0 %v582, 120
      %v687 = vpop.permute.xlu0 %686
      %688 = vrot.lane.b32.xlu0 %v584, 120
      %v689 = vpop.permute.xlu0 %688
      %690 = vrot.lane.b32.xlu0 %v587, 120
      %v691 = vpop.permute.xlu0 %690
      %692 = vrot.lane.b32.xlu0 %v589, 120
      %v693 = vpop.permute.xlu0 %692
      %694 = vrot.lane.b32.xlu0 %v592, 120
      %v695 = vpop.permute.xlu0 %694
      %696 = vrot.lane.b32.xlu0 %v594, 120
      %v697 = vpop.permute.xlu0 %696
      %698 = vrot.lane.b32.xlu0 %v597, 120
      %v699 = vpop.permute.xlu0 %698
      %700 = vrot.lane.b32.xlu0 %v599, 120
      %v701 = vpop.permute.xlu0 %700
      %702 = vrot.lane.b32.xlu0 %v602, 120
      %v703 = vpop.permute.xlu0 %702
      %704 = vrot.lane.b32.xlu0 %v604, 120
      %v705 = vpop.permute.xlu0 %704
      %706 = vrot.lane.b32.xlu0 %v607, 120
      %v707 = vpop.permute.xlu0 %706
      %708 = vrot.lane.b32.xlu0 %v609, 120
      %v709 = vpop.permute.xlu0 %708
      %710 = vrot.lane.b32.xlu0 %v612, 120
      %v711 = vpop.permute.xlu0 %710
      %712 = vrot.lane.b32.xlu0 %v614, 120
      %v713 = vpop.permute.xlu0 %712
      %714 = vrot.lane.b32.xlu0 %v617, 120
      %v715 = vpop.permute.xlu0 %714
      %716 = vrot.lane.b32.xlu0 %v619, 120
      %v717 = vpop.permute.xlu0 %716
      %718 = vrot.lane.b32.xlu0 %v622, 120
      %v719 = vpop.permute.xlu0 %718
      %720 = vrot.lane.b32.xlu0 %v624, 120
      %v721 = vpop.permute.xlu0 %720
      %vm754 = vcmask 64512
      %755 = vst.msk [vmem:[#allocation5] sm:$0xff] %vm754, %v659
      %756 = vst.msk [vmem:[#allocation5 + $0x8] sm:$0xff] %vm754, %v661
      %757 = vst.msk [vmem:[#allocation5 + $0x10] sm:$0xff] %vm754, %v663
      %758 = vst.msk [vmem:[#allocation5 + $0x18] sm:$0xff] %vm754, %v665
      %759 = vst.msk [vmem:[#allocation5 + $0x20] sm:$0xff] %vm754, %v667
      %760 = vst.msk [vmem:[#allocation5 + $0x28] sm:$0xff] %vm754, %v669
      %761 = vst.msk [vmem:[#allocation5 + $0x30] sm:$0xff] %vm754, %v671
      %762 = vst.msk [vmem:[#allocation5 + $0x38] sm:$0xff] %vm754, %v673
      %763 = vst.msk [vmem:[#allocation5 + $0x40] sm:$0xff] %vm754, %v675
      %764 = vst.msk [vmem:[#allocation5 + $0x48] sm:$0xff] %vm754, %v677
      %765 = vst.msk [vmem:[#allocation5 + $0x50] sm:$0xff] %vm754, %v679
      %766 = vst.msk [vmem:[#allocation5 + $0x58] sm:$0xff] %vm754, %v681
      %767 = vst.msk [vmem:[#allocation5 + $0x60] sm:$0xff] %vm754, %v683
      %768 = vst.msk [vmem:[#allocation5 + $0x68] sm:$0xff] %vm754, %v685
      %769 = vst.msk [vmem:[#allocation5 + $0x70] sm:$0xff] %vm754, %v687
      %770 = vst.msk [vmem:[#allocation5 + $0x78] sm:$0xff] %vm754, %v689
      %771 = vst.msk [vmem:[#allocation5 + $0x80] sm:$0xff] %vm754, %v691
      %772 = vst.msk [vmem:[#allocation5 + $0x88] sm:$0xff] %vm754, %v693
      %773 = vst.msk [vmem:[#allocation5 + $0x90] sm:$0xff] %vm754, %v695
      %774 = vst.msk [vmem:[#allocation5 + $0x98] sm:$0xff] %vm754, %v697
      %775 = vst.msk [vmem:[#allocation5 + $0xa0] sm:$0xff] %vm754, %v699
      %776 = vst.msk [vmem:[#allocation5 + $0xa8] sm:$0xff] %vm754, %v701
      %777 = vst.msk [vmem:[#allocation5 + $0xb0] sm:$0xff] %vm754, %v703
      %778 = vst.msk [vmem:[#allocation5 + $0xb8] sm:$0xff] %vm754, %v705
      %779 = vst.msk [vmem:[#allocation5 + $0xc0] sm:$0xff] %vm754, %v707
      %780 = vst.msk [vmem:[#allocation5 + $0xc8] sm:$0xff] %vm754, %v709
      %781 = vst.msk [vmem:[#allocation5 + $0xd0] sm:$0xff] %vm754, %v711
      %782 = vst.msk [vmem:[#allocation5 + $0xd8] sm:$0xff] %vm754, %v713
      %783 = vst.msk [vmem:[#allocation5 + $0xe0] sm:$0xff] %vm754, %v715
      %784 = vst.msk [vmem:[#allocation5 + $0xe8] sm:$0xff] %vm754, %v717
      %785 = vst.msk [vmem:[#allocation5 + $0xf0] sm:$0xff] %vm754, %v719
      %786 = vst.msk [vmem:[#allocation5 + $0xf8] sm:$0xff] %vm754, %v721
      %p787 = scmp.eq.s32.totalorder %s26, 0
      // Predicated region
      $region61: #{bidir_mamba_forward.2} parent=59 // pred_check
        %p788 = pneg %p787
      $region62: #{bidir_mamba_forward.2} parent=59 // pred_check_branch
        %790 = sbr.rel (%p788) target = $region64
      $region63: #{bidir_mamba_forward.2} parent=59 // pred_region
        %791 = vst.msk [vmem:[#allocation9] sm:$0xff] %vm754, 0.0
        %792 = vst.msk [vmem:[#allocation9 + $0x8] sm:$0xff] %vm754, 0.0
        // Predicated region
        $region65: #{bidir_mamba_forward.2} parent=63 // pred_check
          %p793 = pneg %p434
        $region66: #{bidir_mamba_forward.2} parent=63 // pred_check_branch
          %795 = sbr.rel (%p793) target = $region68
        $region67: #{bidir_mamba_forward.2} parent=63 // pred_region
          %796 = vst.msk [vmem:[#allocation2] sm:$0xff] %vm754, 0.0
        $region68: #{bidir_mamba_forward.2} parent=63 // pred_fallthru
          _
        %p797 = scmp.ne.s32.totalorder %s25, 0
        // Predicated region
        $region69: #{bidir_mamba_forward.2} parent=63 // pred_check
          %p798 = pneg %p797
        $region70: #{bidir_mamba_forward.2} parent=63 // pred_check_branch
          %800 = sbr.rel (%p798) target = $region72
        $region71: #{bidir_mamba_forward.2} parent=63 // pred_region
          %801 = vst.msk [vmem:[#allocation2 + $0x108] sm:$0xff] %vm754, 0.0
        $region72: #{bidir_mamba_forward.2} parent=63 // pred_fallthru
          _
      $region64: #{bidir_mamba_forward.2} parent=59 // pred_fallthru
        _
      %802 = vst.msk [vmem:[#allocation2 + $0x8] sm:$0xff] %vm754, %v547
      %803 = vst.msk [vmem:[#allocation2 + $0x10] sm:$0xff] %vm754, %v549
      %804 = vst.msk [vmem:[#allocation2 + $0x18] sm:$0xff] %vm754, %v552
      %805 = vst.msk [vmem:[#allocation2 + $0x20] sm:$0xff] %vm754, %v554
      %806 = vst.msk [vmem:[#allocation2 + $0x28] sm:$0xff] %vm754, %v557
      %807 = vst.msk [vmem:[#allocation2 + $0x30] sm:$0xff] %vm754, %v559
      %808 = vst.msk [vmem:[#allocation2 + $0x38] sm:$0xff] %vm754, %v562
      %809 = vst.msk [vmem:[#allocation2 + $0x40] sm:$0xff] %vm754, %v564
      %810 = vst.msk [vmem:[#allocation2 + $0x48] sm:$0xff] %vm754, %v567
      %811 = vst.msk [vmem:[#allocation2 + $0x50] sm:$0xff] %vm754, %v569
      %812 = vst.msk [vmem:[#allocation2 + $0x58] sm:$0xff] %vm754, %v572
      %813 = vst.msk [vmem:[#allocation2 + $0x60] sm:$0xff] %vm754, %v574
      %814 = vst.msk [vmem:[#allocation2 + $0x68] sm:$0xff] %vm754, %v577
      %815 = vst.msk [vmem:[#allocation2 + $0x70] sm:$0xff] %vm754, %v579
      %816 = vst.msk [vmem:[#allocation2 + $0x78] sm:$0xff] %vm754, %v582
      %817 = vst.msk [vmem:[#allocation2 + $0x80] sm:$0xff] %vm754, %v584
      %818 = vst.msk [vmem:[#allocation2 + $0x88] sm:$0xff] %vm754, %v587
      %819 = vst.msk [vmem:[#allocation2 + $0x90] sm:$0xff] %vm754, %v589
      %820 = vst.msk [vmem:[#allocation2 + $0x98] sm:$0xff] %vm754, %v592
      %821 = vst.msk [vmem:[#allocation2 + $0xa0] sm:$0xff] %vm754, %v594
      %822 = vst.msk [vmem:[#allocation2 + $0xa8] sm:$0xff] %vm754, %v597
      %823 = vst.msk [vmem:[#allocation2 + $0xb0] sm:$0xff] %vm754, %v599
      %824 = vst.msk [vmem:[#allocation2 + $0xb8] sm:$0xff] %vm754, %v602
      %825 = vst.msk [vmem:[#allocation2 + $0xc0] sm:$0xff] %vm754, %v604
      %826 = vst.msk [vmem:[#allocation2 + $0xc8] sm:$0xff] %vm754, %v607
      %827 = vst.msk [vmem:[#allocation2 + $0xd0] sm:$0xff] %vm754, %v609
      %828 = vst.msk [vmem:[#allocation2 + $0xd8] sm:$0xff] %vm754, %v612
      %829 = vst.msk [vmem:[#allocation2 + $0xe0] sm:$0xff] %vm754, %v614
      %830 = vst.msk [vmem:[#allocation2 + $0xe8] sm:$0xff] %vm754, %v617
      %831 = vst.msk [vmem:[#allocation2 + $0xf0] sm:$0xff] %vm754, %v619
      %832 = vst.msk [vmem:[#allocation2 + $0xf8] sm:$0xff] %vm754, %v622
      %833 = vst.msk [vmem:[#allocation2 + $0x100] sm:$0xff] %vm754, %v624
      %v834 = vld [vmem:[#allocation2 + $0x5] sm:$0xff]
      %v835 = vld [vmem:[#allocation2 + $0xd] sm:$0xff]
      %v836 = vld [vmem:[#allocation2 + $0x15] sm:$0xff]
      %v837 = vld [vmem:[#allocation2 + $0x1d] sm:$0xff]
      %v838 = vld [vmem:[#allocation2 + $0x25] sm:$0xff]
      %v839 = vld [vmem:[#allocation2 + $0x2d] sm:$0xff]
      %v840 = vld [vmem:[#allocation2 + $0x35] sm:$0xff]
      %v841 = vld [vmem:[#allocation2 + $0x3d] sm:$0xff]
      %v842 = vld [vmem:[#allocation2 + $0x45] sm:$0xff]
      %v843 = vld [vmem:[#allocation2 + $0x4d] sm:$0xff]
      %v844 = vld [vmem:[#allocation2 + $0x55] sm:$0xff]
      %v845 = vld [vmem:[#allocation2 + $0x5d] sm:$0xff]
      %v846 = vld [vmem:[#allocation2 + $0x65] sm:$0xff]
      %v847 = vld [vmem:[#allocation2 + $0x6d] sm:$0xff]
      %v848 = vld [vmem:[#allocation2 + $0x75] sm:$0xff]
      %v849 = vld [vmem:[#allocation2 + $0x7d] sm:$0xff]
      %v850 = vld [vmem:[#allocation2 + $0x85] sm:$0xff]
      %v851 = vld [vmem:[#allocation2 + $0x8d] sm:$0xff]
      %v852 = vld [vmem:[#allocation2 + $0x95] sm:$0xff]
      %v853 = vld [vmem:[#allocation2 + $0x9d] sm:$0xff]
      %v854 = vld [vmem:[#allocation2 + $0xa5] sm:$0xff]
      %v855 = vld [vmem:[#allocation2 + $0xad] sm:$0xff]
      %v856 = vld [vmem:[#allocation2 + $0xb5] sm:$0xff]
      %v857 = vld [vmem:[#allocation2 + $0xbd] sm:$0xff]
      %v858 = vld [vmem:[#allocation2 + $0xc5] sm:$0xff]
      %v859 = vld [vmem:[#allocation2 + $0xcd] sm:$0xff]
      %v860 = vld [vmem:[#allocation2 + $0xd5] sm:$0xff]
      %v861 = vld [vmem:[#allocation2 + $0xdd] sm:$0xff]
      %v862 = vld [vmem:[#allocation2 + $0xe5] sm:$0xff]
      %v863 = vld [vmem:[#allocation2 + $0xed] sm:$0xff]
      %v864 = vld [vmem:[#allocation2 + $0xf5] sm:$0xff]
      %v865 = vld [vmem:[#allocation2 + $0xfd] sm:$0xff]
      %v866 = vld [vmem:[#allocation2 + $0xb] sm:$0xff]
      %v867 = vld [vmem:[#allocation2 + $0x13] sm:$0xff]
      %v868 = vld [vmem:[#allocation2 + $0x1b] sm:$0xff]
      %v869 = vld [vmem:[#allocation2 + $0x23] sm:$0xff]
      %v870 = vld [vmem:[#allocation2 + $0x2b] sm:$0xff]
      %v871 = vld [vmem:[#allocation2 + $0x33] sm:$0xff]
      %v872 = vld [vmem:[#allocation2 + $0x3b] sm:$0xff]
      %v873 = vld [vmem:[#allocation2 + $0x43] sm:$0xff]
      %v874 = vld [vmem:[#allocation2 + $0x4b] sm:$0xff]
      %v875 = vld [vmem:[#allocation2 + $0x53] sm:$0xff]
      %v876 = vld [vmem:[#allocation2 + $0x5b] sm:$0xff]
      %v877 = vld [vmem:[#allocation2 + $0x63] sm:$0xff]
      %v878 = vld [vmem:[#allocation2 + $0x6b] sm:$0xff]
      %v879 = vld [vmem:[#allocation2 + $0x73] sm:$0xff]
      %v880 = vld [vmem:[#allocation2 + $0x7b] sm:$0xff]
      %v881 = vld [vmem:[#allocation2 + $0x83] sm:$0xff]
      %v882 = vld [vmem:[#allocation2 + $0x8b] sm:$0xff]
      %v883 = vld [vmem:[#allocation2 + $0x93] sm:$0xff]
      %v884 = vld [vmem:[#allocation2 + $0x9b] sm:$0xff]
      %v885 = vld [vmem:[#allocation2 + $0xa3] sm:$0xff]
      %v886 = vld [vmem:[#allocation2 + $0xab] sm:$0xff]
      %v887 = vld [vmem:[#allocation2 + $0xb3] sm:$0xff]
      %v888 = vld [vmem:[#allocation2 + $0xbb] sm:$0xff]
      %v889 = vld [vmem:[#allocation2 + $0xc3] sm:$0xff]
      %v890 = vld [vmem:[#allocation2 + $0xcb] sm:$0xff]
      %v891 = vld [vmem:[#allocation2 + $0xd3] sm:$0xff]
      %v892 = vld [vmem:[#allocation2 + $0xdb] sm:$0xff]
      %v893 = vld [vmem:[#allocation2 + $0xe3] sm:$0xff]
      %v894 = vld [vmem:[#allocation2 + $0xeb] sm:$0xff]
      %v895 = vld [vmem:[#allocation2 + $0xf3] sm:$0xff]
      %v896 = vld [vmem:[#allocation2 + $0xfb] sm:$0xff]
      %v897 = vld [vmem:[#allocation2 + $0x103] sm:$0xff]
      %s898 = scalar_select %p434, 1, 0
      %v899 = vstv %s898
      %vm900 = vcmp.eq.s32.totalorder %v899, 1
      %v901 = vsel %vm900, %v834, %v866
      %v902 = vsel %vm900, %v835, %v867
      %v903 = vsel %vm900, %v836, %v868
      %v904 = vsel %vm900, %v837, %v869
      %v905 = vsel %vm900, %v838, %v870
      %v906 = vsel %vm900, %v839, %v871
      %v907 = vsel %vm900, %v840, %v872
      %v908 = vsel %vm900, %v841, %v873
      %v909 = vsel %vm900, %v842, %v874
      %v910 = vsel %vm900, %v843, %v875
      %v911 = vsel %vm900, %v844, %v876
      %v912 = vsel %vm900, %v845, %v877
      %v913 = vsel %vm900, %v846, %v878
      %v914 = vsel %vm900, %v847, %v879
      %v915 = vsel %vm900, %v848, %v880
      %v916 = vsel %vm900, %v849, %v881
      %v917 = vsel %vm900, %v850, %v882
      %v918 = vsel %vm900, %v851, %v883
      %v919 = vsel %vm900, %v852, %v884
      %v920 = vsel %vm900, %v853, %v885
      %v921 = vsel %vm900, %v854, %v886
      %v922 = vsel %vm900, %v855, %v887
      %v923 = vsel %vm900, %v856, %v888
      %v924 = vsel %vm900, %v857, %v889
      %v925 = vsel %vm900, %v858, %v890
      %v926 = vsel %vm900, %v859, %v891
      %v927 = vsel %vm900, %v860, %v892
      %v928 = vsel %vm900, %v861, %v893
      %v929 = vsel %vm900, %v862, %v894
      %v930 = vsel %vm900, %v863, %v895
      %v931 = vsel %vm900, %v864, %v896
      %v932 = vsel %vm900, %v865, %v897
      %v933 = vld [vmem:[%s2] sm:$0x1]
      %v934 = vperm.slane %v933, 0
      %v935 = vmul.f32 %v901, %v934
      %v936 = vmul.f32 %v902, %v934
      %v937 = vmul.f32 %v903, %v934
      %v938 = vmul.f32 %v904, %v934
      %v939 = vmul.f32 %v905, %v934
      %v940 = vmul.f32 %v906, %v934
      %v941 = vmul.f32 %v907, %v934
      %v942 = vmul.f32 %v908, %v934
      %v943 = vmul.f32 %v909, %v934
      %v944 = vmul.f32 %v910, %v934
      %v945 = vmul.f32 %v911, %v934
      %v946 = vmul.f32 %v912, %v934
      %v947 = vmul.f32 %v913, %v934
      %v948 = vmul.f32 %v914, %v934
      %v949 = vmul.f32 %v915, %v934
      %v950 = vmul.f32 %v916, %v934
      %v951 = vmul.f32 %v917, %v934
      %v952 = vmul.f32 %v918, %v934
      %v953 = vmul.f32 %v919, %v934
      %v954 = vmul.f32 %v920, %v934
      %v955 = vmul.f32 %v921, %v934
      %v956 = vmul.f32 %v922, %v934
      %v957 = vmul.f32 %v923, %v934
      %v958 = vmul.f32 %v924, %v934
      %v959 = vmul.f32 %v925, %v934
      %v960 = vmul.f32 %v926, %v934
      %v961 = vmul.f32 %v927, %v934
      %v962 = vmul.f32 %v928, %v934
      %v963 = vmul.f32 %v929, %v934
      %v964 = vmul.f32 %v930, %v934
      %v965 = vmul.f32 %v931, %v934
      %v966 = vmul.f32 %v932, %v934
      %v967 = vadd.f32 %v935, 0.0
      %v968 = vadd.f32 %v936, 0.0
      %v969 = vadd.f32 %v937, 0.0
      %v970 = vadd.f32 %v938, 0.0
      %v971 = vadd.f32 %v939, 0.0
      %v972 = vadd.f32 %v940, 0.0
      %v973 = vadd.f32 %v941, 0.0
      %v974 = vadd.f32 %v942, 0.0
      %v975 = vadd.f32 %v943, 0.0
      %v976 = vadd.f32 %v944, 0.0
      %v977 = vadd.f32 %v945, 0.0
      %v978 = vadd.f32 %v946, 0.0
      %v979 = vadd.f32 %v947, 0.0
      %v980 = vadd.f32 %v948, 0.0
      %v981 = vadd.f32 %v949, 0.0
      %v982 = vadd.f32 %v950, 0.0
      %v983 = vadd.f32 %v951, 0.0
      %v984 = vadd.f32 %v952, 0.0
      %v985 = vadd.f32 %v953, 0.0
      %v986 = vadd.f32 %v954, 0.0
      %v987 = vadd.f32 %v955, 0.0
      %v988 = vadd.f32 %v956, 0.0
      %v989 = vadd.f32 %v957, 0.0
      %v990 = vadd.f32 %v958, 0.0
      %v991 = vadd.f32 %v959, 0.0
      %v992 = vadd.f32 %v960, 0.0
      %v993 = vadd.f32 %v961, 0.0
      %v994 = vadd.f32 %v962, 0.0
      %v995 = vadd.f32 %v963, 0.0
      %v996 = vadd.f32 %v964, 0.0
      %v997 = vadd.f32 %v965, 0.0
      %v998 = vadd.f32 %v966, 0.0
      %v999 = vld [vmem:[#allocation2 + $0x6] sm:$0xff]
      %v1000 = vld [vmem:[#allocation2 + $0xe] sm:$0xff]
      %v1001 = vld [vmem:[#allocation2 + $0x16] sm:$0xff]
      %v1002 = vld [vmem:[#allocation2 + $0x1e] sm:$0xff]
      %v1003 = vld [vmem:[#allocation2 + $0x26] sm:$0xff]
      %v1004 = vld [vmem:[#allocation2 + $0x2e] sm:$0xff]
      %v1005 = vld [vmem:[#allocation2 + $0x36] sm:$0xff]
      %v1006 = vld [vmem:[#allocation2 + $0x3e] sm:$0xff]
      %v1007 = vld [vmem:[#allocation2 + $0x46] sm:$0xff]
      %v1008 = vld [vmem:[#allocation2 + $0x4e] sm:$0xff]
      %v1009 = vld [vmem:[#allocation2 + $0x56] sm:$0xff]
      %v1010 = vld [vmem:[#allocation2 + $0x5e] sm:$0xff]
      %v1011 = vld [vmem:[#allocation2 + $0x66] sm:$0xff]
      %v1012 = vld [vmem:[#allocation2 + $0x6e] sm:$0xff]
      %v1013 = vld [vmem:[#allocation2 + $0x76] sm:$0xff]
      %v1014 = vld [vmem:[#allocation2 + $0x7e] sm:$0xff]
      %v1015 = vld [vmem:[#allocation2 + $0x86] sm:$0xff]
      %v1016 = vld [vmem:[#allocation2 + $0x8e] sm:$0xff]
      %v1017 = vld [vmem:[#allocation2 + $0x96] sm:$0xff]
      %v1018 = vld [vmem:[#allocation2 + $0x9e] sm:$0xff]
      %v1019 = vld [vmem:[#allocation2 + $0xa6] sm:$0xff]
      %v1020 = vld [vmem:[#allocation2 + $0xae] sm:$0xff]
      %v1021 = vld [vmem:[#allocation2 + $0xb6] sm:$0xff]
      %v1022 = vld [vmem:[#allocation2 + $0xbe] sm:$0xff]
      %v1023 = vld [vmem:[#allocation2 + $0xc6] sm:$0xff]
      %v1024 = vld [vmem:[#allocation2 + $0xce] sm:$0xff]
      %v1025 = vld [vmem:[#allocation2 + $0xd6] sm:$0xff]
      %v1026 = vld [vmem:[#allocation2 + $0xde] sm:$0xff]
      %v1027 = vld [vmem:[#allocation2 + $0xe6] sm:$0xff]
      %v1028 = vld [vmem:[#allocation2 + $0xee] sm:$0xff]
      %v1029 = vld [vmem:[#allocation2 + $0xf6] sm:$0xff]
      %v1030 = vld [vmem:[#allocation2 + $0xfe] sm:$0xff]
      %v1031 = vld [vmem:[#allocation2 + $0xa] sm:$0xff]
      %v1032 = vld [vmem:[#allocation2 + $0x12] sm:$0xff]
      %v1033 = vld [vmem:[#allocation2 + $0x1a] sm:$0xff]
      %v1034 = vld [vmem:[#allocation2 + $0x22] sm:$0xff]
      %v1035 = vld [vmem:[#allocation2 + $0x2a] sm:$0xff]
      %v1036 = vld [vmem:[#allocation2 + $0x32] sm:$0xff]
      %v1037 = vld [vmem:[#allocation2 + $0x3a] sm:$0xff]
      %v1038 = vld [vmem:[#allocation2 + $0x42] sm:$0xff]
      %v1039 = vld [vmem:[#allocation2 + $0x4a] sm:$0xff]
      %v1040 = vld [vmem:[#allocation2 + $0x52] sm:$0xff]
      %v1041 = vld [vmem:[#allocation2 + $0x5a] sm:$0xff]
      %v1042 = vld [vmem:[#allocation2 + $0x62] sm:$0xff]
      %v1043 = vld [vmem:[#allocation2 + $0x6a] sm:$0xff]
      %v1044 = vld [vmem:[#allocation2 + $0x72] sm:$0xff]
      %v1045 = vld [vmem:[#allocation2 + $0x7a] sm:$0xff]
      %v1046 = vld [vmem:[#allocation2 + $0x82] sm:$0xff]
      %v1047 = vld [vmem:[#allocation2 + $0x8a] sm:$0xff]
      %v1048 = vld [vmem:[#allocation2 + $0x92] sm:$0xff]
      %v1049 = vld [vmem:[#allocation2 + $0x9a] sm:$0xff]
      %v1050 = vld [vmem:[#allocation2 + $0xa2] sm:$0xff]
      %v1051 = vld [vmem:[#allocation2 + $0xaa] sm:$0xff]
      %v1052 = vld [vmem:[#allocation2 + $0xb2] sm:$0xff]
      %v1053 = vld [vmem:[#allocation2 + $0xba] sm:$0xff]
      %v1054 = vld [vmem:[#allocation2 + $0xc2] sm:$0xff]
      %v1055 = vld [vmem:[#allocation2 + $0xca] sm:$0xff]
      %v1056 = vld [vmem:[#allocation2 + $0xd2] sm:$0xff]
      %v1057 = vld [vmem:[#allocation2 + $0xda] sm:$0xff]
      %v1058 = vld [vmem:[#allocation2 + $0xe2] sm:$0xff]
      %v1059 = vld [vmem:[#allocation2 + $0xea] sm:$0xff]
      %v1060 = vld [vmem:[#allocation2 + $0xf2] sm:$0xff]
      %v1061 = vld [vmem:[#allocation2 + $0xfa] sm:$0xff]
      %v1062 = vld [vmem:[#allocation2 + $0x102] sm:$0xff]
      %v1063 = vsel %vm900, %v999, %v1031
      %v1064 = vsel %vm900, %v1000, %v1032
      %v1065 = vsel %vm900, %v1001, %v1033
      %v1066 = vsel %vm900, %v1002, %v1034
      %v1067 = vsel %vm900, %v1003, %v1035
      %v1068 = vsel %vm900, %v1004, %v1036
      %v1069 = vsel %vm900, %v1005, %v1037
      %v1070 = vsel %vm900, %v1006, %v1038
      %v1071 = vsel %vm900, %v1007, %v1039
      %v1072 = vsel %vm900, %v1008, %v1040
      %v1073 = vsel %vm900, %v1009, %v1041
      %v1074 = vsel %vm900, %v1010, %v1042
      %v1075 = vsel %vm900, %v1011, %v1043
      %v1076 = vsel %vm900, %v1012, %v1044
      %v1077 = vsel %vm900, %v1013, %v1045
      %v1078 = vsel %vm900, %v1014, %v1046
      %v1079 = vsel %vm900, %v1015, %v1047
      %v1080 = vsel %vm900, %v1016, %v1048
      %v1081 = vsel %vm900, %v1017, %v1049
      %v1082 = vsel %vm900, %v1018, %v1050
      %v1083 = vsel %vm900, %v1019, %v1051
      %v1084 = vsel %vm900, %v1020, %v1052
      %v1085 = vsel %vm900, %v1021, %v1053
      %v1086 = vsel %vm900, %v1022, %v1054
      %v1087 = vsel %vm900, %v1023, %v1055
      %v1088 = vsel %vm900, %v1024, %v1056
      %v1089 = vsel %vm900, %v1025, %v1057
      %v1090 = vsel %vm900, %v1026, %v1058
      %v1091 = vsel %vm900, %v1027, %v1059
      %v1092 = vsel %vm900, %v1028, %v1060
      %v1093 = vsel %vm900, %v1029, %v1061
      %v1094 = vsel %vm900, %v1030, %v1062
      %v1095 = vld [vmem:[%s2 + $0x1] sm:$0x1]
      %v1096 = vperm.slane %v1095, 0
      %v1097 = vmul.f32 %v1063, %v1096
      %v1098 = vmul.f32 %v1064, %v1096
      %v1099 = vmul.f32 %v1065, %v1096
      %v1100 = vmul.f32 %v1066, %v1096
      %v1101 = vmul.f32 %v1067, %v1096
      %v1102 = vmul.f32 %v1068, %v1096
      %v1103 = vmul.f32 %v1069, %v1096
      %v1104 = vmul.f32 %v1070, %v1096
      %v1105 = vmul.f32 %v1071, %v1096
      %v1106 = vmul.f32 %v1072, %v1096
      %v1107 = vmul.f32 %v1073, %v1096
      %v1108 = vmul.f32 %v1074, %v1096
      %v1109 = vmul.f32 %v1075, %v1096
      %v1110 = vmul.f32 %v1076, %v1096
      %v1111 = vmul.f32 %v1077, %v1096
      %v1112 = vmul.f32 %v1078, %v1096
      %v1113 = vmul.f32 %v1079, %v1096
      %v1114 = vmul.f32 %v1080, %v1096
      %v1115 = vmul.f32 %v1081, %v1096
      %v1116 = vmul.f32 %v1082, %v1096
      %v1117 = vmul.f32 %v1083, %v1096
      %v1118 = vmul.f32 %v1084, %v1096
      %v1119 = vmul.f32 %v1085, %v1096
      %v1120 = vmul.f32 %v1086, %v1096
      %v1121 = vmul.f32 %v1087, %v1096
      %v1122 = vmul.f32 %v1088, %v1096
      %v1123 = vmul.f32 %v1089, %v1096
      %v1124 = vmul.f32 %v1090, %v1096
      %v1125 = vmul.f32 %v1091, %v1096
      %v1126 = vmul.f32 %v1092, %v1096
      %v1127 = vmul.f32 %v1093, %v1096
      %v1128 = vmul.f32 %v1094, %v1096
      %v1129 = vadd.f32 %v967, %v1097
      %v1130 = vadd.f32 %v968, %v1098
      %v1131 = vadd.f32 %v969, %v1099
      %v1132 = vadd.f32 %v970, %v1100
      %v1133 = vadd.f32 %v971, %v1101
      %v1134 = vadd.f32 %v972, %v1102
      %v1135 = vadd.f32 %v973, %v1103
      %v1136 = vadd.f32 %v974, %v1104
      %v1137 = vadd.f32 %v975, %v1105
      %v1138 = vadd.f32 %v976, %v1106
      %v1139 = vadd.f32 %v977, %v1107
      %v1140 = vadd.f32 %v978, %v1108
      %v1141 = vadd.f32 %v979, %v1109
      %v1142 = vadd.f32 %v980, %v1110
      %v1143 = vadd.f32 %v981, %v1111
      %v1144 = vadd.f32 %v982, %v1112
      %v1145 = vadd.f32 %v983, %v1113
      %v1146 = vadd.f32 %v984, %v1114
      %v1147 = vadd.f32 %v985, %v1115
      %v1148 = vadd.f32 %v986, %v1116
      %v1149 = vadd.f32 %v987, %v1117
      %v1150 = vadd.f32 %v988, %v1118
      %v1151 = vadd.f32 %v989, %v1119
      %v1152 = vadd.f32 %v990, %v1120
      %v1153 = vadd.f32 %v991, %v1121
      %v1154 = vadd.f32 %v992, %v1122
      %v1155 = vadd.f32 %v993, %v1123
      %v1156 = vadd.f32 %v994, %v1124
      %v1157 = vadd.f32 %v995, %v1125
      %v1158 = vadd.f32 %v996, %v1126
      %v1159 = vadd.f32 %v997, %v1127
      %v1160 = vadd.f32 %v998, %v1128
      %v1161 = vld [vmem:[#allocation2 + $0x7] sm:$0xff]
      %v1162 = vld [vmem:[#allocation2 + $0xf] sm:$0xff]
      %v1163 = vld [vmem:[#allocation2 + $0x17] sm:$0xff]
      %v1164 = vld [vmem:[#allocation2 + $0x1f] sm:$0xff]
      %v1165 = vld [vmem:[#allocation2 + $0x27] sm:$0xff]
      %v1166 = vld [vmem:[#allocation2 + $0x2f] sm:$0xff]
      %v1167 = vld [vmem:[#allocation2 + $0x37] sm:$0xff]
      %v1168 = vld [vmem:[#allocation2 + $0x3f] sm:$0xff]
      %v1169 = vld [vmem:[#allocation2 + $0x47] sm:$0xff]
      %v1170 = vld [vmem:[#allocation2 + $0x4f] sm:$0xff]
      %v1171 = vld [vmem:[#allocation2 + $0x57] sm:$0xff]
      %v1172 = vld [vmem:[#allocation2 + $0x5f] sm:$0xff]
      %v1173 = vld [vmem:[#allocation2 + $0x67] sm:$0xff]
      %v1174 = vld [vmem:[#allocation2 + $0x6f] sm:$0xff]
      %v1175 = vld [vmem:[#allocation2 + $0x77] sm:$0xff]
      %v1176 = vld [vmem:[#allocation2 + $0x7f] sm:$0xff]
      %v1177 = vld [vmem:[#allocation2 + $0x87] sm:$0xff]
      %v1178 = vld [vmem:[#allocation2 + $0x8f] sm:$0xff]
      %v1179 = vld [vmem:[#allocation2 + $0x97] sm:$0xff]
      %v1180 = vld [vmem:[#allocation2 + $0x9f] sm:$0xff]
      %v1181 = vld [vmem:[#allocation2 + $0xa7] sm:$0xff]
      %v1182 = vld [vmem:[#allocation2 + $0xaf] sm:$0xff]
      %v1183 = vld [vmem:[#allocation2 + $0xb7] sm:$0xff]
      %v1184 = vld [vmem:[#allocation2 + $0xbf] sm:$0xff]
      %v1185 = vld [vmem:[#allocation2 + $0xc7] sm:$0xff]
      %v1186 = vld [vmem:[#allocation2 + $0xcf] sm:$0xff]
      %v1187 = vld [vmem:[#allocation2 + $0xd7] sm:$0xff]
      %v1188 = vld [vmem:[#allocation2 + $0xdf] sm:$0xff]
      %v1189 = vld [vmem:[#allocation2 + $0xe7] sm:$0xff]
      %v1190 = vld [vmem:[#allocation2 + $0xef] sm:$0xff]
      %v1191 = vld [vmem:[#allocation2 + $0xf7] sm:$0xff]
      %v1192 = vld [vmem:[#allocation2 + $0xff] sm:$0xff]
      %v1193 = vld [vmem:[#allocation2 + $0x9] sm:$0xff]
      %v1194 = vld [vmem:[#allocation2 + $0x11] sm:$0xff]
      %v1195 = vld [vmem:[#allocation2 + $0x19] sm:$0xff]
      %v1196 = vld [vmem:[#allocation2 + $0x21] sm:$0xff]
      %v1197 = vld [vmem:[#allocation2 + $0x29] sm:$0xff]
      %v1198 = vld [vmem:[#allocation2 + $0x31] sm:$0xff]
      %v1199 = vld [vmem:[#allocation2 + $0x39] sm:$0xff]
      %v1200 = vld [vmem:[#allocation2 + $0x41] sm:$0xff]
      %v1201 = vld [vmem:[#allocation2 + $0x49] sm:$0xff]
      %v1202 = vld [vmem:[#allocation2 + $0x51] sm:$0xff]
      %v1203 = vld [vmem:[#allocation2 + $0x59] sm:$0xff]
      %v1204 = vld [vmem:[#allocation2 + $0x61] sm:$0xff]
      %v1205 = vld [vmem:[#allocation2 + $0x69] sm:$0xff]
      %v1206 = vld [vmem:[#allocation2 + $0x71] sm:$0xff]
      %v1207 = vld [vmem:[#allocation2 + $0x79] sm:$0xff]
      %v1208 = vld [vmem:[#allocation2 + $0x81] sm:$0xff]
      %v1209 = vld [vmem:[#allocation2 + $0x89] sm:$0xff]
      %v1210 = vld [vmem:[#allocation2 + $0x91] sm:$0xff]
      %v1211 = vld [vmem:[#allocation2 + $0x99] sm:$0xff]
      %v1212 = vld [vmem:[#allocation2 + $0xa1] sm:$0xff]
      %v1213 = vld [vmem:[#allocation2 + $0xa9] sm:$0xff]
      %v1214 = vld [vmem:[#allocation2 + $0xb1] sm:$0xff]
      %v1215 = vld [vmem:[#allocation2 + $0xb9] sm:$0xff]
      %v1216 = vld [vmem:[#allocation2 + $0xc1] sm:$0xff]
      %v1217 = vld [vmem:[#allocation2 + $0xc9] sm:$0xff]
      %v1218 = vld [vmem:[#allocation2 + $0xd1] sm:$0xff]
      %v1219 = vld [vmem:[#allocation2 + $0xd9] sm:$0xff]
      %v1220 = vld [vmem:[#allocation2 + $0xe1] sm:$0xff]
      %v1221 = vld [vmem:[#allocation2 + $0xe9] sm:$0xff]
      %v1222 = vld [vmem:[#allocation2 + $0xf1] sm:$0xff]
      %v1223 = vld [vmem:[#allocation2 + $0xf9] sm:$0xff]
      %v1224 = vld [vmem:[#allocation2 + $0x101] sm:$0xff]
      %v1225 = vsel %vm900, %v1161, %v1193
      %v1226 = vsel %vm900, %v1162, %v1194
      %v1227 = vsel %vm900, %v1163, %v1195
      %v1228 = vsel %vm900, %v1164, %v1196
      %v1229 = vsel %vm900, %v1165, %v1197
      %v1230 = vsel %vm900, %v1166, %v1198
      %v1231 = vsel %vm900, %v1167, %v1199
      %v1232 = vsel %vm900, %v1168, %v1200
      %v1233 = vsel %vm900, %v1169, %v1201
      %v1234 = vsel %vm900, %v1170, %v1202
      %v1235 = vsel %vm900, %v1171, %v1203
      %v1236 = vsel %vm900, %v1172, %v1204
      %v1237 = vsel %vm900, %v1173, %v1205
      %v1238 = vsel %vm900, %v1174, %v1206
      %v1239 = vsel %vm900, %v1175, %v1207
      %v1240 = vsel %vm900, %v1176, %v1208
      %v1241 = vsel %vm900, %v1177, %v1209
      %v1242 = vsel %vm900, %v1178, %v1210
      %v1243 = vsel %vm900, %v1179, %v1211
      %v1244 = vsel %vm900, %v1180, %v1212
      %v1245 = vsel %vm900, %v1181, %v1213
      %v1246 = vsel %vm900, %v1182, %v1214
      %v1247 = vsel %vm900, %v1183, %v1215
      %v1248 = vsel %vm900, %v1184, %v1216
      %v1249 = vsel %vm900, %v1185, %v1217
      %v1250 = vsel %vm900, %v1186, %v1218
      %v1251 = vsel %vm900, %v1187, %v1219
      %v1252 = vsel %vm900, %v1188, %v1220
      %v1253 = vsel %vm900, %v1189, %v1221
      %v1254 = vsel %vm900, %v1190, %v1222
      %v1255 = vsel %vm900, %v1191, %v1223
      %v1256 = vsel %vm900, %v1192, %v1224
      %v1257 = vld [vmem:[%s2 + $0x2] sm:$0x1]
      %v1258 = vperm.slane %v1257, 0
      %v1259 = vmul.f32 %v1225, %v1258
      %v1260 = vmul.f32 %v1226, %v1258
      %v1261 = vmul.f32 %v1227, %v1258
      %v1262 = vmul.f32 %v1228, %v1258
      %v1263 = vmul.f32 %v1229, %v1258
      %v1264 = vmul.f32 %v1230, %v1258
      %v1265 = vmul.f32 %v1231, %v1258
      %v1266 = vmul.f32 %v1232, %v1258
      %v1267 = vmul.f32 %v1233, %v1258
      %v1268 = vmul.f32 %v1234, %v1258
      %v1269 = vmul.f32 %v1235, %v1258
      %v1270 = vmul.f32 %v1236, %v1258
      %v1271 = vmul.f32 %v1237, %v1258
      %v1272 = vmul.f32 %v1238, %v1258
      %v1273 = vmul.f32 %v1239, %v1258
      %v1274 = vmul.f32 %v1240, %v1258
      %v1275 = vmul.f32 %v1241, %v1258
      %v1276 = vmul.f32 %v1242, %v1258
      %v1277 = vmul.f32 %v1243, %v1258
      %v1278 = vmul.f32 %v1244, %v1258
      %v1279 = vmul.f32 %v1245, %v1258
      %v1280 = vmul.f32 %v1246, %v1258
      %v1281 = vmul.f32 %v1247, %v1258
      %v1282 = vmul.f32 %v1248, %v1258
      %v1283 = vmul.f32 %v1249, %v1258
      %v1284 = vmul.f32 %v1250, %v1258
      %v1285 = vmul.f32 %v1251, %v1258
      %v1286 = vmul.f32 %v1252, %v1258
      %v1287 = vmul.f32 %v1253, %v1258
      %v1288 = vmul.f32 %v1254, %v1258
      %v1289 = vmul.f32 %v1255, %v1258
      %v1290 = vmul.f32 %v1256, %v1258
      %v1291 = vadd.f32 %v1129, %v1259
      %v1292 = vadd.f32 %v1130, %v1260
      %v1293 = vadd.f32 %v1131, %v1261
      %v1294 = vadd.f32 %v1132, %v1262
      %v1295 = vadd.f32 %v1133, %v1263
      %v1296 = vadd.f32 %v1134, %v1264
      %v1297 = vadd.f32 %v1135, %v1265
      %v1298 = vadd.f32 %v1136, %v1266
      %v1299 = vadd.f32 %v1137, %v1267
      %v1300 = vadd.f32 %v1138, %v1268
      %v1301 = vadd.f32 %v1139, %v1269
      %v1302 = vadd.f32 %v1140, %v1270
      %v1303 = vadd.f32 %v1141, %v1271
      %v1304 = vadd.f32 %v1142, %v1272
      %v1305 = vadd.f32 %v1143, %v1273
      %v1306 = vadd.f32 %v1144, %v1274
      %v1307 = vadd.f32 %v1145, %v1275
      %v1308 = vadd.f32 %v1146, %v1276
      %v1309 = vadd.f32 %v1147, %v1277
      %v1310 = vadd.f32 %v1148, %v1278
      %v1311 = vadd.f32 %v1149, %v1279
      %v1312 = vadd.f32 %v1150, %v1280
      %v1313 = vadd.f32 %v1151, %v1281
      %v1314 = vadd.f32 %v1152, %v1282
      %v1315 = vadd.f32 %v1153, %v1283
      %v1316 = vadd.f32 %v1154, %v1284
      %v1317 = vadd.f32 %v1155, %v1285
      %v1318 = vadd.f32 %v1156, %v1286
      %v1319 = vadd.f32 %v1157, %v1287
      %v1320 = vadd.f32 %v1158, %v1288
      %v1321 = vadd.f32 %v1159, %v1289
      %v1322 = vadd.f32 %v1160, %v1290
      %v1323 = vld [vmem:[#allocation2 + $0x8] sm:$0xff]
      %v1324 = vld [vmem:[#allocation2 + $0x10] sm:$0xff]
      %v1325 = vld [vmem:[#allocation2 + $0x18] sm:$0xff]
      %v1326 = vld [vmem:[#allocation2 + $0x20] sm:$0xff]
      %v1327 = vld [vmem:[#allocation2 + $0x28] sm:$0xff]
      %v1328 = vld [vmem:[#allocation2 + $0x30] sm:$0xff]
      %v1329 = vld [vmem:[#allocation2 + $0x38] sm:$0xff]
      %v1330 = vld [vmem:[#allocation2 + $0x40] sm:$0xff]
      %v1331 = vld [vmem:[#allocation2 + $0x48] sm:$0xff]
      %v1332 = vld [vmem:[#allocation2 + $0x50] sm:$0xff]
      %v1333 = vld [vmem:[#allocation2 + $0x58] sm:$0xff]
      %v1334 = vld [vmem:[#allocation2 + $0x60] sm:$0xff]
      %v1335 = vld [vmem:[#allocation2 + $0x68] sm:$0xff]
      %v1336 = vld [vmem:[#allocation2 + $0x70] sm:$0xff]
      %v1337 = vld [vmem:[#allocation2 + $0x78] sm:$0xff]
      %v1338 = vld [vmem:[#allocation2 + $0x80] sm:$0xff]
      %v1339 = vld [vmem:[#allocation2 + $0x88] sm:$0xff]
      %v1340 = vld [vmem:[#allocation2 + $0x90] sm:$0xff]
      %v1341 = vld [vmem:[#allocation2 + $0x98] sm:$0xff]
      %v1342 = vld [vmem:[#allocation2 + $0xa0] sm:$0xff]
      %v1343 = vld [vmem:[#allocation2 + $0xa8] sm:$0xff]
      %v1344 = vld [vmem:[#allocation2 + $0xb0] sm:$0xff]
      %v1345 = vld [vmem:[#allocation2 + $0xb8] sm:$0xff]
      %v1346 = vld [vmem:[#allocation2 + $0xc0] sm:$0xff]
      %v1347 = vld [vmem:[#allocation2 + $0xc8] sm:$0xff]
      %v1348 = vld [vmem:[#allocation2 + $0xd0] sm:$0xff]
      %v1349 = vld [vmem:[#allocation2 + $0xd8] sm:$0xff]
      %v1350 = vld [vmem:[#allocation2 + $0xe0] sm:$0xff]
      %v1351 = vld [vmem:[#allocation2 + $0xe8] sm:$0xff]
      %v1352 = vld [vmem:[#allocation2 + $0xf0] sm:$0xff]
      %v1353 = vld [vmem:[#allocation2 + $0xf8] sm:$0xff]
      %v1354 = vld [vmem:[#allocation2 + $0x100] sm:$0xff]
      %v1355 = vld [vmem:[%s2 + $0x3] sm:$0x1]
      %v1356 = vperm.slane %v1355, 0
      %v1357 = vmul.f32 %v1323, %v1356
      %v1358 = vmul.f32 %v1324, %v1356
      %v1359 = vmul.f32 %v1325, %v1356
      %v1360 = vmul.f32 %v1326, %v1356
      %v1361 = vmul.f32 %v1327, %v1356
      %v1362 = vmul.f32 %v1328, %v1356
      %v1363 = vmul.f32 %v1329, %v1356
      %v1364 = vmul.f32 %v1330, %v1356
      %v1365 = vmul.f32 %v1331, %v1356
      %v1366 = vmul.f32 %v1332, %v1356
      %v1367 = vmul.f32 %v1333, %v1356
      %v1368 = vmul.f32 %v1334, %v1356
      %v1369 = vmul.f32 %v1335, %v1356
      %v1370 = vmul.f32 %v1336, %v1356
      %v1371 = vmul.f32 %v1337, %v1356
      %v1372 = vmul.f32 %v1338, %v1356
      %v1373 = vmul.f32 %v1339, %v1356
      %v1374 = vmul.f32 %v1340, %v1356
      %v1375 = vmul.f32 %v1341, %v1356
      %v1376 = vmul.f32 %v1342, %v1356
      %v1377 = vmul.f32 %v1343, %v1356
      %v1378 = vmul.f32 %v1344, %v1356
      %v1379 = vmul.f32 %v1345, %v1356
      %v1380 = vmul.f32 %v1346, %v1356
      %v1381 = vmul.f32 %v1347, %v1356
      %v1382 = vmul.f32 %v1348, %v1356
      %v1383 = vmul.f32 %v1349, %v1356
      %v1384 = vmul.f32 %v1350, %v1356
      %v1385 = vmul.f32 %v1351, %v1356
      %v1386 = vmul.f32 %v1352, %v1356
      %v1387 = vmul.f32 %v1353, %v1356
      %v1388 = vmul.f32 %v1354, %v1356
      %v1389 = vadd.f32 %v1291, %v1357
      %v1390 = vadd.f32 %v1292, %v1358
      %v1391 = vadd.f32 %v1293, %v1359
      %v1392 = vadd.f32 %v1294, %v1360
      %v1393 = vadd.f32 %v1295, %v1361
      %v1394 = vadd.f32 %v1296, %v1362
      %v1395 = vadd.f32 %v1297, %v1363
      %v1396 = vadd.f32 %v1298, %v1364
      %v1397 = vadd.f32 %v1299, %v1365
      %v1398 = vadd.f32 %v1300, %v1366
      %v1399 = vadd.f32 %v1301, %v1367
      %v1400 = vadd.f32 %v1302, %v1368
      %v1401 = vadd.f32 %v1303, %v1369
      %v1402 = vadd.f32 %v1304, %v1370
      %v1403 = vadd.f32 %v1305, %v1371
      %v1404 = vadd.f32 %v1306, %v1372
      %v1405 = vadd.f32 %v1307, %v1373
      %v1406 = vadd.f32 %v1308, %v1374
      %v1407 = vadd.f32 %v1309, %v1375
      %v1408 = vadd.f32 %v1310, %v1376
      %v1409 = vadd.f32 %v1311, %v1377
      %v1410 = vadd.f32 %v1312, %v1378
      %v1411 = vadd.f32 %v1313, %v1379
      %v1412 = vadd.f32 %v1314, %v1380
      %v1413 = vadd.f32 %v1315, %v1381
      %v1414 = vadd.f32 %v1316, %v1382
      %v1415 = vadd.f32 %v1317, %v1383
      %v1416 = vadd.f32 %v1318, %v1384
      %v1417 = vadd.f32 %v1319, %v1385
      %v1418 = vadd.f32 %v1320, %v1386
      %v1419 = vadd.f32 %v1321, %v1387
      %v1420 = vadd.f32 %v1322, %v1388
      %v1421 = vld [vmem:[%s3] sm:$0x1]
      %v1423 = vperm.slane %v1421, 0
      %v1425 = vadd.f32 %v1389, %v1423
      %v1426 = vadd.f32 %v1390, %v1423
      %v1427 = vadd.f32 %v1391, %v1423
      %v1428 = vadd.f32 %v1392, %v1423
      %v1429 = vadd.f32 %v1393, %v1423
      %v1430 = vadd.f32 %v1394, %v1423
      %v1431 = vadd.f32 %v1395, %v1423
      %v1432 = vadd.f32 %v1396, %v1423
      %v1433 = vadd.f32 %v1397, %v1423
      %v1434 = vadd.f32 %v1398, %v1423
      %v1435 = vadd.f32 %v1399, %v1423
      %v1436 = vadd.f32 %v1400, %v1423
      %v1437 = vadd.f32 %v1401, %v1423
      %v1438 = vadd.f32 %v1402, %v1423
      %v1439 = vadd.f32 %v1403, %v1423
      %v1440 = vadd.f32 %v1404, %v1423
      %v1441 = vadd.f32 %v1405, %v1423
      %v1442 = vadd.f32 %v1406, %v1423
      %v1443 = vadd.f32 %v1407, %v1423
      %v1444 = vadd.f32 %v1408, %v1423
      %v1445 = vadd.f32 %v1409, %v1423
      %v1446 = vadd.f32 %v1410, %v1423
      %v1447 = vadd.f32 %v1411, %v1423
      %v1448 = vadd.f32 %v1412, %v1423
      %v1449 = vadd.f32 %v1413, %v1423
      %v1450 = vadd.f32 %v1414, %v1423
      %v1451 = vadd.f32 %v1415, %v1423
      %v1452 = vadd.f32 %v1416, %v1423
      %v1453 = vadd.f32 %v1417, %v1423
      %v1454 = vadd.f32 %v1418, %v1423
      %v1455 = vadd.f32 %v1419, %v1423
      %v1456 = vadd.f32 %v1420, %v1423
      %v1457 = vxor.u32 %v1425, 2147483648
      %v1458 = vxor.u32 %v1426, 2147483648
      %v1459 = vxor.u32 %v1427, 2147483648
      %v1460 = vxor.u32 %v1428, 2147483648
      %v1461 = vxor.u32 %v1429, 2147483648
      %v1462 = vxor.u32 %v1430, 2147483648
      %v1463 = vxor.u32 %v1431, 2147483648
      %v1464 = vxor.u32 %v1432, 2147483648
      %v1465 = vxor.u32 %v1433, 2147483648
      %v1466 = vxor.u32 %v1434, 2147483648
      %v1467 = vxor.u32 %v1435, 2147483648
      %v1468 = vxor.u32 %v1436, 2147483648
      %v1469 = vxor.u32 %v1437, 2147483648
      %v1470 = vxor.u32 %v1438, 2147483648
      %v1471 = vxor.u32 %v1439, 2147483648
      %v1472 = vxor.u32 %v1440, 2147483648
      %v1473 = vxor.u32 %v1441, 2147483648
      %v1474 = vxor.u32 %v1442, 2147483648
      %v1475 = vxor.u32 %v1443, 2147483648
      %v1476 = vxor.u32 %v1444, 2147483648
      %v1477 = vxor.u32 %v1445, 2147483648
      %v1478 = vxor.u32 %v1446, 2147483648
      %v1479 = vxor.u32 %v1447, 2147483648
      %v1480 = vxor.u32 %v1448, 2147483648
      %v1481 = vxor.u32 %v1449, 2147483648
      %v1482 = vxor.u32 %v1450, 2147483648
      %v1483 = vxor.u32 %v1451, 2147483648
      %v1484 = vxor.u32 %v1452, 2147483648
      %v1485 = vxor.u32 %v1453, 2147483648
      %v1486 = vxor.u32 %v1454, 2147483648
      %v1487 = vxor.u32 %v1455, 2147483648
      %v1488 = vxor.u32 %v1456, 2147483648
      %v1489 = vmul.f32 %v1457, 1.442695
      %v1490 = vpow.pop %v1489
      %v1491 = vmul.f32 %v1458, 1.442695
      %v1492 = vpow.pop %v1491
      %v1493 = vmul.f32 %v1459, 1.442695
      %v1494 = vpow.pop %v1493
      %v1495 = vmul.f32 %v1460, 1.442695
      %v1496 = vpow.pop %v1495
      %v1497 = vmul.f32 %v1461, 1.442695
      %v1498 = vpow.pop %v1497
      %v1499 = vmul.f32 %v1462, 1.442695
      %v1500 = vpow.pop %v1499
      %v1501 = vmul.f32 %v1463, 1.442695
      %v1502 = vpow.pop %v1501
      %v1503 = vmul.f32 %v1464, 1.442695
      %v1504 = vpow.pop %v1503
      %v1505 = vmul.f32 %v1465, 1.442695
      %v1506 = vpow.pop %v1505
      %v1507 = vmul.f32 %v1466, 1.442695
      %v1508 = vpow.pop %v1507
      %v1509 = vmul.f32 %v1467, 1.442695
      %v1510 = vpow.pop %v1509
      %v1511 = vmul.f32 %v1468, 1.442695
      %v1512 = vpow.pop %v1511
      %v1513 = vmul.f32 %v1469, 1.442695
      %v1514 = vpow.pop %v1513
      %v1515 = vmul.f32 %v1470, 1.442695
      %v1516 = vpow.pop %v1515
      %v1517 = vmul.f32 %v1471, 1.442695
      %v1518 = vpow.pop %v1517
      %v1519 = vmul.f32 %v1472, 1.442695
      %v1520 = vpow.pop %v1519
      %v1521 = vmul.f32 %v1473, 1.442695
      %v1522 = vpow.pop %v1521
      %v1523 = vmul.f32 %v1474, 1.442695
      %v1524 = vpow.pop %v1523
      %v1525 = vmul.f32 %v1475, 1.442695
      %v1526 = vpow.pop %v1525
      %v1527 = vmul.f32 %v1476, 1.442695
      %v1528 = vpow.pop %v1527
      %v1529 = vmul.f32 %v1477, 1.442695
      %v1530 = vpow.pop %v1529
      %v1531 = vmul.f32 %v1478, 1.442695
      %v1532 = vpow.pop %v1531
      %v1533 = vmul.f32 %v1479, 1.442695
      %v1534 = vpow.pop %v1533
      %v1535 = vmul.f32 %v1480, 1.442695
      %v1536 = vpow.pop %v1535
      %v1537 = vmul.f32 %v1481, 1.442695
      %v1538 = vpow.pop %v1537
      %v1539 = vmul.f32 %v1482, 1.442695
      %v1540 = vpow.pop %v1539
      %v1541 = vmul.f32 %v1483, 1.442695
      %v1542 = vpow.pop %v1541
      %v1543 = vmul.f32 %v1484, 1.442695
      %v1544 = vpow.pop %v1543
      %v1545 = vmul.f32 %v1485, 1.442695
      %v1546 = vpow.pop %v1545
      %v1547 = vmul.f32 %v1486, 1.442695
      %v1548 = vpow.pop %v1547
      %v1549 = vmul.f32 %v1487, 1.442695
      %v1550 = vpow.pop %v1549
      %v1551 = vmul.f32 %v1488, 1.442695
      %v1552 = vpow.pop %v1551
      %v1553 = vadd.f32 %v1490, 1.0
      %v1554 = vadd.f32 %v1492, 1.0
      %v1555 = vadd.f32 %v1494, 1.0
      %v1556 = vadd.f32 %v1496, 1.0
      %v1557 = vadd.f32 %v1498, 1.0
      %v1558 = vadd.f32 %v1500, 1.0
      %v1559 = vadd.f32 %v1502, 1.0
      %v1560 = vadd.f32 %v1504, 1.0
      %v1561 = vadd.f32 %v1506, 1.0
      %v1562 = vadd.f32 %v1508, 1.0
      %v1563 = vadd.f32 %v1510, 1.0
      %v1564 = vadd.f32 %v1512, 1.0
      %v1565 = vadd.f32 %v1514, 1.0
      %v1566 = vadd.f32 %v1516, 1.0
      %v1567 = vadd.f32 %v1518, 1.0
      %v1568 = vadd.f32 %v1520, 1.0
      %v1569 = vadd.f32 %v1522, 1.0
      %v1570 = vadd.f32 %v1524, 1.0
      %v1571 = vadd.f32 %v1526, 1.0
      %v1572 = vadd.f32 %v1528, 1.0
      %v1573 = vadd.f32 %v1530, 1.0
      %v1574 = vadd.f32 %v1532, 1.0
      %v1575 = vadd.f32 %v1534, 1.0
      %v1576 = vadd.f32 %v1536, 1.0
      %v1577 = vadd.f32 %v1538, 1.0
      %v1578 = vadd.f32 %v1540, 1.0
      %v1579 = vadd.f32 %v1542, 1.0
      %v1580 = vadd.f32 %v1544, 1.0
      %v1581 = vadd.f32 %v1546, 1.0
      %v1582 = vadd.f32 %v1548, 1.0
      %v1583 = vadd.f32 %v1550, 1.0
      %v1584 = vadd.f32 %v1552, 1.0
      %v1585 = vrcp.pop %v1553
      %v1586 = vmul.f32 %v1553, %v1585
      %v1587 = vsub.f32 1.0, %v1586
      %v1588 = vmul.f32 %v1585, %v1587
      %v1589 = vadd.f32 %v1585, %v1588
      %vm1590 = vweird.f32 %v1553
      %vm1591 = vweird.f32 %v1585
      %vm1592 = vmor %vm1590, %vm1591
      %v1593 = vsel %vm1592, %v1585, %v1589
      %v1594 = vand.u32 2147483647, %v1553
      %vm1595 = vcmp.eq.f32.partialorder %v1594, 8.507059e+37
      %v1596 = vand.u32 %v1553, 2147483648
      %v1597 = vor.u32 1.1754944e-38, %v1596
      %v1598 = vsel %vm1595, %v1597, %v1593
      %v1599 = vmul.f32 1.0, %v1598
      %v1600 = vrcp.pop %v1554
      %v1601 = vmul.f32 %v1554, %v1600
      %v1602 = vsub.f32 1.0, %v1601
      %v1603 = vmul.f32 %v1600, %v1602
      %v1604 = vadd.f32 %v1600, %v1603
      %vm1605 = vweird.f32 %v1554
      %vm1606 = vweird.f32 %v1600
      %vm1607 = vmor %vm1605, %vm1606
      %v1608 = vsel %vm1607, %v1600, %v1604
      %v1609 = vand.u32 2147483647, %v1554
      %vm1610 = vcmp.eq.f32.partialorder %v1609, 8.507059e+37
      %v1611 = vand.u32 %v1554, 2147483648
      %v1612 = vor.u32 1.1754944e-38, %v1611
      %v1613 = vsel %vm1610, %v1612, %v1608
      %v1614 = vmul.f32 1.0, %v1613
      %v1615 = vrcp.pop %v1555
      %v1616 = vmul.f32 %v1555, %v1615
      %v1617 = vsub.f32 1.0, %v1616
      %v1618 = vmul.f32 %v1615, %v1617
      %v1619 = vadd.f32 %v1615, %v1618
      %vm1620 = vweird.f32 %v1555
      %vm1621 = vweird.f32 %v1615
      %vm1622 = vmor %vm1620, %vm1621
      %v1623 = vsel %vm1622, %v1615, %v1619
      %v1624 = vand.u32 2147483647, %v1555
      %vm1625 = vcmp.eq.f32.partialorder %v1624, 8.507059e+37
      %v1626 = vand.u32 %v1555, 2147483648
      %v1627 = vor.u32 1.1754944e-38, %v1626
      %v1628 = vsel %vm1625, %v1627, %v1623
      %v1629 = vmul.f32 1.0, %v1628
      %v1630 = vrcp.pop %v1556
      %v1631 = vmul.f32 %v1556, %v1630
      %v1632 = vsub.f32 1.0, %v1631
      %v1633 = vmul.f32 %v1630, %v1632
      %v1634 = vadd.f32 %v1630, %v1633
      %vm1635 = vweird.f32 %v1556
      %vm1636 = vweird.f32 %v1630
      %vm1637 = vmor %vm1635, %vm1636
      %v1638 = vsel %vm1637, %v1630, %v1634
      %v1639 = vand.u32 2147483647, %v1556
      %vm1640 = vcmp.eq.f32.partialorder %v1639, 8.507059e+37
      %v1641 = vand.u32 %v1556, 2147483648
      %v1642 = vor.u32 1.1754944e-38, %v1641
      %v1643 = vsel %vm1640, %v1642, %v1638
      %v1644 = vmul.f32 1.0, %v1643
      %v1645 = vrcp.pop %v1557
      %v1646 = vmul.f32 %v1557, %v1645
      %v1647 = vsub.f32 1.0, %v1646
      %v1648 = vmul.f32 %v1645, %v1647
      %v1649 = vadd.f32 %v1645, %v1648
      %vm1650 = vweird.f32 %v1557
      %vm1651 = vweird.f32 %v1645
      %vm1652 = vmor %vm1650, %vm1651
      %v1653 = vsel %vm1652, %v1645, %v1649
      %v1654 = vand.u32 2147483647, %v1557
      %vm1655 = vcmp.eq.f32.partialorder %v1654, 8.507059e+37
      %v1656 = vand.u32 %v1557, 2147483648
      %v1657 = vor.u32 1.1754944e-38, %v1656
      %v1658 = vsel %vm1655, %v1657, %v1653
      %v1659 = vmul.f32 1.0, %v1658
      %v1660 = vrcp.pop %v1558
      %v1661 = vmul.f32 %v1558, %v1660
      %v1662 = vsub.f32 1.0, %v1661
      %v1663 = vmul.f32 %v1660, %v1662
      %v1664 = vadd.f32 %v1660, %v1663
      %vm1665 = vweird.f32 %v1558
      %vm1666 = vweird.f32 %v1660
      %vm1667 = vmor %vm1665, %vm1666
      %v1668 = vsel %vm1667, %v1660, %v1664
      %v1669 = vand.u32 2147483647, %v1558
      %vm1670 = vcmp.eq.f32.partialorder %v1669, 8.507059e+37
      %v1671 = vand.u32 %v1558, 2147483648
      %v1672 = vor.u32 1.1754944e-38, %v1671
      %v1673 = vsel %vm1670, %v1672, %v1668
      %v1674 = vmul.f32 1.0, %v1673
      %v1675 = vrcp.pop %v1559
      %v1676 = vmul.f32 %v1559, %v1675
      %v1677 = vsub.f32 1.0, %v1676
      %v1678 = vmul.f32 %v1675, %v1677
      %v1679 = vadd.f32 %v1675, %v1678
      %vm1680 = vweird.f32 %v1559
      %vm1681 = vweird.f32 %v1675
      %vm1682 = vmor %vm1680, %vm1681
      %v1683 = vsel %vm1682, %v1675, %v1679
      %v1684 = vand.u32 2147483647, %v1559
      %vm1685 = vcmp.eq.f32.partialorder %v1684, 8.507059e+37
      %v1686 = vand.u32 %v1559, 2147483648
      %v1687 = vor.u32 1.1754944e-38, %v1686
      %v1688 = vsel %vm1685, %v1687, %v1683
      %v1689 = vmul.f32 1.0, %v1688
      %v1690 = vrcp.pop %v1560
      %v1691 = vmul.f32 %v1560, %v1690
      %v1692 = vsub.f32 1.0, %v1691
      %v1693 = vmul.f32 %v1690, %v1692
      %v1694 = vadd.f32 %v1690, %v1693
      %vm1695 = vweird.f32 %v1560
      %vm1696 = vweird.f32 %v1690
      %vm1697 = vmor %vm1695, %vm1696
      %v1698 = vsel %vm1697, %v1690, %v1694
      %v1699 = vand.u32 2147483647, %v1560
      %vm1700 = vcmp.eq.f32.partialorder %v1699, 8.507059e+37
      %v1701 = vand.u32 %v1560, 2147483648
      %v1702 = vor.u32 1.1754944e-38, %v1701
      %v1703 = vsel %vm1700, %v1702, %v1698
      %v1704 = vmul.f32 1.0, %v1703
      %v1705 = vrcp.pop %v1561
      %v1706 = vmul.f32 %v1561, %v1705
      %v1707 = vsub.f32 1.0, %v1706
      %v1708 = vmul.f32 %v1705, %v1707
      %v1709 = vadd.f32 %v1705, %v1708
      %vm1710 = vweird.f32 %v1561
      %vm1711 = vweird.f32 %v1705
      %vm1712 = vmor %vm1710, %vm1711
      %v1713 = vsel %vm1712, %v1705, %v1709
      %v1714 = vand.u32 2147483647, %v1561
      %vm1715 = vcmp.eq.f32.partialorder %v1714, 8.507059e+37
      %v1716 = vand.u32 %v1561, 2147483648
      %v1717 = vor.u32 1.1754944e-38, %v1716
      %v1718 = vsel %vm1715, %v1717, %v1713
      %v1719 = vmul.f32 1.0, %v1718
      %v1720 = vrcp.pop %v1562
      %v1721 = vmul.f32 %v1562, %v1720
      %v1722 = vsub.f32 1.0, %v1721
      %v1723 = vmul.f32 %v1720, %v1722
      %v1724 = vadd.f32 %v1720, %v1723
      %vm1725 = vweird.f32 %v1562
      %vm1726 = vweird.f32 %v1720
      %vm1727 = vmor %vm1725, %vm1726
      %v1728 = vsel %vm1727, %v1720, %v1724
      %v1729 = vand.u32 2147483647, %v1562
      %vm1730 = vcmp.eq.f32.partialorder %v1729, 8.507059e+37
      %v1731 = vand.u32 %v1562, 2147483648
      %v1732 = vor.u32 1.1754944e-38, %v1731
      %v1733 = vsel %vm1730, %v1732, %v1728
      %v1734 = vmul.f32 1.0, %v1733
      %v1735 = vrcp.pop %v1563
      %v1736 = vmul.f32 %v1563, %v1735
      %v1737 = vsub.f32 1.0, %v1736
      %v1738 = vmul.f32 %v1735, %v1737
      %v1739 = vadd.f32 %v1735, %v1738
      %vm1740 = vweird.f32 %v1563
      %vm1741 = vweird.f32 %v1735
      %vm1742 = vmor %vm1740, %vm1741
      %v1743 = vsel %vm1742, %v1735, %v1739
      %v1744 = vand.u32 2147483647, %v1563
      %vm1745 = vcmp.eq.f32.partialorder %v1744, 8.507059e+37
      %v1746 = vand.u32 %v1563, 2147483648
      %v1747 = vor.u32 1.1754944e-38, %v1746
      %v1748 = vsel %vm1745, %v1747, %v1743
      %v1749 = vmul.f32 1.0, %v1748
      %v1750 = vrcp.pop %v1564
      %v1751 = vmul.f32 %v1564, %v1750
      %v1752 = vsub.f32 1.0, %v1751
      %v1753 = vmul.f32 %v1750, %v1752
      %v1754 = vadd.f32 %v1750, %v1753
      %vm1755 = vweird.f32 %v1564
      %vm1756 = vweird.f32 %v1750
      %vm1757 = vmor %vm1755, %vm1756
      %v1758 = vsel %vm1757, %v1750, %v1754
      %v1759 = vand.u32 2147483647, %v1564
      %vm1760 = vcmp.eq.f32.partialorder %v1759, 8.507059e+37
      %v1761 = vand.u32 %v1564, 2147483648
      %v1762 = vor.u32 1.1754944e-38, %v1761
      %v1763 = vsel %vm1760, %v1762, %v1758
      %v1764 = vmul.f32 1.0, %v1763
      %v1765 = vrcp.pop %v1565
      %v1766 = vmul.f32 %v1565, %v1765
      %v1767 = vsub.f32 1.0, %v1766
      %v1768 = vmul.f32 %v1765, %v1767
      %v1769 = vadd.f32 %v1765, %v1768
      %vm1770 = vweird.f32 %v1565
      %vm1771 = vweird.f32 %v1765
      %vm1772 = vmor %vm1770, %vm1771
      %v1773 = vsel %vm1772, %v1765, %v1769
      %v1774 = vand.u32 2147483647, %v1565
      %vm1775 = vcmp.eq.f32.partialorder %v1774, 8.507059e+37
      %v1776 = vand.u32 %v1565, 2147483648
      %v1777 = vor.u32 1.1754944e-38, %v1776
      %v1778 = vsel %vm1775, %v1777, %v1773
      %v1779 = vmul.f32 1.0, %v1778
      %v1780 = vrcp.pop %v1566
      %v1781 = vmul.f32 %v1566, %v1780
      %v1782 = vsub.f32 1.0, %v1781
      %v1783 = vmul.f32 %v1780, %v1782
      %v1784 = vadd.f32 %v1780, %v1783
      %vm1785 = vweird.f32 %v1566
      %vm1786 = vweird.f32 %v1780
      %vm1787 = vmor %vm1785, %vm1786
      %v1788 = vsel %vm1787, %v1780, %v1784
      %v1789 = vand.u32 2147483647, %v1566
      %vm1790 = vcmp.eq.f32.partialorder %v1789, 8.507059e+37
      %v1791 = vand.u32 %v1566, 2147483648
      %v1792 = vor.u32 1.1754944e-38, %v1791
      %v1793 = vsel %vm1790, %v1792, %v1788
      %v1794 = vmul.f32 1.0, %v1793
      %v1795 = vrcp.pop %v1567
      %v1796 = vmul.f32 %v1567, %v1795
      %v1797 = vsub.f32 1.0, %v1796
      %v1798 = vmul.f32 %v1795, %v1797
      %v1799 = vadd.f32 %v1795, %v1798
      %vm1800 = vweird.f32 %v1567
      %vm1801 = vweird.f32 %v1795
      %vm1802 = vmor %vm1800, %vm1801
      %v1803 = vsel %vm1802, %v1795, %v1799
      %v1804 = vand.u32 2147483647, %v1567
      %vm1805 = vcmp.eq.f32.partialorder %v1804, 8.507059e+37
      %v1806 = vand.u32 %v1567, 2147483648
      %v1807 = vor.u32 1.1754944e-38, %v1806
      %v1808 = vsel %vm1805, %v1807, %v1803
      %v1809 = vmul.f32 1.0, %v1808
      %v1810 = vrcp.pop %v1568
      %v1811 = vmul.f32 %v1568, %v1810
      %v1812 = vsub.f32 1.0, %v1811
      %v1813 = vmul.f32 %v1810, %v1812
      %v1814 = vadd.f32 %v1810, %v1813
      %vm1815 = vweird.f32 %v1568
      %vm1816 = vweird.f32 %v1810
      %vm1817 = vmor %vm1815, %vm1816
      %v1818 = vsel %vm1817, %v1810, %v1814
      %v1819 = vand.u32 2147483647, %v1568
      %vm1820 = vcmp.eq.f32.partialorder %v1819, 8.507059e+37
      %v1821 = vand.u32 %v1568, 2147483648
      %v1822 = vor.u32 1.1754944e-38, %v1821
      %v1823 = vsel %vm1820, %v1822, %v1818
      %v1824 = vmul.f32 1.0, %v1823
      %v1825 = vrcp.pop %v1569
      %v1826 = vmul.f32 %v1569, %v1825
      %v1827 = vsub.f32 1.0, %v1826
      %v1828 = vmul.f32 %v1825, %v1827
      %v1829 = vadd.f32 %v1825, %v1828
      %vm1830 = vweird.f32 %v1569
      %vm1831 = vweird.f32 %v1825
      %vm1832 = vmor %vm1830, %vm1831
      %v1833 = vsel %vm1832, %v1825, %v1829
      %v1834 = vand.u32 2147483647, %v1569
      %vm1835 = vcmp.eq.f32.partialorder %v1834, 8.507059e+37
      %v1836 = vand.u32 %v1569, 2147483648
      %v1837 = vor.u32 1.1754944e-38, %v1836
      %v1838 = vsel %vm1835, %v1837, %v1833
      %v1839 = vmul.f32 1.0, %v1838
      %v1840 = vrcp.pop %v1570
      %v1841 = vmul.f32 %v1570, %v1840
      %v1842 = vsub.f32 1.0, %v1841
      %v1843 = vmul.f32 %v1840, %v1842
      %v1844 = vadd.f32 %v1840, %v1843
      %vm1845 = vweird.f32 %v1570
      %vm1846 = vweird.f32 %v1840
      %vm1847 = vmor %vm1845, %vm1846
      %v1848 = vsel %vm1847, %v1840, %v1844
      %v1849 = vand.u32 2147483647, %v1570
      %vm1850 = vcmp.eq.f32.partialorder %v1849, 8.507059e+37
      %v1851 = vand.u32 %v1570, 2147483648
      %v1852 = vor.u32 1.1754944e-38, %v1851
      %v1853 = vsel %vm1850, %v1852, %v1848
      %v1854 = vmul.f32 1.0, %v1853
      %v1855 = vrcp.pop %v1571
      %v1856 = vmul.f32 %v1571, %v1855
      %v1857 = vsub.f32 1.0, %v1856
      %v1858 = vmul.f32 %v1855, %v1857
      %v1859 = vadd.f32 %v1855, %v1858
      %vm1860 = vweird.f32 %v1571
      %vm1861 = vweird.f32 %v1855
      %vm1862 = vmor %vm1860, %vm1861
      %v1863 = vsel %vm1862, %v1855, %v1859
      %v1864 = vand.u32 2147483647, %v1571
      %vm1865 = vcmp.eq.f32.partialorder %v1864, 8.507059e+37
      %v1866 = vand.u32 %v1571, 2147483648
      %v1867 = vor.u32 1.1754944e-38, %v1866
      %v1868 = vsel %vm1865, %v1867, %v1863
      %v1869 = vmul.f32 1.0, %v1868
      %v1870 = vrcp.pop %v1572
      %v1871 = vmul.f32 %v1572, %v1870
      %v1872 = vsub.f32 1.0, %v1871
      %v1873 = vmul.f32 %v1870, %v1872
      %v1874 = vadd.f32 %v1870, %v1873
      %vm1875 = vweird.f32 %v1572
      %vm1876 = vweird.f32 %v1870
      %vm1877 = vmor %vm1875, %vm1876
      %v1878 = vsel %vm1877, %v1870, %v1874
      %v1879 = vand.u32 2147483647, %v1572
      %vm1880 = vcmp.eq.f32.partialorder %v1879, 8.507059e+37
      %v1881 = vand.u32 %v1572, 2147483648
      %v1882 = vor.u32 1.1754944e-38, %v1881
      %v1883 = vsel %vm1880, %v1882, %v1878
      %v1884 = vmul.f32 1.0, %v1883
      %v1885 = vrcp.pop %v1573
      %v1886 = vmul.f32 %v1573, %v1885
      %v1887 = vsub.f32 1.0, %v1886
      %v1888 = vmul.f32 %v1885, %v1887
      %v1889 = vadd.f32 %v1885, %v1888
      %vm1890 = vweird.f32 %v1573
      %vm1891 = vweird.f32 %v1885
      %vm1892 = vmor %vm1890, %vm1891
      %v1893 = vsel %vm1892, %v1885, %v1889
      %v1894 = vand.u32 2147483647, %v1573
      %vm1895 = vcmp.eq.f32.partialorder %v1894, 8.507059e+37
      %v1896 = vand.u32 %v1573, 2147483648
      %v1897 = vor.u32 1.1754944e-38, %v1896
      %v1898 = vsel %vm1895, %v1897, %v1893
      %v1899 = vmul.f32 1.0, %v1898
      %v1900 = vrcp.pop %v1574
      %v1901 = vmul.f32 %v1574, %v1900
      %v1902 = vsub.f32 1.0, %v1901
      %v1903 = vmul.f32 %v1900, %v1902
      %v1904 = vadd.f32 %v1900, %v1903
      %vm1905 = vweird.f32 %v1574
      %vm1906 = vweird.f32 %v1900
      %vm1907 = vmor %vm1905, %vm1906
      %v1908 = vsel %vm1907, %v1900, %v1904
      %v1909 = vand.u32 2147483647, %v1574
      %vm1910 = vcmp.eq.f32.partialorder %v1909, 8.507059e+37
      %v1911 = vand.u32 %v1574, 2147483648
      %v1912 = vor.u32 1.1754944e-38, %v1911
      %v1913 = vsel %vm1910, %v1912, %v1908
      %v1914 = vmul.f32 1.0, %v1913
      %v1915 = vrcp.pop %v1575
      %v1916 = vmul.f32 %v1575, %v1915
      %v1917 = vsub.f32 1.0, %v1916
      %v1918 = vmul.f32 %v1915, %v1917
      %v1919 = vadd.f32 %v1915, %v1918
      %vm1920 = vweird.f32 %v1575
      %vm1921 = vweird.f32 %v1915
      %vm1922 = vmor %vm1920, %vm1921
      %v1923 = vsel %vm1922, %v1915, %v1919
      %v1924 = vand.u32 2147483647, %v1575
      %vm1925 = vcmp.eq.f32.partialorder %v1924, 8.507059e+37
      %v1926 = vand.u32 %v1575, 2147483648
      %v1927 = vor.u32 1.1754944e-38, %v1926
      %v1928 = vsel %vm1925, %v1927, %v1923
      %v1929 = vmul.f32 1.0, %v1928
      %v1930 = vrcp.pop %v1576
      %v1931 = vmul.f32 %v1576, %v1930
      %v1932 = vsub.f32 1.0, %v1931
      %v1933 = vmul.f32 %v1930, %v1932
      %v1934 = vadd.f32 %v1930, %v1933
      %vm1935 = vweird.f32 %v1576
      %vm1936 = vweird.f32 %v1930
      %vm1937 = vmor %vm1935, %vm1936
      %v1938 = vsel %vm1937, %v1930, %v1934
      %v1939 = vand.u32 2147483647, %v1576
      %vm1940 = vcmp.eq.f32.partialorder %v1939, 8.507059e+37
      %v1941 = vand.u32 %v1576, 2147483648
      %v1942 = vor.u32 1.1754944e-38, %v1941
      %v1943 = vsel %vm1940, %v1942, %v1938
      %v1944 = vmul.f32 1.0, %v1943
      %v1945 = vrcp.pop %v1577
      %v1946 = vmul.f32 %v1577, %v1945
      %v1947 = vsub.f32 1.0, %v1946
      %v1948 = vmul.f32 %v1945, %v1947
      %v1949 = vadd.f32 %v1945, %v1948
      %vm1950 = vweird.f32 %v1577
      %vm1951 = vweird.f32 %v1945
      %vm1952 = vmor %vm1950, %vm1951
      %v1953 = vsel %vm1952, %v1945, %v1949
      %v1954 = vand.u32 2147483647, %v1577
      %vm1955 = vcmp.eq.f32.partialorder %v1954, 8.507059e+37
      %v1956 = vand.u32 %v1577, 2147483648
      %v1957 = vor.u32 1.1754944e-38, %v1956
      %v1958 = vsel %vm1955, %v1957, %v1953
      %v1959 = vmul.f32 1.0, %v1958
      %v1960 = vrcp.pop %v1578
      %v1961 = vmul.f32 %v1578, %v1960
      %v1962 = vsub.f32 1.0, %v1961
      %v1963 = vmul.f32 %v1960, %v1962
      %v1964 = vadd.f32 %v1960, %v1963
      %vm1965 = vweird.f32 %v1578
      %vm1966 = vweird.f32 %v1960
      %vm1967 = vmor %vm1965, %vm1966
      %v1968 = vsel %vm1967, %v1960, %v1964
      %v1969 = vand.u32 2147483647, %v1578
      %vm1970 = vcmp.eq.f32.partialorder %v1969, 8.507059e+37
      %v1971 = vand.u32 %v1578, 2147483648
      %v1972 = vor.u32 1.1754944e-38, %v1971
      %v1973 = vsel %vm1970, %v1972, %v1968
      %v1974 = vmul.f32 1.0, %v1973
      %v1975 = vrcp.pop %v1579
      %v1976 = vmul.f32 %v1579, %v1975
      %v1977 = vsub.f32 1.0, %v1976
      %v1978 = vmul.f32 %v1975, %v1977
      %v1979 = vadd.f32 %v1975, %v1978
      %vm1980 = vweird.f32 %v1579
      %vm1981 = vweird.f32 %v1975
      %vm1982 = vmor %vm1980, %vm1981
      %v1983 = vsel %vm1982, %v1975, %v1979
      %v1984 = vand.u32 2147483647, %v1579
      %vm1985 = vcmp.eq.f32.partialorder %v1984, 8.507059e+37
      %v1986 = vand.u32 %v1579, 2147483648
      %v1987 = vor.u32 1.1754944e-38, %v1986
      %v1988 = vsel %vm1985, %v1987, %v1983
      %v1989 = vmul.f32 1.0, %v1988
      %v1990 = vrcp.pop %v1580
      %v1991 = vmul.f32 %v1580, %v1990
      %v1992 = vsub.f32 1.0, %v1991
      %v1993 = vmul.f32 %v1990, %v1992
      %v1994 = vadd.f32 %v1990, %v1993
      %vm1995 = vweird.f32 %v1580
      %vm1996 = vweird.f32 %v1990
      %vm1997 = vmor %vm1995, %vm1996
      %v1998 = vsel %vm1997, %v1990, %v1994
      %v1999 = vand.u32 2147483647, %v1580
      %vm2000 = vcmp.eq.f32.partialorder %v1999, 8.507059e+37
      %v2001 = vand.u32 %v1580, 2147483648
      %v2002 = vor.u32 1.1754944e-38, %v2001
      %v2003 = vsel %vm2000, %v2002, %v1998
      %v2004 = vmul.f32 1.0, %v2003
      %v2005 = vrcp.pop %v1581
      %v2006 = vmul.f32 %v1581, %v2005
      %v2007 = vsub.f32 1.0, %v2006
      %v2008 = vmul.f32 %v2005, %v2007
      %v2009 = vadd.f32 %v2005, %v2008
      %vm2010 = vweird.f32 %v1581
      %vm2011 = vweird.f32 %v2005
      %vm2012 = vmor %vm2010, %vm2011
      %v2013 = vsel %vm2012, %v2005, %v2009
      %v2014 = vand.u32 2147483647, %v1581
      %vm2015 = vcmp.eq.f32.partialorder %v2014, 8.507059e+37
      %v2016 = vand.u32 %v1581, 2147483648
      %v2017 = vor.u32 1.1754944e-38, %v2016
      %v2018 = vsel %vm2015, %v2017, %v2013
      %v2019 = vmul.f32 1.0, %v2018
      %v2020 = vrcp.pop %v1582
      %v2021 = vmul.f32 %v1582, %v2020
      %v2022 = vsub.f32 1.0, %v2021
      %v2023 = vmul.f32 %v2020, %v2022
      %v2024 = vadd.f32 %v2020, %v2023
      %vm2025 = vweird.f32 %v1582
      %vm2026 = vweird.f32 %v2020
      %vm2027 = vmor %vm2025, %vm2026
      %v2028 = vsel %vm2027, %v2020, %v2024
      %v2029 = vand.u32 2147483647, %v1582
      %vm2030 = vcmp.eq.f32.partialorder %v2029, 8.507059e+37
      %v2031 = vand.u32 %v1582, 2147483648
      %v2032 = vor.u32 1.1754944e-38, %v2031
      %v2033 = vsel %vm2030, %v2032, %v2028
      %v2034 = vmul.f32 1.0, %v2033
      %v2035 = vrcp.pop %v1583
      %v2036 = vmul.f32 %v1583, %v2035
      %v2037 = vsub.f32 1.0, %v2036
      %v2038 = vmul.f32 %v2035, %v2037
      %v2039 = vadd.f32 %v2035, %v2038
      %vm2040 = vweird.f32 %v1583
      %vm2041 = vweird.f32 %v2035
      %vm2042 = vmor %vm2040, %vm2041
      %v2043 = vsel %vm2042, %v2035, %v2039
      %v2044 = vand.u32 2147483647, %v1583
      %vm2045 = vcmp.eq.f32.partialorder %v2044, 8.507059e+37
      %v2046 = vand.u32 %v1583, 2147483648
      %v2047 = vor.u32 1.1754944e-38, %v2046
      %v2048 = vsel %vm2045, %v2047, %v2043
      %v2049 = vmul.f32 1.0, %v2048
      %v2050 = vrcp.pop %v1584
      %v2051 = vmul.f32 %v1584, %v2050
      %v2052 = vsub.f32 1.0, %v2051
      %v2053 = vmul.f32 %v2050, %v2052
      %v2054 = vadd.f32 %v2050, %v2053
      %vm2055 = vweird.f32 %v1584
      %vm2056 = vweird.f32 %v2050
      %vm2057 = vmor %vm2055, %vm2056
      %v2058 = vsel %vm2057, %v2050, %v2054
      %v2059 = vand.u32 2147483647, %v1584
      %vm2060 = vcmp.eq.f32.partialorder %v2059, 8.507059e+37
      %v2061 = vand.u32 %v1584, 2147483648
      %v2062 = vor.u32 1.1754944e-38, %v2061
      %v2063 = vsel %vm2060, %v2062, %v2058
      %v2064 = vmul.f32 1.0, %v2063
      %v2065 = vmul.f32 %v1425, %v1599
      %v2066 = vmul.f32 %v1426, %v1614
      %v2067 = vmul.f32 %v1427, %v1629
      %v2068 = vmul.f32 %v1428, %v1644
      %v2069 = vmul.f32 %v1429, %v1659
      %v2070 = vmul.f32 %v1430, %v1674
      %v2071 = vmul.f32 %v1431, %v1689
      %v2072 = vmul.f32 %v1432, %v1704
      %v2073 = vmul.f32 %v1433, %v1719
      %v2074 = vmul.f32 %v1434, %v1734
      %v2075 = vmul.f32 %v1435, %v1749
      %v2076 = vmul.f32 %v1436, %v1764
      %v2077 = vmul.f32 %v1437, %v1779
      %v2078 = vmul.f32 %v1438, %v1794
      %v2079 = vmul.f32 %v1439, %v1809
      %v2080 = vmul.f32 %v1440, %v1824
      %v2081 = vmul.f32 %v1441, %v1839
      %v2082 = vmul.f32 %v1442, %v1854
      %v2083 = vmul.f32 %v1443, %v1869
      %v2084 = vmul.f32 %v1444, %v1884
      %v2085 = vmul.f32 %v1445, %v1899
      %v2086 = vmul.f32 %v1446, %v1914
      %v2087 = vmul.f32 %v1447, %v1929
      %v2088 = vmul.f32 %v1448, %v1944
      %v2089 = vmul.f32 %v1449, %v1959
      %v2090 = vmul.f32 %v1450, %v1974
      %v2091 = vmul.f32 %v1451, %v1989
      %v2092 = vmul.f32 %v1452, %v2004
      %v2093 = vmul.f32 %v1453, %v2019
      %v2094 = vmul.f32 %v1454, %v2034
      %v2095 = vmul.f32 %v1455, %v2049
      %v2096 = vmul.f32 %v1456, %v2064
      %2097 = vst.msk [vmem:[#allocation4] sm:$0xff] %vm754, %v2065
      %2098 = vst.msk [vmem:[#allocation4 + $0x8] sm:$0xff] %vm754, %v2066
      %2099 = vst.msk [vmem:[#allocation4 + $0x10] sm:$0xff] %vm754, %v2067
      %2100 = vst.msk [vmem:[#allocation4 + $0x18] sm:$0xff] %vm754, %v2068
      %2101 = vst.msk [vmem:[#allocation4 + $0x20] sm:$0xff] %vm754, %v2069
      %2102 = vst.msk [vmem:[#allocation4 + $0x28] sm:$0xff] %vm754, %v2070
      %2103 = vst.msk [vmem:[#allocation4 + $0x30] sm:$0xff] %vm754, %v2071
      %2104 = vst.msk [vmem:[#allocation4 + $0x38] sm:$0xff] %vm754, %v2072
      %2105 = vst.msk [vmem:[#allocation4 + $0x40] sm:$0xff] %vm754, %v2073
      %2106 = vst.msk [vmem:[#allocation4 + $0x48] sm:$0xff] %vm754, %v2074
      %2107 = vst.msk [vmem:[#allocation4 + $0x50] sm:$0xff] %vm754, %v2075
      %2108 = vst.msk [vmem:[#allocation4 + $0x58] sm:$0xff] %vm754, %v2076
      %2109 = vst.msk [vmem:[#allocation4 + $0x60] sm:$0xff] %vm754, %v2077
      %2110 = vst.msk [vmem:[#allocation4 + $0x68] sm:$0xff] %vm754, %v2078
      %2111 = vst.msk [vmem:[#allocation4 + $0x70] sm:$0xff] %vm754, %v2079
      %2112 = vst.msk [vmem:[#allocation4 + $0x78] sm:$0xff] %vm754, %v2080
      %2113 = vst.msk [vmem:[#allocation4 + $0x80] sm:$0xff] %vm754, %v2081
      %2114 = vst.msk [vmem:[#allocation4 + $0x88] sm:$0xff] %vm754, %v2082
      %2115 = vst.msk [vmem:[#allocation4 + $0x90] sm:$0xff] %vm754, %v2083
      %2116 = vst.msk [vmem:[#allocation4 + $0x98] sm:$0xff] %vm754, %v2084
      %2117 = vst.msk [vmem:[#allocation4 + $0xa0] sm:$0xff] %vm754, %v2085
      %2118 = vst.msk [vmem:[#allocation4 + $0xa8] sm:$0xff] %vm754, %v2086
      %2119 = vst.msk [vmem:[#allocation4 + $0xb0] sm:$0xff] %vm754, %v2087
      %2120 = vst.msk [vmem:[#allocation4 + $0xb8] sm:$0xff] %vm754, %v2088
      %2121 = vst.msk [vmem:[#allocation4 + $0xc0] sm:$0xff] %vm754, %v2089
      %2122 = vst.msk [vmem:[#allocation4 + $0xc8] sm:$0xff] %vm754, %v2090
      %2123 = vst.msk [vmem:[#allocation4 + $0xd0] sm:$0xff] %vm754, %v2091
      %2124 = vst.msk [vmem:[#allocation4 + $0xd8] sm:$0xff] %vm754, %v2092
      %2125 = vst.msk [vmem:[#allocation4 + $0xe0] sm:$0xff] %vm754, %v2093
      %2126 = vst.msk [vmem:[#allocation4 + $0xe8] sm:$0xff] %vm754, %v2094
      %2127 = vst.msk [vmem:[#allocation4 + $0xf0] sm:$0xff] %vm754, %v2095
      %2128 = vst.msk [vmem:[#allocation4 + $0xf8] sm:$0xff] %vm754, %v2096
      // Predicated region
      $region73: #{bidir_mamba_forward.2} parent=59 // pred_check
        %p2129 = pneg %p434
      $region74: #{bidir_mamba_forward.2} parent=59 // pred_check_branch
        %2131 = sbr.rel (%p2129) target = $region76
      $region75: #{bidir_mamba_forward.2} parent=59 // pred_region
        %v2132 = vld [vmem:[#allocation2 + $0x100] sm:$0xff]
        %2133 = vst.msk [vmem:[#allocation2] sm:$0xff] %vm754, %v2132
      $region76: #{bidir_mamba_forward.2} parent=59 // pred_fallthru
        _
      %p2134 = scmp.ne.s32.totalorder %s25, 0
      // Predicated region
      $region77: #{bidir_mamba_forward.2} parent=59 // pred_check
        %p2135 = pneg %p2134
      $region78: #{bidir_mamba_forward.2} parent=59 // pred_check_branch
        %2137 = sbr.rel (%p2135) target = $region80
      $region79: #{bidir_mamba_forward.2} parent=59 // pred_region
        %v2138 = vld [vmem:[#allocation2 + $0x8] sm:$0xff]
        %2139 = vst.msk [vmem:[#allocation2 + $0x108] sm:$0xff] %vm754, %v2138
      $region80: #{bidir_mamba_forward.2} parent=59 // pred_fallthru
        _
      %v2140 = vpack.c.bf16 %v2066, %v2065
      %v2141 = vpack.c.bf16 %v2068, %v2067
      %v2142 = vpack.c.bf16 %v2070, %v2069
      %v2143 = vpack.c.bf16 %v2072, %v2071
      %v2144 = vpack.c.bf16 %v2074, %v2073
      %v2145 = vpack.c.bf16 %v2076, %v2075
      %v2146 = vpack.c.bf16 %v2078, %v2077
      %v2147 = vpack.c.bf16 %v2080, %v2079
      %v2148 = vpack.c.bf16 %v2082, %v2081
      %v2149 = vpack.c.bf16 %v2084, %v2083
      %v2150 = vpack.c.bf16 %v2086, %v2085
      %v2151 = vpack.c.bf16 %v2088, %v2087
      %v2152 = vpack.c.bf16 %v2090, %v2089
      %v2153 = vpack.c.bf16 %v2092, %v2091
      %v2154 = vpack.c.bf16 %v2094, %v2093
      %v2155 = vpack.c.bf16 %v2096, %v2095
      %v2156 = vld [vmem:[%s4] sm:$0xf]
      %v2158 = vsel %vm754, %v2140, 0
      %v2161 = vsel %vm754, %v2141, 0
      %v2164 = vsel %vm754, %v2142, 0
      %v2167 = vsel %vm754, %v2143, 0
      %v2170 = vsel %vm754, %v2144, 0
      %v2173 = vsel %vm754, %v2145, 0
      %v2176 = vsel %vm754, %v2146, 0
      %v2179 = vsel %vm754, %v2147, 0
      %v2182 = vsel %vm754, %v2148, 0
      %v2185 = vsel %vm754, %v2149, 0
      %v2188 = vsel %vm754, %v2150, 0
      %v2191 = vsel %vm754, %v2151, 0
      %v2194 = vsel %vm754, %v2152, 0
      %v2197 = vsel %vm754, %v2153, 0
      %v2200 = vsel %vm754, %v2154, 0
      %v2203 = vsel %vm754, %v2155, 0
      %vm2205 = vcmask 1043456
      %v2207 = vsel %vm2205, %v2156, 0
      %2209 = vmatpush.bf16.msra.mxu0 0
      %2210 = vmatpush.bf16.msra.mxu0 0
      %2211 = vmatpush.bf16.msra.mxu0 0
      %2212 = vmatpush.bf16.msra.mxu0 0
      %2213 = vmatpush.bf16.msra.mxu0 0
      %2214 = vmatpush.bf16.msra.mxu0 0
      %2215 = vmatpush.bf16.msra.mxu0 0
      %2216 = vmatpush.bf16.msra.mxu0 %v2207
      %2217 = vmatmul.bf16.gmra.mxu0 %v2158
      %v2218 = vpop.f32.mrf.mxu0
      %v2219 = vadd.f32 0.0, %v2218
      %v2220 = vpop.f32.mrf.mxu0
      %v2221 = vadd.f32 0.0, %v2220
      %2222 = vmatmul.bf16.gmra.mxu0 %v2161
      %v2223 = vpop.f32.mrf.mxu0
      %v2224 = vadd.f32 0.0, %v2223
      %v2225 = vpop.f32.mrf.mxu0
      %v2226 = vadd.f32 0.0, %v2225
      %2227 = vmatmul.bf16.gmra.mxu0 %v2164
      %v2228 = vpop.f32.mrf.mxu0
      %v2229 = vadd.f32 0.0, %v2228
      %v2230 = vpop.f32.mrf.mxu0
      %v2231 = vadd.f32 0.0, %v2230
      %2232 = vmatmul.bf16.gmra.mxu0 %v2167
      %v2233 = vpop.f32.mrf.mxu0
      %v2234 = vadd.f32 0.0, %v2233
      %v2235 = vpop.f32.mrf.mxu0
      %v2236 = vadd.f32 0.0, %v2235
      %2237 = vmatmul.bf16.gmra.mxu0 %v2170
      %v2238 = vpop.f32.mrf.mxu0
      %v2239 = vadd.f32 0.0, %v2238
      %v2240 = vpop.f32.mrf.mxu0
      %v2241 = vadd.f32 0.0, %v2240
      %2242 = vmatmul.bf16.gmra.mxu0 %v2173
      %v2243 = vpop.f32.mrf.mxu0
      %v2244 = vadd.f32 0.0, %v2243
      %v2245 = vpop.f32.mrf.mxu0
      %v2246 = vadd.f32 0.0, %v2245
      %2247 = vmatmul.bf16.gmra.mxu0 %v2176
      %v2248 = vpop.f32.mrf.mxu0
      %v2249 = vadd.f32 0.0, %v2248
      %v2250 = vpop.f32.mrf.mxu0
      %v2251 = vadd.f32 0.0, %v2250
      %2252 = vmatmul.bf16.gmra.mxu0 %v2179
      %v2253 = vpop.f32.mrf.mxu0
      %v2254 = vadd.f32 0.0, %v2253
      %v2255 = vpop.f32.mrf.mxu0
      %v2256 = vadd.f32 0.0, %v2255
      %2257 = vmatmul.bf16.gmra.mxu0 %v2182
      %v2258 = vpop.f32.mrf.mxu0
      %v2259 = vadd.f32 0.0, %v2258
      %v2260 = vpop.f32.mrf.mxu0
      %v2261 = vadd.f32 0.0, %v2260
      %2262 = vmatmul.bf16.gmra.mxu0 %v2185
      %v2263 = vpop.f32.mrf.mxu0
      %v2264 = vadd.f32 0.0, %v2263
      %v2265 = vpop.f32.mrf.mxu0
      %v2266 = vadd.f32 0.0, %v2265
      %2267 = vmatmul.bf16.gmra.mxu0 %v2188
      %v2268 = vpop.f32.mrf.mxu0
      %v2269 = vadd.f32 0.0, %v2268
      %v2270 = vpop.f32.mrf.mxu0
      %v2271 = vadd.f32 0.0, %v2270
      %2272 = vmatmul.bf16.gmra.mxu0 %v2191
      %v2273 = vpop.f32.mrf.mxu0
      %v2274 = vadd.f32 0.0, %v2273
      %v2275 = vpop.f32.mrf.mxu0
      %v2276 = vadd.f32 0.0, %v2275
      %2277 = vmatmul.bf16.gmra.mxu0 %v2194
      %v2278 = vpop.f32.mrf.mxu0
      %v2279 = vadd.f32 0.0, %v2278
      %v2280 = vpop.f32.mrf.mxu0
      %v2281 = vadd.f32 0.0, %v2280
      %2282 = vmatmul.bf16.gmra.mxu0 %v2197
      %v2283 = vpop.f32.mrf.mxu0
      %v2284 = vadd.f32 0.0, %v2283
      %v2285 = vpop.f32.mrf.mxu0
      %v2286 = vadd.f32 0.0, %v2285
      %2287 = vmatmul.bf16.gmra.mxu0 %v2200
      %v2288 = vpop.f32.mrf.mxu0
      %v2289 = vadd.f32 0.0, %v2288
      %v2290 = vpop.f32.mrf.mxu0
      %v2291 = vadd.f32 0.0, %v2290
      %2292 = vmatmul.bf16.gmra.mxu0 %v2203
      %v2293 = vpop.f32.mrf.mxu0
      %v2294 = vadd.f32 0.0, %v2293
      %v2295 = vpop.f32.mrf.mxu0
      %v2296 = vadd.f32 0.0, %v2295
      %2297 = vdwg.mxu0
      %2330 = vrot.lane.b32.xlu0 %v2219, 127
      %v2331 = vpop.permute.xlu0 %2330
      %2332 = vrot.lane.b32.xlu0 %v2221, 127
      %v2333 = vpop.permute.xlu0 %2332
      %2334 = vrot.lane.b32.xlu0 %v2224, 127
      %v2335 = vpop.permute.xlu0 %2334
      %2336 = vrot.lane.b32.xlu0 %v2226, 127
      %v2337 = vpop.permute.xlu0 %2336
      %2338 = vrot.lane.b32.xlu0 %v2229, 127
      %v2339 = vpop.permute.xlu0 %2338
      %2340 = vrot.lane.b32.xlu0 %v2231, 127
      %v2341 = vpop.permute.xlu0 %2340
      %2342 = vrot.lane.b32.xlu0 %v2234, 127
      %v2343 = vpop.permute.xlu0 %2342
      %2344 = vrot.lane.b32.xlu0 %v2236, 127
      %v2345 = vpop.permute.xlu0 %2344
      %2346 = vrot.lane.b32.xlu0 %v2239, 127
      %v2347 = vpop.permute.xlu0 %2346
      %2348 = vrot.lane.b32.xlu0 %v2241, 127
      %v2349 = vpop.permute.xlu0 %2348
      %2350 = vrot.lane.b32.xlu0 %v2244, 127
      %v2351 = vpop.permute.xlu0 %2350
      %2352 = vrot.lane.b32.xlu0 %v2246, 127
      %v2353 = vpop.permute.xlu0 %2352
      %2354 = vrot.lane.b32.xlu0 %v2249, 127
      %v2355 = vpop.permute.xlu0 %2354
      %2356 = vrot.lane.b32.xlu0 %v2251, 127
      %v2357 = vpop.permute.xlu0 %2356
      %2358 = vrot.lane.b32.xlu0 %v2254, 127
      %v2359 = vpop.permute.xlu0 %2358
      %2360 = vrot.lane.b32.xlu0 %v2256, 127
      %v2361 = vpop.permute.xlu0 %2360
      %2362 = vrot.lane.b32.xlu0 %v2259, 127
      %v2363 = vpop.permute.xlu0 %2362
      %2364 = vrot.lane.b32.xlu0 %v2261, 127
      %v2365 = vpop.permute.xlu0 %2364
      %2366 = vrot.lane.b32.xlu0 %v2264, 127
      %v2367 = vpop.permute.xlu0 %2366
      %2368 = vrot.lane.b32.xlu0 %v2266, 127
      %v2369 = vpop.permute.xlu0 %2368
      %2370 = vrot.lane.b32.xlu0 %v2269, 127
      %v2371 = vpop.permute.xlu0 %2370
      %2372 = vrot.lane.b32.xlu0 %v2271, 127
      %v2373 = vpop.permute.xlu0 %2372
      %2374 = vrot.lane.b32.xlu0 %v2274, 127
      %v2375 = vpop.permute.xlu0 %2374
      %2376 = vrot.lane.b32.xlu0 %v2276, 127
      %v2377 = vpop.permute.xlu0 %2376
      %2378 = vrot.lane.b32.xlu0 %v2279, 127
      %v2379 = vpop.permute.xlu0 %2378
      %2380 = vrot.lane.b32.xlu0 %v2281, 127
      %v2381 = vpop.permute.xlu0 %2380
      %2382 = vrot.lane.b32.xlu0 %v2284, 127
      %v2383 = vpop.permute.xlu0 %2382
      %2384 = vrot.lane.b32.xlu0 %v2286, 127
      %v2385 = vpop.permute.xlu0 %2384
      %2386 = vrot.lane.b32.xlu0 %v2289, 127
      %v2387 = vpop.permute.xlu0 %2386
      %2388 = vrot.lane.b32.xlu0 %v2291, 127
      %v2389 = vpop.permute.xlu0 %2388
      %2390 = vrot.lane.b32.xlu0 %v2294, 127
      %v2391 = vpop.permute.xlu0 %2390
      %2392 = vrot.lane.b32.xlu0 %v2296, 127
      %v2393 = vpop.permute.xlu0 %2392
      %vm2426 = vcmask 130048
      %2427 = vst.msk [vmem:[#allocation6] sm:$0xff] %vm2426, %v2331
      %2428 = vst.msk [vmem:[#allocation6 + $0x8] sm:$0xff] %vm2426, %v2333
      %2429 = vst.msk [vmem:[#allocation6 + $0x10] sm:$0xff] %vm2426, %v2335
      %2430 = vst.msk [vmem:[#allocation6 + $0x18] sm:$0xff] %vm2426, %v2337
      %2431 = vst.msk [vmem:[#allocation6 + $0x20] sm:$0xff] %vm2426, %v2339
      %2432 = vst.msk [vmem:[#allocation6 + $0x28] sm:$0xff] %vm2426, %v2341
      %2433 = vst.msk [vmem:[#allocation6 + $0x30] sm:$0xff] %vm2426, %v2343
      %2434 = vst.msk [vmem:[#allocation6 + $0x38] sm:$0xff] %vm2426, %v2345
      %2435 = vst.msk [vmem:[#allocation6 + $0x40] sm:$0xff] %vm2426, %v2347
      %2436 = vst.msk [vmem:[#allocation6 + $0x48] sm:$0xff] %vm2426, %v2349
      %2437 = vst.msk [vmem:[#allocation6 + $0x50] sm:$0xff] %vm2426, %v2351
      %2438 = vst.msk [vmem:[#allocation6 + $0x58] sm:$0xff] %vm2426, %v2353
      %2439 = vst.msk [vmem:[#allocation6 + $0x60] sm:$0xff] %vm2426, %v2355
      %2440 = vst.msk [vmem:[#allocation6 + $0x68] sm:$0xff] %vm2426, %v2357
      %2441 = vst.msk [vmem:[#allocation6 + $0x70] sm:$0xff] %vm2426, %v2359
      %2442 = vst.msk [vmem:[#allocation6 + $0x78] sm:$0xff] %vm2426, %v2361
      %2443 = vst.msk [vmem:[#allocation6 + $0x80] sm:$0xff] %vm2426, %v2363
      %2444 = vst.msk [vmem:[#allocation6 + $0x88] sm:$0xff] %vm2426, %v2365
      %2445 = vst.msk [vmem:[#allocation6 + $0x90] sm:$0xff] %vm2426, %v2367
      %2446 = vst.msk [vmem:[#allocation6 + $0x98] sm:$0xff] %vm2426, %v2369
      %2447 = vst.msk [vmem:[#allocation6 + $0xa0] sm:$0xff] %vm2426, %v2371
      %2448 = vst.msk [vmem:[#allocation6 + $0xa8] sm:$0xff] %vm2426, %v2373
      %2449 = vst.msk [vmem:[#allocation6 + $0xb0] sm:$0xff] %vm2426, %v2375
      %2450 = vst.msk [vmem:[#allocation6 + $0xb8] sm:$0xff] %vm2426, %v2377
      %2451 = vst.msk [vmem:[#allocation6 + $0xc0] sm:$0xff] %vm2426, %v2379
      %2452 = vst.msk [vmem:[#allocation6 + $0xc8] sm:$0xff] %vm2426, %v2381
      %2453 = vst.msk [vmem:[#allocation6 + $0xd0] sm:$0xff] %vm2426, %v2383
      %2454 = vst.msk [vmem:[#allocation6 + $0xd8] sm:$0xff] %vm2426, %v2385
      %2455 = vst.msk [vmem:[#allocation6 + $0xe0] sm:$0xff] %vm2426, %v2387
      %2456 = vst.msk [vmem:[#allocation6 + $0xe8] sm:$0xff] %vm2426, %v2389
      %2457 = vst.msk [vmem:[#allocation6 + $0xf0] sm:$0xff] %vm2426, %v2391
      %2458 = vst.msk [vmem:[#allocation6 + $0xf8] sm:$0xff] %vm2426, %v2393
      %2459 = vrot.lane.b32.xlu0 %v2219, 111
      %v2460 = vpop.permute.xlu0 %2459
      %2461 = vrot.lane.b32.xlu0 %v2221, 111
      %v2462 = vpop.permute.xlu0 %2461
      %2463 = vrot.lane.b32.xlu0 %v2224, 111
      %v2464 = vpop.permute.xlu0 %2463
      %2465 = vrot.lane.b32.xlu0 %v2226, 111
      %v2466 = vpop.permute.xlu0 %2465
      %2467 = vrot.lane.b32.xlu0 %v2229, 111
      %v2468 = vpop.permute.xlu0 %2467
      %2469 = vrot.lane.b32.xlu0 %v2231, 111
      %v2470 = vpop.permute.xlu0 %2469
      %2471 = vrot.lane.b32.xlu0 %v2234, 111
      %v2472 = vpop.permute.xlu0 %2471
      %2473 = vrot.lane.b32.xlu0 %v2236, 111
      %v2474 = vpop.permute.xlu0 %2473
      %2475 = vrot.lane.b32.xlu0 %v2239, 111
      %v2476 = vpop.permute.xlu0 %2475
      %2477 = vrot.lane.b32.xlu0 %v2241, 111
      %v2478 = vpop.permute.xlu0 %2477
      %2479 = vrot.lane.b32.xlu0 %v2244, 111
      %v2480 = vpop.permute.xlu0 %2479
      %2481 = vrot.lane.b32.xlu0 %v2246, 111
      %v2482 = vpop.permute.xlu0 %2481
      %2483 = vrot.lane.b32.xlu0 %v2249, 111
      %v2484 = vpop.permute.xlu0 %2483
      %2485 = vrot.lane.b32.xlu0 %v2251, 111
      %v2486 = vpop.permute.xlu0 %2485
      %2487 = vrot.lane.b32.xlu0 %v2254, 111
      %v2488 = vpop.permute.xlu0 %2487
      %2489 = vrot.lane.b32.xlu0 %v2256, 111
      %v2490 = vpop.permute.xlu0 %2489
      %2491 = vrot.lane.b32.xlu0 %v2259, 111
      %v2492 = vpop.permute.xlu0 %2491
      %2493 = vrot.lane.b32.xlu0 %v2261, 111
      %v2494 = vpop.permute.xlu0 %2493
      %2495 = vrot.lane.b32.xlu0 %v2264, 111
      %v2496 = vpop.permute.xlu0 %2495
      %2497 = vrot.lane.b32.xlu0 %v2266, 111
      %v2498 = vpop.permute.xlu0 %2497
      %2499 = vrot.lane.b32.xlu0 %v2269, 111
      %v2500 = vpop.permute.xlu0 %2499
      %2501 = vrot.lane.b32.xlu0 %v2271, 111
      %v2502 = vpop.permute.xlu0 %2501
      %2503 = vrot.lane.b32.xlu0 %v2274, 111
      %v2504 = vpop.permute.xlu0 %2503
      %2505 = vrot.lane.b32.xlu0 %v2276, 111
      %v2506 = vpop.permute.xlu0 %2505
      %2507 = vrot.lane.b32.xlu0 %v2279, 111
      %v2508 = vpop.permute.xlu0 %2507
      %2509 = vrot.lane.b32.xlu0 %v2281, 111
      %v2510 = vpop.permute.xlu0 %2509
      %2511 = vrot.lane.b32.xlu0 %v2284, 111
      %v2512 = vpop.permute.xlu0 %2511
      %2513 = vrot.lane.b32.xlu0 %v2286, 111
      %v2514 = vpop.permute.xlu0 %2513
      %2515 = vrot.lane.b32.xlu0 %v2289, 111
      %v2516 = vpop.permute.xlu0 %2515
      %2517 = vrot.lane.b32.xlu0 %v2291, 111
      %v2518 = vpop.permute.xlu0 %2517
      %2519 = vrot.lane.b32.xlu0 %v2294, 111
      %v2520 = vpop.permute.xlu0 %2519
      %2521 = vrot.lane.b32.xlu0 %v2296, 111
      %v2522 = vpop.permute.xlu0 %2521
      %2555 = vst.msk [vmem:[#allocation7] sm:$0xff] %vm2426, %v2460
      %2556 = vst.msk [vmem:[#allocation7 + $0x8] sm:$0xff] %vm2426, %v2462
      %2557 = vst.msk [vmem:[#allocation7 + $0x10] sm:$0xff] %vm2426, %v2464
      %2558 = vst.msk [vmem:[#allocation7 + $0x18] sm:$0xff] %vm2426, %v2466
      %2559 = vst.msk [vmem:[#allocation7 + $0x20] sm:$0xff] %vm2426, %v2468
      %2560 = vst.msk [vmem:[#allocation7 + $0x28] sm:$0xff] %vm2426, %v2470
      %2561 = vst.msk [vmem:[#allocation7 + $0x30] sm:$0xff] %vm2426, %v2472
      %2562 = vst.msk [vmem:[#allocation7 + $0x38] sm:$0xff] %vm2426, %v2474
      %2563 = vst.msk [vmem:[#allocation7 + $0x40] sm:$0xff] %vm2426, %v2476
      %2564 = vst.msk [vmem:[#allocation7 + $0x48] sm:$0xff] %vm2426, %v2478
      %2565 = vst.msk [vmem:[#allocation7 + $0x50] sm:$0xff] %vm2426, %v2480
      %2566 = vst.msk [vmem:[#allocation7 + $0x58] sm:$0xff] %vm2426, %v2482
      %2567 = vst.msk [vmem:[#allocation7 + $0x60] sm:$0xff] %vm2426, %v2484
      %2568 = vst.msk [vmem:[#allocation7 + $0x68] sm:$0xff] %vm2426, %v2486
      %2569 = vst.msk [vmem:[#allocation7 + $0x70] sm:$0xff] %vm2426, %v2488
      %2570 = vst.msk [vmem:[#allocation7 + $0x78] sm:$0xff] %vm2426, %v2490
      %2571 = vst.msk [vmem:[#allocation7 + $0x80] sm:$0xff] %vm2426, %v2492
      %2572 = vst.msk [vmem:[#allocation7 + $0x88] sm:$0xff] %vm2426, %v2494
      %2573 = vst.msk [vmem:[#allocation7 + $0x90] sm:$0xff] %vm2426, %v2496
      %2574 = vst.msk [vmem:[#allocation7 + $0x98] sm:$0xff] %vm2426, %v2498
      %2575 = vst.msk [vmem:[#allocation7 + $0xa0] sm:$0xff] %vm2426, %v2500
      %2576 = vst.msk [vmem:[#allocation7 + $0xa8] sm:$0xff] %vm2426, %v2502
      %2577 = vst.msk [vmem:[#allocation7 + $0xb0] sm:$0xff] %vm2426, %v2504
      %2578 = vst.msk [vmem:[#allocation7 + $0xb8] sm:$0xff] %vm2426, %v2506
      %2579 = vst.msk [vmem:[#allocation7 + $0xc0] sm:$0xff] %vm2426, %v2508
      %2580 = vst.msk [vmem:[#allocation7 + $0xc8] sm:$0xff] %vm2426, %v2510
      %2581 = vst.msk [vmem:[#allocation7 + $0xd0] sm:$0xff] %vm2426, %v2512
      %2582 = vst.msk [vmem:[#allocation7 + $0xd8] sm:$0xff] %vm2426, %v2514
      %2583 = vst.msk [vmem:[#allocation7 + $0xe0] sm:$0xff] %vm2426, %v2516
      %2584 = vst.msk [vmem:[#allocation7 + $0xe8] sm:$0xff] %vm2426, %v2518
      %2585 = vst.msk [vmem:[#allocation7 + $0xf0] sm:$0xff] %vm2426, %v2520
      %2586 = vst.msk [vmem:[#allocation7 + $0xf8] sm:$0xff] %vm2426, %v2522
      %v2587 = vpack.c.bf16 %v2221, %v2219
      %v2588 = vpack.c.bf16 %v2226, %v2224
      %v2589 = vpack.c.bf16 %v2231, %v2229
      %v2590 = vpack.c.bf16 %v2236, %v2234
      %v2591 = vpack.c.bf16 %v2241, %v2239
      %v2592 = vpack.c.bf16 %v2246, %v2244
      %v2593 = vpack.c.bf16 %v2251, %v2249
      %v2594 = vpack.c.bf16 %v2256, %v2254
      %v2595 = vpack.c.bf16 %v2261, %v2259
      %v2596 = vpack.c.bf16 %v2266, %v2264
      %v2597 = vpack.c.bf16 %v2271, %v2269
      %v2598 = vpack.c.bf16 %v2276, %v2274
      %v2599 = vpack.c.bf16 %v2281, %v2279
      %v2600 = vpack.c.bf16 %v2286, %v2284
      %v2601 = vpack.c.bf16 %v2291, %v2289
      %v2602 = vpack.c.bf16 %v2296, %v2294
      %v2603 = vld [vmem:[%s5] sm:$0x1]
      %v2604 = vld [vmem:[%s6] sm:$0x1]
      %v2606 = vperm.slane %v2604, 0
      %vm2608 = vcmask 7168
      %v2610 = vsel %vm2608, %v2587, 0
      %v2613 = vsel %vm2608, %v2588, 0
      %v2616 = vsel %vm2608, %v2589, 0
      %v2619 = vsel %vm2608, %v2590, 0
      %v2622 = vsel %vm2608, %v2591, 0
      %v2625 = vsel %vm2608, %v2592, 0
      %v2628 = vsel %vm2608, %v2593, 0
      %v2631 = vsel %vm2608, %v2594, 0
      %v2634 = vsel %vm2608, %v2595, 0
      %v2637 = vsel %vm2608, %v2596, 0
      %v2640 = vsel %vm2608, %v2597, 0
      %v2643 = vsel %vm2608, %v2598, 0
      %v2646 = vsel %vm2608, %v2599, 0
      %v2649 = vsel %vm2608, %v2600, 0
      %v2652 = vsel %vm2608, %v2601, 0
      %v2655 = vsel %vm2608, %v2602, 0
      %vm2657 = vcmask 1040384
      %v2658 = vsel 0, 4294967295, 65535
      %v2659 = vsel %vm2657, %v2658, 0
      %v2661 = vand.u32 %v2603, %v2659
      %2663 = vmatpush.bf16.msra.mxu0 0
      %2664 = vmatpush.bf16.msra.mxu0 0
      %2665 = vmatpush.bf16.msra.mxu0 0
      %2666 = vmatpush.bf16.msra.mxu0 0
      %2667 = vmatpush.bf16.msra.mxu0 0
      %2668 = vmatpush.bf16.msra.mxu0 0
      %2669 = vmatpush.bf16.msra.mxu0 0
      %2670 = vmatpush.bf16.msra.mxu0 %v2661
      %2671 = vmatmul.bf16.gmra.mxu0 %v2610
      %v2672 = vpop.f32.mrf.mxu0
      %v2673 = vadd.f32 %v2606, %v2672
      %v2674 = vpop.f32.mrf.mxu0
      %v2675 = vadd.f32 %v2606, %v2674
      %2676 = vmatmul.bf16.gmra.mxu0 %v2613
      %v2677 = vpop.f32.mrf.mxu0
      %v2678 = vadd.f32 %v2606, %v2677
      %v2679 = vpop.f32.mrf.mxu0
      %v2680 = vadd.f32 %v2606, %v2679
      %2681 = vmatmul.bf16.gmra.mxu0 %v2616
      %v2682 = vpop.f32.mrf.mxu0
      %v2683 = vadd.f32 %v2606, %v2682
      %v2684 = vpop.f32.mrf.mxu0
      %v2685 = vadd.f32 %v2606, %v2684
      %2686 = vmatmul.bf16.gmra.mxu0 %v2619
      %v2687 = vpop.f32.mrf.mxu0
      %v2688 = vadd.f32 %v2606, %v2687
      %v2689 = vpop.f32.mrf.mxu0
      %v2690 = vadd.f32 %v2606, %v2689
      %2691 = vmatmul.bf16.gmra.mxu0 %v2622
      %v2692 = vpop.f32.mrf.mxu0
      %v2693 = vadd.f32 %v2606, %v2692
      %v2694 = vpop.f32.mrf.mxu0
      %v2695 = vadd.f32 %v2606, %v2694
      %2696 = vmatmul.bf16.gmra.mxu0 %v2625
      %v2697 = vpop.f32.mrf.mxu0
      %v2698 = vadd.f32 %v2606, %v2697
      %v2699 = vpop.f32.mrf.mxu0
      %v2700 = vadd.f32 %v2606, %v2699
      %2701 = vmatmul.bf16.gmra.mxu0 %v2628
      %v2702 = vpop.f32.mrf.mxu0
      %v2703 = vadd.f32 %v2606, %v2702
      %v2704 = vpop.f32.mrf.mxu0
      %v2705 = vadd.f32 %v2606, %v2704
      %2706 = vmatmul.bf16.gmra.mxu0 %v2631
      %v2707 = vpop.f32.mrf.mxu0
      %v2708 = vadd.f32 %v2606, %v2707
      %v2709 = vpop.f32.mrf.mxu0
      %v2710 = vadd.f32 %v2606, %v2709
      %2711 = vmatmul.bf16.gmra.mxu0 %v2634
      %v2712 = vpop.f32.mrf.mxu0
      %v2713 = vadd.f32 %v2606, %v2712
      %v2714 = vpop.f32.mrf.mxu0
      %v2715 = vadd.f32 %v2606, %v2714
      %2716 = vmatmul.bf16.gmra.mxu0 %v2637
      %v2717 = vpop.f32.mrf.mxu0
      %v2718 = vadd.f32 %v2606, %v2717
      %v2719 = vpop.f32.mrf.mxu0
      %v2720 = vadd.f32 %v2606, %v2719
      %2721 = vmatmul.bf16.gmra.mxu0 %v2640
      %v2722 = vpop.f32.mrf.mxu0
      %v2723 = vadd.f32 %v2606, %v2722
      %v2724 = vpop.f32.mrf.mxu0
      %v2725 = vadd.f32 %v2606, %v2724
      %2726 = vmatmul.bf16.gmra.mxu0 %v2643
      %v2727 = vpop.f32.mrf.mxu0
      %v2728 = vadd.f32 %v2606, %v2727
      %v2729 = vpop.f32.mrf.mxu0
      %v2730 = vadd.f32 %v2606, %v2729
      %2731 = vmatmul.bf16.gmra.mxu0 %v2646
      %v2732 = vpop.f32.mrf.mxu0
      %v2733 = vadd.f32 %v2606, %v2732
      %v2734 = vpop.f32.mrf.mxu0
      %v2735 = vadd.f32 %v2606, %v2734
      %2736 = vmatmul.bf16.gmra.mxu0 %v2649
      %v2737 = vpop.f32.mrf.mxu0
      %v2738 = vadd.f32 %v2606, %v2737
      %v2739 = vpop.f32.mrf.mxu0
      %v2740 = vadd.f32 %v2606, %v2739
      %2741 = vmatmul.bf16.gmra.mxu0 %v2652
      %v2742 = vpop.f32.mrf.mxu0
      %v2743 = vadd.f32 %v2606, %v2742
      %v2744 = vpop.f32.mrf.mxu0
      %v2745 = vadd.f32 %v2606, %v2744
      %2746 = vmatmul.bf16.gmra.mxu0 %v2655
      %v2747 = vpop.f32.mrf.mxu0
      %v2748 = vadd.f32 %v2606, %v2747
      %v2749 = vpop.f32.mrf.mxu0
      %v2750 = vadd.f32 %v2606, %v2749
      %2751 = vdwg.mxu0
      %v2752 = vmax.f32 %v2673, 0.0
      %v2753 = vmax.f32 %v2675, 0.0
      %v2754 = vmax.f32 %v2678, 0.0
      %v2755 = vmax.f32 %v2680, 0.0
      %v2756 = vmax.f32 %v2683, 0.0
      %v2757 = vmax.f32 %v2685, 0.0
      %v2758 = vmax.f32 %v2688, 0.0
      %v2759 = vmax.f32 %v2690, 0.0
      %v2760 = vmax.f32 %v2693, 0.0
      %v2761 = vmax.f32 %v2695, 0.0
      %v2762 = vmax.f32 %v2698, 0.0
      %v2763 = vmax.f32 %v2700, 0.0
      %v2764 = vmax.f32 %v2703, 0.0
      %v2765 = vmax.f32 %v2705, 0.0
      %v2766 = vmax.f32 %v2708, 0.0
      %v2767 = vmax.f32 %v2710, 0.0
      %v2768 = vmax.f32 %v2713, 0.0
      %v2769 = vmax.f32 %v2715, 0.0
      %v2770 = vmax.f32 %v2718, 0.0
      %v2771 = vmax.f32 %v2720, 0.0
      %v2772 = vmax.f32 %v2723, 0.0
      %v2773 = vmax.f32 %v2725, 0.0
      %v2774 = vmax.f32 %v2728, 0.0
      %v2775 = vmax.f32 %v2730, 0.0
      %v2776 = vmax.f32 %v2733, 0.0
      %v2777 = vmax.f32 %v2735, 0.0
      %v2778 = vmax.f32 %v2738, 0.0
      %v2779 = vmax.f32 %v2740, 0.0
      %v2780 = vmax.f32 %v2743, 0.0
      %v2781 = vmax.f32 %v2745, 0.0
      %v2782 = vmax.f32 %v2748, 0.0
      %v2783 = vmax.f32 %v2750, 0.0
      %v2784 = vand.u32 2147483647, %v2673
      %v2785 = vand.u32 2147483647, %v2675
      %v2786 = vand.u32 2147483647, %v2678
      %v2787 = vand.u32 2147483647, %v2680
      %v2788 = vand.u32 2147483647, %v2683
      %v2789 = vand.u32 2147483647, %v2685
      %v2790 = vand.u32 2147483647, %v2688
      %v2791 = vand.u32 2147483647, %v2690
      %v2792 = vand.u32 2147483647, %v2693
      %v2793 = vand.u32 2147483647, %v2695
      %v2794 = vand.u32 2147483647, %v2698
      %v2795 = vand.u32 2147483647, %v2700
      %v2796 = vand.u32 2147483647, %v2703
      %v2797 = vand.u32 2147483647, %v2705
      %v2798 = vand.u32 2147483647, %v2708
      %v2799 = vand.u32 2147483647, %v2710
      %v2800 = vand.u32 2147483647, %v2713
      %v2801 = vand.u32 2147483647, %v2715
      %v2802 = vand.u32 2147483647, %v2718
      %v2803 = vand.u32 2147483647, %v2720
      %v2804 = vand.u32 2147483647, %v2723
      %v2805 = vand.u32 2147483647, %v2725
      %v2806 = vand.u32 2147483647, %v2728
      %v2807 = vand.u32 2147483647, %v2730
      %v2808 = vand.u32 2147483647, %v2733
      %v2809 = vand.u32 2147483647, %v2735
      %v2810 = vand.u32 2147483647, %v2738
      %v2811 = vand.u32 2147483647, %v2740
      %v2812 = vand.u32 2147483647, %v2743
      %v2813 = vand.u32 2147483647, %v2745
      %v2814 = vand.u32 2147483647, %v2748
      %v2815 = vand.u32 2147483647, %v2750
      %v2816 = vsub.f32 0.0, %v2784
      %v2817 = vsub.f32 0.0, %v2785
      %v2818 = vsub.f32 0.0, %v2786
      %v2819 = vsub.f32 0.0, %v2787
      %v2820 = vsub.f32 0.0, %v2788
      %v2821 = vsub.f32 0.0, %v2789
      %v2822 = vsub.f32 0.0, %v2790
      %v2823 = vsub.f32 0.0, %v2791
      %v2824 = vsub.f32 0.0, %v2792
      %v2825 = vsub.f32 0.0, %v2793
      %v2826 = vsub.f32 0.0, %v2794
      %v2827 = vsub.f32 0.0, %v2795
      %v2828 = vsub.f32 0.0, %v2796
      %v2829 = vsub.f32 0.0, %v2797
      %v2830 = vsub.f32 0.0, %v2798
      %v2831 = vsub.f32 0.0, %v2799
      %v2832 = vsub.f32 0.0, %v2800
      %v2833 = vsub.f32 0.0, %v2801
      %v2834 = vsub.f32 0.0, %v2802
      %v2835 = vsub.f32 0.0, %v2803
      %v2836 = vsub.f32 0.0, %v2804
      %v2837 = vsub.f32 0.0, %v2805
      %v2838 = vsub.f32 0.0, %v2806
      %v2839 = vsub.f32 0.0, %v2807
      %v2840 = vsub.f32 0.0, %v2808
      %v2841 = vsub.f32 0.0, %v2809
      %v2842 = vsub.f32 0.0, %v2810
      %v2843 = vsub.f32 0.0, %v2811
      %v2844 = vsub.f32 0.0, %v2812
      %v2845 = vsub.f32 0.0, %v2813
      %v2846 = vsub.f32 0.0, %v2814
      %v2847 = vsub.f32 0.0, %v2815
      %v2848 = vmul.f32 %v2816, 1.442695
      %v2849 = vpow.pop %v2848
      %v2850 = vmul.f32 %v2817, 1.442695
      %v2851 = vpow.pop %v2850
      %v2852 = vmul.f32 %v2818, 1.442695
      %v2853 = vpow.pop %v2852
      %v2854 = vmul.f32 %v2819, 1.442695
      %v2855 = vpow.pop %v2854
      %v2856 = vmul.f32 %v2820, 1.442695
      %v2857 = vpow.pop %v2856
      %v2858 = vmul.f32 %v2821, 1.442695
      %v2859 = vpow.pop %v2858
      %v2860 = vmul.f32 %v2822, 1.442695
      %v2861 = vpow.pop %v2860
      %v2862 = vmul.f32 %v2823, 1.442695
      %v2863 = vpow.pop %v2862
      %v2864 = vmul.f32 %v2824, 1.442695
      %v2865 = vpow.pop %v2864
      %v2866 = vmul.f32 %v2825, 1.442695
      %v2867 = vpow.pop %v2866
      %v2868 = vmul.f32 %v2826, 1.442695
      %v2869 = vpow.pop %v2868
      %v2870 = vmul.f32 %v2827, 1.442695
      %v2871 = vpow.pop %v2870
      %v2872 = vmul.f32 %v2828, 1.442695
      %v2873 = vpow.pop %v2872
      %v2874 = vmul.f32 %v2829, 1.442695
      %v2875 = vpow.pop %v2874
      %v2876 = vmul.f32 %v2830, 1.442695
      %v2877 = vpow.pop %v2876
      %v2878 = vmul.f32 %v2831, 1.442695
      %v2879 = vpow.pop %v2878
      %v2880 = vmul.f32 %v2832, 1.442695
      %v2881 = vpow.pop %v2880
      %v2882 = vmul.f32 %v2833, 1.442695
      %v2883 = vpow.pop %v2882
      %v2884 = vmul.f32 %v2834, 1.442695
      %v2885 = vpow.pop %v2884
      %v2886 = vmul.f32 %v2835, 1.442695
      %v2887 = vpow.pop %v2886
      %v2888 = vmul.f32 %v2836, 1.442695
      %v2889 = vpow.pop %v2888
      %v2890 = vmul.f32 %v2837, 1.442695
      %v2891 = vpow.pop %v2890
      %v2892 = vmul.f32 %v2838, 1.442695
      %v2893 = vpow.pop %v2892
      %v2894 = vmul.f32 %v2839, 1.442695
      %v2895 = vpow.pop %v2894
      %v2896 = vmul.f32 %v2840, 1.442695
      %v2897 = vpow.pop %v2896
      %v2898 = vmul.f32 %v2841, 1.442695
      %v2899 = vpow.pop %v2898
      %v2900 = vmul.f32 %v2842, 1.442695
      %v2901 = vpow.pop %v2900
      %v2902 = vmul.f32 %v2843, 1.442695
      %v2903 = vpow.pop %v2902
      %v2904 = vmul.f32 %v2844, 1.442695
      %v2905 = vpow.pop %v2904
      %v2906 = vmul.f32 %v2845, 1.442695
      %v2907 = vpow.pop %v2906
      %v2908 = vmul.f32 %v2846, 1.442695
      %v2909 = vpow.pop %v2908
      %v2910 = vmul.f32 %v2847, 1.442695
      %v2911 = vpow.pop %v2910
      %v2912 = vadd.f32 %v2849, 1.0
      %v2913 = vlog2.pop %v2912
      %v2914 = vmul.f32 %v2913, 0.6931472
      %v2915 = vmul.f32 -0.5, %v2849
      %v2916 = vadd.f32 %v2915, 1.0
      %v2917 = vmul.f32 %v2916, %v2849
      %v2918 = vand.u32 2147483647, %v2849
      %vm2919 = vcmp.lt.f32.partialorder %v2918, 0.0004427343
      %v2920 = vsel %vm2919, %v2917, %v2914
      %v2921 = vadd.f32 %v2851, 1.0
      %v2922 = vlog2.pop %v2921
      %v2923 = vmul.f32 %v2922, 0.6931472
      %v2924 = vmul.f32 -0.5, %v2851
      %v2925 = vadd.f32 %v2924, 1.0
      %v2926 = vmul.f32 %v2925, %v2851
      %v2927 = vand.u32 2147483647, %v2851
      %vm2928 = vcmp.lt.f32.partialorder %v2927, 0.0004427343
      %v2929 = vsel %vm2928, %v2926, %v2923
      %v2930 = vadd.f32 %v2853, 1.0
      %v2931 = vlog2.pop %v2930
      %v2932 = vmul.f32 %v2931, 0.6931472
      %v2933 = vmul.f32 -0.5, %v2853
      %v2934 = vadd.f32 %v2933, 1.0
      %v2935 = vmul.f32 %v2934, %v2853
      %v2936 = vand.u32 2147483647, %v2853
      %vm2937 = vcmp.lt.f32.partialorder %v2936, 0.0004427343
      %v2938 = vsel %vm2937, %v2935, %v2932
      %v2939 = vadd.f32 %v2855, 1.0
      %v2940 = vlog2.pop %v2939
      %v2941 = vmul.f32 %v2940, 0.6931472
      %v2942 = vmul.f32 -0.5, %v2855
      %v2943 = vadd.f32 %v2942, 1.0
      %v2944 = vmul.f32 %v2943, %v2855
      %v2945 = vand.u32 2147483647, %v2855
      %vm2946 = vcmp.lt.f32.partialorder %v2945, 0.0004427343
      %v2947 = vsel %vm2946, %v2944, %v2941
      %v2948 = vadd.f32 %v2857, 1.0
      %v2949 = vlog2.pop %v2948
      %v2950 = vmul.f32 %v2949, 0.6931472
      %v2951 = vmul.f32 -0.5, %v2857
      %v2952 = vadd.f32 %v2951, 1.0
      %v2953 = vmul.f32 %v2952, %v2857
      %v2954 = vand.u32 2147483647, %v2857
      %vm2955 = vcmp.lt.f32.partialorder %v2954, 0.0004427343
      %v2956 = vsel %vm2955, %v2953, %v2950
      %v2957 = vadd.f32 %v2859, 1.0
      %v2958 = vlog2.pop %v2957
      %v2959 = vmul.f32 %v2958, 0.6931472
      %v2960 = vmul.f32 -0.5, %v2859
      %v2961 = vadd.f32 %v2960, 1.0
      %v2962 = vmul.f32 %v2961, %v2859
      %v2963 = vand.u32 2147483647, %v2859
      %vm2964 = vcmp.lt.f32.partialorder %v2963, 0.0004427343
      %v2965 = vsel %vm2964, %v2962, %v2959
      %v2966 = vadd.f32 %v2861, 1.0
      %v2967 = vlog2.pop %v2966
      %v2968 = vmul.f32 %v2967, 0.6931472
      %v2969 = vmul.f32 -0.5, %v2861
      %v2970 = vadd.f32 %v2969, 1.0
      %v2971 = vmul.f32 %v2970, %v2861
      %v2972 = vand.u32 2147483647, %v2861
      %vm2973 = vcmp.lt.f32.partialorder %v2972, 0.0004427343
      %v2974 = vsel %vm2973, %v2971, %v2968
      %v2975 = vadd.f32 %v2863, 1.0
      %v2976 = vlog2.pop %v2975
      %v2977 = vmul.f32 %v2976, 0.6931472
      %v2978 = vmul.f32 -0.5, %v2863
      %v2979 = vadd.f32 %v2978, 1.0
      %v2980 = vmul.f32 %v2979, %v2863
      %v2981 = vand.u32 2147483647, %v2863
      %vm2982 = vcmp.lt.f32.partialorder %v2981, 0.0004427343
      %v2983 = vsel %vm2982, %v2980, %v2977
      %v2984 = vadd.f32 %v2865, 1.0
      %v2985 = vlog2.pop %v2984
      %v2986 = vmul.f32 %v2985, 0.6931472
      %v2987 = vmul.f32 -0.5, %v2865
      %v2988 = vadd.f32 %v2987, 1.0
      %v2989 = vmul.f32 %v2988, %v2865
      %v2990 = vand.u32 2147483647, %v2865
      %vm2991 = vcmp.lt.f32.partialorder %v2990, 0.0004427343
      %v2992 = vsel %vm2991, %v2989, %v2986
      %v2993 = vadd.f32 %v2867, 1.0
      %v2994 = vlog2.pop %v2993
      %v2995 = vmul.f32 %v2994, 0.6931472
      %v2996 = vmul.f32 -0.5, %v2867
      %v2997 = vadd.f32 %v2996, 1.0
      %v2998 = vmul.f32 %v2997, %v2867
      %v2999 = vand.u32 2147483647, %v2867
      %vm3000 = vcmp.lt.f32.partialorder %v2999, 0.0004427343
      %v3001 = vsel %vm3000, %v2998, %v2995
      %v3002 = vadd.f32 %v2869, 1.0
      %v3003 = vlog2.pop %v3002
      %v3004 = vmul.f32 %v3003, 0.6931472
      %v3005 = vmul.f32 -0.5, %v2869
      %v3006 = vadd.f32 %v3005, 1.0
      %v3007 = vmul.f32 %v3006, %v2869
      %v3008 = vand.u32 2147483647, %v2869
      %vm3009 = vcmp.lt.f32.partialorder %v3008, 0.0004427343
      %v3010 = vsel %vm3009, %v3007, %v3004
      %v3011 = vadd.f32 %v2871, 1.0
      %v3012 = vlog2.pop %v3011
      %v3013 = vmul.f32 %v3012, 0.6931472
      %v3014 = vmul.f32 -0.5, %v2871
      %v3015 = vadd.f32 %v3014, 1.0
      %v3016 = vmul.f32 %v3015, %v2871
      %v3017 = vand.u32 2147483647, %v2871
      %vm3018 = vcmp.lt.f32.partialorder %v3017, 0.0004427343
      %v3019 = vsel %vm3018, %v3016, %v3013
      %v3020 = vadd.f32 %v2873, 1.0
      %v3021 = vlog2.pop %v3020
      %v3022 = vmul.f32 %v3021, 0.6931472
      %v3023 = vmul.f32 -0.5, %v2873
      %v3024 = vadd.f32 %v3023, 1.0
      %v3025 = vmul.f32 %v3024, %v2873
      %v3026 = vand.u32 2147483647, %v2873
      %vm3027 = vcmp.lt.f32.partialorder %v3026, 0.0004427343
      %v3028 = vsel %vm3027, %v3025, %v3022
      %v3029 = vadd.f32 %v2875, 1.0
      %v3030 = vlog2.pop %v3029
      %v3031 = vmul.f32 %v3030, 0.6931472
      %v3032 = vmul.f32 -0.5, %v2875
      %v3033 = vadd.f32 %v3032, 1.0
      %v3034 = vmul.f32 %v3033, %v2875
      %v3035 = vand.u32 2147483647, %v2875
      %vm3036 = vcmp.lt.f32.partialorder %v3035, 0.0004427343
      %v3037 = vsel %vm3036, %v3034, %v3031
      %v3038 = vadd.f32 %v2877, 1.0
      %v3039 = vlog2.pop %v3038
      %v3040 = vmul.f32 %v3039, 0.6931472
      %v3041 = vmul.f32 -0.5, %v2877
      %v3042 = vadd.f32 %v3041, 1.0
      %v3043 = vmul.f32 %v3042, %v2877
      %v3044 = vand.u32 2147483647, %v2877
      %vm3045 = vcmp.lt.f32.partialorder %v3044, 0.0004427343
      %v3046 = vsel %vm3045, %v3043, %v3040
      %v3047 = vadd.f32 %v2879, 1.0
      %v3048 = vlog2.pop %v3047
      %v3049 = vmul.f32 %v3048, 0.6931472
      %v3050 = vmul.f32 -0.5, %v2879
      %v3051 = vadd.f32 %v3050, 1.0
      %v3052 = vmul.f32 %v3051, %v2879
      %v3053 = vand.u32 2147483647, %v2879
      %vm3054 = vcmp.lt.f32.partialorder %v3053, 0.0004427343
      %v3055 = vsel %vm3054, %v3052, %v3049
      %v3056 = vadd.f32 %v2881, 1.0
      %v3057 = vlog2.pop %v3056
      %v3058 = vmul.f32 %v3057, 0.6931472
      %v3059 = vmul.f32 -0.5, %v2881
      %v3060 = vadd.f32 %v3059, 1.0
      %v3061 = vmul.f32 %v3060, %v2881
      %v3062 = vand.u32 2147483647, %v2881
      %vm3063 = vcmp.lt.f32.partialorder %v3062, 0.0004427343
      %v3064 = vsel %vm3063, %v3061, %v3058
      %v3065 = vadd.f32 %v2883, 1.0
      %v3066 = vlog2.pop %v3065
      %v3067 = vmul.f32 %v3066, 0.6931472
      %v3068 = vmul.f32 -0.5, %v2883
      %v3069 = vadd.f32 %v3068, 1.0
      %v3070 = vmul.f32 %v3069, %v2883
      %v3071 = vand.u32 2147483647, %v2883
      %vm3072 = vcmp.lt.f32.partialorder %v3071, 0.0004427343
      %v3073 = vsel %vm3072, %v3070, %v3067
      %v3074 = vadd.f32 %v2885, 1.0
      %v3075 = vlog2.pop %v3074
      %v3076 = vmul.f32 %v3075, 0.6931472
      %v3077 = vmul.f32 -0.5, %v2885
      %v3078 = vadd.f32 %v3077, 1.0
      %v3079 = vmul.f32 %v3078, %v2885
      %v3080 = vand.u32 2147483647, %v2885
      %vm3081 = vcmp.lt.f32.partialorder %v3080, 0.0004427343
      %v3082 = vsel %vm3081, %v3079, %v3076
      %v3083 = vadd.f32 %v2887, 1.0
      %v3084 = vlog2.pop %v3083
      %v3085 = vmul.f32 %v3084, 0.6931472
      %v3086 = vmul.f32 -0.5, %v2887
      %v3087 = vadd.f32 %v3086, 1.0
      %v3088 = vmul.f32 %v3087, %v2887
      %v3089 = vand.u32 2147483647, %v2887
      %vm3090 = vcmp.lt.f32.partialorder %v3089, 0.0004427343
      %v3091 = vsel %vm3090, %v3088, %v3085
      %v3092 = vadd.f32 %v2889, 1.0
      %v3093 = vlog2.pop %v3092
      %v3094 = vmul.f32 %v3093, 0.6931472
      %v3095 = vmul.f32 -0.5, %v2889
      %v3096 = vadd.f32 %v3095, 1.0
      %v3097 = vmul.f32 %v3096, %v2889
      %v3098 = vand.u32 2147483647, %v2889
      %vm3099 = vcmp.lt.f32.partialorder %v3098, 0.0004427343
      %v3100 = vsel %vm3099, %v3097, %v3094
      %v3101 = vadd.f32 %v2891, 1.0
      %v3102 = vlog2.pop %v3101
      %v3103 = vmul.f32 %v3102, 0.6931472
      %v3104 = vmul.f32 -0.5, %v2891
      %v3105 = vadd.f32 %v3104, 1.0
      %v3106 = vmul.f32 %v3105, %v2891
      %v3107 = vand.u32 2147483647, %v2891
      %vm3108 = vcmp.lt.f32.partialorder %v3107, 0.0004427343
      %v3109 = vsel %vm3108, %v3106, %v3103
      %v3110 = vadd.f32 %v2893, 1.0
      %v3111 = vlog2.pop %v3110
      %v3112 = vmul.f32 %v3111, 0.6931472
      %v3113 = vmul.f32 -0.5, %v2893
      %v3114 = vadd.f32 %v3113, 1.0
      %v3115 = vmul.f32 %v3114, %v2893
      %v3116 = vand.u32 2147483647, %v2893
      %vm3117 = vcmp.lt.f32.partialorder %v3116, 0.0004427343
      %v3118 = vsel %vm3117, %v3115, %v3112
      %v3119 = vadd.f32 %v2895, 1.0
      %v3120 = vlog2.pop %v3119
      %v3121 = vmul.f32 %v3120, 0.6931472
      %v3122 = vmul.f32 -0.5, %v2895
      %v3123 = vadd.f32 %v3122, 1.0
      %v3124 = vmul.f32 %v3123, %v2895
      %v3125 = vand.u32 2147483647, %v2895
      %vm3126 = vcmp.lt.f32.partialorder %v3125, 0.0004427343
      %v3127 = vsel %vm3126, %v3124, %v3121
      %v3128 = vadd.f32 %v2897, 1.0
      %v3129 = vlog2.pop %v3128
      %v3130 = vmul.f32 %v3129, 0.6931472
      %v3131 = vmul.f32 -0.5, %v2897
      %v3132 = vadd.f32 %v3131, 1.0
      %v3133 = vmul.f32 %v3132, %v2897
      %v3134 = vand.u32 2147483647, %v2897
      %vm3135 = vcmp.lt.f32.partialorder %v3134, 0.0004427343
      %v3136 = vsel %vm3135, %v3133, %v3130
      %v3137 = vadd.f32 %v2899, 1.0
      %v3138 = vlog2.pop %v3137
      %v3139 = vmul.f32 %v3138, 0.6931472
      %v3140 = vmul.f32 -0.5, %v2899
      %v3141 = vadd.f32 %v3140, 1.0
      %v3142 = vmul.f32 %v3141, %v2899
      %v3143 = vand.u32 2147483647, %v2899
      %vm3144 = vcmp.lt.f32.partialorder %v3143, 0.0004427343
      %v3145 = vsel %vm3144, %v3142, %v3139
      %v3146 = vadd.f32 %v2901, 1.0
      %v3147 = vlog2.pop %v3146
      %v3148 = vmul.f32 %v3147, 0.6931472
      %v3149 = vmul.f32 -0.5, %v2901
      %v3150 = vadd.f32 %v3149, 1.0
      %v3151 = vmul.f32 %v3150, %v2901
      %v3152 = vand.u32 2147483647, %v2901
      %vm3153 = vcmp.lt.f32.partialorder %v3152, 0.0004427343
      %v3154 = vsel %vm3153, %v3151, %v3148
      %v3155 = vadd.f32 %v2903, 1.0
      %v3156 = vlog2.pop %v3155
      %v3157 = vmul.f32 %v3156, 0.6931472
      %v3158 = vmul.f32 -0.5, %v2903
      %v3159 = vadd.f32 %v3158, 1.0
      %v3160 = vmul.f32 %v3159, %v2903
      %v3161 = vand.u32 2147483647, %v2903
      %vm3162 = vcmp.lt.f32.partialorder %v3161, 0.0004427343
      %v3163 = vsel %vm3162, %v3160, %v3157
      %v3164 = vadd.f32 %v2905, 1.0
      %v3165 = vlog2.pop %v3164
      %v3166 = vmul.f32 %v3165, 0.6931472
      %v3167 = vmul.f32 -0.5, %v2905
      %v3168 = vadd.f32 %v3167, 1.0
      %v3169 = vmul.f32 %v3168, %v2905
      %v3170 = vand.u32 2147483647, %v2905
      %vm3171 = vcmp.lt.f32.partialorder %v3170, 0.0004427343
      %v3172 = vsel %vm3171, %v3169, %v3166
      %v3173 = vadd.f32 %v2907, 1.0
      %v3174 = vlog2.pop %v3173
      %v3175 = vmul.f32 %v3174, 0.6931472
      %v3176 = vmul.f32 -0.5, %v2907
      %v3177 = vadd.f32 %v3176, 1.0
      %v3178 = vmul.f32 %v3177, %v2907
      %v3179 = vand.u32 2147483647, %v2907
      %vm3180 = vcmp.lt.f32.partialorder %v3179, 0.0004427343
      %v3181 = vsel %vm3180, %v3178, %v3175
      %v3182 = vadd.f32 %v2909, 1.0
      %v3183 = vlog2.pop %v3182
      %v3184 = vmul.f32 %v3183, 0.6931472
      %v3185 = vmul.f32 -0.5, %v2909
      %v3186 = vadd.f32 %v3185, 1.0
      %v3187 = vmul.f32 %v3186, %v2909
      %v3188 = vand.u32 2147483647, %v2909
      %vm3189 = vcmp.lt.f32.partialorder %v3188, 0.0004427343
      %v3190 = vsel %vm3189, %v3187, %v3184
      %v3191 = vadd.f32 %v2911, 1.0
      %v3192 = vlog2.pop %v3191
      %v3193 = vmul.f32 %v3192, 0.6931472
      %v3194 = vmul.f32 -0.5, %v2911
      %v3195 = vadd.f32 %v3194, 1.0
      %v3196 = vmul.f32 %v3195, %v2911
      %v3197 = vand.u32 2147483647, %v2911
      %vm3198 = vcmp.lt.f32.partialorder %v3197, 0.0004427343
      %v3199 = vsel %vm3198, %v3196, %v3193
      %v3200 = vadd.f32 %v2752, %v2920
      %v3201 = vadd.f32 %v2753, %v2929
      %v3202 = vadd.f32 %v2754, %v2938
      %v3203 = vadd.f32 %v2755, %v2947
      %v3204 = vadd.f32 %v2756, %v2956
      %v3205 = vadd.f32 %v2757, %v2965
      %v3206 = vadd.f32 %v2758, %v2974
      %v3207 = vadd.f32 %v2759, %v2983
      %v3208 = vadd.f32 %v2760, %v2992
      %v3209 = vadd.f32 %v2761, %v3001
      %v3210 = vadd.f32 %v2762, %v3010
      %v3211 = vadd.f32 %v2763, %v3019
      %v3212 = vadd.f32 %v2764, %v3028
      %v3213 = vadd.f32 %v2765, %v3037
      %v3214 = vadd.f32 %v2766, %v3046
      %v3215 = vadd.f32 %v2767, %v3055
      %v3216 = vadd.f32 %v2768, %v3064
      %v3217 = vadd.f32 %v2769, %v3073
      %v3218 = vadd.f32 %v2770, %v3082
      %v3219 = vadd.f32 %v2771, %v3091
      %v3220 = vadd.f32 %v2772, %v3100
      %v3221 = vadd.f32 %v2773, %v3109
      %v3222 = vadd.f32 %v2774, %v3118
      %v3223 = vadd.f32 %v2775, %v3127
      %v3224 = vadd.f32 %v2776, %v3136
      %v3225 = vadd.f32 %v2777, %v3145
      %v3226 = vadd.f32 %v2778, %v3154
      %v3227 = vadd.f32 %v2779, %v3163
      %v3228 = vadd.f32 %v2780, %v3172
      %v3229 = vadd.f32 %v2781, %v3181
      %v3230 = vadd.f32 %v2782, %v3190
      %v3231 = vadd.f32 %v2783, %v3199
      %3232 = vst.msk [vmem:[#allocation3] sm:$0xff] %vm754, %v3200
      %3233 = vst.msk [vmem:[#allocation3 + $0x8] sm:$0xff] %vm754, %v3201
      %3234 = vst.msk [vmem:[#allocation3 + $0x10] sm:$0xff] %vm754, %v3202
      %3235 = vst.msk [vmem:[#allocation3 + $0x18] sm:$0xff] %vm754, %v3203
      %3236 = vst.msk [vmem:[#allocation3 + $0x20] sm:$0xff] %vm754, %v3204
      %3237 = vst.msk [vmem:[#allocation3 + $0x28] sm:$0xff] %vm754, %v3205
      %3238 = vst.msk [vmem:[#allocation3 + $0x30] sm:$0xff] %vm754, %v3206
      %3239 = vst.msk [vmem:[#allocation3 + $0x38] sm:$0xff] %vm754, %v3207
      %3240 = vst.msk [vmem:[#allocation3 + $0x40] sm:$0xff] %vm754, %v3208
      %3241 = vst.msk [vmem:[#allocation3 + $0x48] sm:$0xff] %vm754, %v3209
      %3242 = vst.msk [vmem:[#allocation3 + $0x50] sm:$0xff] %vm754, %v3210
      %3243 = vst.msk [vmem:[#allocation3 + $0x58] sm:$0xff] %vm754, %v3211
      %3244 = vst.msk [vmem:[#allocation3 + $0x60] sm:$0xff] %vm754, %v3212
      %3245 = vst.msk [vmem:[#allocation3 + $0x68] sm:$0xff] %vm754, %v3213
      %3246 = vst.msk [vmem:[#allocation3 + $0x70] sm:$0xff] %vm754, %v3214
      %3247 = vst.msk [vmem:[#allocation3 + $0x78] sm:$0xff] %vm754, %v3215
      %3248 = vst.msk [vmem:[#allocation3 + $0x80] sm:$0xff] %vm754, %v3216
      %3249 = vst.msk [vmem:[#allocation3 + $0x88] sm:$0xff] %vm754, %v3217
      %3250 = vst.msk [vmem:[#allocation3 + $0x90] sm:$0xff] %vm754, %v3218
      %3251 = vst.msk [vmem:[#allocation3 + $0x98] sm:$0xff] %vm754, %v3219
      %3252 = vst.msk [vmem:[#allocation3 + $0xa0] sm:$0xff] %vm754, %v3220
      %3253 = vst.msk [vmem:[#allocation3 + $0xa8] sm:$0xff] %vm754, %v3221
      %3254 = vst.msk [vmem:[#allocation3 + $0xb0] sm:$0xff] %vm754, %v3222
      %3255 = vst.msk [vmem:[#allocation3 + $0xb8] sm:$0xff] %vm754, %v3223
      %3256 = vst.msk [vmem:[#allocation3 + $0xc0] sm:$0xff] %vm754, %v3224
      %3257 = vst.msk [vmem:[#allocation3 + $0xc8] sm:$0xff] %vm754, %v3225
      %3258 = vst.msk [vmem:[#allocation3 + $0xd0] sm:$0xff] %vm754, %v3226
      %3259 = vst.msk [vmem:[#allocation3 + $0xd8] sm:$0xff] %vm754, %v3227
      %3260 = vst.msk [vmem:[#allocation3 + $0xe0] sm:$0xff] %vm754, %v3228
      %3261 = vst.msk [vmem:[#allocation3 + $0xe8] sm:$0xff] %vm754, %v3229
      %3262 = vst.msk [vmem:[#allocation3 + $0xf0] sm:$0xff] %vm754, %v3230
      %3263 = vst.msk [vmem:[#allocation3 + $0xf8] sm:$0xff] %vm754, %v3231
      %v3264 = vlaneseq
      %v3265 = vshrl.u32 %v3264, 7
      %v3266 = vadd.s32 %v3265, 8
      %v3267 = vlaneseq
      %v3268 = vand.u32 %v3267, 127
      %vm3269 = vcmp.eq.s32.totalorder %v3265, %v3268
      %vm3270 = vcmp.eq.s32.totalorder %v3266, %v3268
      %v3271 = vsel %vm3269, 1, 0
      %v3272 = vsel %vm3270, 1, 0
      %v3273 = vcvt.s32.f32 %v3271
      %v3274 = vcvt.s32.f32 %v3272
      %v3275 = vld [vmem:[%s7] sm:$0xff]
      %v3276 = vld [vmem:[%s7 + $0x8] sm:$0xff]
      %v3277 = vld [vmem:[#allocation9] sm:$0xff]
      %v3278 = vld [vmem:[#allocation9 + $0x8] sm:$0xff]
      loop: start=0, step=1, limit=32
      $region81: #{bidir_mamba_forward.2} parent=59 // loop_pre_header
        _
      $region82: #{bidir_mamba_forward.2} parent=59 // loop_header
        %s3280 = sphi 0, %s3284
        %p3281 = scmp.ge.s32.totalorder %s3280, 32
        %v3285 = vphi %v3277, %v3729
        %v3286 = vphi %v3278, %v3730
      $region83: #{bidir_mamba_forward.2} parent=59 // loop_header_branch
        %3283 = sbr.rel (%p3281) target = $region87
      $region84: #{bidir_mamba_forward.2} parent=59 // loop_body
        %s3287 = smul.u32 %s3280, 8
        %s3288 = ssub.s32 255, %s3287
        %s3289 = scalar_select %p434, %s3287, %s3288
        %s3290 = scalar_lea.vmem [#allocation3], %s3289
        %v3291 = vld [vmem:[%s3290] sm:$0x1]
        %s3292 = scalar_lea.vmem [#allocation4], %s3289
        %v3293 = vld [vmem:[%s3292] sm:$0x1]
        %s3294 = scalar_lea.vmem [#allocation6], %s3289
        %v3295 = vld [vmem:[%s3294] sm:$0x1]
        %s3296 = scalar_lea.vmem [#allocation7], %s3289
        %v3297 = vld [vmem:[%s3296] sm:$0x1]
        %v3298 = vperm.slane %v3295, 0
        %v3299 = vmul.f32 %v3298, %v3273
        %v3300 = vmul.f32 %v3298, %v3274
        %v3301 = vsel %vm2426, %v3299, 0.0
        %3302 = vadd.xlane.f32.xlu0 %v3301
        %v3303 = vpop.xlane.xlu0 %3302
        %v3304 = vsel %vm2426, %v3300, 0.0
        %3305 = vadd.xlane.f32.xlu0 %v3304
        %v3306 = vpop.xlane.xlu0 %3305
        %v3307 = vperm.slane %v3297, 0
        %v3308 = vmul.f32 %v3307, %v3273
        %v3309 = vmul.f32 %v3307, %v3274
        %v3310 = vsel %vm2426, %v3308, 0.0
        %3311 = vadd.xlane.f32.xlu0 %v3310
        %v3312 = vpop.xlane.xlu0 %3311
        %v3313 = vsel %vm2426, %v3309, 0.0
        %3314 = vadd.xlane.f32.xlu0 %v3313
        %v3315 = vpop.xlane.xlu0 %3314
        %v3316 = vperm.slane %v3291, 0
        %v3317 = vmul.f32 %v3316, %v3275
        %v3318 = vmul.f32 %v3316, %v3276
        %v3319 = vmul.f32 %v3317, 1.442695
        %v3320 = vpow.pop %v3319
        %v3321 = vmul.f32 %v3318, 1.442695
        %v3322 = vpow.pop %v3321
        %v3323 = vmul.f32 %v3320, %v3285
        %v3324 = vmul.f32 %v3322, %v3286
        %v3325 = vmul.f32 %v3291, %v3293
        %v3326 = vperm.slane %v3325, 0
        %v3327 = vmul.f32 %v3303, %v3326
        %v3328 = vmul.f32 %v3306, %v3326
        %v3329 = vadd.f32 %v3323, %v3327
        %v3330 = vadd.f32 %v3324, %v3328
        %v3331 = vmul.f32 %v3329, %v3312
        %v3332 = vmul.f32 %v3330, %v3315
        %v3333 = vsel %vm754, %v3331, 0.0
        %v3334 = vsel %vm754, %v3332, 0.0
        %v3335 = vadd.f32 %v3333, %v3334
        %v3336 = vrot.slane %v3335, 4
        %v3337 = vadd.f32 %v3335, %v3336
        %v3338 = vrot.slane %v3337, 2
        %v3339 = vadd.f32 %v3337, %v3338
        %v3340 = vrot.slane %v3339, 1
        %v3341 = vadd.f32 %v3339, %v3340
        %s3342 = scalar_lea.vmem [#allocation8], %s3289
        %vm3343 = vcmask 57344
        %3344 = vst.msk [vmem:[%s3342] sm:$0x1] %vm3343, %v3341
        %s3345 = sadd.s32 %s3287, 1
        %s3346 = ssub.s32 254, %s3287
        %s3347 = scalar_select %p434, %s3345, %s3346
        %s3348 = scalar_lea.vmem [#allocation3], %s3347
        %v3349 = vld [vmem:[%s3348] sm:$0x1]
        %s3350 = scalar_lea.vmem [#allocation4], %s3347
        %v3351 = vld [vmem:[%s3350] sm:$0x1]
        %s3352 = scalar_lea.vmem [#allocation6], %s3347
        %v3353 = vld [vmem:[%s3352] sm:$0x1]
        %s3354 = scalar_lea.vmem [#allocation7], %s3347
        %v3355 = vld [vmem:[%s3354] sm:$0x1]
        %v3356 = vperm.slane %v3353, 0
        %v3357 = vmul.f32 %v3356, %v3273
        %v3358 = vmul.f32 %v3356, %v3274
        %v3359 = vsel %vm2426, %v3357, 0.0
        %3360 = vadd.xlane.f32.xlu0 %v3359
        %v3361 = vpop.xlane.xlu0 %3360
        %v3362 = vsel %vm2426, %v3358, 0.0
        %3363 = vadd.xlane.f32.xlu0 %v3362
        %v3364 = vpop.xlane.xlu0 %3363
        %v3365 = vperm.slane %v3355, 0
        %v3366 = vmul.f32 %v3365, %v3273
        %v3367 = vmul.f32 %v3365, %v3274
        %v3368 = vsel %vm2426, %v3366, 0.0
        %3369 = vadd.xlane.f32.xlu0 %v3368
        %v3370 = vpop.xlane.xlu0 %3369
        %v3371 = vsel %vm2426, %v3367, 0.0
        %3372 = vadd.xlane.f32.xlu0 %v3371
        %v3373 = vpop.xlane.xlu0 %3372
        %v3374 = vperm.slane %v3349, 0
        %v3375 = vmul.f32 %v3374, %v3275
        %v3376 = vmul.f32 %v3374, %v3276
        %v3377 = vmul.f32 %v3375, 1.442695
        %v3378 = vpow.pop %v3377
        %v3379 = vmul.f32 %v3376, 1.442695
        %v3380 = vpow.pop %v3379
        %v3381 = vmul.f32 %v3378, %v3329
        %v3382 = vmul.f32 %v3380, %v3330
        %v3383 = vmul.f32 %v3349, %v3351
        %v3384 = vperm.slane %v3383, 0
        %v3385 = vmul.f32 %v3361, %v3384
        %v3386 = vmul.f32 %v3364, %v3384
        %v3387 = vadd.f32 %v3381, %v3385
        %v3388 = vadd.f32 %v3382, %v3386
        %v3389 = vmul.f32 %v3387, %v3370
        %v3390 = vmul.f32 %v3388, %v3373
        %v3391 = vsel %vm754, %v3389, 0.0
        %v3392 = vsel %vm754, %v3390, 0.0
        %v3393 = vadd.f32 %v3391, %v3392
        %v3394 = vrot.slane %v3393, 4
        %v3395 = vadd.f32 %v3393, %v3394
        %v3396 = vrot.slane %v3395, 2
        %v3397 = vadd.f32 %v3395, %v3396
        %v3398 = vrot.slane %v3397, 1
        %v3399 = vadd.f32 %v3397, %v3398
        %s3400 = scalar_lea.vmem [#allocation8], %s3347
        %3401 = vst.msk [vmem:[%s3400] sm:$0x1] %vm3343, %v3399
        %s3402 = sadd.s32 %s3287, 2
        %s3403 = ssub.s32 253, %s3287
        %s3404 = scalar_select %p434, %s3402, %s3403
        %s3405 = scalar_lea.vmem [#allocation3], %s3404
        %v3406 = vld [vmem:[%s3405] sm:$0x1]
        %s3407 = scalar_lea.vmem [#allocation4], %s3404
        %v3408 = vld [vmem:[%s3407] sm:$0x1]
        %s3409 = scalar_lea.vmem [#allocation6], %s3404
        %v3410 = vld [vmem:[%s3409] sm:$0x1]
        %s3411 = scalar_lea.vmem [#allocation7], %s3404
        %v3412 = vld [vmem:[%s3411] sm:$0x1]
        %v3413 = vperm.slane %v3410, 0
        %v3414 = vmul.f32 %v3413, %v3273
        %v3415 = vmul.f32 %v3413, %v3274
        %v3416 = vsel %vm2426, %v3414, 0.0
        %3417 = vadd.xlane.f32.xlu0 %v3416
        %v3418 = vpop.xlane.xlu0 %3417
        %v3419 = vsel %vm2426, %v3415, 0.0
        %3420 = vadd.xlane.f32.xlu0 %v3419
        %v3421 = vpop.xlane.xlu0 %3420
        %v3422 = vperm.slane %v3412, 0
        %v3423 = vmul.f32 %v3422, %v3273
        %v3424 = vmul.f32 %v3422, %v3274
        %v3425 = vsel %vm2426, %v3423, 0.0
        %3426 = vadd.xlane.f32.xlu0 %v3425
        %v3427 = vpop.xlane.xlu0 %3426
        %v3428 = vsel %vm2426, %v3424, 0.0
        %3429 = vadd.xlane.f32.xlu0 %v3428
        %v3430 = vpop.xlane.xlu0 %3429
        %v3431 = vperm.slane %v3406, 0
        %v3432 = vmul.f32 %v3431, %v3275
        %v3433 = vmul.f32 %v3431, %v3276
        %v3434 = vmul.f32 %v3432, 1.442695
        %v3435 = vpow.pop %v3434
        %v3436 = vmul.f32 %v3433, 1.442695
        %v3437 = vpow.pop %v3436
        %v3438 = vmul.f32 %v3435, %v3387
        %v3439 = vmul.f32 %v3437, %v3388
        %v3440 = vmul.f32 %v3406, %v3408
        %v3441 = vperm.slane %v3440, 0
        %v3442 = vmul.f32 %v3418, %v3441
        %v3443 = vmul.f32 %v3421, %v3441
        %v3444 = vadd.f32 %v3438, %v3442
        %v3445 = vadd.f32 %v3439, %v3443
        %v3446 = vmul.f32 %v3444, %v3427
        %v3447 = vmul.f32 %v3445, %v3430
        %v3448 = vsel %vm754, %v3446, 0.0
        %v3449 = vsel %vm754, %v3447, 0.0
        %v3450 = vadd.f32 %v3448, %v3449
        %v3451 = vrot.slane %v3450, 4
        %v3452 = vadd.f32 %v3450, %v3451
        %v3453 = vrot.slane %v3452, 2
        %v3454 = vadd.f32 %v3452, %v3453
        %v3455 = vrot.slane %v3454, 1
        %v3456 = vadd.f32 %v3454, %v3455
        %s3457 = scalar_lea.vmem [#allocation8], %s3404
        %3458 = vst.msk [vmem:[%s3457] sm:$0x1] %vm3343, %v3456
        %s3459 = sadd.s32 %s3287, 3
        %s3460 = ssub.s32 252, %s3287
        %s3461 = scalar_select %p434, %s3459, %s3460
        %s3462 = scalar_lea.vmem [#allocation3], %s3461
        %v3463 = vld [vmem:[%s3462] sm:$0x1]
        %s3464 = scalar_lea.vmem [#allocation4], %s3461
        %v3465 = vld [vmem:[%s3464] sm:$0x1]
        %s3466 = scalar_lea.vmem [#allocation6], %s3461
        %v3467 = vld [vmem:[%s3466] sm:$0x1]
        %s3468 = scalar_lea.vmem [#allocation7], %s3461
        %v3469 = vld [vmem:[%s3468] sm:$0x1]
        %v3470 = vperm.slane %v3467, 0
        %v3471 = vmul.f32 %v3470, %v3273
        %v3472 = vmul.f32 %v3470, %v3274
        %v3473 = vsel %vm2426, %v3471, 0.0
        %3474 = vadd.xlane.f32.xlu0 %v3473
        %v3475 = vpop.xlane.xlu0 %3474
        %v3476 = vsel %vm2426, %v3472, 0.0
        %3477 = vadd.xlane.f32.xlu0 %v3476
        %v3478 = vpop.xlane.xlu0 %3477
        %v3479 = vperm.slane %v3469, 0
        %v3480 = vmul.f32 %v3479, %v3273
        %v3481 = vmul.f32 %v3479, %v3274
        %v3482 = vsel %vm2426, %v3480, 0.0
        %3483 = vadd.xlane.f32.xlu0 %v3482
        %v3484 = vpop.xlane.xlu0 %3483
        %v3485 = vsel %vm2426, %v3481, 0.0
        %3486 = vadd.xlane.f32.xlu0 %v3485
        %v3487 = vpop.xlane.xlu0 %3486
        %v3488 = vperm.slane %v3463, 0
        %v3489 = vmul.f32 %v3488, %v3275
        %v3490 = vmul.f32 %v3488, %v3276
        %v3491 = vmul.f32 %v3489, 1.442695
        %v3492 = vpow.pop %v3491
        %v3493 = vmul.f32 %v3490, 1.442695
        %v3494 = vpow.pop %v3493
        %v3495 = vmul.f32 %v3492, %v3444
        %v3496 = vmul.f32 %v3494, %v3445
        %v3497 = vmul.f32 %v3463, %v3465
        %v3498 = vperm.slane %v3497, 0
        %v3499 = vmul.f32 %v3475, %v3498
        %v3500 = vmul.f32 %v3478, %v3498
        %v3501 = vadd.f32 %v3495, %v3499
        %v3502 = vadd.f32 %v3496, %v3500
        %v3503 = vmul.f32 %v3501, %v3484
        %v3504 = vmul.f32 %v3502, %v3487
        %v3505 = vsel %vm754, %v3503, 0.0
        %v3506 = vsel %vm754, %v3504, 0.0
        %v3507 = vadd.f32 %v3505, %v3506
        %v3508 = vrot.slane %v3507, 4
        %v3509 = vadd.f32 %v3507, %v3508
        %v3510 = vrot.slane %v3509, 2
        %v3511 = vadd.f32 %v3509, %v3510
        %v3512 = vrot.slane %v3511, 1
        %v3513 = vadd.f32 %v3511, %v3512
        %s3514 = scalar_lea.vmem [#allocation8], %s3461
        %3515 = vst.msk [vmem:[%s3514] sm:$0x1] %vm3343, %v3513
        %s3516 = sadd.s32 %s3287, 4
        %s3517 = ssub.s32 251, %s3287
        %s3518 = scalar_select %p434, %s3516, %s3517
        %s3519 = scalar_lea.vmem [#allocation3], %s3518
        %v3520 = vld [vmem:[%s3519] sm:$0x1]
        %s3521 = scalar_lea.vmem [#allocation4], %s3518
        %v3522 = vld [vmem:[%s3521] sm:$0x1]
        %s3523 = scalar_lea.vmem [#allocation6], %s3518
        %v3524 = vld [vmem:[%s3523] sm:$0x1]
        %s3525 = scalar_lea.vmem [#allocation7], %s3518
        %v3526 = vld [vmem:[%s3525] sm:$0x1]
        %v3527 = vperm.slane %v3524, 0
        %v3528 = vmul.f32 %v3527, %v3273
        %v3529 = vmul.f32 %v3527, %v3274
        %v3530 = vsel %vm2426, %v3528, 0.0
        %3531 = vadd.xlane.f32.xlu0 %v3530
        %v3532 = vpop.xlane.xlu0 %3531
        %v3533 = vsel %vm2426, %v3529, 0.0
        %3534 = vadd.xlane.f32.xlu0 %v3533
        %v3535 = vpop.xlane.xlu0 %3534
        %v3536 = vperm.slane %v3526, 0
        %v3537 = vmul.f32 %v3536, %v3273
        %v3538 = vmul.f32 %v3536, %v3274
        %v3539 = vsel %vm2426, %v3537, 0.0
        %3540 = vadd.xlane.f32.xlu0 %v3539
        %v3541 = vpop.xlane.xlu0 %3540
        %v3542 = vsel %vm2426, %v3538, 0.0
        %3543 = vadd.xlane.f32.xlu0 %v3542
        %v3544 = vpop.xlane.xlu0 %3543
        %v3545 = vperm.slane %v3520, 0
        %v3546 = vmul.f32 %v3545, %v3275
        %v3547 = vmul.f32 %v3545, %v3276
        %v3548 = vmul.f32 %v3546, 1.442695
        %v3549 = vpow.pop %v3548
        %v3550 = vmul.f32 %v3547, 1.442695
        %v3551 = vpow.pop %v3550
        %v3552 = vmul.f32 %v3549, %v3501
        %v3553 = vmul.f32 %v3551, %v3502
        %v3554 = vmul.f32 %v3520, %v3522
        %v3555 = vperm.slane %v3554, 0
        %v3556 = vmul.f32 %v3532, %v3555
        %v3557 = vmul.f32 %v3535, %v3555
        %v3558 = vadd.f32 %v3552, %v3556
        %v3559 = vadd.f32 %v3553, %v3557
        %v3560 = vmul.f32 %v3558, %v3541
        %v3561 = vmul.f32 %v3559, %v3544
        %v3562 = vsel %vm754, %v3560, 0.0
        %v3563 = vsel %vm754, %v3561, 0.0
        %v3564 = vadd.f32 %v3562, %v3563
        %v3565 = vrot.slane %v3564, 4
        %v3566 = vadd.f32 %v3564, %v3565
        %v3567 = vrot.slane %v3566, 2
        %v3568 = vadd.f32 %v3566, %v3567
        %v3569 = vrot.slane %v3568, 1
        %v3570 = vadd.f32 %v3568, %v3569
        %s3571 = scalar_lea.vmem [#allocation8], %s3518
        %3572 = vst.msk [vmem:[%s3571] sm:$0x1] %vm3343, %v3570
        %s3573 = sadd.s32 %s3287, 5
        %s3574 = ssub.s32 250, %s3287
        %s3575 = scalar_select %p434, %s3573, %s3574
        %s3576 = scalar_lea.vmem [#allocation3], %s3575
        %v3577 = vld [vmem:[%s3576] sm:$0x1]
        %s3578 = scalar_lea.vmem [#allocation4], %s3575
        %v3579 = vld [vmem:[%s3578] sm:$0x1]
        %s3580 = scalar_lea.vmem [#allocation6], %s3575
        %v3581 = vld [vmem:[%s3580] sm:$0x1]
        %s3582 = scalar_lea.vmem [#allocation7], %s3575
        %v3583 = vld [vmem:[%s3582] sm:$0x1]
        %v3584 = vperm.slane %v3581, 0
        %v3585 = vmul.f32 %v3584, %v3273
        %v3586 = vmul.f32 %v3584, %v3274
        %v3587 = vsel %vm2426, %v3585, 0.0
        %3588 = vadd.xlane.f32.xlu0 %v3587
        %v3589 = vpop.xlane.xlu0 %3588
        %v3590 = vsel %vm2426, %v3586, 0.0
        %3591 = vadd.xlane.f32.xlu0 %v3590
        %v3592 = vpop.xlane.xlu0 %3591
        %v3593 = vperm.slane %v3583, 0
        %v3594 = vmul.f32 %v3593, %v3273
        %v3595 = vmul.f32 %v3593, %v3274
        %v3596 = vsel %vm2426, %v3594, 0.0
        %3597 = vadd.xlane.f32.xlu0 %v3596
        %v3598 = vpop.xlane.xlu0 %3597
        %v3599 = vsel %vm2426, %v3595, 0.0
        %3600 = vadd.xlane.f32.xlu0 %v3599
        %v3601 = vpop.xlane.xlu0 %3600
        %v3602 = vperm.slane %v3577, 0
        %v3603 = vmul.f32 %v3602, %v3275
        %v3604 = vmul.f32 %v3602, %v3276
        %v3605 = vmul.f32 %v3603, 1.442695
        %v3606 = vpow.pop %v3605
        %v3607 = vmul.f32 %v3604, 1.442695
        %v3608 = vpow.pop %v3607
        %v3609 = vmul.f32 %v3606, %v3558
        %v3610 = vmul.f32 %v3608, %v3559
        %v3611 = vmul.f32 %v3577, %v3579
        %v3612 = vperm.slane %v3611, 0
        %v3613 = vmul.f32 %v3589, %v3612
        %v3614 = vmul.f32 %v3592, %v3612
        %v3615 = vadd.f32 %v3609, %v3613
        %v3616 = vadd.f32 %v3610, %v3614
        %v3617 = vmul.f32 %v3615, %v3598
        %v3618 = vmul.f32 %v3616, %v3601
        %v3619 = vsel %vm754, %v3617, 0.0
        %v3620 = vsel %vm754, %v3618, 0.0
        %v3621 = vadd.f32 %v3619, %v3620
        %v3622 = vrot.slane %v3621, 4
        %v3623 = vadd.f32 %v3621, %v3622
        %v3624 = vrot.slane %v3623, 2
        %v3625 = vadd.f32 %v3623, %v3624
        %v3626 = vrot.slane %v3625, 1
        %v3627 = vadd.f32 %v3625, %v3626
        %s3628 = scalar_lea.vmem [#allocation8], %s3575
        %3629 = vst.msk [vmem:[%s3628] sm:$0x1] %vm3343, %v3627
        %s3630 = sadd.s32 %s3287, 6
        %s3631 = ssub.s32 249, %s3287
        %s3632 = scalar_select %p434, %s3630, %s3631
        %s3633 = scalar_lea.vmem [#allocation3], %s3632
        %v3634 = vld [vmem:[%s3633] sm:$0x1]
        %s3635 = scalar_lea.vmem [#allocation4], %s3632
        %v3636 = vld [vmem:[%s3635] sm:$0x1]
        %s3637 = scalar_lea.vmem [#allocation6], %s3632
        %v3638 = vld [vmem:[%s3637] sm:$0x1]
        %s3639 = scalar_lea.vmem [#allocation7], %s3632
        %v3640 = vld [vmem:[%s3639] sm:$0x1]
        %v3641 = vperm.slane %v3638, 0
        %v3642 = vmul.f32 %v3641, %v3273
        %v3643 = vmul.f32 %v3641, %v3274
        %v3644 = vsel %vm2426, %v3642, 0.0
        %3645 = vadd.xlane.f32.xlu0 %v3644
        %v3646 = vpop.xlane.xlu0 %3645
        %v3647 = vsel %vm2426, %v3643, 0.0
        %3648 = vadd.xlane.f32.xlu0 %v3647
        %v3649 = vpop.xlane.xlu0 %3648
        %v3650 = vperm.slane %v3640, 0
        %v3651 = vmul.f32 %v3650, %v3273
        %v3652 = vmul.f32 %v3650, %v3274
        %v3653 = vsel %vm2426, %v3651, 0.0
        %3654 = vadd.xlane.f32.xlu0 %v3653
        %v3655 = vpop.xlane.xlu0 %3654
        %v3656 = vsel %vm2426, %v3652, 0.0
        %3657 = vadd.xlane.f32.xlu0 %v3656
        %v3658 = vpop.xlane.xlu0 %3657
        %v3659 = vperm.slane %v3634, 0
        %v3660 = vmul.f32 %v3659, %v3275
        %v3661 = vmul.f32 %v3659, %v3276
        %v3662 = vmul.f32 %v3660, 1.442695
        %v3663 = vpow.pop %v3662
        %v3664 = vmul.f32 %v3661, 1.442695
        %v3665 = vpow.pop %v3664
        %v3666 = vmul.f32 %v3663, %v3615
        %v3667 = vmul.f32 %v3665, %v3616
        %v3668 = vmul.f32 %v3634, %v3636
        %v3669 = vperm.slane %v3668, 0
        %v3670 = vmul.f32 %v3646, %v3669
        %v3671 = vmul.f32 %v3649, %v3669
        %v3672 = vadd.f32 %v3666, %v3670
        %v3673 = vadd.f32 %v3667, %v3671
        %v3674 = vmul.f32 %v3672, %v3655
        %v3675 = vmul.f32 %v3673, %v3658
        %v3676 = vsel %vm754, %v3674, 0.0
        %v3677 = vsel %vm754, %v3675, 0.0
        %v3678 = vadd.f32 %v3676, %v3677
        %v3679 = vrot.slane %v3678, 4
        %v3680 = vadd.f32 %v3678, %v3679
        %v3681 = vrot.slane %v3680, 2
        %v3682 = vadd.f32 %v3680, %v3681
        %v3683 = vrot.slane %v3682, 1
        %v3684 = vadd.f32 %v3682, %v3683
        %s3685 = scalar_lea.vmem [#allocation8], %s3632
        %3686 = vst.msk [vmem:[%s3685] sm:$0x1] %vm3343, %v3684
        %s3687 = sadd.s32 %s3287, 7
        %s3688 = ssub.s32 248, %s3287
        %s3689 = scalar_select %p434, %s3687, %s3688
        %s3690 = scalar_lea.vmem [#allocation3], %s3689
        %v3691 = vld [vmem:[%s3690] sm:$0x1]
        %s3692 = scalar_lea.vmem [#allocation4], %s3689
        %v3693 = vld [vmem:[%s3692] sm:$0x1]
        %s3694 = scalar_lea.vmem [#allocation6], %s3689
        %v3695 = vld [vmem:[%s3694] sm:$0x1]
        %s3696 = scalar_lea.vmem [#allocation7], %s3689
        %v3697 = vld [vmem:[%s3696] sm:$0x1]
        %v3698 = vperm.slane %v3695, 0
        %v3699 = vmul.f32 %v3698, %v3273
        %v3700 = vmul.f32 %v3698, %v3274
        %v3701 = vsel %vm2426, %v3699, 0.0
        %3702 = vadd.xlane.f32.xlu0 %v3701
        %v3703 = vpop.xlane.xlu0 %3702
        %v3704 = vsel %vm2426, %v3700, 0.0
        %3705 = vadd.xlane.f32.xlu0 %v3704
        %v3706 = vpop.xlane.xlu0 %3705
        %v3707 = vperm.slane %v3697, 0
        %v3708 = vmul.f32 %v3707, %v3273
        %v3709 = vmul.f32 %v3707, %v3274
        %v3710 = vsel %vm2426, %v3708, 0.0
        %3711 = vadd.xlane.f32.xlu0 %v3710
        %v3712 = vpop.xlane.xlu0 %3711
        %v3713 = vsel %vm2426, %v3709, 0.0
        %3714 = vadd.xlane.f32.xlu0 %v3713
        %v3715 = vpop.xlane.xlu0 %3714
        %v3716 = vperm.slane %v3691, 0
        %v3717 = vmul.f32 %v3716, %v3275
        %v3718 = vmul.f32 %v3716, %v3276
        %v3719 = vmul.f32 %v3717, 1.442695
        %v3720 = vpow.pop %v3719
        %v3721 = vmul.f32 %v3718, 1.442695
        %v3722 = vpow.pop %v3721
        %v3723 = vmul.f32 %v3720, %v3672
        %v3724 = vmul.f32 %v3722, %v3673
        %v3725 = vmul.f32 %v3691, %v3693
        %v3726 = vperm.slane %v3725, 0
        %v3727 = vmul.f32 %v3703, %v3726
        %v3728 = vmul.f32 %v3706, %v3726
        %v3729 = vadd.f32 %v3723, %v3727
        %v3730 = vadd.f32 %v3724, %v3728
        %v3731 = vmul.f32 %v3729, %v3712
        %v3732 = vmul.f32 %v3730, %v3715
        %v3733 = vsel %vm754, %v3731, 0.0
        %v3734 = vsel %vm754, %v3732, 0.0
        %v3735 = vadd.f32 %v3733, %v3734
        %v3736 = vrot.slane %v3735, 4
        %v3737 = vadd.f32 %v3735, %v3736
        %v3738 = vrot.slane %v3737, 2
        %v3739 = vadd.f32 %v3737, %v3738
        %v3740 = vrot.slane %v3739, 1
        %v3741 = vadd.f32 %v3739, %v3740
        %s3742 = scalar_lea.vmem [#allocation8], %s3689
        %3743 = vst.msk [vmem:[%s3742] sm:$0x1] %vm3343, %v3741
      $region85: #{bidir_mamba_forward.2} parent=59 // loop_footer
        %s3284 = sadd.s32 1, %s3280
      $region86: #{bidir_mamba_forward.2} parent=59 // loop_footer_branch
        %3279 = sbr.rel target = $region82
      $region87: #{bidir_mamba_forward.2} parent=59 // loop_exit
        _
      %3744 = vst.msk [vmem:[#allocation9] sm:$0xff] %vm754, %v3285
      %3745 = vst.msk [vmem:[#allocation9 + $0x8] sm:$0xff] %vm754, %v3286
      %v3746 = vld [vmem:[#allocation5] sm:$0xff]
      %v3747 = vld [vmem:[#allocation5 + $0x8] sm:$0xff]
      %v3748 = vld [vmem:[#allocation5 + $0x10] sm:$0xff]
      %v3749 = vld [vmem:[#allocation5 + $0x18] sm:$0xff]
      %v3750 = vld [vmem:[#allocation5 + $0x20] sm:$0xff]
      %v3751 = vld [vmem:[#allocation5 + $0x28] sm:$0xff]
      %v3752 = vld [vmem:[#allocation5 + $0x30] sm:$0xff]
      %v3753 = vld [vmem:[#allocation5 + $0x38] sm:$0xff]
      %v3754 = vld [vmem:[#allocation5 + $0x40] sm:$0xff]
      %v3755 = vld [vmem:[#allocation5 + $0x48] sm:$0xff]
      %v3756 = vld [vmem:[#allocation5 + $0x50] sm:$0xff]
      %v3757 = vld [vmem:[#allocation5 + $0x58] sm:$0xff]
      %v3758 = vld [vmem:[#allocation5 + $0x60] sm:$0xff]
      %v3759 = vld [vmem:[#allocation5 + $0x68] sm:$0xff]
      %v3760 = vld [vmem:[#allocation5 + $0x70] sm:$0xff]
      %v3761 = vld [vmem:[#allocation5 + $0x78] sm:$0xff]
      %v3762 = vld [vmem:[#allocation5 + $0x80] sm:$0xff]
      %v3763 = vld [vmem:[#allocation5 + $0x88] sm:$0xff]
      %v3764 = vld [vmem:[#allocation5 + $0x90] sm:$0xff]
      %v3765 = vld [vmem:[#allocation5 + $0x98] sm:$0xff]
      %v3766 = vld [vmem:[#allocation5 + $0xa0] sm:$0xff]
      %v3767 = vld [vmem:[#allocation5 + $0xa8] sm:$0xff]
      %v3768 = vld [vmem:[#allocation5 + $0xb0] sm:$0xff]
      %v3769 = vld [vmem:[#allocation5 + $0xb8] sm:$0xff]
      %v3770 = vld [vmem:[#allocation5 + $0xc0] sm:$0xff]
      %v3771 = vld [vmem:[#allocation5 + $0xc8] sm:$0xff]
      %v3772 = vld [vmem:[#allocation5 + $0xd0] sm:$0xff]
      %v3773 = vld [vmem:[#allocation5 + $0xd8] sm:$0xff]
      %v3774 = vld [vmem:[#allocation5 + $0xe0] sm:$0xff]
      %v3775 = vld [vmem:[#allocation5 + $0xe8] sm:$0xff]
      %v3776 = vld [vmem:[#allocation5 + $0xf0] sm:$0xff]
      %v3777 = vld [vmem:[#allocation5 + $0xf8] sm:$0xff]
      %v3778 = vld [vmem:[#allocation8] sm:$0xff]
      %v3779 = vld [vmem:[#allocation8 + $0x8] sm:$0xff]
      %v3780 = vld [vmem:[#allocation8 + $0x10] sm:$0xff]
      %v3781 = vld [vmem:[#allocation8 + $0x18] sm:$0xff]
      %v3782 = vld [vmem:[#allocation8 + $0x20] sm:$0xff]
      %v3783 = vld [vmem:[#allocation8 + $0x28] sm:$0xff]
      %v3784 = vld [vmem:[#allocation8 + $0x30] sm:$0xff]
      %v3785 = vld [vmem:[#allocation8 + $0x38] sm:$0xff]
      %v3786 = vld [vmem:[#allocation8 + $0x40] sm:$0xff]
      %v3787 = vld [vmem:[#allocation8 + $0x48] sm:$0xff]
      %v3788 = vld [vmem:[#allocation8 + $0x50] sm:$0xff]
      %v3789 = vld [vmem:[#allocation8 + $0x58] sm:$0xff]
      %v3790 = vld [vmem:[#allocation8 + $0x60] sm:$0xff]
      %v3791 = vld [vmem:[#allocation8 + $0x68] sm:$0xff]
      %v3792 = vld [vmem:[#allocation8 + $0x70] sm:$0xff]
      %v3793 = vld [vmem:[#allocation8 + $0x78] sm:$0xff]
      %v3794 = vld [vmem:[#allocation8 + $0x80] sm:$0xff]
      %v3795 = vld [vmem:[#allocation8 + $0x88] sm:$0xff]
      %v3796 = vld [vmem:[#allocation8 + $0x90] sm:$0xff]
      %v3797 = vld [vmem:[#allocation8 + $0x98] sm:$0xff]
      %v3798 = vld [vmem:[#allocation8 + $0xa0] sm:$0xff]
      %v3799 = vld [vmem:[#allocation8 + $0xa8] sm:$0xff]
      %v3800 = vld [vmem:[#allocation8 + $0xb0] sm:$0xff]
      %v3801 = vld [vmem:[#allocation8 + $0xb8] sm:$0xff]
      %v3802 = vld [vmem:[#allocation8 + $0xc0] sm:$0xff]
      %v3803 = vld [vmem:[#allocation8 + $0xc8] sm:$0xff]
      %v3804 = vld [vmem:[#allocation8 + $0xd0] sm:$0xff]
      %v3805 = vld [vmem:[#allocation8 + $0xd8] sm:$0xff]
      %v3806 = vld [vmem:[#allocation8 + $0xe0] sm:$0xff]
      %v3807 = vld [vmem:[#allocation8 + $0xe8] sm:$0xff]
      %v3808 = vld [vmem:[#allocation8 + $0xf0] sm:$0xff]
      %v3809 = vld [vmem:[#allocation8 + $0xf8] sm:$0xff]
      %v3810 = vld [vmem:[#allocation4] sm:$0xff]
      %v3811 = vld [vmem:[#allocation4 + $0x8] sm:$0xff]
      %v3812 = vld [vmem:[#allocation4 + $0x10] sm:$0xff]
      %v3813 = vld [vmem:[#allocation4 + $0x18] sm:$0xff]
      %v3814 = vld [vmem:[#allocation4 + $0x20] sm:$0xff]
      %v3815 = vld [vmem:[#allocation4 + $0x28] sm:$0xff]
      %v3816 = vld [vmem:[#allocation4 + $0x30] sm:$0xff]
      %v3817 = vld [vmem:[#allocation4 + $0x38] sm:$0xff]
      %v3818 = vld [vmem:[#allocation4 + $0x40] sm:$0xff]
      %v3819 = vld [vmem:[#allocation4 + $0x48] sm:$0xff]
      %v3820 = vld [vmem:[#allocation4 + $0x50] sm:$0xff]
      %v3821 = vld [vmem:[#allocation4 + $0x58] sm:$0xff]
      %v3822 = vld [vmem:[#allocation4 + $0x60] sm:$0xff]
      %v3823 = vld [vmem:[#allocation4 + $0x68] sm:$0xff]
      %v3824 = vld [vmem:[#allocation4 + $0x70] sm:$0xff]
      %v3825 = vld [vmem:[#allocation4 + $0x78] sm:$0xff]
      %v3826 = vld [vmem:[#allocation4 + $0x80] sm:$0xff]
      %v3827 = vld [vmem:[#allocation4 + $0x88] sm:$0xff]
      %v3828 = vld [vmem:[#allocation4 + $0x90] sm:$0xff]
      %v3829 = vld [vmem:[#allocation4 + $0x98] sm:$0xff]
      %v3830 = vld [vmem:[#allocation4 + $0xa0] sm:$0xff]
      %v3831 = vld [vmem:[#allocation4 + $0xa8] sm:$0xff]
      %v3832 = vld [vmem:[#allocation4 + $0xb0] sm:$0xff]
      %v3833 = vld [vmem:[#allocation4 + $0xb8] sm:$0xff]
      %v3834 = vld [vmem:[#allocation4 + $0xc0] sm:$0xff]
      %v3835 = vld [vmem:[#allocation4 + $0xc8] sm:$0xff]
      %v3836 = vld [vmem:[#allocation4 + $0xd0] sm:$0xff]
      %v3837 = vld [vmem:[#allocation4 + $0xd8] sm:$0xff]
      %v3838 = vld [vmem:[#allocation4 + $0xe0] sm:$0xff]
      %v3839 = vld [vmem:[#allocation4 + $0xe8] sm:$0xff]
      %v3840 = vld [vmem:[#allocation4 + $0xf0] sm:$0xff]
      %v3841 = vld [vmem:[#allocation4 + $0xf8] sm:$0xff]
      %v3842 = vld [vmem:[%s8] sm:$0x1]
      %v3844 = vperm.slane %v3842, 0
      %v3846 = vmul.f32 %v3810, %v3844
      %v3847 = vmul.f32 %v3811, %v3844
      %v3848 = vmul.f32 %v3812, %v3844
      %v3849 = vmul.f32 %v3813, %v3844
      %v3850 = vmul.f32 %v3814, %v3844
      %v3851 = vmul.f32 %v3815, %v3844
      %v3852 = vmul.f32 %v3816, %v3844
      %v3853 = vmul.f32 %v3817, %v3844
      %v3854 = vmul.f32 %v3818, %v3844
      %v3855 = vmul.f32 %v3819, %v3844
      %v3856 = vmul.f32 %v3820, %v3844
      %v3857 = vmul.f32 %v3821, %v3844
      %v3858 = vmul.f32 %v3822, %v3844
      %v3859 = vmul.f32 %v3823, %v3844
      %v3860 = vmul.f32 %v3824, %v3844
      %v3861 = vmul.f32 %v3825, %v3844
      %v3862 = vmul.f32 %v3826, %v3844
      %v3863 = vmul.f32 %v3827, %v3844
      %v3864 = vmul.f32 %v3828, %v3844
      %v3865 = vmul.f32 %v3829, %v3844
      %v3866 = vmul.f32 %v3830, %v3844
      %v3867 = vmul.f32 %v3831, %v3844
      %v3868 = vmul.f32 %v3832, %v3844
      %v3869 = vmul.f32 %v3833, %v3844
      %v3870 = vmul.f32 %v3834, %v3844
      %v3871 = vmul.f32 %v3835, %v3844
      %v3872 = vmul.f32 %v3836, %v3844
      %v3873 = vmul.f32 %v3837, %v3844
      %v3874 = vmul.f32 %v3838, %v3844
      %v3875 = vmul.f32 %v3839, %v3844
      %v3876 = vmul.f32 %v3840, %v3844
      %v3877 = vmul.f32 %v3841, %v3844
      %v3878 = vadd.f32 %v3778, %v3846
      %v3879 = vadd.f32 %v3779, %v3847
      %v3880 = vadd.f32 %v3780, %v3848
      %v3881 = vadd.f32 %v3781, %v3849
      %v3882 = vadd.f32 %v3782, %v3850
      %v3883 = vadd.f32 %v3783, %v3851
      %v3884 = vadd.f32 %v3784, %v3852
      %v3885 = vadd.f32 %v3785, %v3853
      %v3886 = vadd.f32 %v3786, %v3854
      %v3887 = vadd.f32 %v3787, %v3855
      %v3888 = vadd.f32 %v3788, %v3856
      %v3889 = vadd.f32 %v3789, %v3857
      %v3890 = vadd.f32 %v3790, %v3858
      %v3891 = vadd.f32 %v3791, %v3859
      %v3892 = vadd.f32 %v3792, %v3860
      %v3893 = vadd.f32 %v3793, %v3861
      %v3894 = vadd.f32 %v3794, %v3862
      %v3895 = vadd.f32 %v3795, %v3863
      %v3896 = vadd.f32 %v3796, %v3864
      %v3897 = vadd.f32 %v3797, %v3865
      %v3898 = vadd.f32 %v3798, %v3866
      %v3899 = vadd.f32 %v3799, %v3867
      %v3900 = vadd.f32 %v3800, %v3868
      %v3901 = vadd.f32 %v3801, %v3869
      %v3902 = vadd.f32 %v3802, %v3870
      %v3903 = vadd.f32 %v3803, %v3871
      %v3904 = vadd.f32 %v3804, %v3872
      %v3905 = vadd.f32 %v3805, %v3873
      %v3906 = vadd.f32 %v3806, %v3874
      %v3907 = vadd.f32 %v3807, %v3875
      %v3908 = vadd.f32 %v3808, %v3876
      %v3909 = vadd.f32 %v3809, %v3877
      %v3910 = vxor.u32 %v3746, 2147483648
      %v3911 = vxor.u32 %v3747, 2147483648
      %v3912 = vxor.u32 %v3748, 2147483648
      %v3913 = vxor.u32 %v3749, 2147483648
      %v3914 = vxor.u32 %v3750, 2147483648
      %v3915 = vxor.u32 %v3751, 2147483648
      %v3916 = vxor.u32 %v3752, 2147483648
      %v3917 = vxor.u32 %v3753, 2147483648
      %v3918 = vxor.u32 %v3754, 2147483648
      %v3919 = vxor.u32 %v3755, 2147483648
      %v3920 = vxor.u32 %v3756, 2147483648
      %v3921 = vxor.u32 %v3757, 2147483648
      %v3922 = vxor.u32 %v3758, 2147483648
      %v3923 = vxor.u32 %v3759, 2147483648
      %v3924 = vxor.u32 %v3760, 2147483648
      %v3925 = vxor.u32 %v3761, 2147483648
      %v3926 = vxor.u32 %v3762, 2147483648
      %v3927 = vxor.u32 %v3763, 2147483648
      %v3928 = vxor.u32 %v3764, 2147483648
      %v3929 = vxor.u32 %v3765, 2147483648
      %v3930 = vxor.u32 %v3766, 2147483648
      %v3931 = vxor.u32 %v3767, 2147483648
      %v3932 = vxor.u32 %v3768, 2147483648
      %v3933 = vxor.u32 %v3769, 2147483648
      %v3934 = vxor.u32 %v3770, 2147483648
      %v3935 = vxor.u32 %v3771, 2147483648
      %v3936 = vxor.u32 %v3772, 2147483648
      %v3937 = vxor.u32 %v3773, 2147483648
      %v3938 = vxor.u32 %v3774, 2147483648
      %v3939 = vxor.u32 %v3775, 2147483648
      %v3940 = vxor.u32 %v3776, 2147483648
      %v3941 = vxor.u32 %v3777, 2147483648
      %v3942 = vmul.f32 %v3910, 1.442695
      %v3943 = vpow.pop %v3942
      %v3944 = vmul.f32 %v3911, 1.442695
      %v3945 = vpow.pop %v3944
      %v3946 = vmul.f32 %v3912, 1.442695
      %v3947 = vpow.pop %v3946
      %v3948 = vmul.f32 %v3913, 1.442695
      %v3949 = vpow.pop %v3948
      %v3950 = vmul.f32 %v3914, 1.442695
      %v3951 = vpow.pop %v3950
      %v3952 = vmul.f32 %v3915, 1.442695
      %v3953 = vpow.pop %v3952
      %v3954 = vmul.f32 %v3916, 1.442695
      %v3955 = vpow.pop %v3954
      %v3956 = vmul.f32 %v3917, 1.442695
      %v3957 = vpow.pop %v3956
      %v3958 = vmul.f32 %v3918, 1.442695
      %v3959 = vpow.pop %v3958
      %v3960 = vmul.f32 %v3919, 1.442695
      %v3961 = vpow.pop %v3960
      %v3962 = vmul.f32 %v3920, 1.442695
      %v3963 = vpow.pop %v3962
      %v3964 = vmul.f32 %v3921, 1.442695
      %v3965 = vpow.pop %v3964
      %v3966 = vmul.f32 %v3922, 1.442695
      %v3967 = vpow.pop %v3966
      %v3968 = vmul.f32 %v3923, 1.442695
      %v3969 = vpow.pop %v3968
      %v3970 = vmul.f32 %v3924, 1.442695
      %v3971 = vpow.pop %v3970
      %v3972 = vmul.f32 %v3925, 1.442695
      %v3973 = vpow.pop %v3972
      %v3974 = vmul.f32 %v3926, 1.442695
      %v3975 = vpow.pop %v3974
      %v3976 = vmul.f32 %v3927, 1.442695
      %v3977 = vpow.pop %v3976
      %v3978 = vmul.f32 %v3928, 1.442695
      %v3979 = vpow.pop %v3978
      %v3980 = vmul.f32 %v3929, 1.442695
      %v3981 = vpow.pop %v3980
      %v3982 = vmul.f32 %v3930, 1.442695
      %v3983 = vpow.pop %v3982
      %v3984 = vmul.f32 %v3931, 1.442695
      %v3985 = vpow.pop %v3984
      %v3986 = vmul.f32 %v3932, 1.442695
      %v3987 = vpow.pop %v3986
      %v3988 = vmul.f32 %v3933, 1.442695
      %v3989 = vpow.pop %v3988
      %v3990 = vmul.f32 %v3934, 1.442695
      %v3991 = vpow.pop %v3990
      %v3992 = vmul.f32 %v3935, 1.442695
      %v3993 = vpow.pop %v3992
      %v3994 = vmul.f32 %v3936, 1.442695
      %v3995 = vpow.pop %v3994
      %v3996 = vmul.f32 %v3937, 1.442695
      %v3997 = vpow.pop %v3996
      %v3998 = vmul.f32 %v3938, 1.442695
      %v3999 = vpow.pop %v3998
      %v4000 = vmul.f32 %v3939, 1.442695
      %v4001 = vpow.pop %v4000
      %v4002 = vmul.f32 %v3940, 1.442695
      %v4003 = vpow.pop %v4002
      %v4004 = vmul.f32 %v3941, 1.442695
      %v4005 = vpow.pop %v4004
      %v4006 = vadd.f32 %v3943, 1.0
      %v4007 = vadd.f32 %v3945, 1.0
      %v4008 = vadd.f32 %v3947, 1.0
      %v4009 = vadd.f32 %v3949, 1.0
      %v4010 = vadd.f32 %v3951, 1.0
      %v4011 = vadd.f32 %v3953, 1.0
      %v4012 = vadd.f32 %v3955, 1.0
      %v4013 = vadd.f32 %v3957, 1.0
      %v4014 = vadd.f32 %v3959, 1.0
      %v4015 = vadd.f32 %v3961, 1.0
      %v4016 = vadd.f32 %v3963, 1.0
      %v4017 = vadd.f32 %v3965, 1.0
      %v4018 = vadd.f32 %v3967, 1.0
      %v4019 = vadd.f32 %v3969, 1.0
      %v4020 = vadd.f32 %v3971, 1.0
      %v4021 = vadd.f32 %v3973, 1.0
      %v4022 = vadd.f32 %v3975, 1.0
      %v4023 = vadd.f32 %v3977, 1.0
      %v4024 = vadd.f32 %v3979, 1.0
      %v4025 = vadd.f32 %v3981, 1.0
      %v4026 = vadd.f32 %v3983, 1.0
      %v4027 = vadd.f32 %v3985, 1.0
      %v4028 = vadd.f32 %v3987, 1.0
      %v4029 = vadd.f32 %v3989, 1.0
      %v4030 = vadd.f32 %v3991, 1.0
      %v4031 = vadd.f32 %v3993, 1.0
      %v4032 = vadd.f32 %v3995, 1.0
      %v4033 = vadd.f32 %v3997, 1.0
      %v4034 = vadd.f32 %v3999, 1.0
      %v4035 = vadd.f32 %v4001, 1.0
      %v4036 = vadd.f32 %v4003, 1.0
      %v4037 = vadd.f32 %v4005, 1.0
      %v4038 = vrcp.pop %v4006
      %v4039 = vmul.f32 %v4006, %v4038
      %v4040 = vsub.f32 1.0, %v4039
      %v4041 = vmul.f32 %v4038, %v4040
      %v4042 = vadd.f32 %v4038, %v4041
      %vm4043 = vweird.f32 %v4006
      %vm4044 = vweird.f32 %v4038
      %vm4045 = vmor %vm4043, %vm4044
      %v4046 = vsel %vm4045, %v4038, %v4042
      %v4047 = vand.u32 2147483647, %v4006
      %vm4048 = vcmp.eq.f32.partialorder %v4047, 8.507059e+37
      %v4049 = vand.u32 %v4006, 2147483648
      %v4050 = vor.u32 1.1754944e-38, %v4049
      %v4051 = vsel %vm4048, %v4050, %v4046
      %v4052 = vmul.f32 1.0, %v4051
      %v4053 = vrcp.pop %v4007
      %v4054 = vmul.f32 %v4007, %v4053
      %v4055 = vsub.f32 1.0, %v4054
      %v4056 = vmul.f32 %v4053, %v4055
      %v4057 = vadd.f32 %v4053, %v4056
      %vm4058 = vweird.f32 %v4007
      %vm4059 = vweird.f32 %v4053
      %vm4060 = vmor %vm4058, %vm4059
      %v4061 = vsel %vm4060, %v4053, %v4057
      %v4062 = vand.u32 2147483647, %v4007
      %vm4063 = vcmp.eq.f32.partialorder %v4062, 8.507059e+37
      %v4064 = vand.u32 %v4007, 2147483648
      %v4065 = vor.u32 1.1754944e-38, %v4064
      %v4066 = vsel %vm4063, %v4065, %v4061
      %v4067 = vmul.f32 1.0, %v4066
      %v4068 = vrcp.pop %v4008
      %v4069 = vmul.f32 %v4008, %v4068
      %v4070 = vsub.f32 1.0, %v4069
      %v4071 = vmul.f32 %v4068, %v4070
      %v4072 = vadd.f32 %v4068, %v4071
      %vm4073 = vweird.f32 %v4008
      %vm4074 = vweird.f32 %v4068
      %vm4075 = vmor %vm4073, %vm4074
      %v4076 = vsel %vm4075, %v4068, %v4072
      %v4077 = vand.u32 2147483647, %v4008
      %vm4078 = vcmp.eq.f32.partialorder %v4077, 8.507059e+37
      %v4079 = vand.u32 %v4008, 2147483648
      %v4080 = vor.u32 1.1754944e-38, %v4079
      %v4081 = vsel %vm4078, %v4080, %v4076
      %v4082 = vmul.f32 1.0, %v4081
      %v4083 = vrcp.pop %v4009
      %v4084 = vmul.f32 %v4009, %v4083
      %v4085 = vsub.f32 1.0, %v4084
      %v4086 = vmul.f32 %v4083, %v4085
      %v4087 = vadd.f32 %v4083, %v4086
      %vm4088 = vweird.f32 %v4009
      %vm4089 = vweird.f32 %v4083
      %vm4090 = vmor %vm4088, %vm4089
      %v4091 = vsel %vm4090, %v4083, %v4087
      %v4092 = vand.u32 2147483647, %v4009
      %vm4093 = vcmp.eq.f32.partialorder %v4092, 8.507059e+37
      %v4094 = vand.u32 %v4009, 2147483648
      %v4095 = vor.u32 1.1754944e-38, %v4094
      %v4096 = vsel %vm4093, %v4095, %v4091
      %v4097 = vmul.f32 1.0, %v4096
      %v4098 = vrcp.pop %v4010
      %v4099 = vmul.f32 %v4010, %v4098
      %v4100 = vsub.f32 1.0, %v4099
      %v4101 = vmul.f32 %v4098, %v4100
      %v4102 = vadd.f32 %v4098, %v4101
      %vm4103 = vweird.f32 %v4010
      %vm4104 = vweird.f32 %v4098
      %vm4105 = vmor %vm4103, %vm4104
      %v4106 = vsel %vm4105, %v4098, %v4102
      %v4107 = vand.u32 2147483647, %v4010
      %vm4108 = vcmp.eq.f32.partialorder %v4107, 8.507059e+37
      %v4109 = vand.u32 %v4010, 2147483648
      %v4110 = vor.u32 1.1754944e-38, %v4109
      %v4111 = vsel %vm4108, %v4110, %v4106
      %v4112 = vmul.f32 1.0, %v4111
      %v4113 = vrcp.pop %v4011
      %v4114 = vmul.f32 %v4011, %v4113
      %v4115 = vsub.f32 1.0, %v4114
      %v4116 = vmul.f32 %v4113, %v4115
      %v4117 = vadd.f32 %v4113, %v4116
      %vm4118 = vweird.f32 %v4011
      %vm4119 = vweird.f32 %v4113
      %vm4120 = vmor %vm4118, %vm4119
      %v4121 = vsel %vm4120, %v4113, %v4117
      %v4122 = vand.u32 2147483647, %v4011
      %vm4123 = vcmp.eq.f32.partialorder %v4122, 8.507059e+37
      %v4124 = vand.u32 %v4011, 2147483648
      %v4125 = vor.u32 1.1754944e-38, %v4124
      %v4126 = vsel %vm4123, %v4125, %v4121
      %v4127 = vmul.f32 1.0, %v4126
      %v4128 = vrcp.pop %v4012
      %v4129 = vmul.f32 %v4012, %v4128
      %v4130 = vsub.f32 1.0, %v4129
      %v4131 = vmul.f32 %v4128, %v4130
      %v4132 = vadd.f32 %v4128, %v4131
      %vm4133 = vweird.f32 %v4012
      %vm4134 = vweird.f32 %v4128
      %vm4135 = vmor %vm4133, %vm4134
      %v4136 = vsel %vm4135, %v4128, %v4132
      %v4137 = vand.u32 2147483647, %v4012
      %vm4138 = vcmp.eq.f32.partialorder %v4137, 8.507059e+37
      %v4139 = vand.u32 %v4012, 2147483648
      %v4140 = vor.u32 1.1754944e-38, %v4139
      %v4141 = vsel %vm4138, %v4140, %v4136
      %v4142 = vmul.f32 1.0, %v4141
      %v4143 = vrcp.pop %v4013
      %v4144 = vmul.f32 %v4013, %v4143
      %v4145 = vsub.f32 1.0, %v4144
      %v4146 = vmul.f32 %v4143, %v4145
      %v4147 = vadd.f32 %v4143, %v4146
      %vm4148 = vweird.f32 %v4013
      %vm4149 = vweird.f32 %v4143
      %vm4150 = vmor %vm4148, %vm4149
      %v4151 = vsel %vm4150, %v4143, %v4147
      %v4152 = vand.u32 2147483647, %v4013
      %vm4153 = vcmp.eq.f32.partialorder %v4152, 8.507059e+37
      %v4154 = vand.u32 %v4013, 2147483648
      %v4155 = vor.u32 1.1754944e-38, %v4154
      %v4156 = vsel %vm4153, %v4155, %v4151
      %v4157 = vmul.f32 1.0, %v4156
      %v4158 = vrcp.pop %v4014
      %v4159 = vmul.f32 %v4014, %v4158
      %v4160 = vsub.f32 1.0, %v4159
      %v4161 = vmul.f32 %v4158, %v4160
      %v4162 = vadd.f32 %v4158, %v4161
      %vm4163 = vweird.f32 %v4014
      %vm4164 = vweird.f32 %v4158
      %vm4165 = vmor %vm4163, %vm4164
      %v4166 = vsel %vm4165, %v4158, %v4162
      %v4167 = vand.u32 2147483647, %v4014
      %vm4168 = vcmp.eq.f32.partialorder %v4167, 8.507059e+37
      %v4169 = vand.u32 %v4014, 2147483648
      %v4170 = vor.u32 1.1754944e-38, %v4169
      %v4171 = vsel %vm4168, %v4170, %v4166
      %v4172 = vmul.f32 1.0, %v4171
      %v4173 = vrcp.pop %v4015
      %v4174 = vmul.f32 %v4015, %v4173
      %v4175 = vsub.f32 1.0, %v4174
      %v4176 = vmul.f32 %v4173, %v4175
      %v4177 = vadd.f32 %v4173, %v4176
      %vm4178 = vweird.f32 %v4015
      %vm4179 = vweird.f32 %v4173
      %vm4180 = vmor %vm4178, %vm4179
      %v4181 = vsel %vm4180, %v4173, %v4177
      %v4182 = vand.u32 2147483647, %v4015
      %vm4183 = vcmp.eq.f32.partialorder %v4182, 8.507059e+37
      %v4184 = vand.u32 %v4015, 2147483648
      %v4185 = vor.u32 1.1754944e-38, %v4184
      %v4186 = vsel %vm4183, %v4185, %v4181
      %v4187 = vmul.f32 1.0, %v4186
      %v4188 = vrcp.pop %v4016
      %v4189 = vmul.f32 %v4016, %v4188
      %v4190 = vsub.f32 1.0, %v4189
      %v4191 = vmul.f32 %v4188, %v4190
      %v4192 = vadd.f32 %v4188, %v4191
      %vm4193 = vweird.f32 %v4016
      %vm4194 = vweird.f32 %v4188
      %vm4195 = vmor %vm4193, %vm4194
      %v4196 = vsel %vm4195, %v4188, %v4192
      %v4197 = vand.u32 2147483647, %v4016
      %vm4198 = vcmp.eq.f32.partialorder %v4197, 8.507059e+37
      %v4199 = vand.u32 %v4016, 2147483648
      %v4200 = vor.u32 1.1754944e-38, %v4199
      %v4201 = vsel %vm4198, %v4200, %v4196
      %v4202 = vmul.f32 1.0, %v4201
      %v4203 = vrcp.pop %v4017
      %v4204 = vmul.f32 %v4017, %v4203
      %v4205 = vsub.f32 1.0, %v4204
      %v4206 = vmul.f32 %v4203, %v4205
      %v4207 = vadd.f32 %v4203, %v4206
      %vm4208 = vweird.f32 %v4017
      %vm4209 = vweird.f32 %v4203
      %vm4210 = vmor %vm4208, %vm4209
      %v4211 = vsel %vm4210, %v4203, %v4207
      %v4212 = vand.u32 2147483647, %v4017
      %vm4213 = vcmp.eq.f32.partialorder %v4212, 8.507059e+37
      %v4214 = vand.u32 %v4017, 2147483648
      %v4215 = vor.u32 1.1754944e-38, %v4214
      %v4216 = vsel %vm4213, %v4215, %v4211
      %v4217 = vmul.f32 1.0, %v4216
      %v4218 = vrcp.pop %v4018
      %v4219 = vmul.f32 %v4018, %v4218
      %v4220 = vsub.f32 1.0, %v4219
      %v4221 = vmul.f32 %v4218, %v4220
      %v4222 = vadd.f32 %v4218, %v4221
      %vm4223 = vweird.f32 %v4018
      %vm4224 = vweird.f32 %v4218
      %vm4225 = vmor %vm4223, %vm4224
      %v4226 = vsel %vm4225, %v4218, %v4222
      %v4227 = vand.u32 2147483647, %v4018
      %vm4228 = vcmp.eq.f32.partialorder %v4227, 8.507059e+37
      %v4229 = vand.u32 %v4018, 2147483648
      %v4230 = vor.u32 1.1754944e-38, %v4229
      %v4231 = vsel %vm4228, %v4230, %v4226
      %v4232 = vmul.f32 1.0, %v4231
      %v4233 = vrcp.pop %v4019
      %v4234 = vmul.f32 %v4019, %v4233
      %v4235 = vsub.f32 1.0, %v4234
      %v4236 = vmul.f32 %v4233, %v4235
      %v4237 = vadd.f32 %v4233, %v4236
      %vm4238 = vweird.f32 %v4019
      %vm4239 = vweird.f32 %v4233
      %vm4240 = vmor %vm4238, %vm4239
      %v4241 = vsel %vm4240, %v4233, %v4237
      %v4242 = vand.u32 2147483647, %v4019
      %vm4243 = vcmp.eq.f32.partialorder %v4242, 8.507059e+37
      %v4244 = vand.u32 %v4019, 2147483648
      %v4245 = vor.u32 1.1754944e-38, %v4244
      %v4246 = vsel %vm4243, %v4245, %v4241
      %v4247 = vmul.f32 1.0, %v4246
      %v4248 = vrcp.pop %v4020
      %v4249 = vmul.f32 %v4020, %v4248
      %v4250 = vsub.f32 1.0, %v4249
      %v4251 = vmul.f32 %v4248, %v4250
      %v4252 = vadd.f32 %v4248, %v4251
      %vm4253 = vweird.f32 %v4020
      %vm4254 = vweird.f32 %v4248
      %vm4255 = vmor %vm4253, %vm4254
      %v4256 = vsel %vm4255, %v4248, %v4252
      %v4257 = vand.u32 2147483647, %v4020
      %vm4258 = vcmp.eq.f32.partialorder %v4257, 8.507059e+37
      %v4259 = vand.u32 %v4020, 2147483648
      %v4260 = vor.u32 1.1754944e-38, %v4259
      %v4261 = vsel %vm4258, %v4260, %v4256
      %v4262 = vmul.f32 1.0, %v4261
      %v4263 = vrcp.pop %v4021
      %v4264 = vmul.f32 %v4021, %v4263
      %v4265 = vsub.f32 1.0, %v4264
      %v4266 = vmul.f32 %v4263, %v4265
      %v4267 = vadd.f32 %v4263, %v4266
      %vm4268 = vweird.f32 %v4021
      %vm4269 = vweird.f32 %v4263
      %vm4270 = vmor %vm4268, %vm4269
      %v4271 = vsel %vm4270, %v4263, %v4267
      %v4272 = vand.u32 2147483647, %v4021
      %vm4273 = vcmp.eq.f32.partialorder %v4272, 8.507059e+37
      %v4274 = vand.u32 %v4021, 2147483648
      %v4275 = vor.u32 1.1754944e-38, %v4274
      %v4276 = vsel %vm4273, %v4275, %v4271
      %v4277 = vmul.f32 1.0, %v4276
      %v4278 = vrcp.pop %v4022
      %v4279 = vmul.f32 %v4022, %v4278
      %v4280 = vsub.f32 1.0, %v4279
      %v4281 = vmul.f32 %v4278, %v4280
      %v4282 = vadd.f32 %v4278, %v4281
      %vm4283 = vweird.f32 %v4022
      %vm4284 = vweird.f32 %v4278
      %vm4285 = vmor %vm4283, %vm4284
      %v4286 = vsel %vm4285, %v4278, %v4282
      %v4287 = vand.u32 2147483647, %v4022
      %vm4288 = vcmp.eq.f32.partialorder %v4287, 8.507059e+37
      %v4289 = vand.u32 %v4022, 2147483648
      %v4290 = vor.u32 1.1754944e-38, %v4289
      %v4291 = vsel %vm4288, %v4290, %v4286
      %v4292 = vmul.f32 1.0, %v4291
      %v4293 = vrcp.pop %v4023
      %v4294 = vmul.f32 %v4023, %v4293
      %v4295 = vsub.f32 1.0, %v4294
      %v4296 = vmul.f32 %v4293, %v4295
      %v4297 = vadd.f32 %v4293, %v4296
      %vm4298 = vweird.f32 %v4023
      %vm4299 = vweird.f32 %v4293
      %vm4300 = vmor %vm4298, %vm4299
      %v4301 = vsel %vm4300, %v4293, %v4297
      %v4302 = vand.u32 2147483647, %v4023
      %vm4303 = vcmp.eq.f32.partialorder %v4302, 8.507059e+37
      %v4304 = vand.u32 %v4023, 2147483648
      %v4305 = vor.u32 1.1754944e-38, %v4304
      %v4306 = vsel %vm4303, %v4305, %v4301
      %v4307 = vmul.f32 1.0, %v4306
      %v4308 = vrcp.pop %v4024
      %v4309 = vmul.f32 %v4024, %v4308
      %v4310 = vsub.f32 1.0, %v4309
      %v4311 = vmul.f32 %v4308, %v4310
      %v4312 = vadd.f32 %v4308, %v4311
      %vm4313 = vweird.f32 %v4024
      %vm4314 = vweird.f32 %v4308
      %vm4315 = vmor %vm4313, %vm4314
      %v4316 = vsel %vm4315, %v4308, %v4312
      %v4317 = vand.u32 2147483647, %v4024
      %vm4318 = vcmp.eq.f32.partialorder %v4317, 8.507059e+37
      %v4319 = vand.u32 %v4024, 2147483648
      %v4320 = vor.u32 1.1754944e-38, %v4319
      %v4321 = vsel %vm4318, %v4320, %v4316
      %v4322 = vmul.f32 1.0, %v4321
      %v4323 = vrcp.pop %v4025
      %v4324 = vmul.f32 %v4025, %v4323
      %v4325 = vsub.f32 1.0, %v4324
      %v4326 = vmul.f32 %v4323, %v4325
      %v4327 = vadd.f32 %v4323, %v4326
      %vm4328 = vweird.f32 %v4025
      %vm4329 = vweird.f32 %v4323
      %vm4330 = vmor %vm4328, %vm4329
      %v4331 = vsel %vm4330, %v4323, %v4327
      %v4332 = vand.u32 2147483647, %v4025
      %vm4333 = vcmp.eq.f32.partialorder %v4332, 8.507059e+37
      %v4334 = vand.u32 %v4025, 2147483648
      %v4335 = vor.u32 1.1754944e-38, %v4334
      %v4336 = vsel %vm4333, %v4335, %v4331
      %v4337 = vmul.f32 1.0, %v4336
      %v4338 = vrcp.pop %v4026
      %v4339 = vmul.f32 %v4026, %v4338
      %v4340 = vsub.f32 1.0, %v4339
      %v4341 = vmul.f32 %v4338, %v4340
      %v4342 = vadd.f32 %v4338, %v4341
      %vm4343 = vweird.f32 %v4026
      %vm4344 = vweird.f32 %v4338
      %vm4345 = vmor %vm4343, %vm4344
      %v4346 = vsel %vm4345, %v4338, %v4342
      %v4347 = vand.u32 2147483647, %v4026
      %vm4348 = vcmp.eq.f32.partialorder %v4347, 8.507059e+37
      %v4349 = vand.u32 %v4026, 2147483648
      %v4350 = vor.u32 1.1754944e-38, %v4349
      %v4351 = vsel %vm4348, %v4350, %v4346
      %v4352 = vmul.f32 1.0, %v4351
      %v4353 = vrcp.pop %v4027
      %v4354 = vmul.f32 %v4027, %v4353
      %v4355 = vsub.f32 1.0, %v4354
      %v4356 = vmul.f32 %v4353, %v4355
      %v4357 = vadd.f32 %v4353, %v4356
      %vm4358 = vweird.f32 %v4027
      %vm4359 = vweird.f32 %v4353
      %vm4360 = vmor %vm4358, %vm4359
      %v4361 = vsel %vm4360, %v4353, %v4357
      %v4362 = vand.u32 2147483647, %v4027
      %vm4363 = vcmp.eq.f32.partialorder %v4362, 8.507059e+37
      %v4364 = vand.u32 %v4027, 2147483648
      %v4365 = vor.u32 1.1754944e-38, %v4364
      %v4366 = vsel %vm4363, %v4365, %v4361
      %v4367 = vmul.f32 1.0, %v4366
      %v4368 = vrcp.pop %v4028
      %v4369 = vmul.f32 %v4028, %v4368
      %v4370 = vsub.f32 1.0, %v4369
      %v4371 = vmul.f32 %v4368, %v4370
      %v4372 = vadd.f32 %v4368, %v4371
      %vm4373 = vweird.f32 %v4028
      %vm4374 = vweird.f32 %v4368
      %vm4375 = vmor %vm4373, %vm4374
      %v4376 = vsel %vm4375, %v4368, %v4372
      %v4377 = vand.u32 2147483647, %v4028
      %vm4378 = vcmp.eq.f32.partialorder %v4377, 8.507059e+37
      %v4379 = vand.u32 %v4028, 2147483648
      %v4380 = vor.u32 1.1754944e-38, %v4379
      %v4381 = vsel %vm4378, %v4380, %v4376
      %v4382 = vmul.f32 1.0, %v4381
      %v4383 = vrcp.pop %v4029
      %v4384 = vmul.f32 %v4029, %v4383
      %v4385 = vsub.f32 1.0, %v4384
      %v4386 = vmul.f32 %v4383, %v4385
      %v4387 = vadd.f32 %v4383, %v4386
      %vm4388 = vweird.f32 %v4029
      %vm4389 = vweird.f32 %v4383
      %vm4390 = vmor %vm4388, %vm4389
      %v4391 = vsel %vm4390, %v4383, %v4387
      %v4392 = vand.u32 2147483647, %v4029
      %vm4393 = vcmp.eq.f32.partialorder %v4392, 8.507059e+37
      %v4394 = vand.u32 %v4029, 2147483648
      %v4395 = vor.u32 1.1754944e-38, %v4394
      %v4396 = vsel %vm4393, %v4395, %v4391
      %v4397 = vmul.f32 1.0, %v4396
      %v4398 = vrcp.pop %v4030
      %v4399 = vmul.f32 %v4030, %v4398
      %v4400 = vsub.f32 1.0, %v4399
      %v4401 = vmul.f32 %v4398, %v4400
      %v4402 = vadd.f32 %v4398, %v4401
      %vm4403 = vweird.f32 %v4030
      %vm4404 = vweird.f32 %v4398
      %vm4405 = vmor %vm4403, %vm4404
      %v4406 = vsel %vm4405, %v4398, %v4402
      %v4407 = vand.u32 2147483647, %v4030
      %vm4408 = vcmp.eq.f32.partialorder %v4407, 8.507059e+37
      %v4409 = vand.u32 %v4030, 2147483648
      %v4410 = vor.u32 1.1754944e-38, %v4409
      %v4411 = vsel %vm4408, %v4410, %v4406
      %v4412 = vmul.f32 1.0, %v4411
      %v4413 = vrcp.pop %v4031
      %v4414 = vmul.f32 %v4031, %v4413
      %v4415 = vsub.f32 1.0, %v4414
      %v4416 = vmul.f32 %v4413, %v4415
      %v4417 = vadd.f32 %v4413, %v4416
      %vm4418 = vweird.f32 %v4031
      %vm4419 = vweird.f32 %v4413
      %vm4420 = vmor %vm4418, %vm4419
      %v4421 = vsel %vm4420, %v4413, %v4417
      %v4422 = vand.u32 2147483647, %v4031
      %vm4423 = vcmp.eq.f32.partialorder %v4422, 8.507059e+37
      %v4424 = vand.u32 %v4031, 2147483648
      %v4425 = vor.u32 1.1754944e-38, %v4424
      %v4426 = vsel %vm4423, %v4425, %v4421
      %v4427 = vmul.f32 1.0, %v4426
      %v4428 = vrcp.pop %v4032
      %v4429 = vmul.f32 %v4032, %v4428
      %v4430 = vsub.f32 1.0, %v4429
      %v4431 = vmul.f32 %v4428, %v4430
      %v4432 = vadd.f32 %v4428, %v4431
      %vm4433 = vweird.f32 %v4032
      %vm4434 = vweird.f32 %v4428
      %vm4435 = vmor %vm4433, %vm4434
      %v4436 = vsel %vm4435, %v4428, %v4432
      %v4437 = vand.u32 2147483647, %v4032
      %vm4438 = vcmp.eq.f32.partialorder %v4437, 8.507059e+37
      %v4439 = vand.u32 %v4032, 2147483648
      %v4440 = vor.u32 1.1754944e-38, %v4439
      %v4441 = vsel %vm4438, %v4440, %v4436
      %v4442 = vmul.f32 1.0, %v4441
      %v4443 = vrcp.pop %v4033
      %v4444 = vmul.f32 %v4033, %v4443
      %v4445 = vsub.f32 1.0, %v4444
      %v4446 = vmul.f32 %v4443, %v4445
      %v4447 = vadd.f32 %v4443, %v4446
      %vm4448 = vweird.f32 %v4033
      %vm4449 = vweird.f32 %v4443
      %vm4450 = vmor %vm4448, %vm4449
      %v4451 = vsel %vm4450, %v4443, %v4447
      %v4452 = vand.u32 2147483647, %v4033
      %vm4453 = vcmp.eq.f32.partialorder %v4452, 8.507059e+37
      %v4454 = vand.u32 %v4033, 2147483648
      %v4455 = vor.u32 1.1754944e-38, %v4454
      %v4456 = vsel %vm4453, %v4455, %v4451
      %v4457 = vmul.f32 1.0, %v4456
      %v4458 = vrcp.pop %v4034
      %v4459 = vmul.f32 %v4034, %v4458
      %v4460 = vsub.f32 1.0, %v4459
      %v4461 = vmul.f32 %v4458, %v4460
      %v4462 = vadd.f32 %v4458, %v4461
      %vm4463 = vweird.f32 %v4034
      %vm4464 = vweird.f32 %v4458
      %vm4465 = vmor %vm4463, %vm4464
      %v4466 = vsel %vm4465, %v4458, %v4462
      %v4467 = vand.u32 2147483647, %v4034
      %vm4468 = vcmp.eq.f32.partialorder %v4467, 8.507059e+37
      %v4469 = vand.u32 %v4034, 2147483648
      %v4470 = vor.u32 1.1754944e-38, %v4469
      %v4471 = vsel %vm4468, %v4470, %v4466
      %v4472 = vmul.f32 1.0, %v4471
      %v4473 = vrcp.pop %v4035
      %v4474 = vmul.f32 %v4035, %v4473
      %v4475 = vsub.f32 1.0, %v4474
      %v4476 = vmul.f32 %v4473, %v4475
      %v4477 = vadd.f32 %v4473, %v4476
      %vm4478 = vweird.f32 %v4035
      %vm4479 = vweird.f32 %v4473
      %vm4480 = vmor %vm4478, %vm4479
      %v4481 = vsel %vm4480, %v4473, %v4477
      %v4482 = vand.u32 2147483647, %v4035
      %vm4483 = vcmp.eq.f32.partialorder %v4482, 8.507059e+37
      %v4484 = vand.u32 %v4035, 2147483648
      %v4485 = vor.u32 1.1754944e-38, %v4484
      %v4486 = vsel %vm4483, %v4485, %v4481
      %v4487 = vmul.f32 1.0, %v4486
      %v4488 = vrcp.pop %v4036
      %v4489 = vmul.f32 %v4036, %v4488
      %v4490 = vsub.f32 1.0, %v4489
      %v4491 = vmul.f32 %v4488, %v4490
      %v4492 = vadd.f32 %v4488, %v4491
      %vm4493 = vweird.f32 %v4036
      %vm4494 = vweird.f32 %v4488
      %vm4495 = vmor %vm4493, %vm4494
      %v4496 = vsel %vm4495, %v4488, %v4492
      %v4497 = vand.u32 2147483647, %v4036
      %vm4498 = vcmp.eq.f32.partialorder %v4497, 8.507059e+37
      %v4499 = vand.u32 %v4036, 2147483648
      %v4500 = vor.u32 1.1754944e-38, %v4499
      %v4501 = vsel %vm4498, %v4500, %v4496
      %v4502 = vmul.f32 1.0, %v4501
      %v4503 = vrcp.pop %v4037
      %v4504 = vmul.f32 %v4037, %v4503
      %v4505 = vsub.f32 1.0, %v4504
      %v4506 = vmul.f32 %v4503, %v4505
      %v4507 = vadd.f32 %v4503, %v4506
      %vm4508 = vweird.f32 %v4037
      %vm4509 = vweird.f32 %v4503
      %vm4510 = vmor %vm4508, %vm4509
      %v4511 = vsel %vm4510, %v4503, %v4507
      %v4512 = vand.u32 2147483647, %v4037
      %vm4513 = vcmp.eq.f32.partialorder %v4512, 8.507059e+37
      %v4514 = vand.u32 %v4037, 2147483648
      %v4515 = vor.u32 1.1754944e-38, %v4514
      %v4516 = vsel %vm4513, %v4515, %v4511
      %v4517 = vmul.f32 1.0, %v4516
      %v4518 = vmul.f32 %v3746, %v4052
      %v4519 = vmul.f32 %v3747, %v4067
      %v4520 = vmul.f32 %v3748, %v4082
      %v4521 = vmul.f32 %v3749, %v4097
      %v4522 = vmul.f32 %v3750, %v4112
      %v4523 = vmul.f32 %v3751, %v4127
      %v4524 = vmul.f32 %v3752, %v4142
      %v4525 = vmul.f32 %v3753, %v4157
      %v4526 = vmul.f32 %v3754, %v4172
      %v4527 = vmul.f32 %v3755, %v4187
      %v4528 = vmul.f32 %v3756, %v4202
      %v4529 = vmul.f32 %v3757, %v4217
      %v4530 = vmul.f32 %v3758, %v4232
      %v4531 = vmul.f32 %v3759, %v4247
      %v4532 = vmul.f32 %v3760, %v4262
      %v4533 = vmul.f32 %v3761, %v4277
      %v4534 = vmul.f32 %v3762, %v4292
      %v4535 = vmul.f32 %v3763, %v4307
      %v4536 = vmul.f32 %v3764, %v4322
      %v4537 = vmul.f32 %v3765, %v4337
      %v4538 = vmul.f32 %v3766, %v4352
      %v4539 = vmul.f32 %v3767, %v4367
      %v4540 = vmul.f32 %v3768, %v4382
      %v4541 = vmul.f32 %v3769, %v4397
      %v4542 = vmul.f32 %v3770, %v4412
      %v4543 = vmul.f32 %v3771, %v4427
      %v4544 = vmul.f32 %v3772, %v4442
      %v4545 = vmul.f32 %v3773, %v4457
      %v4546 = vmul.f32 %v3774, %v4472
      %v4547 = vmul.f32 %v3775, %v4487
      %v4548 = vmul.f32 %v3776, %v4502
      %v4549 = vmul.f32 %v3777, %v4517
      %v4550 = vmul.f32 %v3878, %v4518
      %v4551 = vmul.f32 %v3879, %v4519
      %v4552 = vmul.f32 %v3880, %v4520
      %v4553 = vmul.f32 %v3881, %v4521
      %v4554 = vmul.f32 %v3882, %v4522
      %v4555 = vmul.f32 %v3883, %v4523
      %v4556 = vmul.f32 %v3884, %v4524
      %v4557 = vmul.f32 %v3885, %v4525
      %v4558 = vmul.f32 %v3886, %v4526
      %v4559 = vmul.f32 %v3887, %v4527
      %v4560 = vmul.f32 %v3888, %v4528
      %v4561 = vmul.f32 %v3889, %v4529
      %v4562 = vmul.f32 %v3890, %v4530
      %v4563 = vmul.f32 %v3891, %v4531
      %v4564 = vmul.f32 %v3892, %v4532
      %v4565 = vmul.f32 %v3893, %v4533
      %v4566 = vmul.f32 %v3894, %v4534
      %v4567 = vmul.f32 %v3895, %v4535
      %v4568 = vmul.f32 %v3896, %v4536
      %v4569 = vmul.f32 %v3897, %v4537
      %v4570 = vmul.f32 %v3898, %v4538
      %v4571 = vmul.f32 %v3899, %v4539
      %v4572 = vmul.f32 %v3900, %v4540
      %v4573 = vmul.f32 %v3901, %v4541
      %v4574 = vmul.f32 %v3902, %v4542
      %v4575 = vmul.f32 %v3903, %v4543
      %v4576 = vmul.f32 %v3904, %v4544
      %v4577 = vmul.f32 %v3905, %v4545
      %v4578 = vmul.f32 %v3906, %v4546
      %v4579 = vmul.f32 %v3907, %v4547
      %v4580 = vmul.f32 %v3908, %v4548
      %v4581 = vmul.f32 %v3909, %v4549
      %v4582 = vpack.c.bf16 %v4551, %v4550
      %v4583 = vpack.c.bf16 %v4553, %v4552
      %v4584 = vpack.c.bf16 %v4555, %v4554
      %v4585 = vpack.c.bf16 %v4557, %v4556
      %v4586 = vpack.c.bf16 %v4559, %v4558
      %v4587 = vpack.c.bf16 %v4561, %v4560
      %v4588 = vpack.c.bf16 %v4563, %v4562
      %v4589 = vpack.c.bf16 %v4565, %v4564
      %v4590 = vpack.c.bf16 %v4567, %v4566
      %v4591 = vpack.c.bf16 %v4569, %v4568
      %v4592 = vpack.c.bf16 %v4571, %v4570
      %v4593 = vpack.c.bf16 %v4573, %v4572
      %v4594 = vpack.c.bf16 %v4575, %v4574
      %v4595 = vpack.c.bf16 %v4577, %v4576
      %v4596 = vpack.c.bf16 %v4579, %v4578
      %v4597 = vpack.c.bf16 %v4581, %v4580
      %v4598 = vld [vmem:[%s9] sm:$0xf]
      %v4600 = vsel %vm754, %v4582, 0
      %v4603 = vsel %vm754, %v4583, 0
      %v4606 = vsel %vm754, %v4584, 0
      %v4609 = vsel %vm754, %v4585, 0
      %v4612 = vsel %vm754, %v4586, 0
      %v4615 = vsel %vm754, %v4587, 0
      %v4618 = vsel %vm754, %v4588, 0
      %v4621 = vsel %vm754, %v4589, 0
      %v4624 = vsel %vm754, %v4590, 0
      %v4627 = vsel %vm754, %v4591, 0
      %v4630 = vsel %vm754, %v4592, 0
      %v4633 = vsel %vm754, %v4593, 0
      %v4636 = vsel %vm754, %v4594, 0
      %v4639 = vsel %vm754, %v4595, 0
      %v4642 = vsel %vm754, %v4596, 0
      %v4645 = vsel %vm754, %v4597, 0
      %v4648 = vsel %vm2205, %v4598, 0
      %4650 = vmatpush.bf16.msra.mxu0 0
      %4651 = vmatpush.bf16.msra.mxu0 0
      %4652 = vmatpush.bf16.msra.mxu0 0
      %4653 = vmatpush.bf16.msra.mxu0 0
      %4654 = vmatpush.bf16.msra.mxu0 0
      %4655 = vmatpush.bf16.msra.mxu0 0
      %4656 = vmatpush.bf16.msra.mxu0 0
      %4657 = vmatpush.bf16.msra.mxu0 %v4648
      %4658 = vmatmul.bf16.gmra.mxu0 %v4600
      %v4659 = vpop.f32.mrf.mxu0
      %v4660 = vadd.f32 0.0, %v4659
      %v4661 = vpop.f32.mrf.mxu0
      %v4662 = vadd.f32 0.0, %v4661
      %4663 = vmatmul.bf16.gmra.mxu0 %v4603
      %v4664 = vpop.f32.mrf.mxu0
      %v4665 = vadd.f32 0.0, %v4664
      %v4666 = vpop.f32.mrf.mxu0
      %v4667 = vadd.f32 0.0, %v4666
      %4668 = vmatmul.bf16.gmra.mxu0 %v4606
      %v4669 = vpop.f32.mrf.mxu0
      %v4670 = vadd.f32 0.0, %v4669
      %v4671 = vpop.f32.mrf.mxu0
      %v4672 = vadd.f32 0.0, %v4671
      %4673 = vmatmul.bf16.gmra.mxu0 %v4609
      %v4674 = vpop.f32.mrf.mxu0
      %v4675 = vadd.f32 0.0, %v4674
      %v4676 = vpop.f32.mrf.mxu0
      %v4677 = vadd.f32 0.0, %v4676
      %4678 = vmatmul.bf16.gmra.mxu0 %v4612
      %v4679 = vpop.f32.mrf.mxu0
      %v4680 = vadd.f32 0.0, %v4679
      %v4681 = vpop.f32.mrf.mxu0
      %v4682 = vadd.f32 0.0, %v4681
      %4683 = vmatmul.bf16.gmra.mxu0 %v4615
      %v4684 = vpop.f32.mrf.mxu0
      %v4685 = vadd.f32 0.0, %v4684
      %v4686 = vpop.f32.mrf.mxu0
      %v4687 = vadd.f32 0.0, %v4686
      %4688 = vmatmul.bf16.gmra.mxu0 %v4618
      %v4689 = vpop.f32.mrf.mxu0
      %v4690 = vadd.f32 0.0, %v4689
      %v4691 = vpop.f32.mrf.mxu0
      %v4692 = vadd.f32 0.0, %v4691
      %4693 = vmatmul.bf16.gmra.mxu0 %v4621
      %v4694 = vpop.f32.mrf.mxu0
      %v4695 = vadd.f32 0.0, %v4694
      %v4696 = vpop.f32.mrf.mxu0
      %v4697 = vadd.f32 0.0, %v4696
      %4698 = vmatmul.bf16.gmra.mxu0 %v4624
      %v4699 = vpop.f32.mrf.mxu0
      %v4700 = vadd.f32 0.0, %v4699
      %v4701 = vpop.f32.mrf.mxu0
      %v4702 = vadd.f32 0.0, %v4701
      %4703 = vmatmul.bf16.gmra.mxu0 %v4627
      %v4704 = vpop.f32.mrf.mxu0
      %v4705 = vadd.f32 0.0, %v4704
      %v4706 = vpop.f32.mrf.mxu0
      %v4707 = vadd.f32 0.0, %v4706
      %4708 = vmatmul.bf16.gmra.mxu0 %v4630
      %v4709 = vpop.f32.mrf.mxu0
      %v4710 = vadd.f32 0.0, %v4709
      %v4711 = vpop.f32.mrf.mxu0
      %v4712 = vadd.f32 0.0, %v4711
      %4713 = vmatmul.bf16.gmra.mxu0 %v4633
      %v4714 = vpop.f32.mrf.mxu0
      %v4715 = vadd.f32 0.0, %v4714
      %v4716 = vpop.f32.mrf.mxu0
      %v4717 = vadd.f32 0.0, %v4716
      %4718 = vmatmul.bf16.gmra.mxu0 %v4636
      %v4719 = vpop.f32.mrf.mxu0
      %v4720 = vadd.f32 0.0, %v4719
      %v4721 = vpop.f32.mrf.mxu0
      %v4722 = vadd.f32 0.0, %v4721
      %4723 = vmatmul.bf16.gmra.mxu0 %v4639
      %v4724 = vpop.f32.mrf.mxu0
      %v4725 = vadd.f32 0.0, %v4724
      %v4726 = vpop.f32.mrf.mxu0
      %v4727 = vadd.f32 0.0, %v4726
      %4728 = vmatmul.bf16.gmra.mxu0 %v4642
      %v4729 = vpop.f32.mrf.mxu0
      %v4730 = vadd.f32 0.0, %v4729
      %v4731 = vpop.f32.mrf.mxu0
      %v4732 = vadd.f32 0.0, %v4731
      %4733 = vmatmul.bf16.gmra.mxu0 %v4645
      %v4734 = vpop.f32.mrf.mxu0
      %v4735 = vadd.f32 0.0, %v4734
      %v4736 = vpop.f32.mrf.mxu0
      %v4737 = vadd.f32 0.0, %v4736
      %4738 = vdwg.mxu0
      %4739 = vst.msk [vmem:[%s427] sm:$0xff] %vm484, %v4660
      %4740 = vst.msk [vmem:[%s427 + $0x8] sm:$0xff] %vm484, %v4662
      %4741 = vst.msk [vmem:[%s427 + $0x10] sm:$0xff] %vm484, %v4665
      %4742 = vst.msk [vmem:[%s427 + $0x18] sm:$0xff] %vm484, %v4667
      %4743 = vst.msk [vmem:[%s427 + $0x20] sm:$0xff] %vm484, %v4670
      %4744 = vst.msk [vmem:[%s427 + $0x28] sm:$0xff] %vm484, %v4672
      %4745 = vst.msk [vmem:[%s427 + $0x30] sm:$0xff] %vm484, %v4675
      %4746 = vst.msk [vmem:[%s427 + $0x38] sm:$0xff] %vm484, %v4677
      %4747 = vst.msk [vmem:[%s427 + $0x40] sm:$0xff] %vm484, %v4680
      %4748 = vst.msk [vmem:[%s427 + $0x48] sm:$0xff] %vm484, %v4682
      %4749 = vst.msk [vmem:[%s427 + $0x50] sm:$0xff] %vm484, %v4685
      %4750 = vst.msk [vmem:[%s427 + $0x58] sm:$0xff] %vm484, %v4687
      %4751 = vst.msk [vmem:[%s427 + $0x60] sm:$0xff] %vm484, %v4690
      %4752 = vst.msk [vmem:[%s427 + $0x68] sm:$0xff] %vm484, %v4692
      %4753 = vst.msk [vmem:[%s427 + $0x70] sm:$0xff] %vm484, %v4695
      %4754 = vst.msk [vmem:[%s427 + $0x78] sm:$0xff] %vm484, %v4697
      %4755 = vst.msk [vmem:[%s427 + $0x80] sm:$0xff] %vm484, %v4700
      %4756 = vst.msk [vmem:[%s427 + $0x88] sm:$0xff] %vm484, %v4702
      %4757 = vst.msk [vmem:[%s427 + $0x90] sm:$0xff] %vm484, %v4705
      %4758 = vst.msk [vmem:[%s427 + $0x98] sm:$0xff] %vm484, %v4707
      %4759 = vst.msk [vmem:[%s427 + $0xa0] sm:$0xff] %vm484, %v4710
      %4760 = vst.msk [vmem:[%s427 + $0xa8] sm:$0xff] %vm484, %v4712
      %4761 = vst.msk [vmem:[%s427 + $0xb0] sm:$0xff] %vm484, %v4715
      %4762 = vst.msk [vmem:[%s427 + $0xb8] sm:$0xff] %vm484, %v4717
      %4763 = vst.msk [vmem:[%s427 + $0xc0] sm:$0xff] %vm484, %v4720
      %4764 = vst.msk [vmem:[%s427 + $0xc8] sm:$0xff] %vm484, %v4722
      %4765 = vst.msk [vmem:[%s427 + $0xd0] sm:$0xff] %vm484, %v4725
      %4766 = vst.msk [vmem:[%s427 + $0xd8] sm:$0xff] %vm484, %v4727
      %4767 = vst.msk [vmem:[%s427 + $0xe0] sm:$0xff] %vm484, %v4730
      %4768 = vst.msk [vmem:[%s427 + $0xe8] sm:$0xff] %vm484, %v4732
      %4769 = vst.msk [vmem:[%s427 + $0xf0] sm:$0xff] %vm484, %v4735
      %4770 = vst.msk [vmem:[%s427 + $0xf8] sm:$0xff] %vm484, %v4737
      %s4771 = smul.u32 %s25, 2
      %s4772 = ssub.s32 1, %s4771
      %s4773 = smul.u32 %s4772, %s26
      %s4774 = sadd.s32 %s25, %s4773
      %s4775 = smul.u32 32, %s4774
      %p4776 = scmp.lt.s32.totalorder %s25, 1
      %s4777 = scalar_select %p4776, %s25, 1
      %p4778 = scmp.lt.s32.totalorder %s4775, 63
      %s4779 = scalar_select %p4778, %s4775, 63
      %s4780 = smul.addr %s4777, 64
      %s4781 = sadd.s32 %s4779, %s4780
      %s4782 = smul.addr %s4781, 8
      %s4783 = scalar_lea.vmem %s10, %s4782
      // Predicated region
      $region88: #{bidir_mamba_forward.2} parent=59 // pred_check
        %p4784 = pneg %p284
      $region89: #{bidir_mamba_forward.2} parent=59 // pred_check_branch
        %4786 = sbr.rel (%p4784) target = $region91
      $region90: #{bidir_mamba_forward.2} parent=59 // pred_region
        %s4787 = smul.u32 %s25, 2
        %s4788 = ssub.s32 1, %s4787
        %s4789 = smul.u32 %s4788, %s26
        %s4790 = sadd.s32 %s25, %s4789
        %s4791 = smul.u32 32, %s4790
      $region91: #{bidir_mamba_forward.2} parent=59 // pred_fallthru
        _
    $region60: #{bidir_mamba_forward.2} parent=5 // pred_fallthru
      _
    %p4792 = scmp.le.s32.totalorder 2, %s16
    // Predicated region
    $region92: #{bidir_mamba_forward.2} parent=5 // pred_check
      %p4793 = pneg %p4792
    $region93: #{bidir_mamba_forward.2} parent=5 // pred_check_branch
      %4795 = sbr.rel (%p4793) target = $region95
    $region94: #{bidir_mamba_forward.2} parent=5 // pred_region
      %s4796 = ssub.s32 %s16, 2
      // Predicated region
      $region96: #{bidir_mamba_forward.2} parent=94 // pred_check
        %p4797 = pneg %p290
      $region97: #{bidir_mamba_forward.2} parent=94 // pred_check_branch
        %4799 = sbr.rel (%p4797) target = $region99
      $region98: #{bidir_mamba_forward.2} parent=94 // pred_region
        %s4800 = smul.u32 %s27, 2
        %s4801 = ssub.s32 1, %s4800
        %s4802 = smul.u32 %s4801, %s28
        %s4803 = sadd.s32 %s27, %s4802
        %s4804 = smul.u32 32, %s4803
        %p4805 = scmp.lt.s32.totalorder %s27, 1
        %s4806 = scalar_select %p4805, %s27, 1
        %p4807 = scmp.lt.s32.totalorder %s4804, 63
        %s4808 = scalar_select %p4807, %s4804, 63
        %s4809 = smul.addr %s4806, 64
        %s4810 = sadd.s32 %s4808, %s4809
        %s4811 = smul.addr %s4810, 8
        %s4812 = scalar_lea.vmem %s10, %s4811
      $region99: #{bidir_mamba_forward.2} parent=94 // pred_fallthru
        _
    $region95: #{bidir_mamba_forward.2} parent=5 // pred_fallthru
      _
  $region6: #{bidir_mamba_forward.2} parent=0 // loop_footer
    %s20 = sadd.s32 1, %s16
  $region7: #{bidir_mamba_forward.2} parent=0 // loop_footer_branch
    %15 = sbr.rel target = $region3
  $region8: #{bidir_mamba_forward.2} parent=0 // loop_exit
    _

</llo_original>
